<compile_context>
chip_gen: v6e
topology: v6e:2x2x1
jax: 0.10.0
libtpu: 0.0.40
codegen_flags: <defaults>
</compile_context>

<pallas_src>
import functools
import math

import jax
import jax.numpy as jnp
from jax import lax
from jax.experimental import pallas as pl
from jax.experimental.pallas import tpu as pltpu


# ----------------------------------------------------------------------------
# Fused ResBlock kernel
# ----------------------------------------------------------------------------
def _make_resblock_kernel(H, W, C, res_scale):
    Wp = W + 2                      # padded row stride (1-px halo each side)
    HWext = H * Wp                  # extended (halo-strided) spatial extent
    HW = H * W
    LANES = max(128, ((C + 127) // 128) * 128)  # lane pad for aligned transpose

    def kernel(xpad_ref, x_ref, w1_ref, b1_ref, w2_ref, b2_ref, mask_ref,
               o_ref, tpad_ref, ext_ref):
        f32, bf16 = jnp.float32, jnp.bfloat16
        BUFR = tpad_ref.shape[0]

        def conv3x3(slab, w_ref):
            # 9 flat sublane-offset tap views -> 9 MXU matmuls, value-level acc.
            acc = None
            for dy in range(3):
                for dx in range(3):
                    patch = slab(dy * Wp + dx)                 # (HWext, C) bf16
                    part = jnp.dot(patch, w_ref[dy * 3 + dx],
                                   preferred_element_type=f32)
                    acc = part if acc is None else acc + part
            return acc                                         # (HWext, C) f32

        # ---- conv1 -> bias -> ReLU (intermediate never leaves VMEM) ---------
        acc1 = conv3x3(lambda o: xpad_ref[0, o:o + HWext, :], w1_ref)
        t = jnp.maximum(acc1 + b1_ref[...], 0.0)
        # Zero the wrap-around columns; they land exactly on the halo columns
        # of the conv2 input buffer, so this masked value also builds the halo.
        t = jnp.where(mask_ref[...] > 0.0, t, 0.0)

        # Border-only zeroing of the conv2 halo buffer (~40 rows, not 320+).
        tpad_ref[0:Wp + 1, :] = jnp.zeros((Wp + 1, C), bf16)
        tpad_ref[(H + 1) * Wp:BUFR, :] = jnp.zeros((BUFR - (H + 1) * Wp, C), bf16)
        # One contiguous store: interior pixels + (masked-to-zero) halo columns.
        tpad_ref[Wp + 1:Wp + 1 + HWext, :] = t.astype(bf16)

        # ---- conv2 -> bias -> *res_scale -> + x ------------------------------
        acc2 = conv3x3(lambda o: tpad_ref[o:o + HWext, :], w2_ref)

        # Drop the 2 junk columns per image row (unaligned ref reads + concat).
        ext_ref[...] = acc2
        res = jnp.concatenate(
            [ext_ref[r * Wp:r * Wp + W, :] for r in range(H)], axis=0)  # (HW, C)
        res = res + b2_ref[...]
        if res_scale != 1.0:
            res = res * res_scale

        # (HW, C) -> (C, HW): pad lanes so the transpose is the fully
        # tile-aligned case, then slice the real channels back (sublane slice).
        if C < LANES:
            res = jnp.concatenate(
                [res, jnp.zeros((HW, LANES - C), f32)], axis=-1)
        res_t = jnp.transpose(res)[:C, :]                       # (C, HW) f32

        # Exact f32 residual add; (C, HW) store is lane-dense over HW.
        o_ref[0] = res_t + x_ref[0]

    return kernel


def resblock_forward(x_nchw, params, *, res_scale=1.0):
    """ResBlock.forward. x_nchw: (N, C, H, W) f32; params = (w1, b1, w2, b2)
    with w* in HWIO layout (3, 3, C, C) and b* of shape (C,)."""
    w1, b1, w2, b2 = params
    N, C, H, W = x_nchw.shape
    Wp = W + 2
    HW, HWext = H * W, H * Wp
    # Halo-strided buffer rows: +2 so the largest tap view stays in bounds,
    # rounded up to a sublane multiple.
    PADR = (((H + 2) * Wp + 2) + 7) // 8 * 8

    # conv-1 operand: NHWC + 1-px zero halo, flattened to (padded_rows, C) bf16.
    # (Single small fused XLA pass; the halo / flat layout means the kernel
    #  never builds or zero-fills an input scratch.)
    x_nhwc = jnp.transpose(x_nchw, (0, 2, 3, 1))
    xpad = jnp.pad(x_nhwc, ((0, 0), (1, 1), (1, 1), (0, 0)))
    xpad = xpad.reshape(N, (H + 2) * Wp, C)
    xpad = jnp.pad(xpad, ((0, 0), (0, PADR - (H + 2) * Wp), (0, 0)))
    xpad = xpad.astype(jnp.bfloat16)

    x_res = x_nchw.reshape(N, C, HW)          # free reshape; residual + output

    w1r = w1.astype(jnp.bfloat16).reshape(9, C, C)   # tap k = dy*3 + dx
    w2r = w2.astype(jnp.bfloat16).reshape(9, C, C)
    b1r = b1.reshape(1, C).astype(jnp.float32)
    b2r = b2.reshape(1, C).astype(jnp.float32)
    colmask = ((jnp.arange(HWext) % Wp) < W).astype(jnp.float32).reshape(HWext, 1)

    kernel = _make_resblock_kernel(H, W, C, float(res_scale))

    out = pl.pallas_call(
        kernel,
        out_shape=jax.ShapeDtypeStruct((N, C, HW), jnp.float32),
        grid=(N,),
        in_specs=[
            pl.BlockSpec((1, PADR, C), lambda n: (n, 0, 0)),   # halo'd x (bf16)
            pl.BlockSpec((1, C, HW), lambda n: (n, 0, 0)),     # residual x (f32)
            pl.BlockSpec((9, C, C), lambda n: (0, 0, 0)),      # conv1 weights
            pl.BlockSpec((1, C), lambda n: (0, 0)),            # conv1 bias
            pl.BlockSpec((9, C, C), lambda n: (0, 0, 0)),      # conv2 weights
            pl.BlockSpec((1, C), lambda n: (0, 0)),            # conv2 bias
            pl.BlockSpec((HWext, 1), lambda n: (0, 0)),        # valid-col mask
        ],
        out_specs=pl.BlockSpec((1, C, HW), lambda n: (n, 0, 0)),
        scratch_shapes=[
            pltpu.VMEM((PADR, C), jnp.bfloat16),   # conv2 input (halo'd t)
            pltpu.VMEM((HWext, C), jnp.float32),   # conv2 extended output
        ],
        compiler_params=pltpu.CompilerParams(
            dimension_semantics=("parallel",),     # batch axis; no x-step state
        ),
    )(xpad, x_res, w1r, b1r, w2r, b2r, colmask)

    return out.reshape(N, C, H, W)


# ----------------------------------------------------------------------------
# Parameter init (PyTorch Conv2d default: U(-1/sqrt(fan_in), 1/sqrt(fan_in)))
# and pure-JAX reference for validation.
# ----------------------------------------------------------------------------
def init_resblock_params(key, n_feats):
    def conv_init(k):
        kw, kb = jax.random.split(k)
        fan_in = n_feats * 9
        s = 1.0 / math.sqrt(fan_in)
        w = jax.random.uniform(kw, (3, 3, n_feats, n_feats), jnp.float32, -s, s)
        b = jax.random.uniform(kb, (n_feats,), jnp.float32, -s, s)
        return w, b

    k1, k2 = jax.random.split(key)
    w1, b1 = conv_init(k1)
    w2, b2 = conv_init(k2)
    return (w1, b1, w2, b2)


def resblock_reference(x_nchw, params, *, res_scale=1.0):
    w1, b1, w2, b2 = params
    x = jnp.transpose(x_nchw, (0, 2, 3, 1))
    dn = lax.conv_dimension_numbers(x.shape, w1.shape, ("NHWC", "HWIO", "NHWC"))

    def conv(v, w, b):
        y = lax.conv_general_dilated(v, w, (1, 1), "SAME", dimension_numbers=dn,
                                     precision=lax.Precision.HIGHEST)
        return y + b

    t = jnp.maximum(conv(x, w1, b1), 0.0)
    out = conv(t, w2, b2) * res_scale + x
    return jnp.transpose(out, (0, 3, 1, 2))


if __name__ == "__main__":
    # ResBlock(conv=3x3, n_feats=32, kernel_size=3, res_scale=1): x is NCHW.
    N, C, H, W = 2, 32, 16, 16
    res_scale = 1.0

    key = jax.random.PRNGKey(0)
    k_params, k_x = jax.random.split(key)
    params = init_resblock_params(k_params, C)
    x = jax.random.normal(k_x, (N, C, H, W), jnp.float32)

    fwd = jax.jit(functools.partial(resblock_forward, res_scale=res_scale))
    out = jax.block_until_ready(fwd(x, params))
    assert out.shape == (N, C, H, W), out.shape

    ref = jax.block_until_ready(resblock_reference(x, params, res_scale=res_scale))
    max_err = float(jnp.max(jnp.abs(out - ref)))
    assert max_err < 1e-1, f"max abs err vs reference: {max_err}"
    print("KERNEL_OK")
</pallas_src>

<mosaic_0001>
module attributes {stable_mosaic.version = 11 : i64} {
  func.func @kernel(%arg0: i32, %arg1: memref<1x328x32xbf16, #tpu.memory_space<vmem>>, %arg2: memref<1x32x256xf32, #tpu.memory_space<vmem>>, %arg3: memref<9x32x32xbf16, #tpu.memory_space<vmem>>, %arg4: memref<1x32xf32, #tpu.memory_space<vmem>>, %arg5: memref<9x32x32xbf16, #tpu.memory_space<vmem>>, %arg6: memref<1x32xf32, #tpu.memory_space<vmem>>, %arg7: memref<288x1xf32, #tpu.memory_space<vmem>>, %arg8: memref<1x32x256xf32, #tpu.memory_space<vmem>>, %arg9: memref<328x32xbf16, #tpu.memory_space<vmem>>, %arg10: memref<288x32xf32, #tpu.memory_space<vmem>>) attributes {dimension_semantics = [#tpu.dimension_semantics<parallel>], iteration_bounds = array<i64: 2>, scalar_prefetch = 0 : i64, scratch_operands = 2 : i64, tpu.core_type = #tpu.core_type<tc>, window_params = [{transform_indices = @transform_0, window_bounds = array<i64: 1, 328, 32>}, {transform_indices = @transform_1, window_bounds = array<i64: 1, 32, 256>}, {pipeline_mode = #tpu.pipeline_mode<synchronous>, transform_indices = @transform_2, window_bounds = array<i64: 9, 32, 32>}, {pipeline_mode = #tpu.pipeline_mode<synchronous>, transform_indices = @transform_3, window_bounds = array<i64: 1, 32>}, {pipeline_mode = #tpu.pipeline_mode<synchronous>, transform_indices = @transform_4, window_bounds = array<i64: 9, 32, 32>}, {pipeline_mode = #tpu.pipeline_mode<synchronous>, transform_indices = @transform_5, window_bounds = array<i64: 1, 32>}, {pipeline_mode = #tpu.pipeline_mode<synchronous>, transform_indices = @transform_6, window_bounds = array<i64: 288, 1>}, {transform_indices = @transform_7, window_bounds = array<i64: 1, 32, 256>}]} {
    %c0 = arith.constant 0 : index
    %c0_0 = arith.constant 0 : index
    %c0_1 = arith.constant 0 : index
    %0 = vector.load %arg1[%c0, %c0_0, %c0_1] : memref<1x328x32xbf16, #tpu.memory_space<vmem>>, vector<1x288x32xbf16>
    %1 = vector.shape_cast %0 : vector<1x288x32xbf16> to vector<288x32xbf16>
    %c0_2 = arith.constant 0 : index
    %c0_3 = arith.constant 0 : index
    %c0_4 = arith.constant 0 : index
    %2 = vector.load %arg3[%c0_2, %c0_3, %c0_4] : memref<9x32x32xbf16, #tpu.memory_space<vmem>>, vector<1x32x32xbf16>
    %3 = vector.shape_cast %2 : vector<1x32x32xbf16> to vector<32x32xbf16>
    %cst = arith.constant dense<0.000000e+00> : vector<288x32xf32>
    %4 = tpu.matmul %1, %3, %cst {dimension_numbers = #tpu.dot_dimension_numbers<[1], [0], [0], [1], [0, 0, 1, 1], [], []>} : vector<288x32xbf16>, vector<32x32xbf16>, vector<288x32xf32> -> vector<288x32xf32>
    %c0_5 = arith.constant 0 : index
    %c1 = arith.constant 1 : index
    %c0_6 = arith.constant 0 : index
    %5 = vector.load %arg1[%c0_5, %c1, %c0_6] : memref<1x328x32xbf16, #tpu.memory_space<vmem>>, vector<1x288x32xbf16>
    %6 = vector.shape_cast %5 : vector<1x288x32xbf16> to vector<288x32xbf16>
    %c1_7 = arith.constant 1 : index
    %c0_8 = arith.constant 0 : index
    %c0_9 = arith.constant 0 : index
    %7 = vector.load %arg3[%c1_7, %c0_8, %c0_9] : memref<9x32x32xbf16, #tpu.memory_space<vmem>>, vector<1x32x32xbf16>
    %8 = vector.shape_cast %7 : vector<1x32x32xbf16> to vector<32x32xbf16>
    %cst_10 = arith.constant dense<0.000000e+00> : vector<288x32xf32>
    %9 = tpu.matmul %6, %8, %cst_10 {dimension_numbers = #tpu.dot_dimension_numbers<[1], [0], [0], [1], [0, 0, 1, 1], [], []>} : vector<288x32xbf16>, vector<32x32xbf16>, vector<288x32xf32> -> vector<288x32xf32>
    %10 = arith.addf %4, %9 : vector<288x32xf32>
    %c0_11 = arith.constant 0 : index
    %c2 = arith.constant 2 : index
    %c0_12 = arith.constant 0 : index
    %11 = vector.load %arg1[%c0_11, %c2, %c0_12] : memref<1x328x32xbf16, #tpu.memory_space<vmem>>, vector<1x288x32xbf16>
    %12 = vector.shape_cast %11 : vector<1x288x32xbf16> to vector<288x32xbf16>
    %c2_13 = arith.constant 2 : index
    %c0_14 = arith.constant 0 : index
    %c0_15 = arith.constant 0 : index
    %13 = vector.load %arg3[%c2_13, %c0_14, %c0_15] : memref<9x32x32xbf16, #tpu.memory_space<vmem>>, vector<1x32x32xbf16>
    %14 = vector.shape_cast %13 : vector<1x32x32xbf16> to vector<32x32xbf16>
    %cst_16 = arith.constant dense<0.000000e+00> : vector<288x32xf32>
    %15 = tpu.matmul %12, %14, %cst_16 {dimension_numbers = #tpu.dot_dimension_numbers<[1], [0], [0], [1], [0, 0, 1, 1], [], []>} : vector<288x32xbf16>, vector<32x32xbf16>, vector<288x32xf32> -> vector<288x32xf32>
    %16 = arith.addf %10, %15 : vector<288x32xf32>
    %c0_17 = arith.constant 0 : index
    %c18 = arith.constant 18 : index
    %c0_18 = arith.constant 0 : index
    %17 = vector.load %arg1[%c0_17, %c18, %c0_18] : memref<1x328x32xbf16, #tpu.memory_space<vmem>>, vector<1x288x32xbf16>
    %18 = vector.shape_cast %17 : vector<1x288x32xbf16> to vector<288x32xbf16>
    %c3 = arith.constant 3 : index
    %c0_19 = arith.constant 0 : index
    %c0_20 = arith.constant 0 : index
    %19 = vector.load %arg3[%c3, %c0_19, %c0_20] : memref<9x32x32xbf16, #tpu.memory_space<vmem>>, vector<1x32x32xbf16>
    %20 = vector.shape_cast %19 : vector<1x32x32xbf16> to vector<32x32xbf16>
    %cst_21 = arith.constant dense<0.000000e+00> : vector<288x32xf32>
    %21 = tpu.matmul %18, %20, %cst_21 {dimension_numbers = #tpu.dot_dimension_numbers<[1], [0], [0], [1], [0, 0, 1, 1], [], []>} : vector<288x32xbf16>, vector<32x32xbf16>, vector<288x32xf32> -> vector<288x32xf32>
    %22 = arith.addf %16, %21 : vector<288x32xf32>
    %c0_22 = arith.constant 0 : index
    %c19 = arith.constant 19 : index
    %c0_23 = arith.constant 0 : index
    %23 = vector.load %arg1[%c0_22, %c19, %c0_23] : memref<1x328x32xbf16, #tpu.memory_space<vmem>>, vector<1x288x32xbf16>
    %24 = vector.shape_cast %23 : vector<1x288x32xbf16> to vector<288x32xbf16>
    %c4 = arith.constant 4 : index
    %c0_24 = arith.constant 0 : index
    %c0_25 = arith.constant 0 : index
    %25 = vector.load %arg3[%c4, %c0_24, %c0_25] : memref<9x32x32xbf16, #tpu.memory_space<vmem>>, vector<1x32x32xbf16>
    %26 = vector.shape_cast %25 : vector<1x32x32xbf16> to vector<32x32xbf16>
    %cst_26 = arith.constant dense<0.000000e+00> : vector<288x32xf32>
    %27 = tpu.matmul %24, %26, %cst_26 {dimension_numbers = #tpu.dot_dimension_numbers<[1], [0], [0], [1], [0, 0, 1, 1], [], []>} : vector<288x32xbf16>, vector<32x32xbf16>, vector<288x32xf32> -> vector<288x32xf32>
    %28 = arith.addf %22, %27 : vector<288x32xf32>
    %c0_27 = arith.constant 0 : index
    %c20 = arith.constant 20 : index
    %c0_28 = arith.constant 0 : index
    %29 = vector.load %arg1[%c0_27, %c20, %c0_28] : memref<1x328x32xbf16, #tpu.memory_space<vmem>>, vector<1x288x32xbf16>
    %30 = vector.shape_cast %29 : vector<1x288x32xbf16> to vector<288x32xbf16>
    %c5 = arith.constant 5 : index
    %c0_29 = arith.constant 0 : index
    %c0_30 = arith.constant 0 : index
    %31 = vector.load %arg3[%c5, %c0_29, %c0_30] : memref<9x32x32xbf16, #tpu.memory_space<vmem>>, vector<1x32x32xbf16>
    %32 = vector.shape_cast %31 : vector<1x32x32xbf16> to vector<32x32xbf16>
    %cst_31 = arith.constant dense<0.000000e+00> : vector<288x32xf32>
    %33 = tpu.matmul %30, %32, %cst_31 {dimension_numbers = #tpu.dot_dimension_numbers<[1], [0], [0], [1], [0, 0, 1, 1], [], []>} : vector<288x32xbf16>, vector<32x32xbf16>, vector<288x32xf32> -> vector<288x32xf32>
    %34 = arith.addf %28, %33 : vector<288x32xf32>
    %c0_32 = arith.constant 0 : index
    %c36 = arith.constant 36 : index
    %c0_33 = arith.constant 0 : index
    %35 = vector.load %arg1[%c0_32, %c36, %c0_33] : memref<1x328x32xbf16, #tpu.memory_space<vmem>>, vector<1x288x32xbf16>
    %36 = vector.shape_cast %35 : vector<1x288x32xbf16> to vector<288x32xbf16>
    %c6 = arith.constant 6 : index
    %c0_34 = arith.constant 0 : index
    %c0_35 = arith.constant 0 : index
    %37 = vector.load %arg3[%c6, %c0_34, %c0_35] : memref<9x32x32xbf16, #tpu.memory_space<vmem>>, vector<1x32x32xbf16>
    %38 = vector.shape_cast %37 : vector<1x32x32xbf16> to vector<32x32xbf16>
    %cst_36 = arith.constant dense<0.000000e+00> : vector<288x32xf32>
    %39 = tpu.matmul %36, %38, %cst_36 {dimension_numbers = #tpu.dot_dimension_numbers<[1], [0], [0], [1], [0, 0, 1, 1], [], []>} : vector<288x32xbf16>, vector<32x32xbf16>, vector<288x32xf32> -> vector<288x32xf32>
    %40 = arith.addf %34, %39 : vector<288x32xf32>
    %c0_37 = arith.constant 0 : index
    %c37 = arith.constant 37 : index
    %c0_38 = arith.constant 0 : index
    %41 = vector.load %arg1[%c0_37, %c37, %c0_38] : memref<1x328x32xbf16, #tpu.memory_space<vmem>>, vector<1x288x32xbf16>
    %42 = vector.shape_cast %41 : vector<1x288x32xbf16> to vector<288x32xbf16>
    %c7 = arith.constant 7 : index
    %c0_39 = arith.constant 0 : index
    %c0_40 = arith.constant 0 : index
    %43 = vector.load %arg3[%c7, %c0_39, %c0_40] : memref<9x32x32xbf16, #tpu.memory_space<vmem>>, vector<1x32x32xbf16>
    %44 = vector.shape_cast %43 : vector<1x32x32xbf16> to vector<32x32xbf16>
    %cst_41 = arith.constant dense<0.000000e+00> : vector<288x32xf32>
    %45 = tpu.matmul %42, %44, %cst_41 {dimension_numbers = #tpu.dot_dimension_numbers<[1], [0], [0], [1], [0, 0, 1, 1], [], []>} : vector<288x32xbf16>, vector<32x32xbf16>, vector<288x32xf32> -> vector<288x32xf32>
    %46 = arith.addf %40, %45 : vector<288x32xf32>
    %c0_42 = arith.constant 0 : index
    %c38 = arith.constant 38 : index
    %c0_43 = arith.constant 0 : index
    %47 = vector.load %arg1[%c0_42, %c38, %c0_43] : memref<1x328x32xbf16, #tpu.memory_space<vmem>>, vector<1x288x32xbf16>
    %48 = vector.shape_cast %47 : vector<1x288x32xbf16> to vector<288x32xbf16>
    %c8 = arith.constant 8 : index
    %c0_44 = arith.constant 0 : index
    %c0_45 = arith.constant 0 : index
    %49 = vector.load %arg3[%c8, %c0_44, %c0_45] : memref<9x32x32xbf16, #tpu.memory_space<vmem>>, vector<1x32x32xbf16>
    %50 = vector.shape_cast %49 : vector<1x32x32xbf16> to vector<32x32xbf16>
    %cst_46 = arith.constant dense<0.000000e+00> : vector<288x32xf32>
    %51 = tpu.matmul %48, %50, %cst_46 {dimension_numbers = #tpu.dot_dimension_numbers<[1], [0], [0], [1], [0, 0, 1, 1], [], []>} : vector<288x32xbf16>, vector<32x32xbf16>, vector<288x32xf32> -> vector<288x32xf32>
    %52 = arith.addf %46, %51 : vector<288x32xf32>
    %c0_47 = arith.constant 0 : index
    %c0_48 = arith.constant 0 : index
    %53 = vector.load %arg4[%c0_47, %c0_48] : memref<1x32xf32, #tpu.memory_space<vmem>>, vector<1x32xf32>
    %54 = vector.broadcast %53 : vector<1x32xf32> to vector<288x32xf32>
    %55 = arith.addf %52, %54 : vector<288x32xf32>
    %cst_49 = arith.constant 0.000000e+00 : f32
    %56 = vector.broadcast %cst_49 : f32 to vector<288x32xf32>
    %57 = arith.maximumf %55, %56 : vector<288x32xf32>
    %c0_50 = arith.constant 0 : index
    %c0_51 = arith.constant 0 : index
    %58 = vector.load %arg7[%c0_50, %c0_51] : memref<288x1xf32, #tpu.memory_space<vmem>>, vector<288x1xf32>
    %cst_52 = arith.constant 0.000000e+00 : f32
    %59 = vector.broadcast %cst_52 : f32 to vector<288x1xf32>
    %60 = arith.cmpf ogt, %58, %59 : vector<288x1xf32>
    %cst_53 = arith.constant 0.000000e+00 : f32
    %61 = vector.shape_cast %60 : vector<288x1xi1> to vector<288x1xi1>
    %62 = vector.broadcast %61 : vector<288x1xi1> to vector<288x32xi1>
    %63 = vector.broadcast %cst_53 : f32 to vector<288x32xf32>
    %64 = arith.select %62, %57, %63 : vector<288x32xi1>, vector<288x32xf32>
    %cst_54 = arith.constant 0.000000e+00 : bf16
    %65 = vector.broadcast %cst_54 : bf16 to vector<19x32xbf16>
    %c0_55 = arith.constant 0 : index
    %c0_56 = arith.constant 0 : index
    %66 = vector.load %arg9[%c0_55, %c0_56] : memref<328x32xbf16, #tpu.memory_space<vmem>>, vector<19x32xbf16>
    tpu.vector_store %arg9[%c0_55, %c0_56], %65 {strides = array<i32>} : memref<328x32xbf16, #tpu.memory_space<vmem>>, vector<19x32xbf16>,
    %cst_57 = arith.constant 0.000000e+00 : bf16
    %67 = vector.broadcast %cst_57 : bf16 to vector<22x32xbf16>
    %c306 = arith.constant 306 : index
    %c0_58 = arith.constant 0 : index
    %68 = vector.load %arg9[%c306, %c0_58] : memref<328x32xbf16, #tpu.memory_space<vmem>>, vector<22x32xbf16>
    tpu.vector_store %arg9[%c306, %c0_58], %67 {strides = array<i32>} : memref<328x32xbf16, #tpu.memory_space<vmem>>, vector<22x32xbf16>,
    %69 = arith.truncf %64 : vector<288x32xf32> to vector<288x32xbf16>
    %c19_59 = arith.constant 19 : index
    %c0_60 = arith.constant 0 : index
    %70 = vector.load %arg9[%c19_59, %c0_60] : memref<328x32xbf16, #tpu.memory_space<vmem>>, vector<288x32xbf16>
    tpu.vector_store %arg9[%c19_59, %c0_60], %69 {strides = array<i32>} : memref<328x32xbf16, #tpu.memory_space<vmem>>, vector<288x32xbf16>,
    %c0_61 = arith.constant 0 : index
    %c0_62 = arith.constant 0 : index
    %71 = vector.load %arg9[%c0_61, %c0_62] : memref<328x32xbf16, #tpu.memory_space<vmem>>, vector<288x32xbf16>
    %c0_63 = arith.constant 0 : index
    %c0_64 = arith.constant 0 : index
    %c0_65 = arith.constant 0 : index
    %72 = vector.load %arg5[%c0_63, %c0_64, %c0_65] : memref<9x32x32xbf16, #tpu.memory_space<vmem>>, vector<1x32x32xbf16>
    %73 = vector.shape_cast %72 : vector<1x32x32xbf16> to vector<32x32xbf16>
    %cst_66 = arith.constant dense<0.000000e+00> : vector<288x32xf32>
    %74 = tpu.matmul %71, %73, %cst_66 {dimension_numbers = #tpu.dot_dimension_numbers<[1], [0], [0], [1], [0, 0, 1, 1], [], []>} : vector<288x32xbf16>, vector<32x32xbf16>, vector<288x32xf32> -> vector<288x32xf32>
    %c1_67 = arith.constant 1 : index
    %c0_68 = arith.constant 0 : index
    %75 = vector.load %arg9[%c1_67, %c0_68] : memref<328x32xbf16, #tpu.memory_space<vmem>>, vector<288x32xbf16>
    %c1_69 = arith.constant 1 : index
    %c0_70 = arith.constant 0 : index
    %c0_71 = arith.constant 0 : index
    %76 = vector.load %arg5[%c1_69, %c0_70, %c0_71] : memref<9x32x32xbf16, #tpu.memory_space<vmem>>, vector<1x32x32xbf16>
    %77 = vector.shape_cast %76 : vector<1x32x32xbf16> to vector<32x32xbf16>
    %cst_72 = arith.constant dense<0.000000e+00> : vector<288x32xf32>
    %78 = tpu.matmul %75, %77, %cst_72 {dimension_numbers = #tpu.dot_dimension_numbers<[1], [0], [0], [1], [0, 0, 1, 1], [], []>} : vector<288x32xbf16>, vector<32x32xbf16>, vector<288x32xf32> -> vector<288x32xf32>
    %79 = arith.addf %74, %78 : vector<288x32xf32>
    %c2_73 = arith.constant 2 : index
    %c0_74 = arith.constant 0 : index
    %80 = vector.load %arg9[%c2_73, %c0_74] : memref<328x32xbf16, #tpu.memory_space<vmem>>, vector<288x32xbf16>
    %c2_75 = arith.constant 2 : index
    %c0_76 = arith.constant 0 : index
    %c0_77 = arith.constant 0 : index
    %81 = vector.load %arg5[%c2_75, %c0_76, %c0_77] : memref<9x32x32xbf16, #tpu.memory_space<vmem>>, vector<1x32x32xbf16>
    %82 = vector.shape_cast %81 : vector<1x32x32xbf16> to vector<32x32xbf16>
    %cst_78 = arith.constant dense<0.000000e+00> : vector<288x32xf32>
    %83 = tpu.matmul %80, %82, %cst_78 {dimension_numbers = #tpu.dot_dimension_numbers<[1], [0], [0], [1], [0, 0, 1, 1], [], []>} : vector<288x32xbf16>, vector<32x32xbf16>, vector<288x32xf32> -> vector<288x32xf32>
    %84 = arith.addf %79, %83 : vector<288x32xf32>
    %c18_79 = arith.constant 18 : index
    %c0_80 = arith.constant 0 : index
    %85 = vector.load %arg9[%c18_79, %c0_80] : memref<328x32xbf16, #tpu.memory_space<vmem>>, vector<288x32xbf16>
    %c3_81 = arith.constant 3 : index
    %c0_82 = arith.constant 0 : index
    %c0_83 = arith.constant 0 : index
    %86 = vector.load %arg5[%c3_81, %c0_82, %c0_83] : memref<9x32x32xbf16, #tpu.memory_space<vmem>>, vector<1x32x32xbf16>
    %87 = vector.shape_cast %86 : vector<1x32x32xbf16> to vector<32x32xbf16>
    %cst_84 = arith.constant dense<0.000000e+00> : vector<288x32xf32>
    %88 = tpu.matmul %85, %87, %cst_84 {dimension_numbers = #tpu.dot_dimension_numbers<[1], [0], [0], [1], [0, 0, 1, 1], [], []>} : vector<288x32xbf16>, vector<32x32xbf16>, vector<288x32xf32> -> vector<288x32xf32>
    %89 = arith.addf %84, %88 : vector<288x32xf32>
    %c19_85 = arith.constant 19 : index
    %c0_86 = arith.constant 0 : index
    %90 = vector.load %arg9[%c19_85, %c0_86] : memref<328x32xbf16, #tpu.memory_space<vmem>>, vector<288x32xbf16>
    %c4_87 = arith.constant 4 : index
    %c0_88 = arith.constant 0 : index
    %c0_89 = arith.constant 0 : index
    %91 = vector.load %arg5[%c4_87, %c0_88, %c0_89] : memref<9x32x32xbf16, #tpu.memory_space<vmem>>, vector<1x32x32xbf16>
    %92 = vector.shape_cast %91 : vector<1x32x32xbf16> to vector<32x32xbf16>
    %cst_90 = arith.constant dense<0.000000e+00> : vector<288x32xf32>
    %93 = tpu.matmul %90, %92, %cst_90 {dimension_numbers = #tpu.dot_dimension_numbers<[1], [0], [0], [1], [0, 0, 1, 1], [], []>} : vector<288x32xbf16>, vector<32x32xbf16>, vector<288x32xf32> -> vector<288x32xf32>
    %94 = arith.addf %89, %93 : vector<288x32xf32>
    %c20_91 = arith.constant 20 : index
    %c0_92 = arith.constant 0 : index
    %95 = vector.load %arg9[%c20_91, %c0_92] : memref<328x32xbf16, #tpu.memory_space<vmem>>, vector<288x32xbf16>
    %c5_93 = arith.constant 5 : index
    %c0_94 = arith.constant 0 : index
    %c0_95 = arith.constant 0 : index
    %96 = vector.load %arg5[%c5_93, %c0_94, %c0_95] : memref<9x32x32xbf16, #tpu.memory_space<vmem>>, vector<1x32x32xbf16>
    %97 = vector.shape_cast %96 : vector<1x32x32xbf16> to vector<32x32xbf16>
    %cst_96 = arith.constant dense<0.000000e+00> : vector<288x32xf32>
    %98 = tpu.matmul %95, %97, %cst_96 {dimension_numbers = #tpu.dot_dimension_numbers<[1], [0], [0], [1], [0, 0, 1, 1], [], []>} : vector<288x32xbf16>, vector<32x32xbf16>, vector<288x32xf32> -> vector<288x32xf32>
    %99 = arith.addf %94, %98 : vector<288x32xf32>
    %c36_97 = arith.constant 36 : index
    %c0_98 = arith.constant 0 : index
    %100 = vector.load %arg9[%c36_97, %c0_98] : memref<328x32xbf16, #tpu.memory_space<vmem>>, vector<288x32xbf16>
    %c6_99 = arith.constant 6 : index
    %c0_100 = arith.constant 0 : index
    %c0_101 = arith.constant 0 : index
    %101 = vector.load %arg5[%c6_99, %c0_100, %c0_101] : memref<9x32x32xbf16, #tpu.memory_space<vmem>>, vector<1x32x32xbf16>
    %102 = vector.shape_cast %101 : vector<1x32x32xbf16> to vector<32x32xbf16>
    %cst_102 = arith.constant dense<0.000000e+00> : vector<288x32xf32>
    %103 = tpu.matmul %100, %102, %cst_102 {dimension_numbers = #tpu.dot_dimension_numbers<[1], [0], [0], [1], [0, 0, 1, 1], [], []>} : vector<288x32xbf16>, vector<32x32xbf16>, vector<288x32xf32> -> vector<288x32xf32>
    %104 = arith.addf %99, %103 : vector<288x32xf32>
    %c37_103 = arith.constant 37 : index
    %c0_104 = arith.constant 0 : index
    %105 = vector.load %arg9[%c37_103, %c0_104] : memref<328x32xbf16, #tpu.memory_space<vmem>>, vector<288x32xbf16>
    %c7_105 = arith.constant 7 : index
    %c0_106 = arith.constant 0 : index
    %c0_107 = arith.constant 0 : index
    %106 = vector.load %arg5[%c7_105, %c0_106, %c0_107] : memref<9x32x32xbf16, #tpu.memory_space<vmem>>, vector<1x32x32xbf16>
    %107 = vector.shape_cast %106 : vector<1x32x32xbf16> to vector<32x32xbf16>
    %cst_108 = arith.constant dense<0.000000e+00> : vector<288x32xf32>
    %108 = tpu.matmul %105, %107, %cst_108 {dimension_numbers = #tpu.dot_dimension_numbers<[1], [0], [0], [1], [0, 0, 1, 1], [], []>} : vector<288x32xbf16>, vector<32x32xbf16>, vector<288x32xf32> -> vector<288x32xf32>
    %109 = arith.addf %104, %108 : vector<288x32xf32>
    %c38_109 = arith.constant 38 : index
    %c0_110 = arith.constant 0 : index
    %110 = vector.load %arg9[%c38_109, %c0_110] : memref<328x32xbf16, #tpu.memory_space<vmem>>, vector<288x32xbf16>
    %c8_111 = arith.constant 8 : index
    %c0_112 = arith.constant 0 : index
    %c0_113 = arith.constant 0 : index
    %111 = vector.load %arg5[%c8_111, %c0_112, %c0_113] : memref<9x32x32xbf16, #tpu.memory_space<vmem>>, vector<1x32x32xbf16>
    %112 = vector.shape_cast %111 : vector<1x32x32xbf16> to vector<32x32xbf16>
    %cst_114 = arith.constant dense<0.000000e+00> : vector<288x32xf32>
    %113 = tpu.matmul %110, %112, %cst_114 {dimension_numbers = #tpu.dot_dimension_numbers<[1], [0], [0], [1], [0, 0, 1, 1], [], []>} : vector<288x32xbf16>, vector<32x32xbf16>, vector<288x32xf32> -> vector<288x32xf32>
    %114 = arith.addf %109, %113 : vector<288x32xf32>
    %c0_115 = arith.constant 0 : index
    %c0_116 = arith.constant 0 : index
    %115 = vector.load %arg10[%c0_115, %c0_116] : memref<288x32xf32, #tpu.memory_space<vmem>>, vector<288x32xf32>
    tpu.vector_store %arg10[%c0_115, %c0_116], %114 {strides = array<i32>} : memref<288x32xf32, #tpu.memory_space<vmem>>, vector<288x32xf32>,
    %c0_117 = arith.constant 0 : index
    %c0_118 = arith.constant 0 : index
    %116 = vector.load %arg10[%c0_117, %c0_118] : memref<288x32xf32, #tpu.memory_space<vmem>>, vector<16x32xf32>
    %c18_119 = arith.constant 18 : index
    %c0_120 = arith.constant 0 : index
    %117 = vector.load %arg10[%c18_119, %c0_120] : memref<288x32xf32, #tpu.memory_space<vmem>>, vector<16x32xf32>
    %c36_121 = arith.constant 36 : index
    %c0_122 = arith.constant 0 : index
    %118 = vector.load %arg10[%c36_121, %c0_122] : memref<288x32xf32, #tpu.memory_space<vmem>>, vector<16x32xf32>
    %c54 = arith.constant 54 : index
    %c0_123 = arith.constant 0 : index
    %119 = vector.load %arg10[%c54, %c0_123] : memref<288x32xf32, #tpu.memory_space<vmem>>, vector<16x32xf32>
    %c72 = arith.constant 72 : index
    %c0_124 = arith.constant 0 : index
    %120 = vector.load %arg10[%c72, %c0_124] : memref<288x32xf32, #tpu.memory_space<vmem>>, vector<16x32xf32>
    %c90 = arith.constant 90 : index
    %c0_125 = arith.constant 0 : index
    %121 = vector.load %arg10[%c90, %c0_125] : memref<288x32xf32, #tpu.memory_space<vmem>>, vector<16x32xf32>
    %c108 = arith.constant 108 : index
    %c0_126 = arith.constant 0 : index
    %122 = vector.load %arg10[%c108, %c0_126] : memref<288x32xf32, #tpu.memory_space<vmem>>, vector<16x32xf32>
    %c126 = arith.constant 126 : index
    %c0_127 = arith.constant 0 : index
    %123 = vector.load %arg10[%c126, %c0_127] : memref<288x32xf32, #tpu.memory_space<vmem>>, vector<16x32xf32>
    %c144 = arith.constant 144 : index
    %c0_128 = arith.constant 0 : index
    %124 = vector.load %arg10[%c144, %c0_128] : memref<288x32xf32, #tpu.memory_space<vmem>>, vector<16x32xf32>
    %c162 = arith.constant 162 : index
    %c0_129 = arith.constant 0 : index
    %125 = vector.load %arg10[%c162, %c0_129] : memref<288x32xf32, #tpu.memory_space<vmem>>, vector<16x32xf32>
    %c180 = arith.constant 180 : index
    %c0_130 = arith.constant 0 : index
    %126 = vector.load %arg10[%c180, %c0_130] : memref<288x32xf32, #tpu.memory_space<vmem>>, vector<16x32xf32>
    %c198 = arith.constant 198 : index
    %c0_131 = arith.constant 0 : index
    %127 = vector.load %arg10[%c198, %c0_131] : memref<288x32xf32, #tpu.memory_space<vmem>>, vector<16x32xf32>
    %c216 = arith.constant 216 : index
    %c0_132 = arith.constant 0 : index
    %128 = vector.load %arg10[%c216, %c0_132] : memref<288x32xf32, #tpu.memory_space<vmem>>, vector<16x32xf32>
    %c234 = arith.constant 234 : index
    %c0_133 = arith.constant 0 : index
    %129 = vector.load %arg10[%c234, %c0_133] : memref<288x32xf32, #tpu.memory_space<vmem>>, vector<16x32xf32>
    %c252 = arith.constant 252 : index
    %c0_134 = arith.constant 0 : index
    %130 = vector.load %arg10[%c252, %c0_134] : memref<288x32xf32, #tpu.memory_space<vmem>>, vector<16x32xf32>
    %c270 = arith.constant 270 : index
    %c0_135 = arith.constant 0 : index
    %131 = vector.load %arg10[%c270, %c0_135] : memref<288x32xf32, #tpu.memory_space<vmem>>, vector<16x32xf32>
    %132 = tpu.concatenate %116, %117, %118, %119, %120, %121, %122, %123, %124, %125, %126, %127, %128, %129, %130, %131 in 0 : vector<16x32xf32>, vector<16x32xf32>, vector<16x32xf32>, vector<16x32xf32>, vector<16x32xf32>, vector<16x32xf32>, vector<16x32xf32>, vector<16x32xf32>, vector<16x32xf32>, vector<16x32xf32>, vector<16x32xf32>, vector<16x32xf32>, vector<16x32xf32>, vector<16x32xf32>, vector<16x32xf32>, vector<16x32xf32> -> vector<256x32xf32>
    %c0_136 = arith.constant 0 : index
    %c0_137 = arith.constant 0 : index
    %133 = vector.load %arg6[%c0_136, %c0_137] : memref<1x32xf32, #tpu.memory_space<vmem>>, vector<1x32xf32>
    %134 = vector.broadcast %133 : vector<1x32xf32> to vector<256x32xf32>
    %135 = arith.addf %132, %134 : vector<256x32xf32>
    %cst_138 = arith.constant 0.000000e+00 : f32
    %136 = vector.broadcast %cst_138 : f32 to vector<256x96xf32>
    %137 = tpu.concatenate %135, %136 in 1 : vector<256x32xf32>, vector<256x96xf32> -> vector<256x128xf32>
    %138 = tpu.transpose %137, [1, 0] : vector<256x128xf32> -> vector<128x256xf32>
    %139 = vector.extract_strided_slice %138 {offsets = [0, 0], sizes = [32, 256], strides = [1, 1]} : vector<128x256xf32> to vector<32x256xf32>
    %c0_139 = arith.constant 0 : index
    %c0_140 = arith.constant 0 : index
    %c0_141 = arith.constant 0 : index
    %140 = vector.load %arg2[%c0_139, %c0_140, %c0_141] : memref<1x32x256xf32, #tpu.memory_space<vmem>>, vector<1x32x256xf32>
    %141 = vector.shape_cast %140 : vector<1x32x256xf32> to vector<32x256xf32>
    %142 = arith.addf %139, %141 : vector<32x256xf32>
    %c0_142 = arith.constant 0 : index
    %c0_143 = arith.constant 0 : index
    %c0_144 = arith.constant 0 : index
    %143 = vector.load %arg8[%c0_142, %c0_143, %c0_144] : memref<1x32x256xf32, #tpu.memory_space<vmem>>, vector<1x32x256xf32>
    %144 = vector.shape_cast %143 : vector<1x32x256xf32> to vector<32x256xf32>
    %145 = vector.shape_cast %142 : vector<32x256xf32> to vector<1x32x256xf32>
    tpu.vector_store %arg8[%c0_142, %c0_143, %c0_144], %145 {strides = array<i32>} : memref<1x32x256xf32, #tpu.memory_space<vmem>>, vector<1x32x256xf32>,
    return
  }
  func.func @transform_0(%arg0: i32) -> (i32, i32, i32) {
    %c0_i32 = arith.constant 0 : i32
    %c0_i32_0 = arith.constant 0 : i32
    %c0_i32_1 = arith.constant 0 : i32
    return %arg0, %c0_i32, %c0_i32_0 : i32, i32, i32
  }
  func.func @transform_1(%arg0: i32) -> (i32, i32, i32) {
    %c0_i32 = arith.constant 0 : i32
    %c0_i32_0 = arith.constant 0 : i32
    %c0_i32_1 = arith.constant 0 : i32
    return %arg0, %c0_i32, %c0_i32_0 : i32, i32, i32
  }
  func.func @transform_2(%arg0: i32) -> (i32, i32, i32) {
    %c0_i32 = arith.constant 0 : i32
    %c0_i32_0 = arith.constant 0 : i32
    %c0_i32_1 = arith.constant 0 : i32
    %c0_i32_2 = arith.constant 0 : i32
    return %c0_i32, %c0_i32_0, %c0_i32_1 : i32, i32, i32
  }
  func.func @transform_3(%arg0: i32) -> (i32, i32) {
    %c0_i32 = arith.constant 0 : i32
    %c0_i32_0 = arith.constant 0 : i32
    %c0_i32_1 = arith.constant 0 : i32
    return %c0_i32, %c0_i32_0 : i32, i32
  }
  func.func @transform_4(%arg0: i32) -> (i32, i32, i32) {
    %c0_i32 = arith.constant 0 : i32
    %c0_i32_0 = arith.constant 0 : i32
    %c0_i32_1 = arith.constant 0 : i32
    %c0_i32_2 = arith.constant 0 : i32
    return %c0_i32, %c0_i32_0, %c0_i32_1 : i32, i32, i32
  }
  func.func @transform_5(%arg0: i32) -> (i32, i32) {
    %c0_i32 = arith.constant 0 : i32
    %c0_i32_0 = arith.constant 0 : i32
    %c0_i32_1 = arith.constant 0 : i32
    return %c0_i32, %c0_i32_0 : i32, i32
  }
  func.func @transform_6(%arg0: i32) -> (i32, i32) {
    %c0_i32 = arith.constant 0 : i32
    %c0_i32_0 = arith.constant 0 : i32
    %c0_i32_1 = arith.constant 0 : i32
    return %c0_i32, %c0_i32_0 : i32, i32
  }
  func.func @transform_7(%arg0: i32) -> (i32, i32, i32) {
    %c0_i32 = arith.constant 0 : i32
    %c0_i32_0 = arith.constant 0 : i32
    %c0_i32_1 = arith.constant 0 : i32
    return %arg0, %c0_i32, %c0_i32_0 : i32, i32, i32
  }
}

</mosaic_0001>

<llo_original>
// kernel: resblock_forward.1
$region0: #{resblock_forward.1}
  #allocation0 [shape = 'u32[]', space=smem, size = 0x4, offset = 0x4, fixed_abs, tag = 'smem constant byte address 0x4 - core index']
  #allocation1 [shape = 'u32[144,128]{1,0:T(1,128)}', space=vmem, size = 0x12000, scoped, tag = 'internal scratch']
  #allocation2 [shape = 'bf16[328,32]{1,0:T(8,128)(2,1)}', space=vmem, size = 0x14800, scoped, tag = 'scratch operand']
  #allocation3 [shape = 'f32[288,32]{1,0:T(8,128)}', space=vmem, size = 0x24000, scoped, tag = 'scratch operand']
  %s0 = inlined_call_operand.vmem [shape: bf16[2,328,32], index: 0, kind: input, shape index: {}]
  %s1 = inlined_call_operand.vmem [shape: f32[2,32,256], index: 1, kind: input, shape index: {}]
  %s2 = inlined_call_operand.vmem [shape: bf16[9,32,32], index: 2, kind: input, shape index: {}]
  %s3 = inlined_call_operand.vmem [shape: f32[1,32], index: 3, kind: input, shape index: {}]
  %s4 = inlined_call_operand.vmem [shape: bf16[9,32,32], index: 4, kind: input, shape index: {}]
  %s5 = inlined_call_operand.vmem [shape: f32[1,32], index: 5, kind: input, shape index: {}]
  %s6 = inlined_call_operand.vmem [shape: f32[288,1], index: 6, kind: input, shape index: {}]
  %s7 = inlined_call_operand.vmem [shape: f32[2,32,256], index: 7, kind: output, shape index: {}]
  %s8 = sld [smem:[#allocation0]]
  $region61: #{resblock_forward.1} parent=0
    _
  %s10 = ssub.s32 1, %s8
  %s11 = scalar_select 0, %s10, %s8
  loop: start=0, step=1, limit=4
  $region2: #{resblock_forward.1} parent=0 // loop_pre_header
    _
  $region3: #{resblock_forward.1} parent=0 // loop_header
    %s13 = sphi 0, %s17
    %p14 = scmp.ge.s32.totalorder %s13, 4
    %s23 = sphi 0, %s25
    %s26 = sphi 0, %s23
    %s27 = sphi 0, %s26
    %s43 = sphi 0, %s27
    %s49 = sphi 0, %s51
    %s52 = sphi 0, %s49
    %s53 = sphi 0, %s52
    %s69 = sphi 0, %s53
    %s73 = sphi 0, %s73
    %s75 = sphi 0, %s73
    %s76 = sphi 0, %s75
    %s90 = sphi 0, %s76
    %s94 = sphi 0, %s94
    %s96 = sphi 0, %s94
    %s97 = sphi 0, %s96
    %s111 = sphi 0, %s97
    %s115 = sphi 0, %s115
    %s117 = sphi 0, %s115
    %s118 = sphi 0, %s117
    %s132 = sphi 0, %s118
    %s136 = sphi 0, %s136
    %s138 = sphi 0, %s136
    %s139 = sphi 0, %s138
    %s153 = sphi 0, %s139
    %s157 = sphi 0, %s157
    %s159 = sphi 0, %s157
    %s160 = sphi 0, %s159
    %s174 = sphi 0, %s160
    %s180 = sphi 0, %s182
    %s183 = sphi 0, %s180
    %s184 = sphi 0, %s183
    %s200 = sphi 0, %s184
  $region4: #{resblock_forward.1} parent=0 // loop_header_branch
    %16 = sbr.rel (%p14) target = $region8
  $region5: #{resblock_forward.1} parent=0 // loop_body
    %s18 = ssub.s32 %s13, 1
    %s19 = ssub.s32 %s13, 2
    %s20 = sadd.s32 %s13, 1
    %s21 = ssub.s32 %s13, %s20
    %p22 = scmp.eq.s32.totalorder %s21, 0
    %s24 = sadd.s32 %s23, 1
    %s25 = scalar_select %p22, %s23, %s24
    %p28 = pneg %p22
    %p29 = scmp.eq.s32.totalorder %s13, 1
    %p30 = por %p28, %p29
    %p31 = scmp.ne.s32.totalorder %s23, %s26
    %p32 = scmp.eq.s32.totalorder %s13, 0
    %p33 = por %p31, %p32
    %p34 = scmp.ne.s32.totalorder %s23, %s26
    %p35 = scmp.eq.s32.totalorder %s18, 1
    %p36 = por %p34, %p35
    %p37 = scmp.ne.s32.totalorder %s26, %s27
    %p38 = scmp.eq.s32.totalorder %s18, 0
    %p39 = por %p37, %p38
    %p40 = scmp.ne.s32.totalorder %s26, %s27
    %p41 = scmp.eq.s32.totalorder %s19, 1
    %p42 = por %p40, %p41
    %p44 = scmp.ne.s32.totalorder %s27, %s43
    %p45 = scmp.eq.s32.totalorder %s19, 0
    %p46 = por %p44, %p45
    %s47 = ssub.s32 %s13, %s20
    %p48 = scmp.eq.s32.totalorder %s47, 0
    %s50 = sadd.s32 %s49, 1
    %s51 = scalar_select %p48, %s49, %s50
    %p54 = pneg %p48
    %p55 = scmp.eq.s32.totalorder %s13, 1
    %p56 = por %p54, %p55
    %p57 = scmp.ne.s32.totalorder %s49, %s52
    %p58 = scmp.eq.s32.totalorder %s13, 0
    %p59 = por %p57, %p58
    %p60 = scmp.ne.s32.totalorder %s49, %s52
    %p61 = scmp.eq.s32.totalorder %s18, 1
    %p62 = por %p60, %p61
    %p63 = scmp.ne.s32.totalorder %s52, %s53
    %p64 = scmp.eq.s32.totalorder %s18, 0
    %p65 = por %p63, %p64
    %p66 = scmp.ne.s32.totalorder %s52, %s53
    %p67 = scmp.eq.s32.totalorder %s19, 1
    %p68 = por %p66, %p67
    %p70 = scmp.ne.s32.totalorder %s53, %s69
    %p71 = scmp.eq.s32.totalorder %s19, 0
    %p72 = por %p70, %p71
    %s74 = sadd.s32 %s73, 1
    %p77 = scmp.eq.s32.totalorder %s13, 1
    %p78 = scmp.ne.s32.totalorder %s73, %s75
    %p79 = scmp.eq.s32.totalorder %s13, 0
    %p80 = por %p78, %p79
    %p81 = scmp.ne.s32.totalorder %s73, %s75
    %p82 = scmp.eq.s32.totalorder %s18, 1
    %p83 = por %p81, %p82
    %p84 = scmp.ne.s32.totalorder %s75, %s76
    %p85 = scmp.eq.s32.totalorder %s18, 0
    %p86 = por %p84, %p85
    %p87 = scmp.ne.s32.totalorder %s75, %s76
    %p88 = scmp.eq.s32.totalorder %s19, 1
    %p89 = por %p87, %p88
    %p91 = scmp.ne.s32.totalorder %s76, %s90
    %p92 = scmp.eq.s32.totalorder %s19, 0
    %p93 = por %p91, %p92
    %s95 = sadd.s32 %s94, 1
    %p98 = scmp.eq.s32.totalorder %s13, 1
    %p99 = scmp.ne.s32.totalorder %s94, %s96
    %p100 = scmp.eq.s32.totalorder %s13, 0
    %p101 = por %p99, %p100
    %p102 = scmp.ne.s32.totalorder %s94, %s96
    %p103 = scmp.eq.s32.totalorder %s18, 1
    %p104 = por %p102, %p103
    %p105 = scmp.ne.s32.totalorder %s96, %s97
    %p106 = scmp.eq.s32.totalorder %s18, 0
    %p107 = por %p105, %p106
    %p108 = scmp.ne.s32.totalorder %s96, %s97
    %p109 = scmp.eq.s32.totalorder %s19, 1
    %p110 = por %p108, %p109
    %p112 = scmp.ne.s32.totalorder %s97, %s111
    %p113 = scmp.eq.s32.totalorder %s19, 0
    %p114 = por %p112, %p113
    %s116 = sadd.s32 %s115, 1
    %p119 = scmp.eq.s32.totalorder %s13, 1
    %p120 = scmp.ne.s32.totalorder %s115, %s117
    %p121 = scmp.eq.s32.totalorder %s13, 0
    %p122 = por %p120, %p121
    %p123 = scmp.ne.s32.totalorder %s115, %s117
    %p124 = scmp.eq.s32.totalorder %s18, 1
    %p125 = por %p123, %p124
    %p126 = scmp.ne.s32.totalorder %s117, %s118
    %p127 = scmp.eq.s32.totalorder %s18, 0
    %p128 = por %p126, %p127
    %p129 = scmp.ne.s32.totalorder %s117, %s118
    %p130 = scmp.eq.s32.totalorder %s19, 1
    %p131 = por %p129, %p130
    %p133 = scmp.ne.s32.totalorder %s118, %s132
    %p134 = scmp.eq.s32.totalorder %s19, 0
    %p135 = por %p133, %p134
    %s137 = sadd.s32 %s136, 1
    %p140 = scmp.eq.s32.totalorder %s13, 1
    %p141 = scmp.ne.s32.totalorder %s136, %s138
    %p142 = scmp.eq.s32.totalorder %s13, 0
    %p143 = por %p141, %p142
    %p144 = scmp.ne.s32.totalorder %s136, %s138
    %p145 = scmp.eq.s32.totalorder %s18, 1
    %p146 = por %p144, %p145
    %p147 = scmp.ne.s32.totalorder %s138, %s139
    %p148 = scmp.eq.s32.totalorder %s18, 0
    %p149 = por %p147, %p148
    %p150 = scmp.ne.s32.totalorder %s138, %s139
    %p151 = scmp.eq.s32.totalorder %s19, 1
    %p152 = por %p150, %p151
    %p154 = scmp.ne.s32.totalorder %s139, %s153
    %p155 = scmp.eq.s32.totalorder %s19, 0
    %p156 = por %p154, %p155
    %s158 = sadd.s32 %s157, 1
    %p161 = scmp.eq.s32.totalorder %s13, 1
    %p162 = scmp.ne.s32.totalorder %s157, %s159
    %p163 = scmp.eq.s32.totalorder %s13, 0
    %p164 = por %p162, %p163
    %p165 = scmp.ne.s32.totalorder %s157, %s159
    %p166 = scmp.eq.s32.totalorder %s18, 1
    %p167 = por %p165, %p166
    %p168 = scmp.ne.s32.totalorder %s159, %s160
    %p169 = scmp.eq.s32.totalorder %s18, 0
    %p170 = por %p168, %p169
    %p171 = scmp.ne.s32.totalorder %s159, %s160
    %p172 = scmp.eq.s32.totalorder %s19, 1
    %p173 = por %p171, %p172
    %p175 = scmp.ne.s32.totalorder %s160, %s174
    %p176 = scmp.eq.s32.totalorder %s19, 0
    %p177 = por %p175, %p176
    %s178 = ssub.s32 %s13, %s20
    %p179 = scmp.eq.s32.totalorder %s178, 0
    %s181 = sadd.s32 %s180, 1
    %s182 = scalar_select %p179, %s180, %s181
    %p185 = pneg %p179
    %p186 = scmp.eq.s32.totalorder %s13, 1
    %p187 = por %p185, %p186
    %p188 = scmp.ne.s32.totalorder %s180, %s183
    %p189 = scmp.eq.s32.totalorder %s13, 0
    %p190 = por %p188, %p189
    %p191 = scmp.ne.s32.totalorder %s180, %s183
    %p192 = scmp.eq.s32.totalorder %s18, 1
    %p193 = por %p191, %p192
    %p194 = scmp.ne.s32.totalorder %s183, %s184
    %p195 = scmp.eq.s32.totalorder %s18, 0
    %p196 = por %p194, %p195
    %p197 = scmp.ne.s32.totalorder %s183, %s184
    %p198 = scmp.eq.s32.totalorder %s19, 1
    %p199 = por %p197, %p198
    %p201 = scmp.ne.s32.totalorder %s184, %s200
    %p202 = scmp.eq.s32.totalorder %s19, 0
    %p203 = por %p201, %p202
    %p204 = scmp.le.s32.totalorder 1, %s13
    %p205 = scmp.lt.s32.totalorder %s13, 3
    %p206 = pnand %p204, %p205
    %p207 = pneg %p206
    // Predicated region
    $region9: #{resblock_forward.1} parent=5 // pred_check
      _
    $region10: #{resblock_forward.1} parent=5 // pred_check_branch
      %209 = sbr.rel (%p206) target = $region12
    $region11: #{resblock_forward.1} parent=5 // pred_region
      %s210 = ssub.s32 %s13, 1
      // Predicated region
      $region13: #{resblock_forward.1} parent=11 // pred_check
        %p211 = pneg %p86
      $region14: #{resblock_forward.1} parent=11 // pred_check_branch
        %213 = sbr.rel (%p211) target = $region16
      $region15: #{resblock_forward.1} parent=11 // pred_region
        _
      $region16: #{resblock_forward.1} parent=11 // pred_fallthru
        _
      // Predicated region
      $region17: #{resblock_forward.1} parent=11 // pred_check
        %p214 = pneg %p107
      $region18: #{resblock_forward.1} parent=11 // pred_check_branch
        %216 = sbr.rel (%p214) target = $region20
      $region19: #{resblock_forward.1} parent=11 // pred_region
        _
      $region20: #{resblock_forward.1} parent=11 // pred_fallthru
        _
      // Predicated region
      $region21: #{resblock_forward.1} parent=11 // pred_check
        %p217 = pneg %p128
      $region22: #{resblock_forward.1} parent=11 // pred_check_branch
        %219 = sbr.rel (%p217) target = $region24
      $region23: #{resblock_forward.1} parent=11 // pred_region
        _
      $region24: #{resblock_forward.1} parent=11 // pred_fallthru
        _
      // Predicated region
      $region25: #{resblock_forward.1} parent=11 // pred_check
        %p220 = pneg %p149
      $region26: #{resblock_forward.1} parent=11 // pred_check_branch
        %222 = sbr.rel (%p220) target = $region28
      $region27: #{resblock_forward.1} parent=11 // pred_region
        _
      $region28: #{resblock_forward.1} parent=11 // pred_fallthru
        _
      // Predicated region
      $region29: #{resblock_forward.1} parent=11 // pred_check
        %p223 = pneg %p170
      $region30: #{resblock_forward.1} parent=11 // pred_check_branch
        %225 = sbr.rel (%p223) target = $region32
      $region31: #{resblock_forward.1} parent=11 // pred_region
        _
      $region32: #{resblock_forward.1} parent=11 // pred_fallthru
        _
    $region12: #{resblock_forward.1} parent=5 // pred_fallthru
      _
    %p226 = scmp.lt.s32.totalorder %s13, 2
    // Predicated region
    $region33: #{resblock_forward.1} parent=5 // pred_check
      %p227 = pneg %p226
    $region34: #{resblock_forward.1} parent=5 // pred_check_branch
      %229 = sbr.rel (%p227) target = $region36
    $region35: #{resblock_forward.1} parent=5 // pred_region
      // Predicated region
      $region37: #{resblock_forward.1} parent=35 // pred_check
        %p230 = pneg %p33
      $region38: #{resblock_forward.1} parent=35 // pred_check_branch
        %232 = sbr.rel (%p230) target = $region40
      $region39: #{resblock_forward.1} parent=35 // pred_region
        %p233 = scmp.lt.s32.totalorder %s13, 1
        %s234 = scalar_select %p233, %s13, 1
        %s235 = smul.addr %s234, 41
        %s236 = smul.addr %s235, 4
        %s237 = scalar_lea.vmem %s0, %s236
      $region40: #{resblock_forward.1} parent=35 // pred_fallthru
        _
      // Predicated region
      $region41: #{resblock_forward.1} parent=35 // pred_check
        %p238 = pneg %p59
      $region42: #{resblock_forward.1} parent=35 // pred_check_branch
        %240 = sbr.rel (%p238) target = $region44
      $region43: #{resblock_forward.1} parent=35 // pred_region
        %p241 = scmp.lt.s32.totalorder %s13, 1
        %s242 = scalar_select %p241, %s13, 1
        %s243 = smul.addr %s242, 8
        %s244 = smul.addr %s243, 8
        %s245 = scalar_lea.vmem %s1, %s244
      $region44: #{resblock_forward.1} parent=35 // pred_fallthru
        _
    $region36: #{resblock_forward.1} parent=5 // pred_fallthru
      _
    %p246 = scmp.le.s32.totalorder 1, %s13
    %p247 = scmp.lt.s32.totalorder %s13, 3
    %p248 = pnand %p246, %p247
    %p249 = pneg %p248
    // Predicated region
    $region45: #{resblock_forward.1} parent=5 // pred_check
      _
    $region46: #{resblock_forward.1} parent=5 // pred_check_branch
      %251 = sbr.rel (%p248) target = $region48
    $region47: #{resblock_forward.1} parent=5 // pred_region
      %s252 = ssub.s32 %s13, 1
      %p253 = scmp.lt.s32.totalorder %s18, 1
      %s254 = scalar_select %p253, %s18, 1
      %s255 = smul.addr %s254, 41
      %s256 = smul.addr %s255, 4
      %s257 = scalar_lea.vmem %s0, %s256
      %p258 = pneg %p39
      %p259 = pneg %p36
      %p260 = scmp.lt.s32.totalorder %s18, 1
      %s261 = scalar_select %p260, %s18, 1
      %s262 = smul.addr %s261, 8
      %s263 = smul.addr %s262, 8
      %s264 = scalar_lea.vmem %s1, %s263
      %p265 = pneg %p65
      %p266 = pneg %p62
      %p267 = pneg %p86
      %p268 = pneg %p83
      %p269 = pneg %p107
      %p270 = pneg %p104
      %p271 = pneg %p128
      %p272 = pneg %p125
      %p273 = pneg %p149
      %p274 = pneg %p146
      %p275 = pneg %p170
      %p276 = pneg %p167
      %p277 = pneg %p196
      %p278 = pneg %p193
      %p279 = scmp.lt.s32.totalorder %s18, 1
      %s280 = scalar_select %p279, %s18, 1
      %s281 = smul.addr %s280, 8
      %s282 = smul.addr %s281, 8
      %s283 = scalar_lea.vmem %s7, %s282
      %p284 = scmp.lt.s32.totalorder %s18, 1
      %s285 = scalar_select %p284, %s18, 1
      %s286 = smul.addr %s285, 41
      %s287 = smul.addr %s286, 4
      %s288 = scalar_lea.vmem %s0, %s287
      %p289 = scmp.lt.s32.totalorder %s18, 1
      %s290 = scalar_select %p289, %s18, 1
      %s291 = smul.addr %s290, 8
      %s292 = smul.addr %s291, 8
      %s293 = scalar_lea.vmem %s1, %s292
      %p294 = scmp.lt.s32.totalorder %s18, 1
      %s295 = scalar_select %p294, %s18, 1
      %s296 = smul.addr %s295, 8
      %s297 = smul.addr %s296, 8
      %s298 = scalar_lea.vmem %s7, %s297
      %v300 = vld [vmem:[%s288] sm:$0xf]
      %v301 = vld [vmem:[%s288 + $0x4] sm:$0xf]
      %v302 = vld [vmem:[%s288 + $0x8] sm:$0xf]
      %v303 = vld [vmem:[%s288 + $0xc] sm:$0xf]
      %v304 = vld [vmem:[%s288 + $0x10] sm:$0xf]
      %v305 = vld [vmem:[%s288 + $0x14] sm:$0xf]
      %v306 = vld [vmem:[%s288 + $0x18] sm:$0xf]
      %v307 = vld [vmem:[%s288 + $0x1c] sm:$0xf]
      %v308 = vld [vmem:[%s288 + $0x20] sm:$0xf]
      %v309 = vld [vmem:[%s288 + $0x24] sm:$0xf]
      %v310 = vld [vmem:[%s288 + $0x28] sm:$0xf]
      %v311 = vld [vmem:[%s288 + $0x2c] sm:$0xf]
      %v312 = vld [vmem:[%s288 + $0x30] sm:$0xf]
      %v313 = vld [vmem:[%s288 + $0x34] sm:$0xf]
      %v314 = vld [vmem:[%s288 + $0x38] sm:$0xf]
      %v315 = vld [vmem:[%s288 + $0x3c] sm:$0xf]
      %v316 = vld [vmem:[%s288 + $0x40] sm:$0xf]
      %v317 = vld [vmem:[%s288 + $0x44] sm:$0xf]
      %v318 = vld [vmem:[%s288 + $0x48] sm:$0xf]
      %v319 = vld [vmem:[%s288 + $0x4c] sm:$0xf]
      %v320 = vld [vmem:[%s288 + $0x50] sm:$0xf]
      %v321 = vld [vmem:[%s288 + $0x54] sm:$0xf]
      %v322 = vld [vmem:[%s288 + $0x58] sm:$0xf]
      %v323 = vld [vmem:[%s288 + $0x5c] sm:$0xf]
      %v324 = vld [vmem:[%s288 + $0x60] sm:$0xf]
      %v325 = vld [vmem:[%s288 + $0x64] sm:$0xf]
      %v326 = vld [vmem:[%s288 + $0x68] sm:$0xf]
      %v327 = vld [vmem:[%s288 + $0x6c] sm:$0xf]
      %v328 = vld [vmem:[%s288 + $0x70] sm:$0xf]
      %v329 = vld [vmem:[%s288 + $0x74] sm:$0xf]
      %v330 = vld [vmem:[%s288 + $0x78] sm:$0xf]
      %v331 = vld [vmem:[%s288 + $0x7c] sm:$0xf]
      %v332 = vld [vmem:[%s288 + $0x80] sm:$0xf]
      %v333 = vld [vmem:[%s288 + $0x84] sm:$0xf]
      %v334 = vld [vmem:[%s288 + $0x88] sm:$0xf]
      %v335 = vld [vmem:[%s288 + $0x8c] sm:$0xf]
      %v336 = vld [vmem:[%s2] sm:$0xf]
      %v337 = vld [vmem:[%s2 + $0x4] sm:$0xf]
      %v338 = vld [vmem:[%s2 + $0x8] sm:$0xf]
      %v339 = vld [vmem:[%s2 + $0xc] sm:$0xf]
      %v340 = vld [vmem:[%s288 + $0x90] sm:$0x1]
      %s341 = scalar_lea.vmem %s2, 16
      %v342 = vld [vmem:[%s341] sm:$0xf]
      %v343 = vld [vmem:[%s341 + $0x4] sm:$0xf]
      %v344 = vld [vmem:[%s341 + $0x8] sm:$0xf]
      %v345 = vld [vmem:[%s341 + $0xc] sm:$0xf]
      %v383 = vunpack.c.l.b16 %v300
      %v384 = vunpack.c.l.b16 %v301
      %v385 = vunpack.c.l.b16 %v302
      %v386 = vunpack.c.l.b16 %v303
      %v387 = vunpack.c.l.b16 %v304
      %v388 = vunpack.c.l.b16 %v305
      %v389 = vunpack.c.l.b16 %v306
      %v390 = vunpack.c.l.b16 %v307
      %v391 = vunpack.c.l.b16 %v308
      %v392 = vunpack.c.l.b16 %v309
      %v393 = vunpack.c.l.b16 %v310
      %v394 = vunpack.c.l.b16 %v311
      %v395 = vunpack.c.l.b16 %v312
      %v396 = vunpack.c.l.b16 %v313
      %v397 = vunpack.c.l.b16 %v314
      %v398 = vunpack.c.l.b16 %v315
      %v399 = vunpack.c.l.b16 %v316
      %v400 = vunpack.c.l.b16 %v317
      %v401 = vunpack.c.l.b16 %v318
      %v402 = vunpack.c.l.b16 %v319
      %v403 = vunpack.c.l.b16 %v320
      %v404 = vunpack.c.l.b16 %v321
      %v405 = vunpack.c.l.b16 %v322
      %v406 = vunpack.c.l.b16 %v323
      %v407 = vunpack.c.l.b16 %v324
      %v408 = vunpack.c.l.b16 %v325
      %v409 = vunpack.c.l.b16 %v326
      %v410 = vunpack.c.l.b16 %v327
      %v411 = vunpack.c.l.b16 %v328
      %v412 = vunpack.c.l.b16 %v329
      %v413 = vunpack.c.l.b16 %v330
      %v414 = vunpack.c.l.b16 %v331
      %v415 = vunpack.c.l.b16 %v332
      %v416 = vunpack.c.l.b16 %v333
      %v417 = vunpack.c.l.b16 %v334
      %v418 = vunpack.c.l.b16 %v335
      %v419 = vunpack.c.l.b16 %v340
      %v420 = vpack.c.b16 %v384, %v383
      %v421 = vpack.c.b16 %v386, %v385
      %v422 = vpack.c.b16 %v388, %v387
      %v423 = vpack.c.b16 %v390, %v389
      %v424 = vpack.c.b16 %v392, %v391
      %v425 = vpack.c.b16 %v394, %v393
      %v426 = vpack.c.b16 %v396, %v395
      %v427 = vpack.c.b16 %v398, %v397
      %v428 = vpack.c.b16 %v400, %v399
      %v429 = vpack.c.b16 %v402, %v401
      %v430 = vpack.c.b16 %v404, %v403
      %v431 = vpack.c.b16 %v406, %v405
      %v432 = vpack.c.b16 %v408, %v407
      %v433 = vpack.c.b16 %v410, %v409
      %v434 = vpack.c.b16 %v412, %v411
      %v435 = vpack.c.b16 %v414, %v413
      %v436 = vpack.c.b16 %v416, %v415
      %v437 = vpack.c.b16 %v418, %v417
      %v438 = vpack.c.b16 %v419, %v419
      %vm439 = vsmask.f32 7424
      %v441 = vshrl.u32 %v420, 16
      %v443 = vshll.u32 %v420, 16
      %v445 = vrot.slane %v443, 1
      %v446 = vor.u32 %v441, %v445
      %v448 = vshll.u32 %v421, 16
      %v450 = vrot.slane %v448, 1
      %v451 = vsel %vm439, %v446, %v450
      %v452 = vshrl.u32 %v421, 16
      %v454 = vor.u32 %v452, %v450
      %v456 = vshll.u32 %v422, 16
      %v458 = vrot.slane %v456, 1
      %v459 = vsel %vm439, %v454, %v458
      %v460 = vshrl.u32 %v422, 16
      %v462 = vor.u32 %v460, %v458
      %v464 = vshll.u32 %v423, 16
      %v466 = vrot.slane %v464, 1
      %v467 = vsel %vm439, %v462, %v466
      %v468 = vshrl.u32 %v423, 16
      %v470 = vor.u32 %v468, %v466
      %v472 = vshll.u32 %v424, 16
      %v474 = vrot.slane %v472, 1
      %v475 = vsel %vm439, %v470, %v474
      %v476 = vshrl.u32 %v424, 16
      %v478 = vor.u32 %v476, %v474
      %v480 = vshll.u32 %v425, 16
      %v482 = vrot.slane %v480, 1
      %v483 = vsel %vm439, %v478, %v482
      %v484 = vshrl.u32 %v425, 16
      %v486 = vor.u32 %v484, %v482
      %v488 = vshll.u32 %v426, 16
      %v490 = vrot.slane %v488, 1
      %v491 = vsel %vm439, %v486, %v490
      %v492 = vshrl.u32 %v426, 16
      %v494 = vor.u32 %v492, %v490
      %v496 = vshll.u32 %v427, 16
      %v498 = vrot.slane %v496, 1
      %v499 = vsel %vm439, %v494, %v498
      %v500 = vshrl.u32 %v427, 16
      %v502 = vor.u32 %v500, %v498
      %v504 = vshll.u32 %v428, 16
      %v506 = vrot.slane %v504, 1
      %v507 = vsel %vm439, %v502, %v506
      %v508 = vshrl.u32 %v428, 16
      %v510 = vor.u32 %v508, %v506
      %v512 = vshll.u32 %v429, 16
      %v514 = vrot.slane %v512, 1
      %v515 = vsel %vm439, %v510, %v514
      %v516 = vshrl.u32 %v429, 16
      %v518 = vor.u32 %v516, %v514
      %v520 = vshll.u32 %v430, 16
      %v522 = vrot.slane %v520, 1
      %v523 = vsel %vm439, %v518, %v522
      %v524 = vshrl.u32 %v430, 16
      %v526 = vor.u32 %v524, %v522
      %v528 = vshll.u32 %v431, 16
      %v530 = vrot.slane %v528, 1
      %v531 = vsel %vm439, %v526, %v530
      %v532 = vshrl.u32 %v431, 16
      %v534 = vor.u32 %v532, %v530
      %v536 = vshll.u32 %v432, 16
      %v538 = vrot.slane %v536, 1
      %v539 = vsel %vm439, %v534, %v538
      %v540 = vshrl.u32 %v432, 16
      %v542 = vor.u32 %v540, %v538
      %v544 = vshll.u32 %v433, 16
      %v546 = vrot.slane %v544, 1
      %v547 = vsel %vm439, %v542, %v546
      %v548 = vshrl.u32 %v433, 16
      %v550 = vor.u32 %v548, %v546
      %v552 = vshll.u32 %v434, 16
      %v554 = vrot.slane %v552, 1
      %v555 = vsel %vm439, %v550, %v554
      %v556 = vshrl.u32 %v434, 16
      %v558 = vor.u32 %v556, %v554
      %v560 = vshll.u32 %v435, 16
      %v562 = vrot.slane %v560, 1
      %v563 = vsel %vm439, %v558, %v562
      %v564 = vshrl.u32 %v435, 16
      %v566 = vor.u32 %v564, %v562
      %v568 = vshll.u32 %v436, 16
      %v570 = vrot.slane %v568, 1
      %v571 = vsel %vm439, %v566, %v570
      %v572 = vshrl.u32 %v436, 16
      %v574 = vor.u32 %v572, %v570
      %v576 = vshll.u32 %v437, 16
      %v578 = vrot.slane %v576, 1
      %v579 = vsel %vm439, %v574, %v578
      %v580 = vshrl.u32 %v437, 16
      %v582 = vor.u32 %v580, %v578
      %v584 = vshll.u32 %v438, 16
      %v586 = vrot.slane %v584, 1
      %v587 = vsel %vm439, %v582, %v586
      %v592 = vunpack.c.l.b16 %v342
      %v593 = vunpack.c.l.b16 %v343
      %v594 = vunpack.c.l.b16 %v344
      %v595 = vunpack.c.l.b16 %v345
      %v596 = vpack.c.b16 %v593, %v592
      %v597 = vpack.c.b16 %v595, %v594
      %vm600 = vcmask 261120
      %v602 = vsel %vm600, %v451, 0
      %v605 = vsel %vm600, %v459, 0
      %v608 = vsel %vm600, %v467, 0
      %v611 = vsel %vm600, %v475, 0
      %v614 = vsel %vm600, %v483, 0
      %v617 = vsel %vm600, %v491, 0
      %v620 = vsel %vm600, %v499, 0
      %v623 = vsel %vm600, %v507, 0
      %v626 = vsel %vm600, %v515, 0
      %v629 = vsel %vm600, %v523, 0
      %v632 = vsel %vm600, %v531, 0
      %v635 = vsel %vm600, %v539, 0
      %v638 = vsel %vm600, %v547, 0
      %v641 = vsel %vm600, %v555, 0
      %v644 = vsel %vm600, %v563, 0
      %v647 = vsel %vm600, %v571, 0
      %v650 = vsel %vm600, %v579, 0
      %v653 = vsel %vm600, %v587, 0
      %655 = vmatprep.subr.bf16.mxu0 0
      %656 = vmatpush1.bf16.msra.mxu0 0
      %657 = vmatprep.subr.bf16.mxu0 0
      %658 = vmatpush1.bf16.msra.mxu0 0
      %659 = vmatprep.subr.bf16.mxu0 0
      %660 = vmatpush1.bf16.msra.mxu0 0
      %661 = vmatprep.subr.bf16.mxu0 0
      %662 = vmatpush1.bf16.msra.mxu0 0
      %663 = vmatprep.subr.bf16.mxu0 0
      %664 = vmatpush1.bf16.msra.mxu0 0
      %665 = vmatprep.subr.bf16.mxu0 0
      %666 = vmatpush1.bf16.msra.mxu0 0
      %667 = vmatprep.subr.bf16.mxu0 0
      %668 = vmatpush1.bf16.msra.mxu0 %v597
      %669 = vmatprep.subr.bf16.mxu0 0
      %670 = vmatpush1.bf16.msra.mxu0 %v596
      %671 = vmatprep.subr.bf16.mxu0 0
      %672 = vmatpush2.bf16.msra.mxu0 0
      %673 = vmatprep.subr.bf16.mxu0 0
      %674 = vmatpush2.bf16.msra.mxu0 0
      %675 = vmatprep.subr.bf16.mxu0 0
      %676 = vmatpush2.bf16.msra.mxu0 0
      %677 = vmatprep.subr.bf16.mxu0 0
      %678 = vmatpush2.bf16.msra.mxu0 0
      %679 = vmatprep.subr.bf16.mxu0 0
      %680 = vmatpush2.bf16.msra.mxu0 0
      %681 = vmatprep.subr.bf16.mxu0 0
      %682 = vmatpush2.bf16.msra.mxu0 0
      %683 = vmatprep.subr.bf16.mxu0 0
      %684 = vmatpush2.bf16.msra.mxu0 0
      %685 = vmatprep.subr.bf16.mxu0 0
      %686 = vmatpush2.bf16.msra.mxu0 0
      %687 = vmatprep.mubr.bf16.mxu0 0
      %688 = vmatmul.mubr.bf16.gmra.mxu0 %v602
      %v689 = vpop.f32.mrf.mxu0
      %v690 = vadd.f32 0.0, %v689
      %v691 = vpop.f32.mrf.mxu0
      %v692 = vpop.f32.mrf.mxu0
      %v693 = vadd.f32 0.0, %v692
      %v694 = vpop.f32.mrf.mxu0
      %695 = vmatprep.mubr.bf16.mxu0 0
      %696 = vmatmul.mubr.bf16.gmra.mxu0 %v605
      %v697 = vpop.f32.mrf.mxu0
      %v698 = vadd.f32 0.0, %v697
      %v699 = vpop.f32.mrf.mxu0
      %v700 = vpop.f32.mrf.mxu0
      %v701 = vadd.f32 0.0, %v700
      %v702 = vpop.f32.mrf.mxu0
      %703 = vmatprep.mubr.bf16.mxu0 0
      %704 = vmatmul.mubr.bf16.gmra.mxu0 %v608
      %v705 = vpop.f32.mrf.mxu0
      %v706 = vadd.f32 0.0, %v705
      %v707 = vpop.f32.mrf.mxu0
      %v708 = vpop.f32.mrf.mxu0
      %v709 = vadd.f32 0.0, %v708
      %v710 = vpop.f32.mrf.mxu0
      %711 = vmatprep.mubr.bf16.mxu0 0
      %712 = vmatmul.mubr.bf16.gmra.mxu0 %v611
      %v713 = vpop.f32.mrf.mxu0
      %v714 = vadd.f32 0.0, %v713
      %v715 = vpop.f32.mrf.mxu0
      %v716 = vpop.f32.mrf.mxu0
      %v717 = vadd.f32 0.0, %v716
      %v718 = vpop.f32.mrf.mxu0
      %719 = vmatprep.mubr.bf16.mxu0 0
      %720 = vmatmul.mubr.bf16.gmra.mxu0 %v614
      %v721 = vpop.f32.mrf.mxu0
      %v722 = vadd.f32 0.0, %v721
      %v723 = vpop.f32.mrf.mxu0
      %v724 = vpop.f32.mrf.mxu0
      %v725 = vadd.f32 0.0, %v724
      %v726 = vpop.f32.mrf.mxu0
      %727 = vmatprep.mubr.bf16.mxu0 0
      %728 = vmatmul.mubr.bf16.gmra.mxu0 %v617
      %v729 = vpop.f32.mrf.mxu0
      %v730 = vadd.f32 0.0, %v729
      %v731 = vpop.f32.mrf.mxu0
      %v732 = vpop.f32.mrf.mxu0
      %v733 = vadd.f32 0.0, %v732
      %v734 = vpop.f32.mrf.mxu0
      %735 = vmatprep.mubr.bf16.mxu0 0
      %736 = vmatmul.mubr.bf16.gmra.mxu0 %v620
      %v737 = vpop.f32.mrf.mxu0
      %v738 = vadd.f32 0.0, %v737
      %v739 = vpop.f32.mrf.mxu0
      %v740 = vpop.f32.mrf.mxu0
      %v741 = vadd.f32 0.0, %v740
      %v742 = vpop.f32.mrf.mxu0
      %743 = vmatprep.mubr.bf16.mxu0 0
      %744 = vmatmul.mubr.bf16.gmra.mxu0 %v623
      %v745 = vpop.f32.mrf.mxu0
      %v746 = vadd.f32 0.0, %v745
      %v747 = vpop.f32.mrf.mxu0
      %v748 = vpop.f32.mrf.mxu0
      %v749 = vadd.f32 0.0, %v748
      %v750 = vpop.f32.mrf.mxu0
      %751 = vmatprep.mubr.bf16.mxu0 0
      %752 = vmatmul.mubr.bf16.gmra.mxu0 %v626
      %v753 = vpop.f32.mrf.mxu0
      %v754 = vadd.f32 0.0, %v753
      %v755 = vpop.f32.mrf.mxu0
      %v756 = vpop.f32.mrf.mxu0
      %v757 = vadd.f32 0.0, %v756
      %v758 = vpop.f32.mrf.mxu0
      %759 = vmatprep.mubr.bf16.mxu0 0
      %760 = vmatmul.mubr.bf16.gmra.mxu0 %v629
      %v761 = vpop.f32.mrf.mxu0
      %v762 = vadd.f32 0.0, %v761
      %v763 = vpop.f32.mrf.mxu0
      %v764 = vpop.f32.mrf.mxu0
      %v765 = vadd.f32 0.0, %v764
      %v766 = vpop.f32.mrf.mxu0
      %767 = vmatprep.mubr.bf16.mxu0 0
      %768 = vmatmul.mubr.bf16.gmra.mxu0 %v632
      %v769 = vpop.f32.mrf.mxu0
      %v770 = vadd.f32 0.0, %v769
      %v771 = vpop.f32.mrf.mxu0
      %v772 = vpop.f32.mrf.mxu0
      %v773 = vadd.f32 0.0, %v772
      %v774 = vpop.f32.mrf.mxu0
      %775 = vmatprep.mubr.bf16.mxu0 0
      %776 = vmatmul.mubr.bf16.gmra.mxu0 %v635
      %v777 = vpop.f32.mrf.mxu0
      %v778 = vadd.f32 0.0, %v777
      %v779 = vpop.f32.mrf.mxu0
      %v780 = vpop.f32.mrf.mxu0
      %v781 = vadd.f32 0.0, %v780
      %v782 = vpop.f32.mrf.mxu0
      %783 = vmatprep.mubr.bf16.mxu0 0
      %784 = vmatmul.mubr.bf16.gmra.mxu0 %v638
      %v785 = vpop.f32.mrf.mxu0
      %v786 = vadd.f32 0.0, %v785
      %v787 = vpop.f32.mrf.mxu0
      %v788 = vpop.f32.mrf.mxu0
      %v789 = vadd.f32 0.0, %v788
      %v790 = vpop.f32.mrf.mxu0
      %791 = vmatprep.mubr.bf16.mxu0 0
      %792 = vmatmul.mubr.bf16.gmra.mxu0 %v641
      %v793 = vpop.f32.mrf.mxu0
      %v794 = vadd.f32 0.0, %v793
      %v795 = vpop.f32.mrf.mxu0
      %v796 = vpop.f32.mrf.mxu0
      %v797 = vadd.f32 0.0, %v796
      %v798 = vpop.f32.mrf.mxu0
      %799 = vmatprep.mubr.bf16.mxu0 0
      %800 = vmatmul.mubr.bf16.gmra.mxu0 %v644
      %v801 = vpop.f32.mrf.mxu0
      %v802 = vadd.f32 0.0, %v801
      %v803 = vpop.f32.mrf.mxu0
      %v804 = vpop.f32.mrf.mxu0
      %v805 = vadd.f32 0.0, %v804
      %v806 = vpop.f32.mrf.mxu0
      %807 = vmatprep.mubr.bf16.mxu0 0
      %808 = vmatmul.mubr.bf16.gmra.mxu0 %v647
      %v809 = vpop.f32.mrf.mxu0
      %v810 = vadd.f32 0.0, %v809
      %v811 = vpop.f32.mrf.mxu0
      %v812 = vpop.f32.mrf.mxu0
      %v813 = vadd.f32 0.0, %v812
      %v814 = vpop.f32.mrf.mxu0
      %815 = vmatprep.mubr.bf16.mxu0 0
      %816 = vmatmul.mubr.bf16.gmra.mxu0 %v650
      %v817 = vpop.f32.mrf.mxu0
      %v818 = vadd.f32 0.0, %v817
      %v819 = vpop.f32.mrf.mxu0
      %v820 = vpop.f32.mrf.mxu0
      %v821 = vadd.f32 0.0, %v820
      %v822 = vpop.f32.mrf.mxu0
      %823 = vmatprep.mubr.bf16.mxu0 0
      %824 = vmatmul.mubr.bf16.gmra.mxu0 %v653
      %v825 = vpop.f32.mrf.mxu0
      %v826 = vadd.f32 0.0, %v825
      %v827 = vpop.f32.mrf.mxu0
      %v828 = vpop.f32.mrf.mxu0
      %v829 = vadd.f32 0.0, %v828
      %v830 = vpop.f32.mrf.mxu0
      %831 = vdwg.mxu0
      %v836 = vunpack.c.l.b16 %v336
      %v837 = vunpack.c.l.b16 %v337
      %v838 = vunpack.c.l.b16 %v338
      %v839 = vunpack.c.l.b16 %v339
      %v840 = vpack.c.b16 %v837, %v836
      %v841 = vpack.c.b16 %v839, %v838
      %v844 = vsel %vm600, %v420, 0
      %v846 = vsel %vm600, %v421, 0
      %v848 = vsel %vm600, %v422, 0
      %v850 = vsel %vm600, %v423, 0
      %v852 = vsel %vm600, %v424, 0
      %v854 = vsel %vm600, %v425, 0
      %v856 = vsel %vm600, %v426, 0
      %v858 = vsel %vm600, %v427, 0
      %v860 = vsel %vm600, %v428, 0
      %v862 = vsel %vm600, %v429, 0
      %v864 = vsel %vm600, %v430, 0
      %v866 = vsel %vm600, %v431, 0
      %v868 = vsel %vm600, %v432, 0
      %v870 = vsel %vm600, %v433, 0
      %v872 = vsel %vm600, %v434, 0
      %v874 = vsel %vm600, %v435, 0
      %v876 = vsel %vm600, %v436, 0
      %v878 = vsel %vm600, %v437, 0
      %880 = vmatprep.subr.bf16.mxu0 0
      %881 = vmatpush1.bf16.msra.mxu0 0
      %882 = vmatprep.subr.bf16.mxu0 0
      %883 = vmatpush1.bf16.msra.mxu0 0
      %884 = vmatprep.subr.bf16.mxu0 0
      %885 = vmatpush1.bf16.msra.mxu0 0
      %886 = vmatprep.subr.bf16.mxu0 0
      %887 = vmatpush1.bf16.msra.mxu0 0
      %888 = vmatprep.subr.bf16.mxu0 0
      %889 = vmatpush1.bf16.msra.mxu0 0
      %890 = vmatprep.subr.bf16.mxu0 0
      %891 = vmatpush1.bf16.msra.mxu0 0
      %892 = vmatprep.subr.bf16.mxu0 0
      %893 = vmatpush1.bf16.msra.mxu0 %v841
      %894 = vmatprep.subr.bf16.mxu0 0
      %895 = vmatpush1.bf16.msra.mxu0 %v840
      %896 = vmatprep.subr.bf16.mxu0 0
      %897 = vmatpush2.bf16.msra.mxu0 0
      %898 = vmatprep.subr.bf16.mxu0 0
      %899 = vmatpush2.bf16.msra.mxu0 0
      %900 = vmatprep.subr.bf16.mxu0 0
      %901 = vmatpush2.bf16.msra.mxu0 0
      %902 = vmatprep.subr.bf16.mxu0 0
      %903 = vmatpush2.bf16.msra.mxu0 0
      %904 = vmatprep.subr.bf16.mxu0 0
      %905 = vmatpush2.bf16.msra.mxu0 0
      %906 = vmatprep.subr.bf16.mxu0 0
      %907 = vmatpush2.bf16.msra.mxu0 0
      %908 = vmatprep.subr.bf16.mxu0 0
      %909 = vmatpush2.bf16.msra.mxu0 0
      %910 = vmatprep.subr.bf16.mxu0 0
      %911 = vmatpush2.bf16.msra.mxu0 0
      %912 = vmatprep.mubr.bf16.mxu0 0
      %913 = vmatmul.mubr.bf16.gmra.mxu0 %v844
      %v914 = vpop.f32.mrf.mxu0
      %v915 = vadd.f32 %v690, %v914
      %v916 = vpop.f32.mrf.mxu0
      %v917 = vpop.f32.mrf.mxu0
      %v918 = vadd.f32 %v693, %v917
      %v919 = vpop.f32.mrf.mxu0
      %920 = vmatprep.mubr.bf16.mxu0 0
      %921 = vmatmul.mubr.bf16.gmra.mxu0 %v846
      %v922 = vpop.f32.mrf.mxu0
      %v923 = vadd.f32 %v698, %v922
      %v924 = vpop.f32.mrf.mxu0
      %v925 = vpop.f32.mrf.mxu0
      %v926 = vadd.f32 %v701, %v925
      %v927 = vpop.f32.mrf.mxu0
      %928 = vmatprep.mubr.bf16.mxu0 0
      %929 = vmatmul.mubr.bf16.gmra.mxu0 %v848
      %v930 = vpop.f32.mrf.mxu0
      %v931 = vadd.f32 %v706, %v930
      %v932 = vpop.f32.mrf.mxu0
      %v933 = vpop.f32.mrf.mxu0
      %v934 = vadd.f32 %v709, %v933
      %v935 = vpop.f32.mrf.mxu0
      %936 = vmatprep.mubr.bf16.mxu0 0
      %937 = vmatmul.mubr.bf16.gmra.mxu0 %v850
      %v938 = vpop.f32.mrf.mxu0
      %v939 = vadd.f32 %v714, %v938
      %v940 = vpop.f32.mrf.mxu0
      %v941 = vpop.f32.mrf.mxu0
      %v942 = vadd.f32 %v717, %v941
      %v943 = vpop.f32.mrf.mxu0
      %944 = vmatprep.mubr.bf16.mxu0 0
      %945 = vmatmul.mubr.bf16.gmra.mxu0 %v852
      %v946 = vpop.f32.mrf.mxu0
      %v947 = vadd.f32 %v722, %v946
      %v948 = vpop.f32.mrf.mxu0
      %v949 = vpop.f32.mrf.mxu0
      %v950 = vadd.f32 %v725, %v949
      %v951 = vpop.f32.mrf.mxu0
      %952 = vmatprep.mubr.bf16.mxu0 0
      %953 = vmatmul.mubr.bf16.gmra.mxu0 %v854
      %v954 = vpop.f32.mrf.mxu0
      %v955 = vadd.f32 %v730, %v954
      %v956 = vpop.f32.mrf.mxu0
      %v957 = vpop.f32.mrf.mxu0
      %v958 = vadd.f32 %v733, %v957
      %v959 = vpop.f32.mrf.mxu0
      %960 = vmatprep.mubr.bf16.mxu0 0
      %961 = vmatmul.mubr.bf16.gmra.mxu0 %v856
      %v962 = vpop.f32.mrf.mxu0
      %v963 = vadd.f32 %v738, %v962
      %v964 = vpop.f32.mrf.mxu0
      %v965 = vpop.f32.mrf.mxu0
      %v966 = vadd.f32 %v741, %v965
      %v967 = vpop.f32.mrf.mxu0
      %968 = vmatprep.mubr.bf16.mxu0 0
      %969 = vmatmul.mubr.bf16.gmra.mxu0 %v858
      %v970 = vpop.f32.mrf.mxu0
      %v971 = vadd.f32 %v746, %v970
      %v972 = vpop.f32.mrf.mxu0
      %v973 = vpop.f32.mrf.mxu0
      %v974 = vadd.f32 %v749, %v973
      %v975 = vpop.f32.mrf.mxu0
      %976 = vmatprep.mubr.bf16.mxu0 0
      %977 = vmatmul.mubr.bf16.gmra.mxu0 %v860
      %v978 = vpop.f32.mrf.mxu0
      %v979 = vadd.f32 %v754, %v978
      %v980 = vpop.f32.mrf.mxu0
      %v981 = vpop.f32.mrf.mxu0
      %v982 = vadd.f32 %v757, %v981
      %v983 = vpop.f32.mrf.mxu0
      %984 = vmatprep.mubr.bf16.mxu0 0
      %985 = vmatmul.mubr.bf16.gmra.mxu0 %v862
      %v986 = vpop.f32.mrf.mxu0
      %v987 = vadd.f32 %v762, %v986
      %v988 = vpop.f32.mrf.mxu0
      %v989 = vpop.f32.mrf.mxu0
      %v990 = vadd.f32 %v765, %v989
      %v991 = vpop.f32.mrf.mxu0
      %992 = vmatprep.mubr.bf16.mxu0 0
      %993 = vmatmul.mubr.bf16.gmra.mxu0 %v864
      %v994 = vpop.f32.mrf.mxu0
      %v995 = vadd.f32 %v770, %v994
      %v996 = vpop.f32.mrf.mxu0
      %v997 = vpop.f32.mrf.mxu0
      %v998 = vadd.f32 %v773, %v997
      %v999 = vpop.f32.mrf.mxu0
      %1000 = vmatprep.mubr.bf16.mxu0 0
      %1001 = vmatmul.mubr.bf16.gmra.mxu0 %v866
      %v1002 = vpop.f32.mrf.mxu0
      %v1003 = vadd.f32 %v778, %v1002
      %v1004 = vpop.f32.mrf.mxu0
      %v1005 = vpop.f32.mrf.mxu0
      %v1006 = vadd.f32 %v781, %v1005
      %v1007 = vpop.f32.mrf.mxu0
      %1008 = vmatprep.mubr.bf16.mxu0 0
      %1009 = vmatmul.mubr.bf16.gmra.mxu0 %v868
      %v1010 = vpop.f32.mrf.mxu0
      %v1011 = vadd.f32 %v786, %v1010
      %v1012 = vpop.f32.mrf.mxu0
      %v1013 = vpop.f32.mrf.mxu0
      %v1014 = vadd.f32 %v789, %v1013
      %v1015 = vpop.f32.mrf.mxu0
      %1016 = vmatprep.mubr.bf16.mxu0 0
      %1017 = vmatmul.mubr.bf16.gmra.mxu0 %v870
      %v1018 = vpop.f32.mrf.mxu0
      %v1019 = vadd.f32 %v794, %v1018
      %v1020 = vpop.f32.mrf.mxu0
      %v1021 = vpop.f32.mrf.mxu0
      %v1022 = vadd.f32 %v797, %v1021
      %v1023 = vpop.f32.mrf.mxu0
      %1024 = vmatprep.mubr.bf16.mxu0 0
      %1025 = vmatmul.mubr.bf16.gmra.mxu0 %v872
      %v1026 = vpop.f32.mrf.mxu0
      %v1027 = vadd.f32 %v802, %v1026
      %v1028 = vpop.f32.mrf.mxu0
      %v1029 = vpop.f32.mrf.mxu0
      %v1030 = vadd.f32 %v805, %v1029
      %v1031 = vpop.f32.mrf.mxu0
      %1032 = vmatprep.mubr.bf16.mxu0 0
      %1033 = vmatmul.mubr.bf16.gmra.mxu0 %v874
      %v1034 = vpop.f32.mrf.mxu0
      %v1035 = vadd.f32 %v810, %v1034
      %v1036 = vpop.f32.mrf.mxu0
      %v1037 = vpop.f32.mrf.mxu0
      %v1038 = vadd.f32 %v813, %v1037
      %v1039 = vpop.f32.mrf.mxu0
      %1040 = vmatprep.mubr.bf16.mxu0 0
      %1041 = vmatmul.mubr.bf16.gmra.mxu0 %v876
      %v1042 = vpop.f32.mrf.mxu0
      %v1043 = vadd.f32 %v818, %v1042
      %v1044 = vpop.f32.mrf.mxu0
      %v1045 = vpop.f32.mrf.mxu0
      %v1046 = vadd.f32 %v821, %v1045
      %v1047 = vpop.f32.mrf.mxu0
      %1048 = vmatprep.mubr.bf16.mxu0 0
      %1049 = vmatmul.mubr.bf16.gmra.mxu0 %v878
      %v1050 = vpop.f32.mrf.mxu0
      %v1051 = vadd.f32 %v826, %v1050
      %v1052 = vpop.f32.mrf.mxu0
      %v1053 = vpop.f32.mrf.mxu0
      %v1054 = vadd.f32 %v829, %v1053
      %v1055 = vpop.f32.mrf.mxu0
      %1056 = vdwg.mxu0
      %v1057 = vld [vmem:[%s288] sm:$0xe]
      %s1058 = scalar_lea.vmem %s2, 32
      %v1059 = vld [vmem:[%s1058] sm:$0xf]
      %v1060 = vld [vmem:[%s1058 + $0x4] sm:$0xf]
      %v1061 = vld [vmem:[%s1058 + $0x8] sm:$0xf]
      %v1062 = vld [vmem:[%s1058 + $0xc] sm:$0xf]
      %v1064 = vunpack.c.l.b16 %v1057
      %v1065 = vpack.c.b16 %v384, %v1064
      %vm1066 = vcmask 1046528
      %v1067 = vrot.slane %v1065, 1
      %v1068 = vrot.slane %v421, 1
      %v1069 = vsel %vm1066, %v1067, %v1068
      %v1070 = vrot.slane %v422, 1
      %v1071 = vsel %vm1066, %v1068, %v1070
      %v1072 = vrot.slane %v423, 1
      %v1073 = vsel %vm1066, %v1070, %v1072
      %v1074 = vrot.slane %v424, 1
      %v1075 = vsel %vm1066, %v1072, %v1074
      %v1076 = vrot.slane %v425, 1
      %v1077 = vsel %vm1066, %v1074, %v1076
      %v1078 = vrot.slane %v426, 1
      %v1079 = vsel %vm1066, %v1076, %v1078
      %v1080 = vrot.slane %v427, 1
      %v1081 = vsel %vm1066, %v1078, %v1080
      %v1082 = vrot.slane %v428, 1
      %v1083 = vsel %vm1066, %v1080, %v1082
      %v1084 = vrot.slane %v429, 1
      %v1085 = vsel %vm1066, %v1082, %v1084
      %v1086 = vrot.slane %v430, 1
      %v1087 = vsel %vm1066, %v1084, %v1086
      %v1088 = vrot.slane %v431, 1
      %v1089 = vsel %vm1066, %v1086, %v1088
      %v1090 = vrot.slane %v432, 1
      %v1091 = vsel %vm1066, %v1088, %v1090
      %v1092 = vrot.slane %v433, 1
      %v1093 = vsel %vm1066, %v1090, %v1092
      %v1094 = vrot.slane %v434, 1
      %v1095 = vsel %vm1066, %v1092, %v1094
      %v1096 = vrot.slane %v435, 1
      %v1097 = vsel %vm1066, %v1094, %v1096
      %v1098 = vrot.slane %v436, 1
      %v1099 = vsel %vm1066, %v1096, %v1098
      %v1100 = vrot.slane %v437, 1
      %v1101 = vsel %vm1066, %v1098, %v1100
      %v1102 = vrot.slane %v438, 1
      %v1103 = vsel %vm1066, %v1100, %v1102
      %v1108 = vunpack.c.l.b16 %v1059
      %v1109 = vunpack.c.l.b16 %v1060
      %v1110 = vunpack.c.l.b16 %v1061
      %v1111 = vunpack.c.l.b16 %v1062
      %v1112 = vpack.c.b16 %v1109, %v1108
      %v1113 = vpack.c.b16 %v1111, %v1110
      %v1117 = vsel %vm600, %v1069, 0
      %v1120 = vsel %vm600, %v1071, 0
      %v1123 = vsel %vm600, %v1073, 0
      %v1126 = vsel %vm600, %v1075, 0
      %v1129 = vsel %vm600, %v1077, 0
      %v1132 = vsel %vm600, %v1079, 0
      %v1135 = vsel %vm600, %v1081, 0
      %v1138 = vsel %vm600, %v1083, 0
      %v1141 = vsel %vm600, %v1085, 0
      %v1144 = vsel %vm600, %v1087, 0
      %v1147 = vsel %vm600, %v1089, 0
      %v1150 = vsel %vm600, %v1091, 0
      %v1153 = vsel %vm600, %v1093, 0
      %v1156 = vsel %vm600, %v1095, 0
      %v1159 = vsel %vm600, %v1097, 0
      %v1162 = vsel %vm600, %v1099, 0
      %v1165 = vsel %vm600, %v1101, 0
      %v1168 = vsel %vm600, %v1103, 0
      %1170 = vmatprep.subr.bf16.mxu0 0
      %1171 = vmatpush1.bf16.msra.mxu0 0
      %1172 = vmatprep.subr.bf16.mxu0 0
      %1173 = vmatpush1.bf16.msra.mxu0 0
      %1174 = vmatprep.subr.bf16.mxu0 0
      %1175 = vmatpush1.bf16.msra.mxu0 0
      %1176 = vmatprep.subr.bf16.mxu0 0
      %1177 = vmatpush1.bf16.msra.mxu0 0
      %1178 = vmatprep.subr.bf16.mxu0 0
      %1179 = vmatpush1.bf16.msra.mxu0 0
      %1180 = vmatprep.subr.bf16.mxu0 0
      %1181 = vmatpush1.bf16.msra.mxu0 0
      %1182 = vmatprep.subr.bf16.mxu0 0
      %1183 = vmatpush1.bf16.msra.mxu0 %v1113
      %1184 = vmatprep.subr.bf16.mxu0 0
      %1185 = vmatpush1.bf16.msra.mxu0 %v1112
      %1186 = vmatprep.subr.bf16.mxu0 0
      %1187 = vmatpush2.bf16.msra.mxu0 0
      %1188 = vmatprep.subr.bf16.mxu0 0
      %1189 = vmatpush2.bf16.msra.mxu0 0
      %1190 = vmatprep.subr.bf16.mxu0 0
      %1191 = vmatpush2.bf16.msra.mxu0 0
      %1192 = vmatprep.subr.bf16.mxu0 0
      %1193 = vmatpush2.bf16.msra.mxu0 0
      %1194 = vmatprep.subr.bf16.mxu0 0
      %1195 = vmatpush2.bf16.msra.mxu0 0
      %1196 = vmatprep.subr.bf16.mxu0 0
      %1197 = vmatpush2.bf16.msra.mxu0 0
      %1198 = vmatprep.subr.bf16.mxu0 0
      %1199 = vmatpush2.bf16.msra.mxu0 0
      %1200 = vmatprep.subr.bf16.mxu0 0
      %1201 = vmatpush2.bf16.msra.mxu0 0
      %1202 = vmatprep.mubr.bf16.mxu0 0
      %1203 = vmatmul.mubr.bf16.gmra.mxu0 %v1117
      %v1204 = vpop.f32.mrf.mxu0
      %v1205 = vadd.f32 0.0, %v1204
      %v1206 = vpop.f32.mrf.mxu0
      %v1207 = vpop.f32.mrf.mxu0
      %v1208 = vadd.f32 0.0, %v1207
      %v1209 = vpop.f32.mrf.mxu0
      %1210 = vmatprep.mubr.bf16.mxu0 0
      %1211 = vmatmul.mubr.bf16.gmra.mxu0 %v1120
      %v1212 = vpop.f32.mrf.mxu0
      %v1213 = vadd.f32 0.0, %v1212
      %v1214 = vpop.f32.mrf.mxu0
      %v1215 = vpop.f32.mrf.mxu0
      %v1216 = vadd.f32 0.0, %v1215
      %v1217 = vpop.f32.mrf.mxu0
      %1218 = vmatprep.mubr.bf16.mxu0 0
      %1219 = vmatmul.mubr.bf16.gmra.mxu0 %v1123
      %v1220 = vpop.f32.mrf.mxu0
      %v1221 = vadd.f32 0.0, %v1220
      %v1222 = vpop.f32.mrf.mxu0
      %v1223 = vpop.f32.mrf.mxu0
      %v1224 = vadd.f32 0.0, %v1223
      %v1225 = vpop.f32.mrf.mxu0
      %1226 = vmatprep.mubr.bf16.mxu0 0
      %1227 = vmatmul.mubr.bf16.gmra.mxu0 %v1126
      %v1228 = vpop.f32.mrf.mxu0
      %v1229 = vadd.f32 0.0, %v1228
      %v1230 = vpop.f32.mrf.mxu0
      %v1231 = vpop.f32.mrf.mxu0
      %v1232 = vadd.f32 0.0, %v1231
      %v1233 = vpop.f32.mrf.mxu0
      %1234 = vmatprep.mubr.bf16.mxu0 0
      %1235 = vmatmul.mubr.bf16.gmra.mxu0 %v1129
      %v1236 = vpop.f32.mrf.mxu0
      %v1237 = vadd.f32 0.0, %v1236
      %v1238 = vpop.f32.mrf.mxu0
      %v1239 = vpop.f32.mrf.mxu0
      %v1240 = vadd.f32 0.0, %v1239
      %v1241 = vpop.f32.mrf.mxu0
      %1242 = vmatprep.mubr.bf16.mxu0 0
      %1243 = vmatmul.mubr.bf16.gmra.mxu0 %v1132
      %v1244 = vpop.f32.mrf.mxu0
      %v1245 = vadd.f32 0.0, %v1244
      %v1246 = vpop.f32.mrf.mxu0
      %v1247 = vpop.f32.mrf.mxu0
      %v1248 = vadd.f32 0.0, %v1247
      %v1249 = vpop.f32.mrf.mxu0
      %1250 = vmatprep.mubr.bf16.mxu0 0
      %1251 = vmatmul.mubr.bf16.gmra.mxu0 %v1135
      %v1252 = vpop.f32.mrf.mxu0
      %v1253 = vadd.f32 0.0, %v1252
      %v1254 = vpop.f32.mrf.mxu0
      %v1255 = vpop.f32.mrf.mxu0
      %v1256 = vadd.f32 0.0, %v1255
      %v1257 = vpop.f32.mrf.mxu0
      %1258 = vmatprep.mubr.bf16.mxu0 0
      %1259 = vmatmul.mubr.bf16.gmra.mxu0 %v1138
      %v1260 = vpop.f32.mrf.mxu0
      %v1261 = vadd.f32 0.0, %v1260
      %v1262 = vpop.f32.mrf.mxu0
      %v1263 = vpop.f32.mrf.mxu0
      %v1264 = vadd.f32 0.0, %v1263
      %v1265 = vpop.f32.mrf.mxu0
      %1266 = vmatprep.mubr.bf16.mxu0 0
      %1267 = vmatmul.mubr.bf16.gmra.mxu0 %v1141
      %v1268 = vpop.f32.mrf.mxu0
      %v1269 = vadd.f32 0.0, %v1268
      %v1270 = vpop.f32.mrf.mxu0
      %v1271 = vpop.f32.mrf.mxu0
      %v1272 = vadd.f32 0.0, %v1271
      %v1273 = vpop.f32.mrf.mxu0
      %1274 = vmatprep.mubr.bf16.mxu0 0
      %1275 = vmatmul.mubr.bf16.gmra.mxu0 %v1144
      %v1276 = vpop.f32.mrf.mxu0
      %v1277 = vadd.f32 0.0, %v1276
      %v1278 = vpop.f32.mrf.mxu0
      %v1279 = vpop.f32.mrf.mxu0
      %v1280 = vadd.f32 0.0, %v1279
      %v1281 = vpop.f32.mrf.mxu0
      %1282 = vmatprep.mubr.bf16.mxu0 0
      %1283 = vmatmul.mubr.bf16.gmra.mxu0 %v1147
      %v1284 = vpop.f32.mrf.mxu0
      %v1285 = vadd.f32 0.0, %v1284
      %v1286 = vpop.f32.mrf.mxu0
      %v1287 = vpop.f32.mrf.mxu0
      %v1288 = vadd.f32 0.0, %v1287
      %v1289 = vpop.f32.mrf.mxu0
      %1290 = vmatprep.mubr.bf16.mxu0 0
      %1291 = vmatmul.mubr.bf16.gmra.mxu0 %v1150
      %v1292 = vpop.f32.mrf.mxu0
      %v1293 = vadd.f32 0.0, %v1292
      %v1294 = vpop.f32.mrf.mxu0
      %v1295 = vpop.f32.mrf.mxu0
      %v1296 = vadd.f32 0.0, %v1295
      %v1297 = vpop.f32.mrf.mxu0
      %1298 = vmatprep.mubr.bf16.mxu0 0
      %1299 = vmatmul.mubr.bf16.gmra.mxu0 %v1153
      %v1300 = vpop.f32.mrf.mxu0
      %v1301 = vadd.f32 0.0, %v1300
      %v1302 = vpop.f32.mrf.mxu0
      %v1303 = vpop.f32.mrf.mxu0
      %v1304 = vadd.f32 0.0, %v1303
      %v1305 = vpop.f32.mrf.mxu0
      %1306 = vmatprep.mubr.bf16.mxu0 0
      %1307 = vmatmul.mubr.bf16.gmra.mxu0 %v1156
      %v1308 = vpop.f32.mrf.mxu0
      %v1309 = vadd.f32 0.0, %v1308
      %v1310 = vpop.f32.mrf.mxu0
      %v1311 = vpop.f32.mrf.mxu0
      %v1312 = vadd.f32 0.0, %v1311
      %v1313 = vpop.f32.mrf.mxu0
      %1314 = vmatprep.mubr.bf16.mxu0 0
      %1315 = vmatmul.mubr.bf16.gmra.mxu0 %v1159
      %v1316 = vpop.f32.mrf.mxu0
      %v1317 = vadd.f32 0.0, %v1316
      %v1318 = vpop.f32.mrf.mxu0
      %v1319 = vpop.f32.mrf.mxu0
      %v1320 = vadd.f32 0.0, %v1319
      %v1321 = vpop.f32.mrf.mxu0
      %1322 = vmatprep.mubr.bf16.mxu0 0
      %1323 = vmatmul.mubr.bf16.gmra.mxu0 %v1162
      %v1324 = vpop.f32.mrf.mxu0
      %v1325 = vadd.f32 0.0, %v1324
      %v1326 = vpop.f32.mrf.mxu0
      %v1327 = vpop.f32.mrf.mxu0
      %v1328 = vadd.f32 0.0, %v1327
      %v1329 = vpop.f32.mrf.mxu0
      %1330 = vmatprep.mubr.bf16.mxu0 0
      %1331 = vmatmul.mubr.bf16.gmra.mxu0 %v1165
      %v1332 = vpop.f32.mrf.mxu0
      %v1333 = vadd.f32 0.0, %v1332
      %v1334 = vpop.f32.mrf.mxu0
      %v1335 = vpop.f32.mrf.mxu0
      %v1336 = vadd.f32 0.0, %v1335
      %v1337 = vpop.f32.mrf.mxu0
      %1338 = vmatprep.mubr.bf16.mxu0 0
      %1339 = vmatmul.mubr.bf16.gmra.mxu0 %v1168
      %v1340 = vpop.f32.mrf.mxu0
      %v1341 = vadd.f32 0.0, %v1340
      %v1342 = vpop.f32.mrf.mxu0
      %v1343 = vpop.f32.mrf.mxu0
      %v1344 = vadd.f32 0.0, %v1343
      %v1345 = vpop.f32.mrf.mxu0
      %1346 = vdwg.mxu0
      %v1347 = vadd.f32 %v915, %v1205
      %v1348 = vadd.f32 %v918, %v1208
      %v1349 = vadd.f32 %v923, %v1213
      %v1350 = vadd.f32 %v926, %v1216
      %v1351 = vadd.f32 %v931, %v1221
      %v1352 = vadd.f32 %v934, %v1224
      %v1353 = vadd.f32 %v939, %v1229
      %v1354 = vadd.f32 %v942, %v1232
      %v1355 = vadd.f32 %v947, %v1237
      %v1356 = vadd.f32 %v950, %v1240
      %v1357 = vadd.f32 %v955, %v1245
      %v1358 = vadd.f32 %v958, %v1248
      %v1359 = vadd.f32 %v963, %v1253
      %v1360 = vadd.f32 %v966, %v1256
      %v1361 = vadd.f32 %v971, %v1261
      %v1362 = vadd.f32 %v974, %v1264
      %v1363 = vadd.f32 %v979, %v1269
      %v1364 = vadd.f32 %v982, %v1272
      %v1365 = vadd.f32 %v987, %v1277
      %v1366 = vadd.f32 %v990, %v1280
      %v1367 = vadd.f32 %v995, %v1285
      %v1368 = vadd.f32 %v998, %v1288
      %v1369 = vadd.f32 %v1003, %v1293
      %v1370 = vadd.f32 %v1006, %v1296
      %v1371 = vadd.f32 %v1011, %v1301
      %v1372 = vadd.f32 %v1014, %v1304
      %v1373 = vadd.f32 %v1019, %v1309
      %v1374 = vadd.f32 %v1022, %v1312
      %v1375 = vadd.f32 %v1027, %v1317
      %v1376 = vadd.f32 %v1030, %v1320
      %v1377 = vadd.f32 %v1035, %v1325
      %v1378 = vadd.f32 %v1038, %v1328
      %v1379 = vadd.f32 %v1043, %v1333
      %v1380 = vadd.f32 %v1046, %v1336
      %v1381 = vadd.f32 %v1051, %v1341
      %v1382 = vadd.f32 %v1054, %v1344
      %v1383 = vld [vmem:[%s288 + $0x8] sm:$0xe]
      %v1384 = vld [vmem:[%s288 + $0xc] sm:$0xf]
      %v1385 = vld [vmem:[%s288 + $0x10] sm:$0xf]
      %v1386 = vld [vmem:[%s288 + $0x14] sm:$0xf]
      %v1387 = vld [vmem:[%s288 + $0x18] sm:$0xf]
      %v1388 = vld [vmem:[%s288 + $0x1c] sm:$0xf]
      %v1389 = vld [vmem:[%s288 + $0x20] sm:$0xf]
      %v1390 = vld [vmem:[%s288 + $0x24] sm:$0xf]
      %v1391 = vld [vmem:[%s288 + $0x28] sm:$0xf]
      %v1392 = vld [vmem:[%s288 + $0x2c] sm:$0xf]
      %v1393 = vld [vmem:[%s288 + $0x30] sm:$0xf]
      %v1394 = vld [vmem:[%s288 + $0x34] sm:$0xf]
      %v1395 = vld [vmem:[%s288 + $0x38] sm:$0xf]
      %v1396 = vld [vmem:[%s288 + $0x3c] sm:$0xf]
      %v1397 = vld [vmem:[%s288 + $0x40] sm:$0xf]
      %v1398 = vld [vmem:[%s288 + $0x44] sm:$0xf]
      %v1399 = vld [vmem:[%s288 + $0x48] sm:$0xf]
      %v1400 = vld [vmem:[%s288 + $0x4c] sm:$0xf]
      %v1401 = vld [vmem:[%s288 + $0x50] sm:$0xf]
      %v1402 = vld [vmem:[%s288 + $0x54] sm:$0xf]
      %v1403 = vld [vmem:[%s288 + $0x58] sm:$0xf]
      %v1404 = vld [vmem:[%s288 + $0x5c] sm:$0xf]
      %v1405 = vld [vmem:[%s288 + $0x60] sm:$0xf]
      %v1406 = vld [vmem:[%s288 + $0x64] sm:$0xf]
      %v1407 = vld [vmem:[%s288 + $0x68] sm:$0xf]
      %v1408 = vld [vmem:[%s288 + $0x6c] sm:$0xf]
      %v1409 = vld [vmem:[%s288 + $0x70] sm:$0xf]
      %v1410 = vld [vmem:[%s288 + $0x74] sm:$0xf]
      %v1411 = vld [vmem:[%s288 + $0x78] sm:$0xf]
      %v1412 = vld [vmem:[%s288 + $0x7c] sm:$0xf]
      %v1413 = vld [vmem:[%s288 + $0x80] sm:$0xf]
      %v1414 = vld [vmem:[%s288 + $0x84] sm:$0xf]
      %v1415 = vld [vmem:[%s288 + $0x88] sm:$0xf]
      %v1416 = vld [vmem:[%s288 + $0x8c] sm:$0xf]
      %v1417 = vld [vmem:[%s288 + $0x90] sm:$0xf]
      %v1418 = vld [vmem:[%s288 + $0x94] sm:$0xf]
      %v1419 = vld [vmem:[%s288 + $0x98] sm:$0x1]
      %s1420 = scalar_lea.vmem %s2, 48
      %v1421 = vld [vmem:[%s1420] sm:$0xf]
      %v1422 = vld [vmem:[%s1420 + $0x4] sm:$0xf]
      %v1423 = vld [vmem:[%s1420 + $0x8] sm:$0xf]
      %v1424 = vld [vmem:[%s1420 + $0xc] sm:$0xf]
      %v1462 = vunpack.c.l.b16 %v1383
      %v1463 = vunpack.c.l.b16 %v1384
      %v1464 = vunpack.c.l.b16 %v1385
      %v1465 = vunpack.c.l.b16 %v1386
      %v1466 = vunpack.c.l.b16 %v1387
      %v1467 = vunpack.c.l.b16 %v1388
      %v1468 = vunpack.c.l.b16 %v1389
      %v1469 = vunpack.c.l.b16 %v1390
      %v1470 = vunpack.c.l.b16 %v1391
      %v1471 = vunpack.c.l.b16 %v1392
      %v1472 = vunpack.c.l.b16 %v1393
      %v1473 = vunpack.c.l.b16 %v1394
      %v1474 = vunpack.c.l.b16 %v1395
      %v1475 = vunpack.c.l.b16 %v1396
      %v1476 = vunpack.c.l.b16 %v1397
      %v1477 = vunpack.c.l.b16 %v1398
      %v1478 = vunpack.c.l.b16 %v1399
      %v1479 = vunpack.c.l.b16 %v1400
      %v1480 = vunpack.c.l.b16 %v1401
      %v1481 = vunpack.c.l.b16 %v1402
      %v1482 = vunpack.c.l.b16 %v1403
      %v1483 = vunpack.c.l.b16 %v1404
      %v1484 = vunpack.c.l.b16 %v1405
      %v1485 = vunpack.c.l.b16 %v1406
      %v1486 = vunpack.c.l.b16 %v1407
      %v1487 = vunpack.c.l.b16 %v1408
      %v1488 = vunpack.c.l.b16 %v1409
      %v1489 = vunpack.c.l.b16 %v1410
      %v1490 = vunpack.c.l.b16 %v1411
      %v1491 = vunpack.c.l.b16 %v1412
      %v1492 = vunpack.c.l.b16 %v1413
      %v1493 = vunpack.c.l.b16 %v1414
      %v1494 = vunpack.c.l.b16 %v1415
      %v1495 = vunpack.c.l.b16 %v1416
      %v1496 = vunpack.c.l.b16 %v1417
      %v1497 = vunpack.c.l.b16 %v1418
      %v1498 = vunpack.c.l.b16 %v1419
      %v1499 = vpack.c.b16 %v1463, %v1462
      %v1500 = vpack.c.b16 %v1465, %v1464
      %v1501 = vpack.c.b16 %v1467, %v1466
      %v1502 = vpack.c.b16 %v1469, %v1468
      %v1503 = vpack.c.b16 %v1471, %v1470
      %v1504 = vpack.c.b16 %v1473, %v1472
      %v1505 = vpack.c.b16 %v1475, %v1474
      %v1506 = vpack.c.b16 %v1477, %v1476
      %v1507 = vpack.c.b16 %v1479, %v1478
      %v1508 = vpack.c.b16 %v1481, %v1480
      %v1509 = vpack.c.b16 %v1483, %v1482
      %v1510 = vpack.c.b16 %v1485, %v1484
      %v1511 = vpack.c.b16 %v1487, %v1486
      %v1512 = vpack.c.b16 %v1489, %v1488
      %v1513 = vpack.c.b16 %v1491, %v1490
      %v1514 = vpack.c.b16 %v1493, %v1492
      %v1515 = vpack.c.b16 %v1495, %v1494
      %v1516 = vpack.c.b16 %v1497, %v1496
      %v1517 = vpack.c.b16 %v1498, %v1498
      %v1518 = vrot.slane %v1499, 1
      %v1519 = vrot.slane %v1500, 1
      %v1520 = vsel %vm1066, %v1518, %v1519
      %v1521 = vrot.slane %v1501, 1
      %v1522 = vsel %vm1066, %v1519, %v1521
      %v1523 = vrot.slane %v1502, 1
      %v1524 = vsel %vm1066, %v1521, %v1523
      %v1525 = vrot.slane %v1503, 1
      %v1526 = vsel %vm1066, %v1523, %v1525
      %v1527 = vrot.slane %v1504, 1
      %v1528 = vsel %vm1066, %v1525, %v1527
      %v1529 = vrot.slane %v1505, 1
      %v1530 = vsel %vm1066, %v1527, %v1529
      %v1531 = vrot.slane %v1506, 1
      %v1532 = vsel %vm1066, %v1529, %v1531
      %v1533 = vrot.slane %v1507, 1
      %v1534 = vsel %vm1066, %v1531, %v1533
      %v1535 = vrot.slane %v1508, 1
      %v1536 = vsel %vm1066, %v1533, %v1535
      %v1537 = vrot.slane %v1509, 1
      %v1538 = vsel %vm1066, %v1535, %v1537
      %v1539 = vrot.slane %v1510, 1
      %v1540 = vsel %vm1066, %v1537, %v1539
      %v1541 = vrot.slane %v1511, 1
      %v1542 = vsel %vm1066, %v1539, %v1541
      %v1543 = vrot.slane %v1512, 1
      %v1544 = vsel %vm1066, %v1541, %v1543
      %v1545 = vrot.slane %v1513, 1
      %v1546 = vsel %vm1066, %v1543, %v1545
      %v1547 = vrot.slane %v1514, 1
      %v1548 = vsel %vm1066, %v1545, %v1547
      %v1549 = vrot.slane %v1515, 1
      %v1550 = vsel %vm1066, %v1547, %v1549
      %v1551 = vrot.slane %v1516, 1
      %v1552 = vsel %vm1066, %v1549, %v1551
      %v1553 = vrot.slane %v1517, 1
      %v1554 = vsel %vm1066, %v1551, %v1553
      %v1559 = vunpack.c.l.b16 %v1421
      %v1560 = vunpack.c.l.b16 %v1422
      %v1561 = vunpack.c.l.b16 %v1423
      %v1562 = vunpack.c.l.b16 %v1424
      %v1563 = vpack.c.b16 %v1560, %v1559
      %v1564 = vpack.c.b16 %v1562, %v1561
      %v1568 = vsel %vm600, %v1520, 0
      %v1571 = vsel %vm600, %v1522, 0
      %v1574 = vsel %vm600, %v1524, 0
      %v1577 = vsel %vm600, %v1526, 0
      %v1580 = vsel %vm600, %v1528, 0
      %v1583 = vsel %vm600, %v1530, 0
      %v1586 = vsel %vm600, %v1532, 0
      %v1589 = vsel %vm600, %v1534, 0
      %v1592 = vsel %vm600, %v1536, 0
      %v1595 = vsel %vm600, %v1538, 0
      %v1598 = vsel %vm600, %v1540, 0
      %v1601 = vsel %vm600, %v1542, 0
      %v1604 = vsel %vm600, %v1544, 0
      %v1607 = vsel %vm600, %v1546, 0
      %v1610 = vsel %vm600, %v1548, 0
      %v1613 = vsel %vm600, %v1550, 0
      %v1616 = vsel %vm600, %v1552, 0
      %v1619 = vsel %vm600, %v1554, 0
      %1621 = vmatprep.subr.bf16.mxu0 0
      %1622 = vmatpush1.bf16.msra.mxu0 0
      %1623 = vmatprep.subr.bf16.mxu0 0
      %1624 = vmatpush1.bf16.msra.mxu0 0
      %1625 = vmatprep.subr.bf16.mxu0 0
      %1626 = vmatpush1.bf16.msra.mxu0 0
      %1627 = vmatprep.subr.bf16.mxu0 0
      %1628 = vmatpush1.bf16.msra.mxu0 0
      %1629 = vmatprep.subr.bf16.mxu0 0
      %1630 = vmatpush1.bf16.msra.mxu0 0
      %1631 = vmatprep.subr.bf16.mxu0 0
      %1632 = vmatpush1.bf16.msra.mxu0 0
      %1633 = vmatprep.subr.bf16.mxu0 0
      %1634 = vmatpush1.bf16.msra.mxu0 %v1564
      %1635 = vmatprep.subr.bf16.mxu0 0
      %1636 = vmatpush1.bf16.msra.mxu0 %v1563
      %1637 = vmatprep.subr.bf16.mxu0 0
      %1638 = vmatpush2.bf16.msra.mxu0 0
      %1639 = vmatprep.subr.bf16.mxu0 0
      %1640 = vmatpush2.bf16.msra.mxu0 0
      %1641 = vmatprep.subr.bf16.mxu0 0
      %1642 = vmatpush2.bf16.msra.mxu0 0
      %1643 = vmatprep.subr.bf16.mxu0 0
      %1644 = vmatpush2.bf16.msra.mxu0 0
      %1645 = vmatprep.subr.bf16.mxu0 0
      %1646 = vmatpush2.bf16.msra.mxu0 0
      %1647 = vmatprep.subr.bf16.mxu0 0
      %1648 = vmatpush2.bf16.msra.mxu0 0
      %1649 = vmatprep.subr.bf16.mxu0 0
      %1650 = vmatpush2.bf16.msra.mxu0 0
      %1651 = vmatprep.subr.bf16.mxu0 0
      %1652 = vmatpush2.bf16.msra.mxu0 0
      %1653 = vmatprep.mubr.bf16.mxu0 0
      %1654 = vmatmul.mubr.bf16.gmra.mxu0 %v1568
      %v1655 = vpop.f32.mrf.mxu0
      %v1656 = vadd.f32 0.0, %v1655
      %v1657 = vpop.f32.mrf.mxu0
      %v1658 = vpop.f32.mrf.mxu0
      %v1659 = vadd.f32 0.0, %v1658
      %v1660 = vpop.f32.mrf.mxu0
      %1661 = vmatprep.mubr.bf16.mxu0 0
      %1662 = vmatmul.mubr.bf16.gmra.mxu0 %v1571
      %v1663 = vpop.f32.mrf.mxu0
      %v1664 = vadd.f32 0.0, %v1663
      %v1665 = vpop.f32.mrf.mxu0
      %v1666 = vpop.f32.mrf.mxu0
      %v1667 = vadd.f32 0.0, %v1666
      %v1668 = vpop.f32.mrf.mxu0
      %1669 = vmatprep.mubr.bf16.mxu0 0
      %1670 = vmatmul.mubr.bf16.gmra.mxu0 %v1574
      %v1671 = vpop.f32.mrf.mxu0
      %v1672 = vadd.f32 0.0, %v1671
      %v1673 = vpop.f32.mrf.mxu0
      %v1674 = vpop.f32.mrf.mxu0
      %v1675 = vadd.f32 0.0, %v1674
      %v1676 = vpop.f32.mrf.mxu0
      %1677 = vmatprep.mubr.bf16.mxu0 0
      %1678 = vmatmul.mubr.bf16.gmra.mxu0 %v1577
      %v1679 = vpop.f32.mrf.mxu0
      %v1680 = vadd.f32 0.0, %v1679
      %v1681 = vpop.f32.mrf.mxu0
      %v1682 = vpop.f32.mrf.mxu0
      %v1683 = vadd.f32 0.0, %v1682
      %v1684 = vpop.f32.mrf.mxu0
      %1685 = vmatprep.mubr.bf16.mxu0 0
      %1686 = vmatmul.mubr.bf16.gmra.mxu0 %v1580
      %v1687 = vpop.f32.mrf.mxu0
      %v1688 = vadd.f32 0.0, %v1687
      %v1689 = vpop.f32.mrf.mxu0
      %v1690 = vpop.f32.mrf.mxu0
      %v1691 = vadd.f32 0.0, %v1690
      %v1692 = vpop.f32.mrf.mxu0
      %1693 = vmatprep.mubr.bf16.mxu0 0
      %1694 = vmatmul.mubr.bf16.gmra.mxu0 %v1583
      %v1695 = vpop.f32.mrf.mxu0
      %v1696 = vadd.f32 0.0, %v1695
      %v1697 = vpop.f32.mrf.mxu0
      %v1698 = vpop.f32.mrf.mxu0
      %v1699 = vadd.f32 0.0, %v1698
      %v1700 = vpop.f32.mrf.mxu0
      %1701 = vmatprep.mubr.bf16.mxu0 0
      %1702 = vmatmul.mubr.bf16.gmra.mxu0 %v1586
      %v1703 = vpop.f32.mrf.mxu0
      %v1704 = vadd.f32 0.0, %v1703
      %v1705 = vpop.f32.mrf.mxu0
      %v1706 = vpop.f32.mrf.mxu0
      %v1707 = vadd.f32 0.0, %v1706
      %v1708 = vpop.f32.mrf.mxu0
      %1709 = vmatprep.mubr.bf16.mxu0 0
      %1710 = vmatmul.mubr.bf16.gmra.mxu0 %v1589
      %v1711 = vpop.f32.mrf.mxu0
      %v1712 = vadd.f32 0.0, %v1711
      %v1713 = vpop.f32.mrf.mxu0
      %v1714 = vpop.f32.mrf.mxu0
      %v1715 = vadd.f32 0.0, %v1714
      %v1716 = vpop.f32.mrf.mxu0
      %1717 = vmatprep.mubr.bf16.mxu0 0
      %1718 = vmatmul.mubr.bf16.gmra.mxu0 %v1592
      %v1719 = vpop.f32.mrf.mxu0
      %v1720 = vadd.f32 0.0, %v1719
      %v1721 = vpop.f32.mrf.mxu0
      %v1722 = vpop.f32.mrf.mxu0
      %v1723 = vadd.f32 0.0, %v1722
      %v1724 = vpop.f32.mrf.mxu0
      %1725 = vmatprep.mubr.bf16.mxu0 0
      %1726 = vmatmul.mubr.bf16.gmra.mxu0 %v1595
      %v1727 = vpop.f32.mrf.mxu0
      %v1728 = vadd.f32 0.0, %v1727
      %v1729 = vpop.f32.mrf.mxu0
      %v1730 = vpop.f32.mrf.mxu0
      %v1731 = vadd.f32 0.0, %v1730
      %v1732 = vpop.f32.mrf.mxu0
      %1733 = vmatprep.mubr.bf16.mxu0 0
      %1734 = vmatmul.mubr.bf16.gmra.mxu0 %v1598
      %v1735 = vpop.f32.mrf.mxu0
      %v1736 = vadd.f32 0.0, %v1735
      %v1737 = vpop.f32.mrf.mxu0
      %v1738 = vpop.f32.mrf.mxu0
      %v1739 = vadd.f32 0.0, %v1738
      %v1740 = vpop.f32.mrf.mxu0
      %1741 = vmatprep.mubr.bf16.mxu0 0
      %1742 = vmatmul.mubr.bf16.gmra.mxu0 %v1601
      %v1743 = vpop.f32.mrf.mxu0
      %v1744 = vadd.f32 0.0, %v1743
      %v1745 = vpop.f32.mrf.mxu0
      %v1746 = vpop.f32.mrf.mxu0
      %v1747 = vadd.f32 0.0, %v1746
      %v1748 = vpop.f32.mrf.mxu0
      %1749 = vmatprep.mubr.bf16.mxu0 0
      %1750 = vmatmul.mubr.bf16.gmra.mxu0 %v1604
      %v1751 = vpop.f32.mrf.mxu0
      %v1752 = vadd.f32 0.0, %v1751
      %v1753 = vpop.f32.mrf.mxu0
      %v1754 = vpop.f32.mrf.mxu0
      %v1755 = vadd.f32 0.0, %v1754
      %v1756 = vpop.f32.mrf.mxu0
      %1757 = vmatprep.mubr.bf16.mxu0 0
      %1758 = vmatmul.mubr.bf16.gmra.mxu0 %v1607
      %v1759 = vpop.f32.mrf.mxu0
      %v1760 = vadd.f32 0.0, %v1759
      %v1761 = vpop.f32.mrf.mxu0
      %v1762 = vpop.f32.mrf.mxu0
      %v1763 = vadd.f32 0.0, %v1762
      %v1764 = vpop.f32.mrf.mxu0
      %1765 = vmatprep.mubr.bf16.mxu0 0
      %1766 = vmatmul.mubr.bf16.gmra.mxu0 %v1610
      %v1767 = vpop.f32.mrf.mxu0
      %v1768 = vadd.f32 0.0, %v1767
      %v1769 = vpop.f32.mrf.mxu0
      %v1770 = vpop.f32.mrf.mxu0
      %v1771 = vadd.f32 0.0, %v1770
      %v1772 = vpop.f32.mrf.mxu0
      %1773 = vmatprep.mubr.bf16.mxu0 0
      %1774 = vmatmul.mubr.bf16.gmra.mxu0 %v1613
      %v1775 = vpop.f32.mrf.mxu0
      %v1776 = vadd.f32 0.0, %v1775
      %v1777 = vpop.f32.mrf.mxu0
      %v1778 = vpop.f32.mrf.mxu0
      %v1779 = vadd.f32 0.0, %v1778
      %v1780 = vpop.f32.mrf.mxu0
      %1781 = vmatprep.mubr.bf16.mxu0 0
      %1782 = vmatmul.mubr.bf16.gmra.mxu0 %v1616
      %v1783 = vpop.f32.mrf.mxu0
      %v1784 = vadd.f32 0.0, %v1783
      %v1785 = vpop.f32.mrf.mxu0
      %v1786 = vpop.f32.mrf.mxu0
      %v1787 = vadd.f32 0.0, %v1786
      %v1788 = vpop.f32.mrf.mxu0
      %1789 = vmatprep.mubr.bf16.mxu0 0
      %1790 = vmatmul.mubr.bf16.gmra.mxu0 %v1619
      %v1791 = vpop.f32.mrf.mxu0
      %v1792 = vadd.f32 0.0, %v1791
      %v1793 = vpop.f32.mrf.mxu0
      %v1794 = vpop.f32.mrf.mxu0
      %v1795 = vadd.f32 0.0, %v1794
      %v1796 = vpop.f32.mrf.mxu0
      %1797 = vdwg.mxu0
      %v1798 = vadd.f32 %v1347, %v1656
      %v1799 = vadd.f32 %v1348, %v1659
      %v1800 = vadd.f32 %v1349, %v1664
      %v1801 = vadd.f32 %v1350, %v1667
      %v1802 = vadd.f32 %v1351, %v1672
      %v1803 = vadd.f32 %v1352, %v1675
      %v1804 = vadd.f32 %v1353, %v1680
      %v1805 = vadd.f32 %v1354, %v1683
      %v1806 = vadd.f32 %v1355, %v1688
      %v1807 = vadd.f32 %v1356, %v1691
      %v1808 = vadd.f32 %v1357, %v1696
      %v1809 = vadd.f32 %v1358, %v1699
      %v1810 = vadd.f32 %v1359, %v1704
      %v1811 = vadd.f32 %v1360, %v1707
      %v1812 = vadd.f32 %v1361, %v1712
      %v1813 = vadd.f32 %v1362, %v1715
      %v1814 = vadd.f32 %v1363, %v1720
      %v1815 = vadd.f32 %v1364, %v1723
      %v1816 = vadd.f32 %v1365, %v1728
      %v1817 = vadd.f32 %v1366, %v1731
      %v1818 = vadd.f32 %v1367, %v1736
      %v1819 = vadd.f32 %v1368, %v1739
      %v1820 = vadd.f32 %v1369, %v1744
      %v1821 = vadd.f32 %v1370, %v1747
      %v1822 = vadd.f32 %v1371, %v1752
      %v1823 = vadd.f32 %v1372, %v1755
      %v1824 = vadd.f32 %v1373, %v1760
      %v1825 = vadd.f32 %v1374, %v1763
      %v1826 = vadd.f32 %v1375, %v1768
      %v1827 = vadd.f32 %v1376, %v1771
      %v1828 = vadd.f32 %v1377, %v1776
      %v1829 = vadd.f32 %v1378, %v1779
      %v1830 = vadd.f32 %v1379, %v1784
      %v1831 = vadd.f32 %v1380, %v1787
      %v1832 = vadd.f32 %v1381, %v1792
      %v1833 = vadd.f32 %v1382, %v1795
      %v1834 = vld [vmem:[%s288 + $0x98] sm:$0x3]
      %s1835 = scalar_lea.vmem %s2, 64
      %v1836 = vld [vmem:[%s1835] sm:$0xf]
      %v1837 = vld [vmem:[%s1835 + $0x4] sm:$0xf]
      %v1838 = vld [vmem:[%s1835 + $0x8] sm:$0xf]
      %v1839 = vld [vmem:[%s1835 + $0xc] sm:$0xf]
      %v1841 = vunpack.c.l.b16 %v1834
      %v1842 = vpack.c.b16 %v1841, %v1841
      %vm1843 = vsmask.f32 6400
      %v1845 = vshrl.u32 %v1499, 16
      %v1847 = vrot.slane %v1845, 1
      %v1848 = vshll.u32 %v1499, 16
      %v1850 = vrot.slane %v1848, 2
      %v1851 = vor.u32 %v1847, %v1850
      %v1853 = vshrl.u32 %v1500, 16
      %v1855 = vrot.slane %v1853, 1
      %v1856 = vshll.u32 %v1500, 16
      %v1858 = vrot.slane %v1856, 2
      %v1859 = vor.u32 %v1855, %v1858
      %v1860 = vsel %vm1843, %v1851, %v1859
      %v1862 = vshrl.u32 %v1501, 16
      %v1864 = vrot.slane %v1862, 1
      %v1865 = vshll.u32 %v1501, 16
      %v1867 = vrot.slane %v1865, 2
      %v1868 = vor.u32 %v1864, %v1867
      %v1869 = vsel %vm1843, %v1859, %v1868
      %v1871 = vshrl.u32 %v1502, 16
      %v1873 = vrot.slane %v1871, 1
      %v1874 = vshll.u32 %v1502, 16
      %v1876 = vrot.slane %v1874, 2
      %v1877 = vor.u32 %v1873, %v1876
      %v1878 = vsel %vm1843, %v1868, %v1877
      %v1880 = vshrl.u32 %v1503, 16
      %v1882 = vrot.slane %v1880, 1
      %v1883 = vshll.u32 %v1503, 16
      %v1885 = vrot.slane %v1883, 2
      %v1886 = vor.u32 %v1882, %v1885
      %v1887 = vsel %vm1843, %v1877, %v1886
      %v1889 = vshrl.u32 %v1504, 16
      %v1891 = vrot.slane %v1889, 1
      %v1892 = vshll.u32 %v1504, 16
      %v1894 = vrot.slane %v1892, 2
      %v1895 = vor.u32 %v1891, %v1894
      %v1896 = vsel %vm1843, %v1886, %v1895
      %v1898 = vshrl.u32 %v1505, 16
      %v1900 = vrot.slane %v1898, 1
      %v1901 = vshll.u32 %v1505, 16
      %v1903 = vrot.slane %v1901, 2
      %v1904 = vor.u32 %v1900, %v1903
      %v1905 = vsel %vm1843, %v1895, %v1904
      %v1907 = vshrl.u32 %v1506, 16
      %v1909 = vrot.slane %v1907, 1
      %v1910 = vshll.u32 %v1506, 16
      %v1912 = vrot.slane %v1910, 2
      %v1913 = vor.u32 %v1909, %v1912
      %v1914 = vsel %vm1843, %v1904, %v1913
      %v1916 = vshrl.u32 %v1507, 16
      %v1918 = vrot.slane %v1916, 1
      %v1919 = vshll.u32 %v1507, 16
      %v1921 = vrot.slane %v1919, 2
      %v1922 = vor.u32 %v1918, %v1921
      %v1923 = vsel %vm1843, %v1913, %v1922
      %v1925 = vshrl.u32 %v1508, 16
      %v1927 = vrot.slane %v1925, 1
      %v1928 = vshll.u32 %v1508, 16
      %v1930 = vrot.slane %v1928, 2
      %v1931 = vor.u32 %v1927, %v1930
      %v1932 = vsel %vm1843, %v1922, %v1931
      %v1934 = vshrl.u32 %v1509, 16
      %v1936 = vrot.slane %v1934, 1
      %v1937 = vshll.u32 %v1509, 16
      %v1939 = vrot.slane %v1937, 2
      %v1940 = vor.u32 %v1936, %v1939
      %v1941 = vsel %vm1843, %v1931, %v1940
      %v1943 = vshrl.u32 %v1510, 16
      %v1945 = vrot.slane %v1943, 1
      %v1946 = vshll.u32 %v1510, 16
      %v1948 = vrot.slane %v1946, 2
      %v1949 = vor.u32 %v1945, %v1948
      %v1950 = vsel %vm1843, %v1940, %v1949
      %v1952 = vshrl.u32 %v1511, 16
      %v1954 = vrot.slane %v1952, 1
      %v1955 = vshll.u32 %v1511, 16
      %v1957 = vrot.slane %v1955, 2
      %v1958 = vor.u32 %v1954, %v1957
      %v1959 = vsel %vm1843, %v1949, %v1958
      %v1961 = vshrl.u32 %v1512, 16
      %v1963 = vrot.slane %v1961, 1
      %v1964 = vshll.u32 %v1512, 16
      %v1966 = vrot.slane %v1964, 2
      %v1967 = vor.u32 %v1963, %v1966
      %v1968 = vsel %vm1843, %v1958, %v1967
      %v1970 = vshrl.u32 %v1513, 16
      %v1972 = vrot.slane %v1970, 1
      %v1973 = vshll.u32 %v1513, 16
      %v1975 = vrot.slane %v1973, 2
      %v1976 = vor.u32 %v1972, %v1975
      %v1977 = vsel %vm1843, %v1967, %v1976
      %v1979 = vshrl.u32 %v1514, 16
      %v1981 = vrot.slane %v1979, 1
      %v1982 = vshll.u32 %v1514, 16
      %v1984 = vrot.slane %v1982, 2
      %v1985 = vor.u32 %v1981, %v1984
      %v1986 = vsel %vm1843, %v1976, %v1985
      %v1988 = vshrl.u32 %v1515, 16
      %v1990 = vrot.slane %v1988, 1
      %v1991 = vshll.u32 %v1515, 16
      %v1993 = vrot.slane %v1991, 2
      %v1994 = vor.u32 %v1990, %v1993
      %v1995 = vsel %vm1843, %v1985, %v1994
      %v1997 = vshrl.u32 %v1516, 16
      %v1999 = vrot.slane %v1997, 1
      %v2000 = vshll.u32 %v1516, 16
      %v2002 = vrot.slane %v2000, 2
      %v2003 = vor.u32 %v1999, %v2002
      %v2004 = vsel %vm1843, %v1994, %v2003
      %v2006 = vshrl.u32 %v1842, 16
      %v2008 = vrot.slane %v2006, 1
      %v2009 = vshll.u32 %v1842, 16
      %v2011 = vrot.slane %v2009, 2
      %v2012 = vor.u32 %v2008, %v2011
      %v2013 = vsel %vm1843, %v2003, %v2012
      %v2018 = vunpack.c.l.b16 %v1836
      %v2019 = vunpack.c.l.b16 %v1837
      %v2020 = vunpack.c.l.b16 %v1838
      %v2021 = vunpack.c.l.b16 %v1839
      %v2022 = vpack.c.b16 %v2019, %v2018
      %v2023 = vpack.c.b16 %v2021, %v2020
      %v2027 = vsel %vm600, %v1860, 0
      %v2030 = vsel %vm600, %v1869, 0
      %v2033 = vsel %vm600, %v1878, 0
      %v2036 = vsel %vm600, %v1887, 0
      %v2039 = vsel %vm600, %v1896, 0
      %v2042 = vsel %vm600, %v1905, 0
      %v2045 = vsel %vm600, %v1914, 0
      %v2048 = vsel %vm600, %v1923, 0
      %v2051 = vsel %vm600, %v1932, 0
      %v2054 = vsel %vm600, %v1941, 0
      %v2057 = vsel %vm600, %v1950, 0
      %v2060 = vsel %vm600, %v1959, 0
      %v2063 = vsel %vm600, %v1968, 0
      %v2066 = vsel %vm600, %v1977, 0
      %v2069 = vsel %vm600, %v1986, 0
      %v2072 = vsel %vm600, %v1995, 0
      %v2075 = vsel %vm600, %v2004, 0
      %v2078 = vsel %vm600, %v2013, 0
      %2080 = vmatprep.subr.bf16.mxu0 0
      %2081 = vmatpush1.bf16.msra.mxu0 0
      %2082 = vmatprep.subr.bf16.mxu0 0
      %2083 = vmatpush1.bf16.msra.mxu0 0
      %2084 = vmatprep.subr.bf16.mxu0 0
      %2085 = vmatpush1.bf16.msra.mxu0 0
      %2086 = vmatprep.subr.bf16.mxu0 0
      %2087 = vmatpush1.bf16.msra.mxu0 0
      %2088 = vmatprep.subr.bf16.mxu0 0
      %2089 = vmatpush1.bf16.msra.mxu0 0
      %2090 = vmatprep.subr.bf16.mxu0 0
      %2091 = vmatpush1.bf16.msra.mxu0 0
      %2092 = vmatprep.subr.bf16.mxu0 0
      %2093 = vmatpush1.bf16.msra.mxu0 %v2023
      %2094 = vmatprep.subr.bf16.mxu0 0
      %2095 = vmatpush1.bf16.msra.mxu0 %v2022
      %2096 = vmatprep.subr.bf16.mxu0 0
      %2097 = vmatpush2.bf16.msra.mxu0 0
      %2098 = vmatprep.subr.bf16.mxu0 0
      %2099 = vmatpush2.bf16.msra.mxu0 0
      %2100 = vmatprep.subr.bf16.mxu0 0
      %2101 = vmatpush2.bf16.msra.mxu0 0
      %2102 = vmatprep.subr.bf16.mxu0 0
      %2103 = vmatpush2.bf16.msra.mxu0 0
      %2104 = vmatprep.subr.bf16.mxu0 0
      %2105 = vmatpush2.bf16.msra.mxu0 0
      %2106 = vmatprep.subr.bf16.mxu0 0
      %2107 = vmatpush2.bf16.msra.mxu0 0
      %2108 = vmatprep.subr.bf16.mxu0 0
      %2109 = vmatpush2.bf16.msra.mxu0 0
      %2110 = vmatprep.subr.bf16.mxu0 0
      %2111 = vmatpush2.bf16.msra.mxu0 0
      %2112 = vmatprep.mubr.bf16.mxu0 0
      %2113 = vmatmul.mubr.bf16.gmra.mxu0 %v2027
      %v2114 = vpop.f32.mrf.mxu0
      %v2115 = vadd.f32 0.0, %v2114
      %v2116 = vpop.f32.mrf.mxu0
      %v2117 = vpop.f32.mrf.mxu0
      %v2118 = vadd.f32 0.0, %v2117
      %v2119 = vpop.f32.mrf.mxu0
      %2120 = vmatprep.mubr.bf16.mxu0 0
      %2121 = vmatmul.mubr.bf16.gmra.mxu0 %v2030
      %v2122 = vpop.f32.mrf.mxu0
      %v2123 = vadd.f32 0.0, %v2122
      %v2124 = vpop.f32.mrf.mxu0
      %v2125 = vpop.f32.mrf.mxu0
      %v2126 = vadd.f32 0.0, %v2125
      %v2127 = vpop.f32.mrf.mxu0
      %2128 = vmatprep.mubr.bf16.mxu0 0
      %2129 = vmatmul.mubr.bf16.gmra.mxu0 %v2033
      %v2130 = vpop.f32.mrf.mxu0
      %v2131 = vadd.f32 0.0, %v2130
      %v2132 = vpop.f32.mrf.mxu0
      %v2133 = vpop.f32.mrf.mxu0
      %v2134 = vadd.f32 0.0, %v2133
      %v2135 = vpop.f32.mrf.mxu0
      %2136 = vmatprep.mubr.bf16.mxu0 0
      %2137 = vmatmul.mubr.bf16.gmra.mxu0 %v2036
      %v2138 = vpop.f32.mrf.mxu0
      %v2139 = vadd.f32 0.0, %v2138
      %v2140 = vpop.f32.mrf.mxu0
      %v2141 = vpop.f32.mrf.mxu0
      %v2142 = vadd.f32 0.0, %v2141
      %v2143 = vpop.f32.mrf.mxu0
      %2144 = vmatprep.mubr.bf16.mxu0 0
      %2145 = vmatmul.mubr.bf16.gmra.mxu0 %v2039
      %v2146 = vpop.f32.mrf.mxu0
      %v2147 = vadd.f32 0.0, %v2146
      %v2148 = vpop.f32.mrf.mxu0
      %v2149 = vpop.f32.mrf.mxu0
      %v2150 = vadd.f32 0.0, %v2149
      %v2151 = vpop.f32.mrf.mxu0
      %2152 = vmatprep.mubr.bf16.mxu0 0
      %2153 = vmatmul.mubr.bf16.gmra.mxu0 %v2042
      %v2154 = vpop.f32.mrf.mxu0
      %v2155 = vadd.f32 0.0, %v2154
      %v2156 = vpop.f32.mrf.mxu0
      %v2157 = vpop.f32.mrf.mxu0
      %v2158 = vadd.f32 0.0, %v2157
      %v2159 = vpop.f32.mrf.mxu0
      %2160 = vmatprep.mubr.bf16.mxu0 0
      %2161 = vmatmul.mubr.bf16.gmra.mxu0 %v2045
      %v2162 = vpop.f32.mrf.mxu0
      %v2163 = vadd.f32 0.0, %v2162
      %v2164 = vpop.f32.mrf.mxu0
      %v2165 = vpop.f32.mrf.mxu0
      %v2166 = vadd.f32 0.0, %v2165
      %v2167 = vpop.f32.mrf.mxu0
      %2168 = vmatprep.mubr.bf16.mxu0 0
      %2169 = vmatmul.mubr.bf16.gmra.mxu0 %v2048
      %v2170 = vpop.f32.mrf.mxu0
      %v2171 = vadd.f32 0.0, %v2170
      %v2172 = vpop.f32.mrf.mxu0
      %v2173 = vpop.f32.mrf.mxu0
      %v2174 = vadd.f32 0.0, %v2173
      %v2175 = vpop.f32.mrf.mxu0
      %2176 = vmatprep.mubr.bf16.mxu0 0
      %2177 = vmatmul.mubr.bf16.gmra.mxu0 %v2051
      %v2178 = vpop.f32.mrf.mxu0
      %v2179 = vadd.f32 0.0, %v2178
      %v2180 = vpop.f32.mrf.mxu0
      %v2181 = vpop.f32.mrf.mxu0
      %v2182 = vadd.f32 0.0, %v2181
      %v2183 = vpop.f32.mrf.mxu0
      %2184 = vmatprep.mubr.bf16.mxu0 0
      %2185 = vmatmul.mubr.bf16.gmra.mxu0 %v2054
      %v2186 = vpop.f32.mrf.mxu0
      %v2187 = vadd.f32 0.0, %v2186
      %v2188 = vpop.f32.mrf.mxu0
      %v2189 = vpop.f32.mrf.mxu0
      %v2190 = vadd.f32 0.0, %v2189
      %v2191 = vpop.f32.mrf.mxu0
      %2192 = vmatprep.mubr.bf16.mxu0 0
      %2193 = vmatmul.mubr.bf16.gmra.mxu0 %v2057
      %v2194 = vpop.f32.mrf.mxu0
      %v2195 = vadd.f32 0.0, %v2194
      %v2196 = vpop.f32.mrf.mxu0
      %v2197 = vpop.f32.mrf.mxu0
      %v2198 = vadd.f32 0.0, %v2197
      %v2199 = vpop.f32.mrf.mxu0
      %2200 = vmatprep.mubr.bf16.mxu0 0
      %2201 = vmatmul.mubr.bf16.gmra.mxu0 %v2060
      %v2202 = vpop.f32.mrf.mxu0
      %v2203 = vadd.f32 0.0, %v2202
      %v2204 = vpop.f32.mrf.mxu0
      %v2205 = vpop.f32.mrf.mxu0
      %v2206 = vadd.f32 0.0, %v2205
      %v2207 = vpop.f32.mrf.mxu0
      %2208 = vmatprep.mubr.bf16.mxu0 0
      %2209 = vmatmul.mubr.bf16.gmra.mxu0 %v2063
      %v2210 = vpop.f32.mrf.mxu0
      %v2211 = vadd.f32 0.0, %v2210
      %v2212 = vpop.f32.mrf.mxu0
      %v2213 = vpop.f32.mrf.mxu0
      %v2214 = vadd.f32 0.0, %v2213
      %v2215 = vpop.f32.mrf.mxu0
      %2216 = vmatprep.mubr.bf16.mxu0 0
      %2217 = vmatmul.mubr.bf16.gmra.mxu0 %v2066
      %v2218 = vpop.f32.mrf.mxu0
      %v2219 = vadd.f32 0.0, %v2218
      %v2220 = vpop.f32.mrf.mxu0
      %v2221 = vpop.f32.mrf.mxu0
      %v2222 = vadd.f32 0.0, %v2221
      %v2223 = vpop.f32.mrf.mxu0
      %2224 = vmatprep.mubr.bf16.mxu0 0
      %2225 = vmatmul.mubr.bf16.gmra.mxu0 %v2069
      %v2226 = vpop.f32.mrf.mxu0
      %v2227 = vadd.f32 0.0, %v2226
      %v2228 = vpop.f32.mrf.mxu0
      %v2229 = vpop.f32.mrf.mxu0
      %v2230 = vadd.f32 0.0, %v2229
      %v2231 = vpop.f32.mrf.mxu0
      %2232 = vmatprep.mubr.bf16.mxu0 0
      %2233 = vmatmul.mubr.bf16.gmra.mxu0 %v2072
      %v2234 = vpop.f32.mrf.mxu0
      %v2235 = vadd.f32 0.0, %v2234
      %v2236 = vpop.f32.mrf.mxu0
      %v2237 = vpop.f32.mrf.mxu0
      %v2238 = vadd.f32 0.0, %v2237
      %v2239 = vpop.f32.mrf.mxu0
      %2240 = vmatprep.mubr.bf16.mxu0 0
      %2241 = vmatmul.mubr.bf16.gmra.mxu0 %v2075
      %v2242 = vpop.f32.mrf.mxu0
      %v2243 = vadd.f32 0.0, %v2242
      %v2244 = vpop.f32.mrf.mxu0
      %v2245 = vpop.f32.mrf.mxu0
      %v2246 = vadd.f32 0.0, %v2245
      %v2247 = vpop.f32.mrf.mxu0
      %2248 = vmatprep.mubr.bf16.mxu0 0
      %2249 = vmatmul.mubr.bf16.gmra.mxu0 %v2078
      %v2250 = vpop.f32.mrf.mxu0
      %v2251 = vadd.f32 0.0, %v2250
      %v2252 = vpop.f32.mrf.mxu0
      %v2253 = vpop.f32.mrf.mxu0
      %v2254 = vadd.f32 0.0, %v2253
      %v2255 = vpop.f32.mrf.mxu0
      %2256 = vdwg.mxu0
      %v2257 = vadd.f32 %v1798, %v2115
      %v2258 = vadd.f32 %v1799, %v2118
      %v2259 = vadd.f32 %v1800, %v2123
      %v2260 = vadd.f32 %v1801, %v2126
      %v2261 = vadd.f32 %v1802, %v2131
      %v2262 = vadd.f32 %v1803, %v2134
      %v2263 = vadd.f32 %v1804, %v2139
      %v2264 = vadd.f32 %v1805, %v2142
      %v2265 = vadd.f32 %v1806, %v2147
      %v2266 = vadd.f32 %v1807, %v2150
      %v2267 = vadd.f32 %v1808, %v2155
      %v2268 = vadd.f32 %v1809, %v2158
      %v2269 = vadd.f32 %v1810, %v2163
      %v2270 = vadd.f32 %v1811, %v2166
      %v2271 = vadd.f32 %v1812, %v2171
      %v2272 = vadd.f32 %v1813, %v2174
      %v2273 = vadd.f32 %v1814, %v2179
      %v2274 = vadd.f32 %v1815, %v2182
      %v2275 = vadd.f32 %v1816, %v2187
      %v2276 = vadd.f32 %v1817, %v2190
      %v2277 = vadd.f32 %v1818, %v2195
      %v2278 = vadd.f32 %v1819, %v2198
      %v2279 = vadd.f32 %v1820, %v2203
      %v2280 = vadd.f32 %v1821, %v2206
      %v2281 = vadd.f32 %v1822, %v2211
      %v2282 = vadd.f32 %v1823, %v2214
      %v2283 = vadd.f32 %v1824, %v2219
      %v2284 = vadd.f32 %v1825, %v2222
      %v2285 = vadd.f32 %v1826, %v2227
      %v2286 = vadd.f32 %v1827, %v2230
      %v2287 = vadd.f32 %v1828, %v2235
      %v2288 = vadd.f32 %v1829, %v2238
      %v2289 = vadd.f32 %v1830, %v2243
      %v2290 = vadd.f32 %v1831, %v2246
      %v2291 = vadd.f32 %v1832, %v2251
      %v2292 = vadd.f32 %v1833, %v2254
      %v2293 = vld [vmem:[%s288 + $0x8] sm:$0xc]
      %s2294 = scalar_lea.vmem %s2, 80
      %v2295 = vld [vmem:[%s2294] sm:$0xf]
      %v2296 = vld [vmem:[%s2294 + $0x4] sm:$0xf]
      %v2297 = vld [vmem:[%s2294 + $0x8] sm:$0xf]
      %v2298 = vld [vmem:[%s2294 + $0xc] sm:$0xf]
      %v2300 = vunpack.c.l.b16 %v2293
      %v2301 = vpack.c.b16 %v1463, %v2300
      %vm2302 = vcmask 1045504
      %v2303 = vrot.slane %v2301, 2
      %v2304 = vrot.slane %v1500, 2
      %v2305 = vsel %vm2302, %v2303, %v2304
      %v2306 = vrot.slane %v1501, 2
      %v2307 = vsel %vm2302, %v2304, %v2306
      %v2308 = vrot.slane %v1502, 2
      %v2309 = vsel %vm2302, %v2306, %v2308
      %v2310 = vrot.slane %v1503, 2
      %v2311 = vsel %vm2302, %v2308, %v2310
      %v2312 = vrot.slane %v1504, 2
      %v2313 = vsel %vm2302, %v2310, %v2312
      %v2314 = vrot.slane %v1505, 2
      %v2315 = vsel %vm2302, %v2312, %v2314
      %v2316 = vrot.slane %v1506, 2
      %v2317 = vsel %vm2302, %v2314, %v2316
      %v2318 = vrot.slane %v1507, 2
      %v2319 = vsel %vm2302, %v2316, %v2318
      %v2320 = vrot.slane %v1508, 2
      %v2321 = vsel %vm2302, %v2318, %v2320
      %v2322 = vrot.slane %v1509, 2
      %v2323 = vsel %vm2302, %v2320, %v2322
      %v2324 = vrot.slane %v1510, 2
      %v2325 = vsel %vm2302, %v2322, %v2324
      %v2326 = vrot.slane %v1511, 2
      %v2327 = vsel %vm2302, %v2324, %v2326
      %v2328 = vrot.slane %v1512, 2
      %v2329 = vsel %vm2302, %v2326, %v2328
      %v2330 = vrot.slane %v1513, 2
      %v2331 = vsel %vm2302, %v2328, %v2330
      %v2332 = vrot.slane %v1514, 2
      %v2333 = vsel %vm2302, %v2330, %v2332
      %v2334 = vrot.slane %v1515, 2
      %v2335 = vsel %vm2302, %v2332, %v2334
      %v2336 = vrot.slane %v1516, 2
      %v2337 = vsel %vm2302, %v2334, %v2336
      %v2338 = vrot.slane %v1842, 2
      %v2339 = vsel %vm2302, %v2336, %v2338
      %v2344 = vunpack.c.l.b16 %v2295
      %v2345 = vunpack.c.l.b16 %v2296
      %v2346 = vunpack.c.l.b16 %v2297
      %v2347 = vunpack.c.l.b16 %v2298
      %v2348 = vpack.c.b16 %v2345, %v2344
      %v2349 = vpack.c.b16 %v2347, %v2346
      %v2353 = vsel %vm600, %v2305, 0
      %v2356 = vsel %vm600, %v2307, 0
      %v2359 = vsel %vm600, %v2309, 0
      %v2362 = vsel %vm600, %v2311, 0
      %v2365 = vsel %vm600, %v2313, 0
      %v2368 = vsel %vm600, %v2315, 0
      %v2371 = vsel %vm600, %v2317, 0
      %v2374 = vsel %vm600, %v2319, 0
      %v2377 = vsel %vm600, %v2321, 0
      %v2380 = vsel %vm600, %v2323, 0
      %v2383 = vsel %vm600, %v2325, 0
      %v2386 = vsel %vm600, %v2327, 0
      %v2389 = vsel %vm600, %v2329, 0
      %v2392 = vsel %vm600, %v2331, 0
      %v2395 = vsel %vm600, %v2333, 0
      %v2398 = vsel %vm600, %v2335, 0
      %v2401 = vsel %vm600, %v2337, 0
      %v2404 = vsel %vm600, %v2339, 0
      %2406 = vmatprep.subr.bf16.mxu0 0
      %2407 = vmatpush1.bf16.msra.mxu0 0
      %2408 = vmatprep.subr.bf16.mxu0 0
      %2409 = vmatpush1.bf16.msra.mxu0 0
      %2410 = vmatprep.subr.bf16.mxu0 0
      %2411 = vmatpush1.bf16.msra.mxu0 0
      %2412 = vmatprep.subr.bf16.mxu0 0
      %2413 = vmatpush1.bf16.msra.mxu0 0
      %2414 = vmatprep.subr.bf16.mxu0 0
      %2415 = vmatpush1.bf16.msra.mxu0 0
      %2416 = vmatprep.subr.bf16.mxu0 0
      %2417 = vmatpush1.bf16.msra.mxu0 0
      %2418 = vmatprep.subr.bf16.mxu0 0
      %2419 = vmatpush1.bf16.msra.mxu0 %v2349
      %2420 = vmatprep.subr.bf16.mxu0 0
      %2421 = vmatpush1.bf16.msra.mxu0 %v2348
      %2422 = vmatprep.subr.bf16.mxu0 0
      %2423 = vmatpush2.bf16.msra.mxu0 0
      %2424 = vmatprep.subr.bf16.mxu0 0
      %2425 = vmatpush2.bf16.msra.mxu0 0
      %2426 = vmatprep.subr.bf16.mxu0 0
      %2427 = vmatpush2.bf16.msra.mxu0 0
      %2428 = vmatprep.subr.bf16.mxu0 0
      %2429 = vmatpush2.bf16.msra.mxu0 0
      %2430 = vmatprep.subr.bf16.mxu0 0
      %2431 = vmatpush2.bf16.msra.mxu0 0
      %2432 = vmatprep.subr.bf16.mxu0 0
      %2433 = vmatpush2.bf16.msra.mxu0 0
      %2434 = vmatprep.subr.bf16.mxu0 0
      %2435 = vmatpush2.bf16.msra.mxu0 0
      %2436 = vmatprep.subr.bf16.mxu0 0
      %2437 = vmatpush2.bf16.msra.mxu0 0
      %2438 = vmatprep.mubr.bf16.mxu0 0
      %2439 = vmatmul.mubr.bf16.gmra.mxu0 %v2353
      %v2440 = vpop.f32.mrf.mxu0
      %v2441 = vadd.f32 0.0, %v2440
      %v2442 = vpop.f32.mrf.mxu0
      %v2443 = vpop.f32.mrf.mxu0
      %v2444 = vadd.f32 0.0, %v2443
      %v2445 = vpop.f32.mrf.mxu0
      %2446 = vmatprep.mubr.bf16.mxu0 0
      %2447 = vmatmul.mubr.bf16.gmra.mxu0 %v2356
      %v2448 = vpop.f32.mrf.mxu0
      %v2449 = vadd.f32 0.0, %v2448
      %v2450 = vpop.f32.mrf.mxu0
      %v2451 = vpop.f32.mrf.mxu0
      %v2452 = vadd.f32 0.0, %v2451
      %v2453 = vpop.f32.mrf.mxu0
      %2454 = vmatprep.mubr.bf16.mxu0 0
      %2455 = vmatmul.mubr.bf16.gmra.mxu0 %v2359
      %v2456 = vpop.f32.mrf.mxu0
      %v2457 = vadd.f32 0.0, %v2456
      %v2458 = vpop.f32.mrf.mxu0
      %v2459 = vpop.f32.mrf.mxu0
      %v2460 = vadd.f32 0.0, %v2459
      %v2461 = vpop.f32.mrf.mxu0
      %2462 = vmatprep.mubr.bf16.mxu0 0
      %2463 = vmatmul.mubr.bf16.gmra.mxu0 %v2362
      %v2464 = vpop.f32.mrf.mxu0
      %v2465 = vadd.f32 0.0, %v2464
      %v2466 = vpop.f32.mrf.mxu0
      %v2467 = vpop.f32.mrf.mxu0
      %v2468 = vadd.f32 0.0, %v2467
      %v2469 = vpop.f32.mrf.mxu0
      %2470 = vmatprep.mubr.bf16.mxu0 0
      %2471 = vmatmul.mubr.bf16.gmra.mxu0 %v2365
      %v2472 = vpop.f32.mrf.mxu0
      %v2473 = vadd.f32 0.0, %v2472
      %v2474 = vpop.f32.mrf.mxu0
      %v2475 = vpop.f32.mrf.mxu0
      %v2476 = vadd.f32 0.0, %v2475
      %v2477 = vpop.f32.mrf.mxu0
      %2478 = vmatprep.mubr.bf16.mxu0 0
      %2479 = vmatmul.mubr.bf16.gmra.mxu0 %v2368
      %v2480 = vpop.f32.mrf.mxu0
      %v2481 = vadd.f32 0.0, %v2480
      %v2482 = vpop.f32.mrf.mxu0
      %v2483 = vpop.f32.mrf.mxu0
      %v2484 = vadd.f32 0.0, %v2483
      %v2485 = vpop.f32.mrf.mxu0
      %2486 = vmatprep.mubr.bf16.mxu0 0
      %2487 = vmatmul.mubr.bf16.gmra.mxu0 %v2371
      %v2488 = vpop.f32.mrf.mxu0
      %v2489 = vadd.f32 0.0, %v2488
      %v2490 = vpop.f32.mrf.mxu0
      %v2491 = vpop.f32.mrf.mxu0
      %v2492 = vadd.f32 0.0, %v2491
      %v2493 = vpop.f32.mrf.mxu0
      %2494 = vmatprep.mubr.bf16.mxu0 0
      %2495 = vmatmul.mubr.bf16.gmra.mxu0 %v2374
      %v2496 = vpop.f32.mrf.mxu0
      %v2497 = vadd.f32 0.0, %v2496
      %v2498 = vpop.f32.mrf.mxu0
      %v2499 = vpop.f32.mrf.mxu0
      %v2500 = vadd.f32 0.0, %v2499
      %v2501 = vpop.f32.mrf.mxu0
      %2502 = vmatprep.mubr.bf16.mxu0 0
      %2503 = vmatmul.mubr.bf16.gmra.mxu0 %v2377
      %v2504 = vpop.f32.mrf.mxu0
      %v2505 = vadd.f32 0.0, %v2504
      %v2506 = vpop.f32.mrf.mxu0
      %v2507 = vpop.f32.mrf.mxu0
      %v2508 = vadd.f32 0.0, %v2507
      %v2509 = vpop.f32.mrf.mxu0
      %2510 = vmatprep.mubr.bf16.mxu0 0
      %2511 = vmatmul.mubr.bf16.gmra.mxu0 %v2380
      %v2512 = vpop.f32.mrf.mxu0
      %v2513 = vadd.f32 0.0, %v2512
      %v2514 = vpop.f32.mrf.mxu0
      %v2515 = vpop.f32.mrf.mxu0
      %v2516 = vadd.f32 0.0, %v2515
      %v2517 = vpop.f32.mrf.mxu0
      %2518 = vmatprep.mubr.bf16.mxu0 0
      %2519 = vmatmul.mubr.bf16.gmra.mxu0 %v2383
      %v2520 = vpop.f32.mrf.mxu0
      %v2521 = vadd.f32 0.0, %v2520
      %v2522 = vpop.f32.mrf.mxu0
      %v2523 = vpop.f32.mrf.mxu0
      %v2524 = vadd.f32 0.0, %v2523
      %v2525 = vpop.f32.mrf.mxu0
      %2526 = vmatprep.mubr.bf16.mxu0 0
      %2527 = vmatmul.mubr.bf16.gmra.mxu0 %v2386
      %v2528 = vpop.f32.mrf.mxu0
      %v2529 = vadd.f32 0.0, %v2528
      %v2530 = vpop.f32.mrf.mxu0
      %v2531 = vpop.f32.mrf.mxu0
      %v2532 = vadd.f32 0.0, %v2531
      %v2533 = vpop.f32.mrf.mxu0
      %2534 = vmatprep.mubr.bf16.mxu0 0
      %2535 = vmatmul.mubr.bf16.gmra.mxu0 %v2389
      %v2536 = vpop.f32.mrf.mxu0
      %v2537 = vadd.f32 0.0, %v2536
      %v2538 = vpop.f32.mrf.mxu0
      %v2539 = vpop.f32.mrf.mxu0
      %v2540 = vadd.f32 0.0, %v2539
      %v2541 = vpop.f32.mrf.mxu0
      %2542 = vmatprep.mubr.bf16.mxu0 0
      %2543 = vmatmul.mubr.bf16.gmra.mxu0 %v2392
      %v2544 = vpop.f32.mrf.mxu0
      %v2545 = vadd.f32 0.0, %v2544
      %v2546 = vpop.f32.mrf.mxu0
      %v2547 = vpop.f32.mrf.mxu0
      %v2548 = vadd.f32 0.0, %v2547
      %v2549 = vpop.f32.mrf.mxu0
      %2550 = vmatprep.mubr.bf16.mxu0 0
      %2551 = vmatmul.mubr.bf16.gmra.mxu0 %v2395
      %v2552 = vpop.f32.mrf.mxu0
      %v2553 = vadd.f32 0.0, %v2552
      %v2554 = vpop.f32.mrf.mxu0
      %v2555 = vpop.f32.mrf.mxu0
      %v2556 = vadd.f32 0.0, %v2555
      %v2557 = vpop.f32.mrf.mxu0
      %2558 = vmatprep.mubr.bf16.mxu0 0
      %2559 = vmatmul.mubr.bf16.gmra.mxu0 %v2398
      %v2560 = vpop.f32.mrf.mxu0
      %v2561 = vadd.f32 0.0, %v2560
      %v2562 = vpop.f32.mrf.mxu0
      %v2563 = vpop.f32.mrf.mxu0
      %v2564 = vadd.f32 0.0, %v2563
      %v2565 = vpop.f32.mrf.mxu0
      %2566 = vmatprep.mubr.bf16.mxu0 0
      %2567 = vmatmul.mubr.bf16.gmra.mxu0 %v2401
      %v2568 = vpop.f32.mrf.mxu0
      %v2569 = vadd.f32 0.0, %v2568
      %v2570 = vpop.f32.mrf.mxu0
      %v2571 = vpop.f32.mrf.mxu0
      %v2572 = vadd.f32 0.0, %v2571
      %v2573 = vpop.f32.mrf.mxu0
      %2574 = vmatprep.mubr.bf16.mxu0 0
      %2575 = vmatmul.mubr.bf16.gmra.mxu0 %v2404
      %v2576 = vpop.f32.mrf.mxu0
      %v2577 = vadd.f32 0.0, %v2576
      %v2578 = vpop.f32.mrf.mxu0
      %v2579 = vpop.f32.mrf.mxu0
      %v2580 = vadd.f32 0.0, %v2579
      %v2581 = vpop.f32.mrf.mxu0
      %2582 = vdwg.mxu0
      %v2583 = vadd.f32 %v2257, %v2441
      %v2584 = vadd.f32 %v2258, %v2444
      %v2585 = vadd.f32 %v2259, %v2449
      %v2586 = vadd.f32 %v2260, %v2452
      %v2587 = vadd.f32 %v2261, %v2457
      %v2588 = vadd.f32 %v2262, %v2460
      %v2589 = vadd.f32 %v2263, %v2465
      %v2590 = vadd.f32 %v2264, %v2468
      %v2591 = vadd.f32 %v2265, %v2473
      %v2592 = vadd.f32 %v2266, %v2476
      %v2593 = vadd.f32 %v2267, %v2481
      %v2594 = vadd.f32 %v2268, %v2484
      %v2595 = vadd.f32 %v2269, %v2489
      %v2596 = vadd.f32 %v2270, %v2492
      %v2597 = vadd.f32 %v2271, %v2497
      %v2598 = vadd.f32 %v2272, %v2500
      %v2599 = vadd.f32 %v2273, %v2505
      %v2600 = vadd.f32 %v2274, %v2508
      %v2601 = vadd.f32 %v2275, %v2513
      %v2602 = vadd.f32 %v2276, %v2516
      %v2603 = vadd.f32 %v2277, %v2521
      %v2604 = vadd.f32 %v2278, %v2524
      %v2605 = vadd.f32 %v2279, %v2529
      %v2606 = vadd.f32 %v2280, %v2532
      %v2607 = vadd.f32 %v2281, %v2537
      %v2608 = vadd.f32 %v2282, %v2540
      %v2609 = vadd.f32 %v2283, %v2545
      %v2610 = vadd.f32 %v2284, %v2548
      %v2611 = vadd.f32 %v2285, %v2553
      %v2612 = vadd.f32 %v2286, %v2556
      %v2613 = vadd.f32 %v2287, %v2561
      %v2614 = vadd.f32 %v2288, %v2564
      %v2615 = vadd.f32 %v2289, %v2569
      %v2616 = vadd.f32 %v2290, %v2572
      %v2617 = vadd.f32 %v2291, %v2577
      %v2618 = vadd.f32 %v2292, %v2580
      %v2619 = vld [vmem:[%s288 + $0x10] sm:$0xc]
      %v2620 = vld [vmem:[%s288 + $0x14] sm:$0xf]
      %v2621 = vld [vmem:[%s288 + $0x18] sm:$0xf]
      %v2622 = vld [vmem:[%s288 + $0x1c] sm:$0xf]
      %v2623 = vld [vmem:[%s288 + $0x20] sm:$0xf]
      %v2624 = vld [vmem:[%s288 + $0x24] sm:$0xf]
      %v2625 = vld [vmem:[%s288 + $0x28] sm:$0xf]
      %v2626 = vld [vmem:[%s288 + $0x2c] sm:$0xf]
      %v2627 = vld [vmem:[%s288 + $0x30] sm:$0xf]
      %v2628 = vld [vmem:[%s288 + $0x34] sm:$0xf]
      %v2629 = vld [vmem:[%s288 + $0x38] sm:$0xf]
      %v2630 = vld [vmem:[%s288 + $0x3c] sm:$0xf]
      %v2631 = vld [vmem:[%s288 + $0x40] sm:$0xf]
      %v2632 = vld [vmem:[%s288 + $0x44] sm:$0xf]
      %v2633 = vld [vmem:[%s288 + $0x48] sm:$0xf]
      %v2634 = vld [vmem:[%s288 + $0x4c] sm:$0xf]
      %v2635 = vld [vmem:[%s288 + $0x50] sm:$0xf]
      %v2636 = vld [vmem:[%s288 + $0x54] sm:$0xf]
      %v2637 = vld [vmem:[%s288 + $0x58] sm:$0xf]
      %v2638 = vld [vmem:[%s288 + $0x5c] sm:$0xf]
      %v2639 = vld [vmem:[%s288 + $0x60] sm:$0xf]
      %v2640 = vld [vmem:[%s288 + $0x64] sm:$0xf]
      %v2641 = vld [vmem:[%s288 + $0x68] sm:$0xf]
      %v2642 = vld [vmem:[%s288 + $0x6c] sm:$0xf]
      %v2643 = vld [vmem:[%s288 + $0x70] sm:$0xf]
      %v2644 = vld [vmem:[%s288 + $0x74] sm:$0xf]
      %v2645 = vld [vmem:[%s288 + $0x78] sm:$0xf]
      %v2646 = vld [vmem:[%s288 + $0x7c] sm:$0xf]
      %v2647 = vld [vmem:[%s288 + $0x80] sm:$0xf]
      %v2648 = vld [vmem:[%s288 + $0x84] sm:$0xf]
      %v2649 = vld [vmem:[%s288 + $0x88] sm:$0xf]
      %v2650 = vld [vmem:[%s288 + $0x8c] sm:$0xf]
      %v2651 = vld [vmem:[%s288 + $0x90] sm:$0xf]
      %v2652 = vld [vmem:[%s288 + $0x94] sm:$0xf]
      %v2653 = vld [vmem:[%s288 + $0x98] sm:$0xf]
      %v2654 = vld [vmem:[%s288 + $0x9c] sm:$0xf]
      %v2655 = vld [vmem:[%s288 + $0xa0] sm:$0x3]
      %s2656 = scalar_lea.vmem %s2, 96
      %v2657 = vld [vmem:[%s2656] sm:$0xf]
      %v2658 = vld [vmem:[%s2656 + $0x4] sm:$0xf]
      %v2659 = vld [vmem:[%s2656 + $0x8] sm:$0xf]
      %v2660 = vld [vmem:[%s2656 + $0xc] sm:$0xf]
      %v2698 = vunpack.c.l.b16 %v2619
      %v2699 = vunpack.c.l.b16 %v2620
      %v2700 = vunpack.c.l.b16 %v2621
      %v2701 = vunpack.c.l.b16 %v2622
      %v2702 = vunpack.c.l.b16 %v2623
      %v2703 = vunpack.c.l.b16 %v2624
      %v2704 = vunpack.c.l.b16 %v2625
      %v2705 = vunpack.c.l.b16 %v2626
      %v2706 = vunpack.c.l.b16 %v2627
      %v2707 = vunpack.c.l.b16 %v2628
      %v2708 = vunpack.c.l.b16 %v2629
      %v2709 = vunpack.c.l.b16 %v2630
      %v2710 = vunpack.c.l.b16 %v2631
      %v2711 = vunpack.c.l.b16 %v2632
      %v2712 = vunpack.c.l.b16 %v2633
      %v2713 = vunpack.c.l.b16 %v2634
      %v2714 = vunpack.c.l.b16 %v2635
      %v2715 = vunpack.c.l.b16 %v2636
      %v2716 = vunpack.c.l.b16 %v2637
      %v2717 = vunpack.c.l.b16 %v2638
      %v2718 = vunpack.c.l.b16 %v2639
      %v2719 = vunpack.c.l.b16 %v2640
      %v2720 = vunpack.c.l.b16 %v2641
      %v2721 = vunpack.c.l.b16 %v2642
      %v2722 = vunpack.c.l.b16 %v2643
      %v2723 = vunpack.c.l.b16 %v2644
      %v2724 = vunpack.c.l.b16 %v2645
      %v2725 = vunpack.c.l.b16 %v2646
      %v2726 = vunpack.c.l.b16 %v2647
      %v2727 = vunpack.c.l.b16 %v2648
      %v2728 = vunpack.c.l.b16 %v2649
      %v2729 = vunpack.c.l.b16 %v2650
      %v2730 = vunpack.c.l.b16 %v2651
      %v2731 = vunpack.c.l.b16 %v2652
      %v2732 = vunpack.c.l.b16 %v2653
      %v2733 = vunpack.c.l.b16 %v2654
      %v2734 = vunpack.c.l.b16 %v2655
      %v2735 = vpack.c.b16 %v2699, %v2698
      %v2736 = vpack.c.b16 %v2701, %v2700
      %v2737 = vpack.c.b16 %v2703, %v2702
      %v2738 = vpack.c.b16 %v2705, %v2704
      %v2739 = vpack.c.b16 %v2707, %v2706
      %v2740 = vpack.c.b16 %v2709, %v2708
      %v2741 = vpack.c.b16 %v2711, %v2710
      %v2742 = vpack.c.b16 %v2713, %v2712
      %v2743 = vpack.c.b16 %v2715, %v2714
      %v2744 = vpack.c.b16 %v2717, %v2716
      %v2745 = vpack.c.b16 %v2719, %v2718
      %v2746 = vpack.c.b16 %v2721, %v2720
      %v2747 = vpack.c.b16 %v2723, %v2722
      %v2748 = vpack.c.b16 %v2725, %v2724
      %v2749 = vpack.c.b16 %v2727, %v2726
      %v2750 = vpack.c.b16 %v2729, %v2728
      %v2751 = vpack.c.b16 %v2731, %v2730
      %v2752 = vpack.c.b16 %v2733, %v2732
      %v2753 = vpack.c.b16 %v2734, %v2734
      %v2754 = vrot.slane %v2735, 2
      %v2755 = vrot.slane %v2736, 2
      %v2756 = vsel %vm2302, %v2754, %v2755
      %v2757 = vrot.slane %v2737, 2
      %v2758 = vsel %vm2302, %v2755, %v2757
      %v2759 = vrot.slane %v2738, 2
      %v2760 = vsel %vm2302, %v2757, %v2759
      %v2761 = vrot.slane %v2739, 2
      %v2762 = vsel %vm2302, %v2759, %v2761
      %v2763 = vrot.slane %v2740, 2
      %v2764 = vsel %vm2302, %v2761, %v2763
      %v2765 = vrot.slane %v2741, 2
      %v2766 = vsel %vm2302, %v2763, %v2765
      %v2767 = vrot.slane %v2742, 2
      %v2768 = vsel %vm2302, %v2765, %v2767
      %v2769 = vrot.slane %v2743, 2
      %v2770 = vsel %vm2302, %v2767, %v2769
      %v2771 = vrot.slane %v2744, 2
      %v2772 = vsel %vm2302, %v2769, %v2771
      %v2773 = vrot.slane %v2745, 2
      %v2774 = vsel %vm2302, %v2771, %v2773
      %v2775 = vrot.slane %v2746, 2
      %v2776 = vsel %vm2302, %v2773, %v2775
      %v2777 = vrot.slane %v2747, 2
      %v2778 = vsel %vm2302, %v2775, %v2777
      %v2779 = vrot.slane %v2748, 2
      %v2780 = vsel %vm2302, %v2777, %v2779
      %v2781 = vrot.slane %v2749, 2
      %v2782 = vsel %vm2302, %v2779, %v2781
      %v2783 = vrot.slane %v2750, 2
      %v2784 = vsel %vm2302, %v2781, %v2783
      %v2785 = vrot.slane %v2751, 2
      %v2786 = vsel %vm2302, %v2783, %v2785
      %v2787 = vrot.slane %v2752, 2
      %v2788 = vsel %vm2302, %v2785, %v2787
      %v2789 = vrot.slane %v2753, 2
      %v2790 = vsel %vm2302, %v2787, %v2789
      %v2795 = vunpack.c.l.b16 %v2657
      %v2796 = vunpack.c.l.b16 %v2658
      %v2797 = vunpack.c.l.b16 %v2659
      %v2798 = vunpack.c.l.b16 %v2660
      %v2799 = vpack.c.b16 %v2796, %v2795
      %v2800 = vpack.c.b16 %v2798, %v2797
      %v2804 = vsel %vm600, %v2756, 0
      %v2807 = vsel %vm600, %v2758, 0
      %v2810 = vsel %vm600, %v2760, 0
      %v2813 = vsel %vm600, %v2762, 0
      %v2816 = vsel %vm600, %v2764, 0
      %v2819 = vsel %vm600, %v2766, 0
      %v2822 = vsel %vm600, %v2768, 0
      %v2825 = vsel %vm600, %v2770, 0
      %v2828 = vsel %vm600, %v2772, 0
      %v2831 = vsel %vm600, %v2774, 0
      %v2834 = vsel %vm600, %v2776, 0
      %v2837 = vsel %vm600, %v2778, 0
      %v2840 = vsel %vm600, %v2780, 0
      %v2843 = vsel %vm600, %v2782, 0
      %v2846 = vsel %vm600, %v2784, 0
      %v2849 = vsel %vm600, %v2786, 0
      %v2852 = vsel %vm600, %v2788, 0
      %v2855 = vsel %vm600, %v2790, 0
      %2857 = vmatprep.subr.bf16.mxu0 0
      %2858 = vmatpush1.bf16.msra.mxu0 0
      %2859 = vmatprep.subr.bf16.mxu0 0
      %2860 = vmatpush1.bf16.msra.mxu0 0
      %2861 = vmatprep.subr.bf16.mxu0 0
      %2862 = vmatpush1.bf16.msra.mxu0 0
      %2863 = vmatprep.subr.bf16.mxu0 0
      %2864 = vmatpush1.bf16.msra.mxu0 0
      %2865 = vmatprep.subr.bf16.mxu0 0
      %2866 = vmatpush1.bf16.msra.mxu0 0
      %2867 = vmatprep.subr.bf16.mxu0 0
      %2868 = vmatpush1.bf16.msra.mxu0 0
      %2869 = vmatprep.subr.bf16.mxu0 0
      %2870 = vmatpush1.bf16.msra.mxu0 %v2800
      %2871 = vmatprep.subr.bf16.mxu0 0
      %2872 = vmatpush1.bf16.msra.mxu0 %v2799
      %2873 = vmatprep.subr.bf16.mxu0 0
      %2874 = vmatpush2.bf16.msra.mxu0 0
      %2875 = vmatprep.subr.bf16.mxu0 0
      %2876 = vmatpush2.bf16.msra.mxu0 0
      %2877 = vmatprep.subr.bf16.mxu0 0
      %2878 = vmatpush2.bf16.msra.mxu0 0
      %2879 = vmatprep.subr.bf16.mxu0 0
      %2880 = vmatpush2.bf16.msra.mxu0 0
      %2881 = vmatprep.subr.bf16.mxu0 0
      %2882 = vmatpush2.bf16.msra.mxu0 0
      %2883 = vmatprep.subr.bf16.mxu0 0
      %2884 = vmatpush2.bf16.msra.mxu0 0
      %2885 = vmatprep.subr.bf16.mxu0 0
      %2886 = vmatpush2.bf16.msra.mxu0 0
      %2887 = vmatprep.subr.bf16.mxu0 0
      %2888 = vmatpush2.bf16.msra.mxu0 0
      %2889 = vmatprep.mubr.bf16.mxu0 0
      %2890 = vmatmul.mubr.bf16.gmra.mxu0 %v2804
      %v2891 = vpop.f32.mrf.mxu0
      %v2892 = vadd.f32 0.0, %v2891
      %v2893 = vpop.f32.mrf.mxu0
      %v2894 = vpop.f32.mrf.mxu0
      %v2895 = vadd.f32 0.0, %v2894
      %v2896 = vpop.f32.mrf.mxu0
      %2897 = vmatprep.mubr.bf16.mxu0 0
      %2898 = vmatmul.mubr.bf16.gmra.mxu0 %v2807
      %v2899 = vpop.f32.mrf.mxu0
      %v2900 = vadd.f32 0.0, %v2899
      %v2901 = vpop.f32.mrf.mxu0
      %v2902 = vpop.f32.mrf.mxu0
      %v2903 = vadd.f32 0.0, %v2902
      %v2904 = vpop.f32.mrf.mxu0
      %2905 = vmatprep.mubr.bf16.mxu0 0
      %2906 = vmatmul.mubr.bf16.gmra.mxu0 %v2810
      %v2907 = vpop.f32.mrf.mxu0
      %v2908 = vadd.f32 0.0, %v2907
      %v2909 = vpop.f32.mrf.mxu0
      %v2910 = vpop.f32.mrf.mxu0
      %v2911 = vadd.f32 0.0, %v2910
      %v2912 = vpop.f32.mrf.mxu0
      %2913 = vmatprep.mubr.bf16.mxu0 0
      %2914 = vmatmul.mubr.bf16.gmra.mxu0 %v2813
      %v2915 = vpop.f32.mrf.mxu0
      %v2916 = vadd.f32 0.0, %v2915
      %v2917 = vpop.f32.mrf.mxu0
      %v2918 = vpop.f32.mrf.mxu0
      %v2919 = vadd.f32 0.0, %v2918
      %v2920 = vpop.f32.mrf.mxu0
      %2921 = vmatprep.mubr.bf16.mxu0 0
      %2922 = vmatmul.mubr.bf16.gmra.mxu0 %v2816
      %v2923 = vpop.f32.mrf.mxu0
      %v2924 = vadd.f32 0.0, %v2923
      %v2925 = vpop.f32.mrf.mxu0
      %v2926 = vpop.f32.mrf.mxu0
      %v2927 = vadd.f32 0.0, %v2926
      %v2928 = vpop.f32.mrf.mxu0
      %2929 = vmatprep.mubr.bf16.mxu0 0
      %2930 = vmatmul.mubr.bf16.gmra.mxu0 %v2819
      %v2931 = vpop.f32.mrf.mxu0
      %v2932 = vadd.f32 0.0, %v2931
      %v2933 = vpop.f32.mrf.mxu0
      %v2934 = vpop.f32.mrf.mxu0
      %v2935 = vadd.f32 0.0, %v2934
      %v2936 = vpop.f32.mrf.mxu0
      %2937 = vmatprep.mubr.bf16.mxu0 0
      %2938 = vmatmul.mubr.bf16.gmra.mxu0 %v2822
      %v2939 = vpop.f32.mrf.mxu0
      %v2940 = vadd.f32 0.0, %v2939
      %v2941 = vpop.f32.mrf.mxu0
      %v2942 = vpop.f32.mrf.mxu0
      %v2943 = vadd.f32 0.0, %v2942
      %v2944 = vpop.f32.mrf.mxu0
      %2945 = vmatprep.mubr.bf16.mxu0 0
      %2946 = vmatmul.mubr.bf16.gmra.mxu0 %v2825
      %v2947 = vpop.f32.mrf.mxu0
      %v2948 = vadd.f32 0.0, %v2947
      %v2949 = vpop.f32.mrf.mxu0
      %v2950 = vpop.f32.mrf.mxu0
      %v2951 = vadd.f32 0.0, %v2950
      %v2952 = vpop.f32.mrf.mxu0
      %2953 = vmatprep.mubr.bf16.mxu0 0
      %2954 = vmatmul.mubr.bf16.gmra.mxu0 %v2828
      %v2955 = vpop.f32.mrf.mxu0
      %v2956 = vadd.f32 0.0, %v2955
      %v2957 = vpop.f32.mrf.mxu0
      %v2958 = vpop.f32.mrf.mxu0
      %v2959 = vadd.f32 0.0, %v2958
      %v2960 = vpop.f32.mrf.mxu0
      %2961 = vmatprep.mubr.bf16.mxu0 0
      %2962 = vmatmul.mubr.bf16.gmra.mxu0 %v2831
      %v2963 = vpop.f32.mrf.mxu0
      %v2964 = vadd.f32 0.0, %v2963
      %v2965 = vpop.f32.mrf.mxu0
      %v2966 = vpop.f32.mrf.mxu0
      %v2967 = vadd.f32 0.0, %v2966
      %v2968 = vpop.f32.mrf.mxu0
      %2969 = vmatprep.mubr.bf16.mxu0 0
      %2970 = vmatmul.mubr.bf16.gmra.mxu0 %v2834
      %v2971 = vpop.f32.mrf.mxu0
      %v2972 = vadd.f32 0.0, %v2971
      %v2973 = vpop.f32.mrf.mxu0
      %v2974 = vpop.f32.mrf.mxu0
      %v2975 = vadd.f32 0.0, %v2974
      %v2976 = vpop.f32.mrf.mxu0
      %2977 = vmatprep.mubr.bf16.mxu0 0
      %2978 = vmatmul.mubr.bf16.gmra.mxu0 %v2837
      %v2979 = vpop.f32.mrf.mxu0
      %v2980 = vadd.f32 0.0, %v2979
      %v2981 = vpop.f32.mrf.mxu0
      %v2982 = vpop.f32.mrf.mxu0
      %v2983 = vadd.f32 0.0, %v2982
      %v2984 = vpop.f32.mrf.mxu0
      %2985 = vmatprep.mubr.bf16.mxu0 0
      %2986 = vmatmul.mubr.bf16.gmra.mxu0 %v2840
      %v2987 = vpop.f32.mrf.mxu0
      %v2988 = vadd.f32 0.0, %v2987
      %v2989 = vpop.f32.mrf.mxu0
      %v2990 = vpop.f32.mrf.mxu0
      %v2991 = vadd.f32 0.0, %v2990
      %v2992 = vpop.f32.mrf.mxu0
      %2993 = vmatprep.mubr.bf16.mxu0 0
      %2994 = vmatmul.mubr.bf16.gmra.mxu0 %v2843
      %v2995 = vpop.f32.mrf.mxu0
      %v2996 = vadd.f32 0.0, %v2995
      %v2997 = vpop.f32.mrf.mxu0
      %v2998 = vpop.f32.mrf.mxu0
      %v2999 = vadd.f32 0.0, %v2998
      %v3000 = vpop.f32.mrf.mxu0
      %3001 = vmatprep.mubr.bf16.mxu0 0
      %3002 = vmatmul.mubr.bf16.gmra.mxu0 %v2846
      %v3003 = vpop.f32.mrf.mxu0
      %v3004 = vadd.f32 0.0, %v3003
      %v3005 = vpop.f32.mrf.mxu0
      %v3006 = vpop.f32.mrf.mxu0
      %v3007 = vadd.f32 0.0, %v3006
      %v3008 = vpop.f32.mrf.mxu0
      %3009 = vmatprep.mubr.bf16.mxu0 0
      %3010 = vmatmul.mubr.bf16.gmra.mxu0 %v2849
      %v3011 = vpop.f32.mrf.mxu0
      %v3012 = vadd.f32 0.0, %v3011
      %v3013 = vpop.f32.mrf.mxu0
      %v3014 = vpop.f32.mrf.mxu0
      %v3015 = vadd.f32 0.0, %v3014
      %v3016 = vpop.f32.mrf.mxu0
      %3017 = vmatprep.mubr.bf16.mxu0 0
      %3018 = vmatmul.mubr.bf16.gmra.mxu0 %v2852
      %v3019 = vpop.f32.mrf.mxu0
      %v3020 = vadd.f32 0.0, %v3019
      %v3021 = vpop.f32.mrf.mxu0
      %v3022 = vpop.f32.mrf.mxu0
      %v3023 = vadd.f32 0.0, %v3022
      %v3024 = vpop.f32.mrf.mxu0
      %3025 = vmatprep.mubr.bf16.mxu0 0
      %3026 = vmatmul.mubr.bf16.gmra.mxu0 %v2855
      %v3027 = vpop.f32.mrf.mxu0
      %v3028 = vadd.f32 0.0, %v3027
      %v3029 = vpop.f32.mrf.mxu0
      %v3030 = vpop.f32.mrf.mxu0
      %v3031 = vadd.f32 0.0, %v3030
      %v3032 = vpop.f32.mrf.mxu0
      %3033 = vdwg.mxu0
      %v3034 = vadd.f32 %v2583, %v2892
      %v3035 = vadd.f32 %v2584, %v2895
      %v3036 = vadd.f32 %v2585, %v2900
      %v3037 = vadd.f32 %v2586, %v2903
      %v3038 = vadd.f32 %v2587, %v2908
      %v3039 = vadd.f32 %v2588, %v2911
      %v3040 = vadd.f32 %v2589, %v2916
      %v3041 = vadd.f32 %v2590, %v2919
      %v3042 = vadd.f32 %v2591, %v2924
      %v3043 = vadd.f32 %v2592, %v2927
      %v3044 = vadd.f32 %v2593, %v2932
      %v3045 = vadd.f32 %v2594, %v2935
      %v3046 = vadd.f32 %v2595, %v2940
      %v3047 = vadd.f32 %v2596, %v2943
      %v3048 = vadd.f32 %v2597, %v2948
      %v3049 = vadd.f32 %v2598, %v2951
      %v3050 = vadd.f32 %v2599, %v2956
      %v3051 = vadd.f32 %v2600, %v2959
      %v3052 = vadd.f32 %v2601, %v2964
      %v3053 = vadd.f32 %v2602, %v2967
      %v3054 = vadd.f32 %v2603, %v2972
      %v3055 = vadd.f32 %v2604, %v2975
      %v3056 = vadd.f32 %v2605, %v2980
      %v3057 = vadd.f32 %v2606, %v2983
      %v3058 = vadd.f32 %v2607, %v2988
      %v3059 = vadd.f32 %v2608, %v2991
      %v3060 = vadd.f32 %v2609, %v2996
      %v3061 = vadd.f32 %v2610, %v2999
      %v3062 = vadd.f32 %v2611, %v3004
      %v3063 = vadd.f32 %v2612, %v3007
      %v3064 = vadd.f32 %v2613, %v3012
      %v3065 = vadd.f32 %v2614, %v3015
      %v3066 = vadd.f32 %v2615, %v3020
      %v3067 = vadd.f32 %v2616, %v3023
      %v3068 = vadd.f32 %v2617, %v3028
      %v3069 = vadd.f32 %v2618, %v3031
      %v3070 = vld [vmem:[%s288 + $0xa0] sm:$0x7]
      %s3071 = scalar_lea.vmem %s2, 112
      %v3072 = vld [vmem:[%s3071] sm:$0xf]
      %v3073 = vld [vmem:[%s3071 + $0x4] sm:$0xf]
      %v3074 = vld [vmem:[%s3071 + $0x8] sm:$0xf]
      %v3075 = vld [vmem:[%s3071 + $0xc] sm:$0xf]
      %v3077 = vunpack.c.l.b16 %v3070
      %v3078 = vpack.c.b16 %v3077, %v3077
      %vm3079 = vsmask.f32 5376
      %v3081 = vshrl.u32 %v2735, 16
      %v3083 = vrot.slane %v3081, 2
      %v3084 = vshll.u32 %v2735, 16
      %v3086 = vrot.slane %v3084, 3
      %v3087 = vor.u32 %v3083, %v3086
      %v3089 = vshrl.u32 %v2736, 16
      %v3091 = vrot.slane %v3089, 2
      %v3092 = vshll.u32 %v2736, 16
      %v3094 = vrot.slane %v3092, 3
      %v3095 = vor.u32 %v3091, %v3094
      %v3096 = vsel %vm3079, %v3087, %v3095
      %v3098 = vshrl.u32 %v2737, 16
      %v3100 = vrot.slane %v3098, 2
      %v3101 = vshll.u32 %v2737, 16
      %v3103 = vrot.slane %v3101, 3
      %v3104 = vor.u32 %v3100, %v3103
      %v3105 = vsel %vm3079, %v3095, %v3104
      %v3107 = vshrl.u32 %v2738, 16
      %v3109 = vrot.slane %v3107, 2
      %v3110 = vshll.u32 %v2738, 16
      %v3112 = vrot.slane %v3110, 3
      %v3113 = vor.u32 %v3109, %v3112
      %v3114 = vsel %vm3079, %v3104, %v3113
      %v3116 = vshrl.u32 %v2739, 16
      %v3118 = vrot.slane %v3116, 2
      %v3119 = vshll.u32 %v2739, 16
      %v3121 = vrot.slane %v3119, 3
      %v3122 = vor.u32 %v3118, %v3121
      %v3123 = vsel %vm3079, %v3113, %v3122
      %v3125 = vshrl.u32 %v2740, 16
      %v3127 = vrot.slane %v3125, 2
      %v3128 = vshll.u32 %v2740, 16
      %v3130 = vrot.slane %v3128, 3
      %v3131 = vor.u32 %v3127, %v3130
      %v3132 = vsel %vm3079, %v3122, %v3131
      %v3134 = vshrl.u32 %v2741, 16
      %v3136 = vrot.slane %v3134, 2
      %v3137 = vshll.u32 %v2741, 16
      %v3139 = vrot.slane %v3137, 3
      %v3140 = vor.u32 %v3136, %v3139
      %v3141 = vsel %vm3079, %v3131, %v3140
      %v3143 = vshrl.u32 %v2742, 16
      %v3145 = vrot.slane %v3143, 2
      %v3146 = vshll.u32 %v2742, 16
      %v3148 = vrot.slane %v3146, 3
      %v3149 = vor.u32 %v3145, %v3148
      %v3150 = vsel %vm3079, %v3140, %v3149
      %v3152 = vshrl.u32 %v2743, 16
      %v3154 = vrot.slane %v3152, 2
      %v3155 = vshll.u32 %v2743, 16
      %v3157 = vrot.slane %v3155, 3
      %v3158 = vor.u32 %v3154, %v3157
      %v3159 = vsel %vm3079, %v3149, %v3158
      %v3161 = vshrl.u32 %v2744, 16
      %v3163 = vrot.slane %v3161, 2
      %v3164 = vshll.u32 %v2744, 16
      %v3166 = vrot.slane %v3164, 3
      %v3167 = vor.u32 %v3163, %v3166
      %v3168 = vsel %vm3079, %v3158, %v3167
      %v3170 = vshrl.u32 %v2745, 16
      %v3172 = vrot.slane %v3170, 2
      %v3173 = vshll.u32 %v2745, 16
      %v3175 = vrot.slane %v3173, 3
      %v3176 = vor.u32 %v3172, %v3175
      %v3177 = vsel %vm3079, %v3167, %v3176
      %v3179 = vshrl.u32 %v2746, 16
      %v3181 = vrot.slane %v3179, 2
      %v3182 = vshll.u32 %v2746, 16
      %v3184 = vrot.slane %v3182, 3
      %v3185 = vor.u32 %v3181, %v3184
      %v3186 = vsel %vm3079, %v3176, %v3185
      %v3188 = vshrl.u32 %v2747, 16
      %v3190 = vrot.slane %v3188, 2
      %v3191 = vshll.u32 %v2747, 16
      %v3193 = vrot.slane %v3191, 3
      %v3194 = vor.u32 %v3190, %v3193
      %v3195 = vsel %vm3079, %v3185, %v3194
      %v3197 = vshrl.u32 %v2748, 16
      %v3199 = vrot.slane %v3197, 2
      %v3200 = vshll.u32 %v2748, 16
      %v3202 = vrot.slane %v3200, 3
      %v3203 = vor.u32 %v3199, %v3202
      %v3204 = vsel %vm3079, %v3194, %v3203
      %v3206 = vshrl.u32 %v2749, 16
      %v3208 = vrot.slane %v3206, 2
      %v3209 = vshll.u32 %v2749, 16
      %v3211 = vrot.slane %v3209, 3
      %v3212 = vor.u32 %v3208, %v3211
      %v3213 = vsel %vm3079, %v3203, %v3212
      %v3215 = vshrl.u32 %v2750, 16
      %v3217 = vrot.slane %v3215, 2
      %v3218 = vshll.u32 %v2750, 16
      %v3220 = vrot.slane %v3218, 3
      %v3221 = vor.u32 %v3217, %v3220
      %v3222 = vsel %vm3079, %v3212, %v3221
      %v3224 = vshrl.u32 %v2751, 16
      %v3226 = vrot.slane %v3224, 2
      %v3227 = vshll.u32 %v2751, 16
      %v3229 = vrot.slane %v3227, 3
      %v3230 = vor.u32 %v3226, %v3229
      %v3231 = vsel %vm3079, %v3221, %v3230
      %v3233 = vshrl.u32 %v2752, 16
      %v3235 = vrot.slane %v3233, 2
      %v3236 = vshll.u32 %v2752, 16
      %v3238 = vrot.slane %v3236, 3
      %v3239 = vor.u32 %v3235, %v3238
      %v3240 = vsel %vm3079, %v3230, %v3239
      %v3242 = vshrl.u32 %v3078, 16
      %v3244 = vrot.slane %v3242, 2
      %v3245 = vshll.u32 %v3078, 16
      %v3247 = vrot.slane %v3245, 3
      %v3248 = vor.u32 %v3244, %v3247
      %v3249 = vsel %vm3079, %v3239, %v3248
      %v3254 = vunpack.c.l.b16 %v3072
      %v3255 = vunpack.c.l.b16 %v3073
      %v3256 = vunpack.c.l.b16 %v3074
      %v3257 = vunpack.c.l.b16 %v3075
      %v3258 = vpack.c.b16 %v3255, %v3254
      %v3259 = vpack.c.b16 %v3257, %v3256
      %v3263 = vsel %vm600, %v3096, 0
      %v3266 = vsel %vm600, %v3105, 0
      %v3269 = vsel %vm600, %v3114, 0
      %v3272 = vsel %vm600, %v3123, 0
      %v3275 = vsel %vm600, %v3132, 0
      %v3278 = vsel %vm600, %v3141, 0
      %v3281 = vsel %vm600, %v3150, 0
      %v3284 = vsel %vm600, %v3159, 0
      %v3287 = vsel %vm600, %v3168, 0
      %v3290 = vsel %vm600, %v3177, 0
      %v3293 = vsel %vm600, %v3186, 0
      %v3296 = vsel %vm600, %v3195, 0
      %v3299 = vsel %vm600, %v3204, 0
      %v3302 = vsel %vm600, %v3213, 0
      %v3305 = vsel %vm600, %v3222, 0
      %v3308 = vsel %vm600, %v3231, 0
      %v3311 = vsel %vm600, %v3240, 0
      %v3314 = vsel %vm600, %v3249, 0
      %3316 = vmatprep.subr.bf16.mxu0 0
      %3317 = vmatpush1.bf16.msra.mxu0 0
      %3318 = vmatprep.subr.bf16.mxu0 0
      %3319 = vmatpush1.bf16.msra.mxu0 0
      %3320 = vmatprep.subr.bf16.mxu0 0
      %3321 = vmatpush1.bf16.msra.mxu0 0
      %3322 = vmatprep.subr.bf16.mxu0 0
      %3323 = vmatpush1.bf16.msra.mxu0 0
      %3324 = vmatprep.subr.bf16.mxu0 0
      %3325 = vmatpush1.bf16.msra.mxu0 0
      %3326 = vmatprep.subr.bf16.mxu0 0
      %3327 = vmatpush1.bf16.msra.mxu0 0
      %3328 = vmatprep.subr.bf16.mxu0 0
      %3329 = vmatpush1.bf16.msra.mxu0 %v3259
      %3330 = vmatprep.subr.bf16.mxu0 0
      %3331 = vmatpush1.bf16.msra.mxu0 %v3258
      %3332 = vmatprep.subr.bf16.mxu0 0
      %3333 = vmatpush2.bf16.msra.mxu0 0
      %3334 = vmatprep.subr.bf16.mxu0 0
      %3335 = vmatpush2.bf16.msra.mxu0 0
      %3336 = vmatprep.subr.bf16.mxu0 0
      %3337 = vmatpush2.bf16.msra.mxu0 0
      %3338 = vmatprep.subr.bf16.mxu0 0
      %3339 = vmatpush2.bf16.msra.mxu0 0
      %3340 = vmatprep.subr.bf16.mxu0 0
      %3341 = vmatpush2.bf16.msra.mxu0 0
      %3342 = vmatprep.subr.bf16.mxu0 0
      %3343 = vmatpush2.bf16.msra.mxu0 0
      %3344 = vmatprep.subr.bf16.mxu0 0
      %3345 = vmatpush2.bf16.msra.mxu0 0
      %3346 = vmatprep.subr.bf16.mxu0 0
      %3347 = vmatpush2.bf16.msra.mxu0 0
      %3348 = vmatprep.mubr.bf16.mxu0 0
      %3349 = vmatmul.mubr.bf16.gmra.mxu0 %v3263
      %v3350 = vpop.f32.mrf.mxu0
      %v3351 = vadd.f32 0.0, %v3350
      %v3352 = vpop.f32.mrf.mxu0
      %v3353 = vpop.f32.mrf.mxu0
      %v3354 = vadd.f32 0.0, %v3353
      %v3355 = vpop.f32.mrf.mxu0
      %3356 = vmatprep.mubr.bf16.mxu0 0
      %3357 = vmatmul.mubr.bf16.gmra.mxu0 %v3266
      %v3358 = vpop.f32.mrf.mxu0
      %v3359 = vadd.f32 0.0, %v3358
      %v3360 = vpop.f32.mrf.mxu0
      %v3361 = vpop.f32.mrf.mxu0
      %v3362 = vadd.f32 0.0, %v3361
      %v3363 = vpop.f32.mrf.mxu0
      %3364 = vmatprep.mubr.bf16.mxu0 0
      %3365 = vmatmul.mubr.bf16.gmra.mxu0 %v3269
      %v3366 = vpop.f32.mrf.mxu0
      %v3367 = vadd.f32 0.0, %v3366
      %v3368 = vpop.f32.mrf.mxu0
      %v3369 = vpop.f32.mrf.mxu0
      %v3370 = vadd.f32 0.0, %v3369
      %v3371 = vpop.f32.mrf.mxu0
      %3372 = vmatprep.mubr.bf16.mxu0 0
      %3373 = vmatmul.mubr.bf16.gmra.mxu0 %v3272
      %v3374 = vpop.f32.mrf.mxu0
      %v3375 = vadd.f32 0.0, %v3374
      %v3376 = vpop.f32.mrf.mxu0
      %v3377 = vpop.f32.mrf.mxu0
      %v3378 = vadd.f32 0.0, %v3377
      %v3379 = vpop.f32.mrf.mxu0
      %3380 = vmatprep.mubr.bf16.mxu0 0
      %3381 = vmatmul.mubr.bf16.gmra.mxu0 %v3275
      %v3382 = vpop.f32.mrf.mxu0
      %v3383 = vadd.f32 0.0, %v3382
      %v3384 = vpop.f32.mrf.mxu0
      %v3385 = vpop.f32.mrf.mxu0
      %v3386 = vadd.f32 0.0, %v3385
      %v3387 = vpop.f32.mrf.mxu0
      %3388 = vmatprep.mubr.bf16.mxu0 0
      %3389 = vmatmul.mubr.bf16.gmra.mxu0 %v3278
      %v3390 = vpop.f32.mrf.mxu0
      %v3391 = vadd.f32 0.0, %v3390
      %v3392 = vpop.f32.mrf.mxu0
      %v3393 = vpop.f32.mrf.mxu0
      %v3394 = vadd.f32 0.0, %v3393
      %v3395 = vpop.f32.mrf.mxu0
      %3396 = vmatprep.mubr.bf16.mxu0 0
      %3397 = vmatmul.mubr.bf16.gmra.mxu0 %v3281
      %v3398 = vpop.f32.mrf.mxu0
      %v3399 = vadd.f32 0.0, %v3398
      %v3400 = vpop.f32.mrf.mxu0
      %v3401 = vpop.f32.mrf.mxu0
      %v3402 = vadd.f32 0.0, %v3401
      %v3403 = vpop.f32.mrf.mxu0
      %3404 = vmatprep.mubr.bf16.mxu0 0
      %3405 = vmatmul.mubr.bf16.gmra.mxu0 %v3284
      %v3406 = vpop.f32.mrf.mxu0
      %v3407 = vadd.f32 0.0, %v3406
      %v3408 = vpop.f32.mrf.mxu0
      %v3409 = vpop.f32.mrf.mxu0
      %v3410 = vadd.f32 0.0, %v3409
      %v3411 = vpop.f32.mrf.mxu0
      %3412 = vmatprep.mubr.bf16.mxu0 0
      %3413 = vmatmul.mubr.bf16.gmra.mxu0 %v3287
      %v3414 = vpop.f32.mrf.mxu0
      %v3415 = vadd.f32 0.0, %v3414
      %v3416 = vpop.f32.mrf.mxu0
      %v3417 = vpop.f32.mrf.mxu0
      %v3418 = vadd.f32 0.0, %v3417
      %v3419 = vpop.f32.mrf.mxu0
      %3420 = vmatprep.mubr.bf16.mxu0 0
      %3421 = vmatmul.mubr.bf16.gmra.mxu0 %v3290
      %v3422 = vpop.f32.mrf.mxu0
      %v3423 = vadd.f32 0.0, %v3422
      %v3424 = vpop.f32.mrf.mxu0
      %v3425 = vpop.f32.mrf.mxu0
      %v3426 = vadd.f32 0.0, %v3425
      %v3427 = vpop.f32.mrf.mxu0
      %3428 = vmatprep.mubr.bf16.mxu0 0
      %3429 = vmatmul.mubr.bf16.gmra.mxu0 %v3293
      %v3430 = vpop.f32.mrf.mxu0
      %v3431 = vadd.f32 0.0, %v3430
      %v3432 = vpop.f32.mrf.mxu0
      %v3433 = vpop.f32.mrf.mxu0
      %v3434 = vadd.f32 0.0, %v3433
      %v3435 = vpop.f32.mrf.mxu0
      %3436 = vmatprep.mubr.bf16.mxu0 0
      %3437 = vmatmul.mubr.bf16.gmra.mxu0 %v3296
      %v3438 = vpop.f32.mrf.mxu0
      %v3439 = vadd.f32 0.0, %v3438
      %v3440 = vpop.f32.mrf.mxu0
      %v3441 = vpop.f32.mrf.mxu0
      %v3442 = vadd.f32 0.0, %v3441
      %v3443 = vpop.f32.mrf.mxu0
      %3444 = vmatprep.mubr.bf16.mxu0 0
      %3445 = vmatmul.mubr.bf16.gmra.mxu0 %v3299
      %v3446 = vpop.f32.mrf.mxu0
      %v3447 = vadd.f32 0.0, %v3446
      %v3448 = vpop.f32.mrf.mxu0
      %v3449 = vpop.f32.mrf.mxu0
      %v3450 = vadd.f32 0.0, %v3449
      %v3451 = vpop.f32.mrf.mxu0
      %3452 = vmatprep.mubr.bf16.mxu0 0
      %3453 = vmatmul.mubr.bf16.gmra.mxu0 %v3302
      %v3454 = vpop.f32.mrf.mxu0
      %v3455 = vadd.f32 0.0, %v3454
      %v3456 = vpop.f32.mrf.mxu0
      %v3457 = vpop.f32.mrf.mxu0
      %v3458 = vadd.f32 0.0, %v3457
      %v3459 = vpop.f32.mrf.mxu0
      %3460 = vmatprep.mubr.bf16.mxu0 0
      %3461 = vmatmul.mubr.bf16.gmra.mxu0 %v3305
      %v3462 = vpop.f32.mrf.mxu0
      %v3463 = vadd.f32 0.0, %v3462
      %v3464 = vpop.f32.mrf.mxu0
      %v3465 = vpop.f32.mrf.mxu0
      %v3466 = vadd.f32 0.0, %v3465
      %v3467 = vpop.f32.mrf.mxu0
      %3468 = vmatprep.mubr.bf16.mxu0 0
      %3469 = vmatmul.mubr.bf16.gmra.mxu0 %v3308
      %v3470 = vpop.f32.mrf.mxu0
      %v3471 = vadd.f32 0.0, %v3470
      %v3472 = vpop.f32.mrf.mxu0
      %v3473 = vpop.f32.mrf.mxu0
      %v3474 = vadd.f32 0.0, %v3473
      %v3475 = vpop.f32.mrf.mxu0
      %3476 = vmatprep.mubr.bf16.mxu0 0
      %3477 = vmatmul.mubr.bf16.gmra.mxu0 %v3311
      %v3478 = vpop.f32.mrf.mxu0
      %v3479 = vadd.f32 0.0, %v3478
      %v3480 = vpop.f32.mrf.mxu0
      %v3481 = vpop.f32.mrf.mxu0
      %v3482 = vadd.f32 0.0, %v3481
      %v3483 = vpop.f32.mrf.mxu0
      %3484 = vmatprep.mubr.bf16.mxu0 0
      %3485 = vmatmul.mubr.bf16.gmra.mxu0 %v3314
      %v3486 = vpop.f32.mrf.mxu0
      %v3487 = vadd.f32 0.0, %v3486
      %v3488 = vpop.f32.mrf.mxu0
      %v3489 = vpop.f32.mrf.mxu0
      %v3490 = vadd.f32 0.0, %v3489
      %v3491 = vpop.f32.mrf.mxu0
      %3492 = vdwg.mxu0
      %v3493 = vadd.f32 %v3034, %v3351
      %v3494 = vadd.f32 %v3035, %v3354
      %v3495 = vadd.f32 %v3036, %v3359
      %v3496 = vadd.f32 %v3037, %v3362
      %v3497 = vadd.f32 %v3038, %v3367
      %v3498 = vadd.f32 %v3039, %v3370
      %v3499 = vadd.f32 %v3040, %v3375
      %v3500 = vadd.f32 %v3041, %v3378
      %v3501 = vadd.f32 %v3042, %v3383
      %v3502 = vadd.f32 %v3043, %v3386
      %v3503 = vadd.f32 %v3044, %v3391
      %v3504 = vadd.f32 %v3045, %v3394
      %v3505 = vadd.f32 %v3046, %v3399
      %v3506 = vadd.f32 %v3047, %v3402
      %v3507 = vadd.f32 %v3048, %v3407
      %v3508 = vadd.f32 %v3049, %v3410
      %v3509 = vadd.f32 %v3050, %v3415
      %v3510 = vadd.f32 %v3051, %v3418
      %v3511 = vadd.f32 %v3052, %v3423
      %v3512 = vadd.f32 %v3053, %v3426
      %v3513 = vadd.f32 %v3054, %v3431
      %v3514 = vadd.f32 %v3055, %v3434
      %v3515 = vadd.f32 %v3056, %v3439
      %v3516 = vadd.f32 %v3057, %v3442
      %v3517 = vadd.f32 %v3058, %v3447
      %v3518 = vadd.f32 %v3059, %v3450
      %v3519 = vadd.f32 %v3060, %v3455
      %v3520 = vadd.f32 %v3061, %v3458
      %v3521 = vadd.f32 %v3062, %v3463
      %v3522 = vadd.f32 %v3063, %v3466
      %v3523 = vadd.f32 %v3064, %v3471
      %v3524 = vadd.f32 %v3065, %v3474
      %v3525 = vadd.f32 %v3066, %v3479
      %v3526 = vadd.f32 %v3067, %v3482
      %v3527 = vadd.f32 %v3068, %v3487
      %v3528 = vadd.f32 %v3069, %v3490
      %v3529 = vld [vmem:[%s288 + $0x10] sm:$0x8]
      %s3530 = scalar_lea.vmem %s2, 128
      %v3531 = vld [vmem:[%s3530] sm:$0xf]
      %v3532 = vld [vmem:[%s3530 + $0x4] sm:$0xf]
      %v3533 = vld [vmem:[%s3530 + $0x8] sm:$0xf]
      %v3534 = vld [vmem:[%s3530 + $0xc] sm:$0xf]
      %v3536 = vunpack.c.l.b16 %v3529
      %v3537 = vpack.c.b16 %v2699, %v3536
      %vm3538 = vcmask 1044480
      %v3539 = vrot.slane %v3537, 3
      %v3540 = vrot.slane %v2736, 3
      %v3541 = vsel %vm3538, %v3539, %v3540
      %v3542 = vrot.slane %v2737, 3
      %v3543 = vsel %vm3538, %v3540, %v3542
      %v3544 = vrot.slane %v2738, 3
      %v3545 = vsel %vm3538, %v3542, %v3544
      %v3546 = vrot.slane %v2739, 3
      %v3547 = vsel %vm3538, %v3544, %v3546
      %v3548 = vrot.slane %v2740, 3
      %v3549 = vsel %vm3538, %v3546, %v3548
      %v3550 = vrot.slane %v2741, 3
      %v3551 = vsel %vm3538, %v3548, %v3550
      %v3552 = vrot.slane %v2742, 3
      %v3553 = vsel %vm3538, %v3550, %v3552
      %v3554 = vrot.slane %v2743, 3
      %v3555 = vsel %vm3538, %v3552, %v3554
      %v3556 = vrot.slane %v2744, 3
      %v3557 = vsel %vm3538, %v3554, %v3556
      %v3558 = vrot.slane %v2745, 3
      %v3559 = vsel %vm3538, %v3556, %v3558
      %v3560 = vrot.slane %v2746, 3
      %v3561 = vsel %vm3538, %v3558, %v3560
      %v3562 = vrot.slane %v2747, 3
      %v3563 = vsel %vm3538, %v3560, %v3562
      %v3564 = vrot.slane %v2748, 3
      %v3565 = vsel %vm3538, %v3562, %v3564
      %v3566 = vrot.slane %v2749, 3
      %v3567 = vsel %vm3538, %v3564, %v3566
      %v3568 = vrot.slane %v2750, 3
      %v3569 = vsel %vm3538, %v3566, %v3568
      %v3570 = vrot.slane %v2751, 3
      %v3571 = vsel %vm3538, %v3568, %v3570
      %v3572 = vrot.slane %v2752, 3
      %v3573 = vsel %vm3538, %v3570, %v3572
      %v3574 = vrot.slane %v3078, 3
      %v3575 = vsel %vm3538, %v3572, %v3574
      %v3580 = vunpack.c.l.b16 %v3531
      %v3581 = vunpack.c.l.b16 %v3532
      %v3582 = vunpack.c.l.b16 %v3533
      %v3583 = vunpack.c.l.b16 %v3534
      %v3584 = vpack.c.b16 %v3581, %v3580
      %v3585 = vpack.c.b16 %v3583, %v3582
      %v3589 = vsel %vm600, %v3541, 0
      %v3592 = vsel %vm600, %v3543, 0
      %v3595 = vsel %vm600, %v3545, 0
      %v3598 = vsel %vm600, %v3547, 0
      %v3601 = vsel %vm600, %v3549, 0
      %v3604 = vsel %vm600, %v3551, 0
      %v3607 = vsel %vm600, %v3553, 0
      %v3610 = vsel %vm600, %v3555, 0
      %v3613 = vsel %vm600, %v3557, 0
      %v3616 = vsel %vm600, %v3559, 0
      %v3619 = vsel %vm600, %v3561, 0
      %v3622 = vsel %vm600, %v3563, 0
      %v3625 = vsel %vm600, %v3565, 0
      %v3628 = vsel %vm600, %v3567, 0
      %v3631 = vsel %vm600, %v3569, 0
      %v3634 = vsel %vm600, %v3571, 0
      %v3637 = vsel %vm600, %v3573, 0
      %v3640 = vsel %vm600, %v3575, 0
      %3642 = vmatprep.subr.bf16.mxu0 0
      %3643 = vmatpush1.bf16.msra.mxu0 0
      %3644 = vmatprep.subr.bf16.mxu0 0
      %3645 = vmatpush1.bf16.msra.mxu0 0
      %3646 = vmatprep.subr.bf16.mxu0 0
      %3647 = vmatpush1.bf16.msra.mxu0 0
      %3648 = vmatprep.subr.bf16.mxu0 0
      %3649 = vmatpush1.bf16.msra.mxu0 0
      %3650 = vmatprep.subr.bf16.mxu0 0
      %3651 = vmatpush1.bf16.msra.mxu0 0
      %3652 = vmatprep.subr.bf16.mxu0 0
      %3653 = vmatpush1.bf16.msra.mxu0 0
      %3654 = vmatprep.subr.bf16.mxu0 0
      %3655 = vmatpush1.bf16.msra.mxu0 %v3585
      %3656 = vmatprep.subr.bf16.mxu0 0
      %3657 = vmatpush1.bf16.msra.mxu0 %v3584
      %3658 = vmatprep.subr.bf16.mxu0 0
      %3659 = vmatpush2.bf16.msra.mxu0 0
      %3660 = vmatprep.subr.bf16.mxu0 0
      %3661 = vmatpush2.bf16.msra.mxu0 0
      %3662 = vmatprep.subr.bf16.mxu0 0
      %3663 = vmatpush2.bf16.msra.mxu0 0
      %3664 = vmatprep.subr.bf16.mxu0 0
      %3665 = vmatpush2.bf16.msra.mxu0 0
      %3666 = vmatprep.subr.bf16.mxu0 0
      %3667 = vmatpush2.bf16.msra.mxu0 0
      %3668 = vmatprep.subr.bf16.mxu0 0
      %3669 = vmatpush2.bf16.msra.mxu0 0
      %3670 = vmatprep.subr.bf16.mxu0 0
      %3671 = vmatpush2.bf16.msra.mxu0 0
      %3672 = vmatprep.subr.bf16.mxu0 0
      %3673 = vmatpush2.bf16.msra.mxu0 0
      %3674 = vmatprep.mubr.bf16.mxu0 0
      %3675 = vmatmul.mubr.bf16.gmra.mxu0 %v3589
      %v3676 = vpop.f32.mrf.mxu0
      %v3677 = vadd.f32 0.0, %v3676
      %v3678 = vpop.f32.mrf.mxu0
      %v3679 = vpop.f32.mrf.mxu0
      %v3680 = vadd.f32 0.0, %v3679
      %v3681 = vpop.f32.mrf.mxu0
      %3682 = vmatprep.mubr.bf16.mxu0 0
      %3683 = vmatmul.mubr.bf16.gmra.mxu0 %v3592
      %v3684 = vpop.f32.mrf.mxu0
      %v3685 = vadd.f32 0.0, %v3684
      %v3686 = vpop.f32.mrf.mxu0
      %v3687 = vpop.f32.mrf.mxu0
      %v3688 = vadd.f32 0.0, %v3687
      %v3689 = vpop.f32.mrf.mxu0
      %3690 = vmatprep.mubr.bf16.mxu0 0
      %3691 = vmatmul.mubr.bf16.gmra.mxu0 %v3595
      %v3692 = vpop.f32.mrf.mxu0
      %v3693 = vadd.f32 0.0, %v3692
      %v3694 = vpop.f32.mrf.mxu0
      %v3695 = vpop.f32.mrf.mxu0
      %v3696 = vadd.f32 0.0, %v3695
      %v3697 = vpop.f32.mrf.mxu0
      %3698 = vmatprep.mubr.bf16.mxu0 0
      %3699 = vmatmul.mubr.bf16.gmra.mxu0 %v3598
      %v3700 = vpop.f32.mrf.mxu0
      %v3701 = vadd.f32 0.0, %v3700
      %v3702 = vpop.f32.mrf.mxu0
      %v3703 = vpop.f32.mrf.mxu0
      %v3704 = vadd.f32 0.0, %v3703
      %v3705 = vpop.f32.mrf.mxu0
      %3706 = vmatprep.mubr.bf16.mxu0 0
      %3707 = vmatmul.mubr.bf16.gmra.mxu0 %v3601
      %v3708 = vpop.f32.mrf.mxu0
      %v3709 = vadd.f32 0.0, %v3708
      %v3710 = vpop.f32.mrf.mxu0
      %v3711 = vpop.f32.mrf.mxu0
      %v3712 = vadd.f32 0.0, %v3711
      %v3713 = vpop.f32.mrf.mxu0
      %3714 = vmatprep.mubr.bf16.mxu0 0
      %3715 = vmatmul.mubr.bf16.gmra.mxu0 %v3604
      %v3716 = vpop.f32.mrf.mxu0
      %v3717 = vadd.f32 0.0, %v3716
      %v3718 = vpop.f32.mrf.mxu0
      %v3719 = vpop.f32.mrf.mxu0
      %v3720 = vadd.f32 0.0, %v3719
      %v3721 = vpop.f32.mrf.mxu0
      %3722 = vmatprep.mubr.bf16.mxu0 0
      %3723 = vmatmul.mubr.bf16.gmra.mxu0 %v3607
      %v3724 = vpop.f32.mrf.mxu0
      %v3725 = vadd.f32 0.0, %v3724
      %v3726 = vpop.f32.mrf.mxu0
      %v3727 = vpop.f32.mrf.mxu0
      %v3728 = vadd.f32 0.0, %v3727
      %v3729 = vpop.f32.mrf.mxu0
      %3730 = vmatprep.mubr.bf16.mxu0 0
      %3731 = vmatmul.mubr.bf16.gmra.mxu0 %v3610
      %v3732 = vpop.f32.mrf.mxu0
      %v3733 = vadd.f32 0.0, %v3732
      %v3734 = vpop.f32.mrf.mxu0
      %v3735 = vpop.f32.mrf.mxu0
      %v3736 = vadd.f32 0.0, %v3735
      %v3737 = vpop.f32.mrf.mxu0
      %3738 = vmatprep.mubr.bf16.mxu0 0
      %3739 = vmatmul.mubr.bf16.gmra.mxu0 %v3613
      %v3740 = vpop.f32.mrf.mxu0
      %v3741 = vadd.f32 0.0, %v3740
      %v3742 = vpop.f32.mrf.mxu0
      %v3743 = vpop.f32.mrf.mxu0
      %v3744 = vadd.f32 0.0, %v3743
      %v3745 = vpop.f32.mrf.mxu0
      %3746 = vmatprep.mubr.bf16.mxu0 0
      %3747 = vmatmul.mubr.bf16.gmra.mxu0 %v3616
      %v3748 = vpop.f32.mrf.mxu0
      %v3749 = vadd.f32 0.0, %v3748
      %v3750 = vpop.f32.mrf.mxu0
      %v3751 = vpop.f32.mrf.mxu0
      %v3752 = vadd.f32 0.0, %v3751
      %v3753 = vpop.f32.mrf.mxu0
      %3754 = vmatprep.mubr.bf16.mxu0 0
      %3755 = vmatmul.mubr.bf16.gmra.mxu0 %v3619
      %v3756 = vpop.f32.mrf.mxu0
      %v3757 = vadd.f32 0.0, %v3756
      %v3758 = vpop.f32.mrf.mxu0
      %v3759 = vpop.f32.mrf.mxu0
      %v3760 = vadd.f32 0.0, %v3759
      %v3761 = vpop.f32.mrf.mxu0
      %3762 = vmatprep.mubr.bf16.mxu0 0
      %3763 = vmatmul.mubr.bf16.gmra.mxu0 %v3622
      %v3764 = vpop.f32.mrf.mxu0
      %v3765 = vadd.f32 0.0, %v3764
      %v3766 = vpop.f32.mrf.mxu0
      %v3767 = vpop.f32.mrf.mxu0
      %v3768 = vadd.f32 0.0, %v3767
      %v3769 = vpop.f32.mrf.mxu0
      %3770 = vmatprep.mubr.bf16.mxu0 0
      %3771 = vmatmul.mubr.bf16.gmra.mxu0 %v3625
      %v3772 = vpop.f32.mrf.mxu0
      %v3773 = vadd.f32 0.0, %v3772
      %v3774 = vpop.f32.mrf.mxu0
      %v3775 = vpop.f32.mrf.mxu0
      %v3776 = vadd.f32 0.0, %v3775
      %v3777 = vpop.f32.mrf.mxu0
      %3778 = vmatprep.mubr.bf16.mxu0 0
      %3779 = vmatmul.mubr.bf16.gmra.mxu0 %v3628
      %v3780 = vpop.f32.mrf.mxu0
      %v3781 = vadd.f32 0.0, %v3780
      %v3782 = vpop.f32.mrf.mxu0
      %v3783 = vpop.f32.mrf.mxu0
      %v3784 = vadd.f32 0.0, %v3783
      %v3785 = vpop.f32.mrf.mxu0
      %3786 = vmatprep.mubr.bf16.mxu0 0
      %3787 = vmatmul.mubr.bf16.gmra.mxu0 %v3631
      %v3788 = vpop.f32.mrf.mxu0
      %v3789 = vadd.f32 0.0, %v3788
      %v3790 = vpop.f32.mrf.mxu0
      %v3791 = vpop.f32.mrf.mxu0
      %v3792 = vadd.f32 0.0, %v3791
      %v3793 = vpop.f32.mrf.mxu0
      %3794 = vmatprep.mubr.bf16.mxu0 0
      %3795 = vmatmul.mubr.bf16.gmra.mxu0 %v3634
      %v3796 = vpop.f32.mrf.mxu0
      %v3797 = vadd.f32 0.0, %v3796
      %v3798 = vpop.f32.mrf.mxu0
      %v3799 = vpop.f32.mrf.mxu0
      %v3800 = vadd.f32 0.0, %v3799
      %v3801 = vpop.f32.mrf.mxu0
      %3802 = vmatprep.mubr.bf16.mxu0 0
      %3803 = vmatmul.mubr.bf16.gmra.mxu0 %v3637
      %v3804 = vpop.f32.mrf.mxu0
      %v3805 = vadd.f32 0.0, %v3804
      %v3806 = vpop.f32.mrf.mxu0
      %v3807 = vpop.f32.mrf.mxu0
      %v3808 = vadd.f32 0.0, %v3807
      %v3809 = vpop.f32.mrf.mxu0
      %3810 = vmatprep.mubr.bf16.mxu0 0
      %3811 = vmatmul.mubr.bf16.gmra.mxu0 %v3640
      %v3812 = vpop.f32.mrf.mxu0
      %v3813 = vadd.f32 0.0, %v3812
      %v3814 = vpop.f32.mrf.mxu0
      %v3815 = vpop.f32.mrf.mxu0
      %v3816 = vadd.f32 0.0, %v3815
      %v3817 = vpop.f32.mrf.mxu0
      %3818 = vdwg.mxu0
      %v3819 = vadd.f32 %v3493, %v3677
      %v3820 = vadd.f32 %v3494, %v3680
      %v3821 = vadd.f32 %v3495, %v3685
      %v3822 = vadd.f32 %v3496, %v3688
      %v3823 = vadd.f32 %v3497, %v3693
      %v3824 = vadd.f32 %v3498, %v3696
      %v3825 = vadd.f32 %v3499, %v3701
      %v3826 = vadd.f32 %v3500, %v3704
      %v3827 = vadd.f32 %v3501, %v3709
      %v3828 = vadd.f32 %v3502, %v3712
      %v3829 = vadd.f32 %v3503, %v3717
      %v3830 = vadd.f32 %v3504, %v3720
      %v3831 = vadd.f32 %v3505, %v3725
      %v3832 = vadd.f32 %v3506, %v3728
      %v3833 = vadd.f32 %v3507, %v3733
      %v3834 = vadd.f32 %v3508, %v3736
      %v3835 = vadd.f32 %v3509, %v3741
      %v3836 = vadd.f32 %v3510, %v3744
      %v3837 = vadd.f32 %v3511, %v3749
      %v3838 = vadd.f32 %v3512, %v3752
      %v3839 = vadd.f32 %v3513, %v3757
      %v3840 = vadd.f32 %v3514, %v3760
      %v3841 = vadd.f32 %v3515, %v3765
      %v3842 = vadd.f32 %v3516, %v3768
      %v3843 = vadd.f32 %v3517, %v3773
      %v3844 = vadd.f32 %v3518, %v3776
      %v3845 = vadd.f32 %v3519, %v3781
      %v3846 = vadd.f32 %v3520, %v3784
      %v3847 = vadd.f32 %v3521, %v3789
      %v3848 = vadd.f32 %v3522, %v3792
      %v3849 = vadd.f32 %v3523, %v3797
      %v3850 = vadd.f32 %v3524, %v3800
      %v3851 = vadd.f32 %v3525, %v3805
      %v3852 = vadd.f32 %v3526, %v3808
      %v3853 = vadd.f32 %v3527, %v3813
      %v3854 = vadd.f32 %v3528, %v3816
      %v3855 = vld [vmem:[%s3] sm:$0x1]
      %v3857 = vlaneseq
      %v3858 = vshrl.u32 %v3857, 7
      %v3859 = vsub.s32 0, %v3858
      %v3860 = vrot.slane %v3855, %v3859
      %v3862 = vadd.f32 %v3819, %v3860
      %v3863 = vadd.f32 %v3820, %v3860
      %v3864 = vadd.f32 %v3821, %v3860
      %v3865 = vadd.f32 %v3822, %v3860
      %v3866 = vadd.f32 %v3823, %v3860
      %v3867 = vadd.f32 %v3824, %v3860
      %v3868 = vadd.f32 %v3825, %v3860
      %v3869 = vadd.f32 %v3826, %v3860
      %v3870 = vadd.f32 %v3827, %v3860
      %v3871 = vadd.f32 %v3828, %v3860
      %v3872 = vadd.f32 %v3829, %v3860
      %v3873 = vadd.f32 %v3830, %v3860
      %v3874 = vadd.f32 %v3831, %v3860
      %v3875 = vadd.f32 %v3832, %v3860
      %v3876 = vadd.f32 %v3833, %v3860
      %v3877 = vadd.f32 %v3834, %v3860
      %v3878 = vadd.f32 %v3835, %v3860
      %v3879 = vadd.f32 %v3836, %v3860
      %v3880 = vadd.f32 %v3837, %v3860
      %v3881 = vadd.f32 %v3838, %v3860
      %v3882 = vadd.f32 %v3839, %v3860
      %v3883 = vadd.f32 %v3840, %v3860
      %v3884 = vadd.f32 %v3841, %v3860
      %v3885 = vadd.f32 %v3842, %v3860
      %v3886 = vadd.f32 %v3843, %v3860
      %v3887 = vadd.f32 %v3844, %v3860
      %v3888 = vadd.f32 %v3845, %v3860
      %v3889 = vadd.f32 %v3846, %v3860
      %v3890 = vadd.f32 %v3847, %v3860
      %v3891 = vadd.f32 %v3848, %v3860
      %v3892 = vadd.f32 %v3849, %v3860
      %v3893 = vadd.f32 %v3850, %v3860
      %v3894 = vadd.f32 %v3851, %v3860
      %v3895 = vadd.f32 %v3852, %v3860
      %v3896 = vadd.f32 %v3853, %v3860
      %v3897 = vadd.f32 %v3854, %v3860
      %v3898 = vmax.f32 %v3862, 0.0
      %v3899 = vmax.f32 %v3863, 0.0
      %v3900 = vmax.f32 %v3864, 0.0
      %v3901 = vmax.f32 %v3865, 0.0
      %v3902 = vmax.f32 %v3866, 0.0
      %v3903 = vmax.f32 %v3867, 0.0
      %v3904 = vmax.f32 %v3868, 0.0
      %v3905 = vmax.f32 %v3869, 0.0
      %v3906 = vmax.f32 %v3870, 0.0
      %v3907 = vmax.f32 %v3871, 0.0
      %v3908 = vmax.f32 %v3872, 0.0
      %v3909 = vmax.f32 %v3873, 0.0
      %v3910 = vmax.f32 %v3874, 0.0
      %v3911 = vmax.f32 %v3875, 0.0
      %v3912 = vmax.f32 %v3876, 0.0
      %v3913 = vmax.f32 %v3877, 0.0
      %v3914 = vmax.f32 %v3878, 0.0
      %v3915 = vmax.f32 %v3879, 0.0
      %v3916 = vmax.f32 %v3880, 0.0
      %v3917 = vmax.f32 %v3881, 0.0
      %v3918 = vmax.f32 %v3882, 0.0
      %v3919 = vmax.f32 %v3883, 0.0
      %v3920 = vmax.f32 %v3884, 0.0
      %v3921 = vmax.f32 %v3885, 0.0
      %v3922 = vmax.f32 %v3886, 0.0
      %v3923 = vmax.f32 %v3887, 0.0
      %v3924 = vmax.f32 %v3888, 0.0
      %v3925 = vmax.f32 %v3889, 0.0
      %v3926 = vmax.f32 %v3890, 0.0
      %v3927 = vmax.f32 %v3891, 0.0
      %v3928 = vmax.f32 %v3892, 0.0
      %v3929 = vmax.f32 %v3893, 0.0
      %v3930 = vmax.f32 %v3894, 0.0
      %v3931 = vmax.f32 %v3895, 0.0
      %v3932 = vmax.f32 %v3896, 0.0
      %v3933 = vmax.f32 %v3897, 0.0
      %v3934 = vld [vmem:[%s6] sm:$0xff]
      %v3935 = vld [vmem:[%s6 + $0x8] sm:$0xff]
      %v3936 = vld [vmem:[%s6 + $0x10] sm:$0xff]
      %v3937 = vld [vmem:[%s6 + $0x18] sm:$0xff]
      %v3938 = vld [vmem:[%s6 + $0x20] sm:$0xff]
      %v3939 = vld [vmem:[%s6 + $0x28] sm:$0xff]
      %v3940 = vld [vmem:[%s6 + $0x30] sm:$0xff]
      %v3941 = vld [vmem:[%s6 + $0x38] sm:$0xff]
      %v3942 = vld [vmem:[%s6 + $0x40] sm:$0xff]
      %v3943 = vld [vmem:[%s6 + $0x48] sm:$0xff]
      %v3944 = vld [vmem:[%s6 + $0x50] sm:$0xff]
      %v3945 = vld [vmem:[%s6 + $0x58] sm:$0xff]
      %v3946 = vld [vmem:[%s6 + $0x60] sm:$0xff]
      %v3947 = vld [vmem:[%s6 + $0x68] sm:$0xff]
      %v3948 = vld [vmem:[%s6 + $0x70] sm:$0xff]
      %v3949 = vld [vmem:[%s6 + $0x78] sm:$0xff]
      %v3950 = vld [vmem:[%s6 + $0x80] sm:$0xff]
      %v3951 = vld [vmem:[%s6 + $0x88] sm:$0xff]
      %v3952 = vld [vmem:[%s6 + $0x90] sm:$0xff]
      %v3953 = vld [vmem:[%s6 + $0x98] sm:$0xff]
      %v3954 = vld [vmem:[%s6 + $0xa0] sm:$0xff]
      %v3955 = vld [vmem:[%s6 + $0xa8] sm:$0xff]
      %v3956 = vld [vmem:[%s6 + $0xb0] sm:$0xff]
      %v3957 = vld [vmem:[%s6 + $0xb8] sm:$0xff]
      %v3958 = vld [vmem:[%s6 + $0xc0] sm:$0xff]
      %v3959 = vld [vmem:[%s6 + $0xc8] sm:$0xff]
      %v3960 = vld [vmem:[%s6 + $0xd0] sm:$0xff]
      %v3961 = vld [vmem:[%s6 + $0xd8] sm:$0xff]
      %v3962 = vld [vmem:[%s6 + $0xe0] sm:$0xff]
      %v3963 = vld [vmem:[%s6 + $0xe8] sm:$0xff]
      %v3964 = vld [vmem:[%s6 + $0xf0] sm:$0xff]
      %v3965 = vld [vmem:[%s6 + $0xf8] sm:$0xff]
      %v3966 = vld [vmem:[%s6 + $0x100] sm:$0xff]
      %v3967 = vld [vmem:[%s6 + $0x108] sm:$0xff]
      %v3968 = vld [vmem:[%s6 + $0x110] sm:$0xff]
      %v3969 = vld [vmem:[%s6 + $0x118] sm:$0xff]
      %vm3970 = vcmp.gt.f32.partialorder %v3934, 0.0
      %vm3971 = vcmp.gt.f32.partialorder %v3935, 0.0
      %vm3972 = vcmp.gt.f32.partialorder %v3936, 0.0
      %vm3973 = vcmp.gt.f32.partialorder %v3937, 0.0
      %vm3974 = vcmp.gt.f32.partialorder %v3938, 0.0
      %vm3975 = vcmp.gt.f32.partialorder %v3939, 0.0
      %vm3976 = vcmp.gt.f32.partialorder %v3940, 0.0
      %vm3977 = vcmp.gt.f32.partialorder %v3941, 0.0
      %vm3978 = vcmp.gt.f32.partialorder %v3942, 0.0
      %vm3979 = vcmp.gt.f32.partialorder %v3943, 0.0
      %vm3980 = vcmp.gt.f32.partialorder %v3944, 0.0
      %vm3981 = vcmp.gt.f32.partialorder %v3945, 0.0
      %vm3982 = vcmp.gt.f32.partialorder %v3946, 0.0
      %vm3983 = vcmp.gt.f32.partialorder %v3947, 0.0
      %vm3984 = vcmp.gt.f32.partialorder %v3948, 0.0
      %vm3985 = vcmp.gt.f32.partialorder %v3949, 0.0
      %vm3986 = vcmp.gt.f32.partialorder %v3950, 0.0
      %vm3987 = vcmp.gt.f32.partialorder %v3951, 0.0
      %vm3988 = vcmp.gt.f32.partialorder %v3952, 0.0
      %vm3989 = vcmp.gt.f32.partialorder %v3953, 0.0
      %vm3990 = vcmp.gt.f32.partialorder %v3954, 0.0
      %vm3991 = vcmp.gt.f32.partialorder %v3955, 0.0
      %vm3992 = vcmp.gt.f32.partialorder %v3956, 0.0
      %vm3993 = vcmp.gt.f32.partialorder %v3957, 0.0
      %vm3994 = vcmp.gt.f32.partialorder %v3958, 0.0
      %vm3995 = vcmp.gt.f32.partialorder %v3959, 0.0
      %vm3996 = vcmp.gt.f32.partialorder %v3960, 0.0
      %vm3997 = vcmp.gt.f32.partialorder %v3961, 0.0
      %vm3998 = vcmp.gt.f32.partialorder %v3962, 0.0
      %vm3999 = vcmp.gt.f32.partialorder %v3963, 0.0
      %vm4000 = vcmp.gt.f32.partialorder %v3964, 0.0
      %vm4001 = vcmp.gt.f32.partialorder %v3965, 0.0
      %vm4002 = vcmp.gt.f32.partialorder %v3966, 0.0
      %vm4003 = vcmp.gt.f32.partialorder %v3967, 0.0
      %vm4004 = vcmp.gt.f32.partialorder %v3968, 0.0
      %vm4005 = vcmp.gt.f32.partialorder %v3969, 0.0
      %v4006 = vsel %vm3970, 1, 0
      %v4007 = vsel %vm3971, 1, 0
      %v4008 = vsel %vm3972, 1, 0
      %v4009 = vsel %vm3973, 1, 0
      %v4010 = vsel %vm3974, 1, 0
      %v4011 = vsel %vm3975, 1, 0
      %v4012 = vsel %vm3976, 1, 0
      %v4013 = vsel %vm3977, 1, 0
      %v4014 = vsel %vm3978, 1, 0
      %v4015 = vsel %vm3979, 1, 0
      %v4016 = vsel %vm3980, 1, 0
      %v4017 = vsel %vm3981, 1, 0
      %v4018 = vsel %vm3982, 1, 0
      %v4019 = vsel %vm3983, 1, 0
      %v4020 = vsel %vm3984, 1, 0
      %v4021 = vsel %vm3985, 1, 0
      %v4022 = vsel %vm3986, 1, 0
      %v4023 = vsel %vm3987, 1, 0
      %v4024 = vsel %vm3988, 1, 0
      %v4025 = vsel %vm3989, 1, 0
      %v4026 = vsel %vm3990, 1, 0
      %v4027 = vsel %vm3991, 1, 0
      %v4028 = vsel %vm3992, 1, 0
      %v4029 = vsel %vm3993, 1, 0
      %v4030 = vsel %vm3994, 1, 0
      %v4031 = vsel %vm3995, 1, 0
      %v4032 = vsel %vm3996, 1, 0
      %v4033 = vsel %vm3997, 1, 0
      %v4034 = vsel %vm3998, 1, 0
      %v4035 = vsel %vm3999, 1, 0
      %v4036 = vsel %vm4000, 1, 0
      %v4037 = vsel %vm4001, 1, 0
      %v4038 = vsel %vm4002, 1, 0
      %v4039 = vsel %vm4003, 1, 0
      %v4040 = vsel %vm4004, 1, 0
      %v4041 = vsel %vm4005, 1, 0
      %4042 = vset.pattern.permute.xlu0 0
      %4043 = vperm.xlu0 %4042, %v4006
      %v4044 = vpop.permute.xlu0 %4043
      %4045 = vset.pattern.permute.xlu0 0
      %4046 = vperm.xlu0 %4045, %v4007
      %v4047 = vpop.permute.xlu0 %4046
      %4048 = vset.pattern.permute.xlu0 0
      %4049 = vperm.xlu0 %4048, %v4008
      %v4050 = vpop.permute.xlu0 %4049
      %4051 = vset.pattern.permute.xlu0 0
      %4052 = vperm.xlu0 %4051, %v4009
      %v4053 = vpop.permute.xlu0 %4052
      %4054 = vset.pattern.permute.xlu0 0
      %4055 = vperm.xlu0 %4054, %v4010
      %v4056 = vpop.permute.xlu0 %4055
      %4057 = vset.pattern.permute.xlu0 0
      %4058 = vperm.xlu0 %4057, %v4011
      %v4059 = vpop.permute.xlu0 %4058
      %4060 = vset.pattern.permute.xlu0 0
      %4061 = vperm.xlu0 %4060, %v4012
      %v4062 = vpop.permute.xlu0 %4061
      %4063 = vset.pattern.permute.xlu0 0
      %4064 = vperm.xlu0 %4063, %v4013
      %v4065 = vpop.permute.xlu0 %4064
      %4066 = vset.pattern.permute.xlu0 0
      %4067 = vperm.xlu0 %4066, %v4014
      %v4068 = vpop.permute.xlu0 %4067
      %4069 = vset.pattern.permute.xlu0 0
      %4070 = vperm.xlu0 %4069, %v4015
      %v4071 = vpop.permute.xlu0 %4070
      %4072 = vset.pattern.permute.xlu0 0
      %4073 = vperm.xlu0 %4072, %v4016
      %v4074 = vpop.permute.xlu0 %4073
      %4075 = vset.pattern.permute.xlu0 0
      %4076 = vperm.xlu0 %4075, %v4017
      %v4077 = vpop.permute.xlu0 %4076
      %4078 = vset.pattern.permute.xlu0 0
      %4079 = vperm.xlu0 %4078, %v4018
      %v4080 = vpop.permute.xlu0 %4079
      %4081 = vset.pattern.permute.xlu0 0
      %4082 = vperm.xlu0 %4081, %v4019
      %v4083 = vpop.permute.xlu0 %4082
      %4084 = vset.pattern.permute.xlu0 0
      %4085 = vperm.xlu0 %4084, %v4020
      %v4086 = vpop.permute.xlu0 %4085
      %4087 = vset.pattern.permute.xlu0 0
      %4088 = vperm.xlu0 %4087, %v4021
      %v4089 = vpop.permute.xlu0 %4088
      %4090 = vset.pattern.permute.xlu0 0
      %4091 = vperm.xlu0 %4090, %v4022
      %v4092 = vpop.permute.xlu0 %4091
      %4093 = vset.pattern.permute.xlu0 0
      %4094 = vperm.xlu0 %4093, %v4023
      %v4095 = vpop.permute.xlu0 %4094
      %4096 = vset.pattern.permute.xlu0 0
      %4097 = vperm.xlu0 %4096, %v4024
      %v4098 = vpop.permute.xlu0 %4097
      %4099 = vset.pattern.permute.xlu0 0
      %4100 = vperm.xlu0 %4099, %v4025
      %v4101 = vpop.permute.xlu0 %4100
      %4102 = vset.pattern.permute.xlu0 0
      %4103 = vperm.xlu0 %4102, %v4026
      %v4104 = vpop.permute.xlu0 %4103
      %4105 = vset.pattern.permute.xlu0 0
      %4106 = vperm.xlu0 %4105, %v4027
      %v4107 = vpop.permute.xlu0 %4106
      %4108 = vset.pattern.permute.xlu0 0
      %4109 = vperm.xlu0 %4108, %v4028
      %v4110 = vpop.permute.xlu0 %4109
      %4111 = vset.pattern.permute.xlu0 0
      %4112 = vperm.xlu0 %4111, %v4029
      %v4113 = vpop.permute.xlu0 %4112
      %4114 = vset.pattern.permute.xlu0 0
      %4115 = vperm.xlu0 %4114, %v4030
      %v4116 = vpop.permute.xlu0 %4115
      %4117 = vset.pattern.permute.xlu0 0
      %4118 = vperm.xlu0 %4117, %v4031
      %v4119 = vpop.permute.xlu0 %4118
      %4120 = vset.pattern.permute.xlu0 0
      %4121 = vperm.xlu0 %4120, %v4032
      %v4122 = vpop.permute.xlu0 %4121
      %4123 = vset.pattern.permute.xlu0 0
      %4124 = vperm.xlu0 %4123, %v4033
      %v4125 = vpop.permute.xlu0 %4124
      %4126 = vset.pattern.permute.xlu0 0
      %4127 = vperm.xlu0 %4126, %v4034
      %v4128 = vpop.permute.xlu0 %4127
      %4129 = vset.pattern.permute.xlu0 0
      %4130 = vperm.xlu0 %4129, %v4035
      %v4131 = vpop.permute.xlu0 %4130
      %4132 = vset.pattern.permute.xlu0 0
      %4133 = vperm.xlu0 %4132, %v4036
      %v4134 = vpop.permute.xlu0 %4133
      %4135 = vset.pattern.permute.xlu0 0
      %4136 = vperm.xlu0 %4135, %v4037
      %v4137 = vpop.permute.xlu0 %4136
      %4138 = vset.pattern.permute.xlu0 0
      %4139 = vperm.xlu0 %4138, %v4038
      %v4140 = vpop.permute.xlu0 %4139
      %4141 = vset.pattern.permute.xlu0 0
      %4142 = vperm.xlu0 %4141, %v4039
      %v4143 = vpop.permute.xlu0 %4142
      %4144 = vset.pattern.permute.xlu0 0
      %4145 = vperm.xlu0 %4144, %v4040
      %v4146 = vpop.permute.xlu0 %4145
      %4147 = vset.pattern.permute.xlu0 0
      %4148 = vperm.xlu0 %4147, %v4041
      %v4149 = vpop.permute.xlu0 %4148
      %vm4150 = vcmp.eq.s32.totalorder %v4044, 1
      %vm4151 = vcmp.eq.s32.totalorder %v4047, 1
      %vm4152 = vcmp.eq.s32.totalorder %v4050, 1
      %vm4153 = vcmp.eq.s32.totalorder %v4053, 1
      %vm4154 = vcmp.eq.s32.totalorder %v4056, 1
      %vm4155 = vcmp.eq.s32.totalorder %v4059, 1
      %vm4156 = vcmp.eq.s32.totalorder %v4062, 1
      %vm4157 = vcmp.eq.s32.totalorder %v4065, 1
      %vm4158 = vcmp.eq.s32.totalorder %v4068, 1
      %vm4159 = vcmp.eq.s32.totalorder %v4071, 1
      %vm4160 = vcmp.eq.s32.totalorder %v4074, 1
      %vm4161 = vcmp.eq.s32.totalorder %v4077, 1
      %vm4162 = vcmp.eq.s32.totalorder %v4080, 1
      %vm4163 = vcmp.eq.s32.totalorder %v4083, 1
      %vm4164 = vcmp.eq.s32.totalorder %v4086, 1
      %vm4165 = vcmp.eq.s32.totalorder %v4089, 1
      %vm4166 = vcmp.eq.s32.totalorder %v4092, 1
      %vm4167 = vcmp.eq.s32.totalorder %v4095, 1
      %vm4168 = vcmp.eq.s32.totalorder %v4098, 1
      %vm4169 = vcmp.eq.s32.totalorder %v4101, 1
      %vm4170 = vcmp.eq.s32.totalorder %v4104, 1
      %vm4171 = vcmp.eq.s32.totalorder %v4107, 1
      %vm4172 = vcmp.eq.s32.totalorder %v4110, 1
      %vm4173 = vcmp.eq.s32.totalorder %v4113, 1
      %vm4174 = vcmp.eq.s32.totalorder %v4116, 1
      %vm4175 = vcmp.eq.s32.totalorder %v4119, 1
      %vm4176 = vcmp.eq.s32.totalorder %v4122, 1
      %vm4177 = vcmp.eq.s32.totalorder %v4125, 1
      %vm4178 = vcmp.eq.s32.totalorder %v4128, 1
      %vm4179 = vcmp.eq.s32.totalorder %v4131, 1
      %vm4180 = vcmp.eq.s32.totalorder %v4134, 1
      %vm4181 = vcmp.eq.s32.totalorder %v4137, 1
      %vm4182 = vcmp.eq.s32.totalorder %v4140, 1
      %vm4183 = vcmp.eq.s32.totalorder %v4143, 1
      %vm4184 = vcmp.eq.s32.totalorder %v4146, 1
      %vm4185 = vcmp.eq.s32.totalorder %v4149, 1
      %v4186 = vsel %vm4150, %v3898, 0.0
      %v4187 = vsel %vm4151, %v3899, 0.0
      %v4188 = vsel %vm4152, %v3900, 0.0
      %v4189 = vsel %vm4153, %v3901, 0.0
      %v4190 = vsel %vm4154, %v3902, 0.0
      %v4191 = vsel %vm4155, %v3903, 0.0
      %v4192 = vsel %vm4156, %v3904, 0.0
      %v4193 = vsel %vm4157, %v3905, 0.0
      %v4194 = vsel %vm4158, %v3906, 0.0
      %v4195 = vsel %vm4159, %v3907, 0.0
      %v4196 = vsel %vm4160, %v3908, 0.0
      %v4197 = vsel %vm4161, %v3909, 0.0
      %v4198 = vsel %vm4162, %v3910, 0.0
      %v4199 = vsel %vm4163, %v3911, 0.0
      %v4200 = vsel %vm4164, %v3912, 0.0
      %v4201 = vsel %vm4165, %v3913, 0.0
      %v4202 = vsel %vm4166, %v3914, 0.0
      %v4203 = vsel %vm4167, %v3915, 0.0
      %v4204 = vsel %vm4168, %v3916, 0.0
      %v4205 = vsel %vm4169, %v3917, 0.0
      %v4206 = vsel %vm4170, %v3918, 0.0
      %v4207 = vsel %vm4171, %v3919, 0.0
      %v4208 = vsel %vm4172, %v3920, 0.0
      %v4209 = vsel %vm4173, %v3921, 0.0
      %v4210 = vsel %vm4174, %v3922, 0.0
      %v4211 = vsel %vm4175, %v3923, 0.0
      %v4212 = vsel %vm4176, %v3924, 0.0
      %v4213 = vsel %vm4177, %v3925, 0.0
      %v4214 = vsel %vm4178, %v3926, 0.0
      %v4215 = vsel %vm4179, %v3927, 0.0
      %v4216 = vsel %vm4180, %v3928, 0.0
      %v4217 = vsel %vm4181, %v3929, 0.0
      %v4218 = vsel %vm4182, %v3930, 0.0
      %v4219 = vsel %vm4183, %v3931, 0.0
      %v4220 = vsel %vm4184, %v3932, 0.0
      %v4221 = vsel %vm4185, %v3933, 0.0
      %vm4222 = vcmask 257024
      %4223 = vst.msk [vmem:[#allocation2] sm:$0xf] %vm4222, 0
      %4224 = vst.msk [vmem:[#allocation2 + $0x4] sm:$0xf] %vm4222, 0
      %vm4225 = vcmask 254976
      %vm4226 = vsmask.f32 1280
      %vm4227 = vmand %vm4225, %vm4226
      %v4228 = vld [vmem:[#allocation2 + $0x8] sm:$0x3]
      %v4229 = vsel %vm4227, 0, %v4228
      %4230 = vst [vmem:[#allocation2 + $0x8] sm:$0x3] %v4229
      %vm4231 = vcmask 257025
      %4232 = vst.msk [vmem:[#allocation2 + $0x98] sm:$0xe] %vm4231, 0
      %4233 = vst.msk [vmem:[#allocation2 + $0x9c] sm:$0xf] %vm4222, 0
      %4234 = vst.msk [vmem:[#allocation2 + $0xa0] sm:$0xf] %vm4222, 0
      %v4235 = vpack.c.bf16 %v4187, %v4186
      %v4236 = vpack.c.bf16 %v4189, %v4188
      %v4237 = vpack.c.bf16 %v4191, %v4190
      %v4238 = vpack.c.bf16 %v4193, %v4192
      %v4239 = vpack.c.bf16 %v4195, %v4194
      %v4240 = vpack.c.bf16 %v4197, %v4196
      %v4241 = vpack.c.bf16 %v4199, %v4198
      %v4242 = vpack.c.bf16 %v4201, %v4200
      %v4243 = vpack.c.bf16 %v4203, %v4202
      %v4244 = vpack.c.bf16 %v4205, %v4204
      %v4245 = vpack.c.bf16 %v4207, %v4206
      %v4246 = vpack.c.bf16 %v4209, %v4208
      %v4247 = vpack.c.bf16 %v4211, %v4210
      %v4248 = vpack.c.bf16 %v4213, %v4212
      %v4249 = vpack.c.bf16 %v4215, %v4214
      %v4250 = vpack.c.bf16 %v4217, %v4216
      %v4251 = vpack.c.bf16 %v4219, %v4218
      %v4252 = vpack.c.bf16 %v4221, %v4220
      %v4271 = vunpack.c.l.b16 %v4235
      %v4272 = vunpack.c.h.b16 %v4235
      %v4273 = vunpack.c.l.b16 %v4236
      %v4274 = vunpack.c.h.b16 %v4236
      %v4275 = vunpack.c.l.b16 %v4237
      %v4276 = vunpack.c.h.b16 %v4237
      %v4277 = vunpack.c.l.b16 %v4238
      %v4278 = vunpack.c.h.b16 %v4238
      %v4279 = vunpack.c.l.b16 %v4239
      %v4280 = vunpack.c.h.b16 %v4239
      %v4281 = vunpack.c.l.b16 %v4240
      %v4282 = vunpack.c.h.b16 %v4240
      %v4283 = vunpack.c.l.b16 %v4241
      %v4284 = vunpack.c.h.b16 %v4241
      %v4285 = vunpack.c.l.b16 %v4242
      %v4286 = vunpack.c.h.b16 %v4242
      %v4287 = vunpack.c.l.b16 %v4243
      %v4288 = vunpack.c.h.b16 %v4243
      %v4289 = vunpack.c.l.b16 %v4244
      %v4290 = vunpack.c.h.b16 %v4244
      %v4291 = vunpack.c.l.b16 %v4245
      %v4292 = vunpack.c.h.b16 %v4245
      %v4293 = vunpack.c.l.b16 %v4246
      %v4294 = vunpack.c.h.b16 %v4246
      %v4295 = vunpack.c.l.b16 %v4247
      %v4296 = vunpack.c.h.b16 %v4247
      %v4297 = vunpack.c.l.b16 %v4248
      %v4298 = vunpack.c.h.b16 %v4248
      %v4299 = vunpack.c.l.b16 %v4249
      %v4300 = vunpack.c.h.b16 %v4249
      %v4301 = vunpack.c.l.b16 %v4250
      %v4302 = vunpack.c.h.b16 %v4250
      %v4303 = vunpack.c.l.b16 %v4251
      %v4304 = vunpack.c.h.b16 %v4251
      %v4305 = vunpack.c.l.b16 %v4252
      %v4306 = vunpack.c.h.b16 %v4252
      %v4307 = vpack.c.b16 %v4271, %v4271
      %v4308 = vpack.c.b16 %v4272, %v4272
      %v4309 = vpack.c.b16 %v4273, %v4273
      %v4310 = vpack.c.b16 %v4274, %v4274
      %v4311 = vpack.c.b16 %v4275, %v4275
      %v4312 = vpack.c.b16 %v4276, %v4276
      %v4313 = vpack.c.b16 %v4277, %v4277
      %v4314 = vpack.c.b16 %v4278, %v4278
      %v4315 = vpack.c.b16 %v4279, %v4279
      %v4316 = vpack.c.b16 %v4280, %v4280
      %v4317 = vpack.c.b16 %v4281, %v4281
      %v4318 = vpack.c.b16 %v4282, %v4282
      %v4319 = vpack.c.b16 %v4283, %v4283
      %v4320 = vpack.c.b16 %v4284, %v4284
      %v4321 = vpack.c.b16 %v4285, %v4285
      %v4322 = vpack.c.b16 %v4286, %v4286
      %v4323 = vpack.c.b16 %v4287, %v4287
      %v4324 = vpack.c.b16 %v4288, %v4288
      %v4325 = vpack.c.b16 %v4289, %v4289
      %v4326 = vpack.c.b16 %v4290, %v4290
      %v4327 = vpack.c.b16 %v4291, %v4291
      %v4328 = vpack.c.b16 %v4292, %v4292
      %v4329 = vpack.c.b16 %v4293, %v4293
      %v4330 = vpack.c.b16 %v4294, %v4294
      %v4331 = vpack.c.b16 %v4295, %v4295
      %v4332 = vpack.c.b16 %v4296, %v4296
      %v4333 = vpack.c.b16 %v4297, %v4297
      %v4334 = vpack.c.b16 %v4298, %v4298
      %v4335 = vpack.c.b16 %v4299, %v4299
      %v4336 = vpack.c.b16 %v4300, %v4300
      %v4337 = vpack.c.b16 %v4301, %v4301
      %v4338 = vpack.c.b16 %v4302, %v4302
      %v4339 = vpack.c.b16 %v4303, %v4303
      %v4340 = vpack.c.b16 %v4304, %v4304
      %v4341 = vpack.c.b16 %v4305, %v4305
      %v4342 = vpack.c.b16 %v4306, %v4306
      %vm4343 = vsmask.f32 5392
      %vm4344 = vmor %vm4226, %vm4343
      %v4346 = vshrl.u32 %v4307, 16
      %v4348 = vrot.slane %v4346, 6
      %v4349 = vshll.u32 %v4307, 16
      %v4351 = vrot.slane %v4349, 7
      %v4352 = vor.u32 %v4348, %v4351
      %v4353 = vrot.slane %v4352, 4
      %v4355 = vshrl.u32 %v4308, 16
      %v4357 = vrot.slane %v4355, 6
      %v4358 = vshll.u32 %v4308, 16
      %v4360 = vrot.slane %v4358, 7
      %v4361 = vor.u32 %v4357, %v4360
      %v4362 = vsel %vm4344, %v4353, %v4361
      %v4363 = vrot.slane %v4361, 4
      %v4365 = vshrl.u32 %v4309, 16
      %v4367 = vrot.slane %v4365, 6
      %v4368 = vshll.u32 %v4309, 16
      %v4370 = vrot.slane %v4368, 7
      %v4371 = vor.u32 %v4367, %v4370
      %v4372 = vsel %vm4344, %v4363, %v4371
      %v4373 = vrot.slane %v4371, 4
      %v4375 = vshrl.u32 %v4310, 16
      %v4377 = vrot.slane %v4375, 6
      %v4378 = vshll.u32 %v4310, 16
      %v4380 = vrot.slane %v4378, 7
      %v4381 = vor.u32 %v4377, %v4380
      %v4382 = vsel %vm4344, %v4373, %v4381
      %v4383 = vrot.slane %v4381, 4
      %v4385 = vshrl.u32 %v4311, 16
      %v4387 = vrot.slane %v4385, 6
      %v4388 = vshll.u32 %v4311, 16
      %v4390 = vrot.slane %v4388, 7
      %v4391 = vor.u32 %v4387, %v4390
      %v4392 = vsel %vm4344, %v4383, %v4391
      %v4393 = vrot.slane %v4391, 4
      %v4395 = vshrl.u32 %v4312, 16
      %v4397 = vrot.slane %v4395, 6
      %v4398 = vshll.u32 %v4312, 16
      %v4400 = vrot.slane %v4398, 7
      %v4401 = vor.u32 %v4397, %v4400
      %v4402 = vsel %vm4344, %v4393, %v4401
      %v4403 = vrot.slane %v4401, 4
      %v4405 = vshrl.u32 %v4313, 16
      %v4407 = vrot.slane %v4405, 6
      %v4408 = vshll.u32 %v4313, 16
      %v4410 = vrot.slane %v4408, 7
      %v4411 = vor.u32 %v4407, %v4410
      %v4412 = vsel %vm4344, %v4403, %v4411
      %v4413 = vrot.slane %v4411, 4
      %v4415 = vshrl.u32 %v4314, 16
      %v4417 = vrot.slane %v4415, 6
      %v4418 = vshll.u32 %v4314, 16
      %v4420 = vrot.slane %v4418, 7
      %v4421 = vor.u32 %v4417, %v4420
      %v4422 = vsel %vm4344, %v4413, %v4421
      %v4423 = vrot.slane %v4421, 4
      %v4425 = vshrl.u32 %v4315, 16
      %v4427 = vrot.slane %v4425, 6
      %v4428 = vshll.u32 %v4315, 16
      %v4430 = vrot.slane %v4428, 7
      %v4431 = vor.u32 %v4427, %v4430
      %v4432 = vsel %vm4344, %v4423, %v4431
      %v4433 = vrot.slane %v4431, 4
      %v4435 = vshrl.u32 %v4316, 16
      %v4437 = vrot.slane %v4435, 6
      %v4438 = vshll.u32 %v4316, 16
      %v4440 = vrot.slane %v4438, 7
      %v4441 = vor.u32 %v4437, %v4440
      %v4442 = vsel %vm4344, %v4433, %v4441
      %v4443 = vrot.slane %v4441, 4
      %v4445 = vshrl.u32 %v4317, 16
      %v4447 = vrot.slane %v4445, 6
      %v4448 = vshll.u32 %v4317, 16
      %v4450 = vrot.slane %v4448, 7
      %v4451 = vor.u32 %v4447, %v4450
      %v4452 = vsel %vm4344, %v4443, %v4451
      %v4453 = vrot.slane %v4451, 4
      %v4455 = vshrl.u32 %v4318, 16
      %v4457 = vrot.slane %v4455, 6
      %v4458 = vshll.u32 %v4318, 16
      %v4460 = vrot.slane %v4458, 7
      %v4461 = vor.u32 %v4457, %v4460
      %v4462 = vsel %vm4344, %v4453, %v4461
      %v4463 = vrot.slane %v4461, 4
      %v4465 = vshrl.u32 %v4319, 16
      %v4467 = vrot.slane %v4465, 6
      %v4468 = vshll.u32 %v4319, 16
      %v4470 = vrot.slane %v4468, 7
      %v4471 = vor.u32 %v4467, %v4470
      %v4472 = vsel %vm4344, %v4463, %v4471
      %v4473 = vrot.slane %v4471, 4
      %v4475 = vshrl.u32 %v4320, 16
      %v4477 = vrot.slane %v4475, 6
      %v4478 = vshll.u32 %v4320, 16
      %v4480 = vrot.slane %v4478, 7
      %v4481 = vor.u32 %v4477, %v4480
      %v4482 = vsel %vm4344, %v4473, %v4481
      %v4483 = vrot.slane %v4481, 4
      %v4485 = vshrl.u32 %v4321, 16
      %v4487 = vrot.slane %v4485, 6
      %v4488 = vshll.u32 %v4321, 16
      %v4490 = vrot.slane %v4488, 7
      %v4491 = vor.u32 %v4487, %v4490
      %v4492 = vsel %vm4344, %v4483, %v4491
      %v4493 = vrot.slane %v4491, 4
      %v4495 = vshrl.u32 %v4322, 16
      %v4497 = vrot.slane %v4495, 6
      %v4498 = vshll.u32 %v4322, 16
      %v4500 = vrot.slane %v4498, 7
      %v4501 = vor.u32 %v4497, %v4500
      %v4502 = vsel %vm4344, %v4493, %v4501
      %v4503 = vrot.slane %v4501, 4
      %v4505 = vshrl.u32 %v4323, 16
      %v4507 = vrot.slane %v4505, 6
      %v4508 = vshll.u32 %v4323, 16
      %v4510 = vrot.slane %v4508, 7
      %v4511 = vor.u32 %v4507, %v4510
      %v4512 = vsel %vm4344, %v4503, %v4511
      %v4513 = vrot.slane %v4511, 4
      %v4515 = vshrl.u32 %v4324, 16
      %v4517 = vrot.slane %v4515, 6
      %v4518 = vshll.u32 %v4324, 16
      %v4520 = vrot.slane %v4518, 7
      %v4521 = vor.u32 %v4517, %v4520
      %v4522 = vsel %vm4344, %v4513, %v4521
      %v4523 = vrot.slane %v4521, 4
      %v4525 = vshrl.u32 %v4325, 16
      %v4527 = vrot.slane %v4525, 6
      %v4528 = vshll.u32 %v4325, 16
      %v4530 = vrot.slane %v4528, 7
      %v4531 = vor.u32 %v4527, %v4530
      %v4532 = vsel %vm4344, %v4523, %v4531
      %v4533 = vrot.slane %v4531, 4
      %v4535 = vshrl.u32 %v4326, 16
      %v4537 = vrot.slane %v4535, 6
      %v4538 = vshll.u32 %v4326, 16
      %v4540 = vrot.slane %v4538, 7
      %v4541 = vor.u32 %v4537, %v4540
      %v4542 = vsel %vm4344, %v4533, %v4541
      %v4543 = vrot.slane %v4541, 4
      %v4545 = vshrl.u32 %v4327, 16
      %v4547 = vrot.slane %v4545, 6
      %v4548 = vshll.u32 %v4327, 16
      %v4550 = vrot.slane %v4548, 7
      %v4551 = vor.u32 %v4547, %v4550
      %v4552 = vsel %vm4344, %v4543, %v4551
      %v4553 = vrot.slane %v4551, 4
      %v4555 = vshrl.u32 %v4328, 16
      %v4557 = vrot.slane %v4555, 6
      %v4558 = vshll.u32 %v4328, 16
      %v4560 = vrot.slane %v4558, 7
      %v4561 = vor.u32 %v4557, %v4560
      %v4562 = vsel %vm4344, %v4553, %v4561
      %v4563 = vrot.slane %v4561, 4
      %v4565 = vshrl.u32 %v4329, 16
      %v4567 = vrot.slane %v4565, 6
      %v4568 = vshll.u32 %v4329, 16
      %v4570 = vrot.slane %v4568, 7
      %v4571 = vor.u32 %v4567, %v4570
      %v4572 = vsel %vm4344, %v4563, %v4571
      %v4573 = vrot.slane %v4571, 4
      %v4575 = vshrl.u32 %v4330, 16
      %v4577 = vrot.slane %v4575, 6
      %v4578 = vshll.u32 %v4330, 16
      %v4580 = vrot.slane %v4578, 7
      %v4581 = vor.u32 %v4577, %v4580
      %v4582 = vsel %vm4344, %v4573, %v4581
      %v4583 = vrot.slane %v4581, 4
      %v4585 = vshrl.u32 %v4331, 16
      %v4587 = vrot.slane %v4585, 6
      %v4588 = vshll.u32 %v4331, 16
      %v4590 = vrot.slane %v4588, 7
      %v4591 = vor.u32 %v4587, %v4590
      %v4592 = vsel %vm4344, %v4583, %v4591
      %v4593 = vrot.slane %v4591, 4
      %v4595 = vshrl.u32 %v4332, 16
      %v4597 = vrot.slane %v4595, 6
      %v4598 = vshll.u32 %v4332, 16
      %v4600 = vrot.slane %v4598, 7
      %v4601 = vor.u32 %v4597, %v4600
      %v4602 = vsel %vm4344, %v4593, %v4601
      %v4603 = vrot.slane %v4601, 4
      %v4605 = vshrl.u32 %v4333, 16
      %v4607 = vrot.slane %v4605, 6
      %v4608 = vshll.u32 %v4333, 16
      %v4610 = vrot.slane %v4608, 7
      %v4611 = vor.u32 %v4607, %v4610
      %v4612 = vsel %vm4344, %v4603, %v4611
      %v4613 = vrot.slane %v4611, 4
      %v4615 = vshrl.u32 %v4334, 16
      %v4617 = vrot.slane %v4615, 6
      %v4618 = vshll.u32 %v4334, 16
      %v4620 = vrot.slane %v4618, 7
      %v4621 = vor.u32 %v4617, %v4620
      %v4622 = vsel %vm4344, %v4613, %v4621
      %v4623 = vrot.slane %v4621, 4
      %v4625 = vshrl.u32 %v4335, 16
      %v4627 = vrot.slane %v4625, 6
      %v4628 = vshll.u32 %v4335, 16
      %v4630 = vrot.slane %v4628, 7
      %v4631 = vor.u32 %v4627, %v4630
      %v4632 = vsel %vm4344, %v4623, %v4631
      %v4633 = vrot.slane %v4631, 4
      %v4635 = vshrl.u32 %v4336, 16
      %v4637 = vrot.slane %v4635, 6
      %v4638 = vshll.u32 %v4336, 16
      %v4640 = vrot.slane %v4638, 7
      %v4641 = vor.u32 %v4637, %v4640
      %v4642 = vsel %vm4344, %v4633, %v4641
      %v4643 = vrot.slane %v4641, 4
      %v4645 = vshrl.u32 %v4337, 16
      %v4647 = vrot.slane %v4645, 6
      %v4648 = vshll.u32 %v4337, 16
      %v4650 = vrot.slane %v4648, 7
      %v4651 = vor.u32 %v4647, %v4650
      %v4652 = vsel %vm4344, %v4643, %v4651
      %v4653 = vrot.slane %v4651, 4
      %v4655 = vshrl.u32 %v4338, 16
      %v4657 = vrot.slane %v4655, 6
      %v4658 = vshll.u32 %v4338, 16
      %v4660 = vrot.slane %v4658, 7
      %v4661 = vor.u32 %v4657, %v4660
      %v4662 = vsel %vm4344, %v4653, %v4661
      %v4663 = vrot.slane %v4661, 4
      %v4665 = vshrl.u32 %v4339, 16
      %v4667 = vrot.slane %v4665, 6
      %v4668 = vshll.u32 %v4339, 16
      %v4670 = vrot.slane %v4668, 7
      %v4671 = vor.u32 %v4667, %v4670
      %v4672 = vsel %vm4344, %v4663, %v4671
      %v4673 = vrot.slane %v4671, 4
      %v4675 = vshrl.u32 %v4340, 16
      %v4677 = vrot.slane %v4675, 6
      %v4678 = vshll.u32 %v4340, 16
      %v4680 = vrot.slane %v4678, 7
      %v4681 = vor.u32 %v4677, %v4680
      %v4682 = vsel %vm4344, %v4673, %v4681
      %v4683 = vrot.slane %v4681, 4
      %v4685 = vshrl.u32 %v4341, 16
      %v4687 = vrot.slane %v4685, 6
      %v4688 = vshll.u32 %v4341, 16
      %v4690 = vrot.slane %v4688, 7
      %v4691 = vor.u32 %v4687, %v4690
      %v4692 = vsel %vm4344, %v4683, %v4691
      %v4693 = vrot.slane %v4691, 4
      %v4695 = vshrl.u32 %v4342, 16
      %v4697 = vrot.slane %v4695, 6
      %v4698 = vshll.u32 %v4342, 16
      %v4700 = vrot.slane %v4698, 7
      %v4701 = vor.u32 %v4697, %v4700
      %v4702 = vsel %vm4344, %v4693, %v4701
      %v4703 = vrot.slane %v4701, 4
      %vm4741 = vcmask 257025
      %vm4742 = vsmask.f32 7942
      %vm4743 = vmand %vm4741, %vm4742
      %v4744 = vld [vmem:[#allocation2 + $0x8] sm:$0xe]
      %v4745 = vsel %vm4743, %v4352, %v4744
      %4746 = vst [vmem:[#allocation2 + $0x8] sm:$0xe] %v4745
      %4747 = vst.msk [vmem:[#allocation2 + $0xc] sm:$0xf] %vm4222, %v4362
      %4748 = vst.msk [vmem:[#allocation2 + $0x10] sm:$0xf] %vm4222, %v4372
      %4749 = vst.msk [vmem:[#allocation2 + $0x14] sm:$0xf] %vm4222, %v4382
      %4750 = vst.msk [vmem:[#allocation2 + $0x18] sm:$0xf] %vm4222, %v4392
      %4751 = vst.msk [vmem:[#allocation2 + $0x1c] sm:$0xf] %vm4222, %v4402
      %4752 = vst.msk [vmem:[#allocation2 + $0x20] sm:$0xf] %vm4222, %v4412
      %4753 = vst.msk [vmem:[#allocation2 + $0x24] sm:$0xf] %vm4222, %v4422
      %4754 = vst.msk [vmem:[#allocation2 + $0x28] sm:$0xf] %vm4222, %v4432
      %4755 = vst.msk [vmem:[#allocation2 + $0x2c] sm:$0xf] %vm4222, %v4442
      %4756 = vst.msk [vmem:[#allocation2 + $0x30] sm:$0xf] %vm4222, %v4452
      %4757 = vst.msk [vmem:[#allocation2 + $0x34] sm:$0xf] %vm4222, %v4462
      %4758 = vst.msk [vmem:[#allocation2 + $0x38] sm:$0xf] %vm4222, %v4472
      %4759 = vst.msk [vmem:[#allocation2 + $0x3c] sm:$0xf] %vm4222, %v4482
      %4760 = vst.msk [vmem:[#allocation2 + $0x40] sm:$0xf] %vm4222, %v4492
      %4761 = vst.msk [vmem:[#allocation2 + $0x44] sm:$0xf] %vm4222, %v4502
      %4762 = vst.msk [vmem:[#allocation2 + $0x48] sm:$0xf] %vm4222, %v4512
      %4763 = vst.msk [vmem:[#allocation2 + $0x4c] sm:$0xf] %vm4222, %v4522
      %4764 = vst.msk [vmem:[#allocation2 + $0x50] sm:$0xf] %vm4222, %v4532
      %4765 = vst.msk [vmem:[#allocation2 + $0x54] sm:$0xf] %vm4222, %v4542
      %4766 = vst.msk [vmem:[#allocation2 + $0x58] sm:$0xf] %vm4222, %v4552
      %4767 = vst.msk [vmem:[#allocation2 + $0x5c] sm:$0xf] %vm4222, %v4562
      %4768 = vst.msk [vmem:[#allocation2 + $0x60] sm:$0xf] %vm4222, %v4572
      %4769 = vst.msk [vmem:[#allocation2 + $0x64] sm:$0xf] %vm4222, %v4582
      %4770 = vst.msk [vmem:[#allocation2 + $0x68] sm:$0xf] %vm4222, %v4592
      %4771 = vst.msk [vmem:[#allocation2 + $0x6c] sm:$0xf] %vm4222, %v4602
      %4772 = vst.msk [vmem:[#allocation2 + $0x70] sm:$0xf] %vm4222, %v4612
      %4773 = vst.msk [vmem:[#allocation2 + $0x74] sm:$0xf] %vm4222, %v4622
      %4774 = vst.msk [vmem:[#allocation2 + $0x78] sm:$0xf] %vm4222, %v4632
      %4775 = vst.msk [vmem:[#allocation2 + $0x7c] sm:$0xf] %vm4222, %v4642
      %4776 = vst.msk [vmem:[#allocation2 + $0x80] sm:$0xf] %vm4222, %v4652
      %4777 = vst.msk [vmem:[#allocation2 + $0x84] sm:$0xf] %vm4222, %v4662
      %4778 = vst.msk [vmem:[#allocation2 + $0x88] sm:$0xf] %vm4222, %v4672
      %4779 = vst.msk [vmem:[#allocation2 + $0x8c] sm:$0xf] %vm4222, %v4682
      %4780 = vst.msk [vmem:[#allocation2 + $0x90] sm:$0xf] %vm4222, %v4692
      %4781 = vst.msk [vmem:[#allocation2 + $0x94] sm:$0xf] %vm4222, %v4702
      %v4782 = vld [vmem:[#allocation2 + $0x98] sm:$0x3]
      %v4783 = vsel %vm4227, %v4703, %v4782
      %4784 = vst [vmem:[#allocation2 + $0x98] sm:$0x3] %v4783
      %v4785 = vld [vmem:[#allocation2] sm:$0xf]
      %v4786 = vld [vmem:[#allocation2 + $0x4] sm:$0xf]
      %v4787 = vld [vmem:[#allocation2 + $0x8] sm:$0xf]
      %v4788 = vld [vmem:[#allocation2 + $0xc] sm:$0xf]
      %v4789 = vld [vmem:[#allocation2 + $0x10] sm:$0xf]
      %v4790 = vld [vmem:[#allocation2 + $0x14] sm:$0xf]
      %v4791 = vld [vmem:[#allocation2 + $0x18] sm:$0xf]
      %v4792 = vld [vmem:[#allocation2 + $0x1c] sm:$0xf]
      %v4793 = vld [vmem:[#allocation2 + $0x20] sm:$0xf]
      %v4794 = vld [vmem:[#allocation2 + $0x24] sm:$0xf]
      %v4795 = vld [vmem:[#allocation2 + $0x28] sm:$0xf]
      %v4796 = vld [vmem:[#allocation2 + $0x2c] sm:$0xf]
      %v4797 = vld [vmem:[#allocation2 + $0x30] sm:$0xf]
      %v4798 = vld [vmem:[#allocation2 + $0x34] sm:$0xf]
      %v4799 = vld [vmem:[#allocation2 + $0x38] sm:$0xf]
      %v4800 = vld [vmem:[#allocation2 + $0x3c] sm:$0xf]
      %v4801 = vld [vmem:[#allocation2 + $0x40] sm:$0xf]
      %v4802 = vld [vmem:[#allocation2 + $0x44] sm:$0xf]
      %v4803 = vld [vmem:[#allocation2 + $0x48] sm:$0xf]
      %v4804 = vld [vmem:[#allocation2 + $0x4c] sm:$0xf]
      %v4805 = vld [vmem:[#allocation2 + $0x50] sm:$0xf]
      %v4806 = vld [vmem:[#allocation2 + $0x54] sm:$0xf]
      %v4807 = vld [vmem:[#allocation2 + $0x58] sm:$0xf]
      %v4808 = vld [vmem:[#allocation2 + $0x5c] sm:$0xf]
      %v4809 = vld [vmem:[#allocation2 + $0x60] sm:$0xf]
      %v4810 = vld [vmem:[#allocation2 + $0x64] sm:$0xf]
      %v4811 = vld [vmem:[#allocation2 + $0x68] sm:$0xf]
      %v4812 = vld [vmem:[#allocation2 + $0x6c] sm:$0xf]
      %v4813 = vld [vmem:[#allocation2 + $0x70] sm:$0xf]
      %v4814 = vld [vmem:[#allocation2 + $0x74] sm:$0xf]
      %v4815 = vld [vmem:[#allocation2 + $0x78] sm:$0xf]
      %v4816 = vld [vmem:[#allocation2 + $0x7c] sm:$0xf]
      %v4817 = vld [vmem:[#allocation2 + $0x80] sm:$0xf]
      %v4818 = vld [vmem:[#allocation2 + $0x84] sm:$0xf]
      %v4819 = vld [vmem:[#allocation2 + $0x88] sm:$0xf]
      %v4820 = vld [vmem:[#allocation2 + $0x8c] sm:$0xf]
      %v4821 = vld [vmem:[%s4] sm:$0xf]
      %v4822 = vld [vmem:[%s4 + $0x4] sm:$0xf]
      %v4823 = vld [vmem:[%s4 + $0x8] sm:$0xf]
      %v4824 = vld [vmem:[%s4 + $0xc] sm:$0xf]
      %v4825 = vld [vmem:[#allocation2 + $0x90] sm:$0x1]
      %s4826 = scalar_lea.vmem %s4, 16
      %v4827 = vld [vmem:[%s4826] sm:$0xf]
      %v4828 = vld [vmem:[%s4826 + $0x4] sm:$0xf]
      %v4829 = vld [vmem:[%s4826 + $0x8] sm:$0xf]
      %v4830 = vld [vmem:[%s4826 + $0xc] sm:$0xf]
      %v4868 = vunpack.c.l.b16 %v4785
      %v4869 = vunpack.c.l.b16 %v4786
      %v4870 = vunpack.c.l.b16 %v4787
      %v4871 = vunpack.c.l.b16 %v4788
      %v4872 = vunpack.c.l.b16 %v4789
      %v4873 = vunpack.c.l.b16 %v4790
      %v4874 = vunpack.c.l.b16 %v4791
      %v4875 = vunpack.c.l.b16 %v4792
      %v4876 = vunpack.c.l.b16 %v4793
      %v4877 = vunpack.c.l.b16 %v4794
      %v4878 = vunpack.c.l.b16 %v4795
      %v4879 = vunpack.c.l.b16 %v4796
      %v4880 = vunpack.c.l.b16 %v4797
      %v4881 = vunpack.c.l.b16 %v4798
      %v4882 = vunpack.c.l.b16 %v4799
      %v4883 = vunpack.c.l.b16 %v4800
      %v4884 = vunpack.c.l.b16 %v4801
      %v4885 = vunpack.c.l.b16 %v4802
      %v4886 = vunpack.c.l.b16 %v4803
      %v4887 = vunpack.c.l.b16 %v4804
      %v4888 = vunpack.c.l.b16 %v4805
      %v4889 = vunpack.c.l.b16 %v4806
      %v4890 = vunpack.c.l.b16 %v4807
      %v4891 = vunpack.c.l.b16 %v4808
      %v4892 = vunpack.c.l.b16 %v4809
      %v4893 = vunpack.c.l.b16 %v4810
      %v4894 = vunpack.c.l.b16 %v4811
      %v4895 = vunpack.c.l.b16 %v4812
      %v4896 = vunpack.c.l.b16 %v4813
      %v4897 = vunpack.c.l.b16 %v4814
      %v4898 = vunpack.c.l.b16 %v4815
      %v4899 = vunpack.c.l.b16 %v4816
      %v4900 = vunpack.c.l.b16 %v4817
      %v4901 = vunpack.c.l.b16 %v4818
      %v4902 = vunpack.c.l.b16 %v4819
      %v4903 = vunpack.c.l.b16 %v4820
      %v4904 = vunpack.c.l.b16 %v4825
      %v4905 = vpack.c.b16 %v4869, %v4868
      %v4906 = vpack.c.b16 %v4871, %v4870
      %v4907 = vpack.c.b16 %v4873, %v4872
      %v4908 = vpack.c.b16 %v4875, %v4874
      %v4909 = vpack.c.b16 %v4877, %v4876
      %v4910 = vpack.c.b16 %v4879, %v4878
      %v4911 = vpack.c.b16 %v4881, %v4880
      %v4912 = vpack.c.b16 %v4883, %v4882
      %v4913 = vpack.c.b16 %v4885, %v4884
      %v4914 = vpack.c.b16 %v4887, %v4886
      %v4915 = vpack.c.b16 %v4889, %v4888
      %v4916 = vpack.c.b16 %v4891, %v4890
      %v4917 = vpack.c.b16 %v4893, %v4892
      %v4918 = vpack.c.b16 %v4895, %v4894
      %v4919 = vpack.c.b16 %v4897, %v4896
      %v4920 = vpack.c.b16 %v4899, %v4898
      %v4921 = vpack.c.b16 %v4901, %v4900
      %v4922 = vpack.c.b16 %v4903, %v4902
      %v4923 = vpack.c.b16 %v4904, %v4904
      %v4925 = vshrl.u32 %v4905, 16
      %v4927 = vshll.u32 %v4905, 16
      %v4929 = vrot.slane %v4927, 1
      %v4930 = vor.u32 %v4925, %v4929
      %v4932 = vshll.u32 %v4906, 16
      %v4934 = vrot.slane %v4932, 1
      %v4935 = vsel %vm439, %v4930, %v4934
      %v4936 = vshrl.u32 %v4906, 16
      %v4938 = vor.u32 %v4936, %v4934
      %v4940 = vshll.u32 %v4907, 16
      %v4942 = vrot.slane %v4940, 1
      %v4943 = vsel %vm439, %v4938, %v4942
      %v4944 = vshrl.u32 %v4907, 16
      %v4946 = vor.u32 %v4944, %v4942
      %v4948 = vshll.u32 %v4908, 16
      %v4950 = vrot.slane %v4948, 1
      %v4951 = vsel %vm439, %v4946, %v4950
      %v4952 = vshrl.u32 %v4908, 16
      %v4954 = vor.u32 %v4952, %v4950
      %v4956 = vshll.u32 %v4909, 16
      %v4958 = vrot.slane %v4956, 1
      %v4959 = vsel %vm439, %v4954, %v4958
      %v4960 = vshrl.u32 %v4909, 16
      %v4962 = vor.u32 %v4960, %v4958
      %v4964 = vshll.u32 %v4910, 16
      %v4966 = vrot.slane %v4964, 1
      %v4967 = vsel %vm439, %v4962, %v4966
      %v4968 = vshrl.u32 %v4910, 16
      %v4970 = vor.u32 %v4968, %v4966
      %v4972 = vshll.u32 %v4911, 16
      %v4974 = vrot.slane %v4972, 1
      %v4975 = vsel %vm439, %v4970, %v4974
      %v4976 = vshrl.u32 %v4911, 16
      %v4978 = vor.u32 %v4976, %v4974
      %v4980 = vshll.u32 %v4912, 16
      %v4982 = vrot.slane %v4980, 1
      %v4983 = vsel %vm439, %v4978, %v4982
      %v4984 = vshrl.u32 %v4912, 16
      %v4986 = vor.u32 %v4984, %v4982
      %v4988 = vshll.u32 %v4913, 16
      %v4990 = vrot.slane %v4988, 1
      %v4991 = vsel %vm439, %v4986, %v4990
      %v4992 = vshrl.u32 %v4913, 16
      %v4994 = vor.u32 %v4992, %v4990
      %v4996 = vshll.u32 %v4914, 16
      %v4998 = vrot.slane %v4996, 1
      %v4999 = vsel %vm439, %v4994, %v4998
      %v5000 = vshrl.u32 %v4914, 16
      %v5002 = vor.u32 %v5000, %v4998
      %v5004 = vshll.u32 %v4915, 16
      %v5006 = vrot.slane %v5004, 1
      %v5007 = vsel %vm439, %v5002, %v5006
      %v5008 = vshrl.u32 %v4915, 16
      %v5010 = vor.u32 %v5008, %v5006
      %v5012 = vshll.u32 %v4916, 16
      %v5014 = vrot.slane %v5012, 1
      %v5015 = vsel %vm439, %v5010, %v5014
      %v5016 = vshrl.u32 %v4916, 16
      %v5018 = vor.u32 %v5016, %v5014
      %v5020 = vshll.u32 %v4917, 16
      %v5022 = vrot.slane %v5020, 1
      %v5023 = vsel %vm439, %v5018, %v5022
      %v5024 = vshrl.u32 %v4917, 16
      %v5026 = vor.u32 %v5024, %v5022
      %v5028 = vshll.u32 %v4918, 16
      %v5030 = vrot.slane %v5028, 1
      %v5031 = vsel %vm439, %v5026, %v5030
      %v5032 = vshrl.u32 %v4918, 16
      %v5034 = vor.u32 %v5032, %v5030
      %v5036 = vshll.u32 %v4919, 16
      %v5038 = vrot.slane %v5036, 1
      %v5039 = vsel %vm439, %v5034, %v5038
      %v5040 = vshrl.u32 %v4919, 16
      %v5042 = vor.u32 %v5040, %v5038
      %v5044 = vshll.u32 %v4920, 16
      %v5046 = vrot.slane %v5044, 1
      %v5047 = vsel %vm439, %v5042, %v5046
      %v5048 = vshrl.u32 %v4920, 16
      %v5050 = vor.u32 %v5048, %v5046
      %v5052 = vshll.u32 %v4921, 16
      %v5054 = vrot.slane %v5052, 1
      %v5055 = vsel %vm439, %v5050, %v5054
      %v5056 = vshrl.u32 %v4921, 16
      %v5058 = vor.u32 %v5056, %v5054
      %v5060 = vshll.u32 %v4922, 16
      %v5062 = vrot.slane %v5060, 1
      %v5063 = vsel %vm439, %v5058, %v5062
      %v5064 = vshrl.u32 %v4922, 16
      %v5066 = vor.u32 %v5064, %v5062
      %v5068 = vshll.u32 %v4923, 16
      %v5070 = vrot.slane %v5068, 1
      %v5071 = vsel %vm439, %v5066, %v5070
      %v5076 = vunpack.c.l.b16 %v4827
      %v5077 = vunpack.c.l.b16 %v4828
      %v5078 = vunpack.c.l.b16 %v4829
      %v5079 = vunpack.c.l.b16 %v4830
      %v5080 = vpack.c.b16 %v5077, %v5076
      %v5081 = vpack.c.b16 %v5079, %v5078
      %v5085 = vsel %vm600, %v4935, 0
      %v5088 = vsel %vm600, %v4943, 0
      %v5091 = vsel %vm600, %v4951, 0
      %v5094 = vsel %vm600, %v4959, 0
      %v5097 = vsel %vm600, %v4967, 0
      %v5100 = vsel %vm600, %v4975, 0
      %v5103 = vsel %vm600, %v4983, 0
      %v5106 = vsel %vm600, %v4991, 0
      %v5109 = vsel %vm600, %v4999, 0
      %v5112 = vsel %vm600, %v5007, 0
      %v5115 = vsel %vm600, %v5015, 0
      %v5118 = vsel %vm600, %v5023, 0
      %v5121 = vsel %vm600, %v5031, 0
      %v5124 = vsel %vm600, %v5039, 0
      %v5127 = vsel %vm600, %v5047, 0
      %v5130 = vsel %vm600, %v5055, 0
      %v5133 = vsel %vm600, %v5063, 0
      %v5136 = vsel %vm600, %v5071, 0
      %5138 = vmatprep.subr.bf16.mxu0 0
      %5139 = vmatpush1.bf16.msra.mxu0 0
      %5140 = vmatprep.subr.bf16.mxu0 0
      %5141 = vmatpush1.bf16.msra.mxu0 0
      %5142 = vmatprep.subr.bf16.mxu0 0
      %5143 = vmatpush1.bf16.msra.mxu0 0
      %5144 = vmatprep.subr.bf16.mxu0 0
      %5145 = vmatpush1.bf16.msra.mxu0 0
      %5146 = vmatprep.subr.bf16.mxu0 0
      %5147 = vmatpush1.bf16.msra.mxu0 0
      %5148 = vmatprep.subr.bf16.mxu0 0
      %5149 = vmatpush1.bf16.msra.mxu0 0
      %5150 = vmatprep.subr.bf16.mxu0 0
      %5151 = vmatpush1.bf16.msra.mxu0 %v5081
      %5152 = vmatprep.subr.bf16.mxu0 0
      %5153 = vmatpush1.bf16.msra.mxu0 %v5080
      %5154 = vmatprep.subr.bf16.mxu0 0
      %5155 = vmatpush2.bf16.msra.mxu0 0
      %5156 = vmatprep.subr.bf16.mxu0 0
      %5157 = vmatpush2.bf16.msra.mxu0 0
      %5158 = vmatprep.subr.bf16.mxu0 0
      %5159 = vmatpush2.bf16.msra.mxu0 0
      %5160 = vmatprep.subr.bf16.mxu0 0
      %5161 = vmatpush2.bf16.msra.mxu0 0
      %5162 = vmatprep.subr.bf16.mxu0 0
      %5163 = vmatpush2.bf16.msra.mxu0 0
      %5164 = vmatprep.subr.bf16.mxu0 0
      %5165 = vmatpush2.bf16.msra.mxu0 0
      %5166 = vmatprep.subr.bf16.mxu0 0
      %5167 = vmatpush2.bf16.msra.mxu0 0
      %5168 = vmatprep.subr.bf16.mxu0 0
      %5169 = vmatpush2.bf16.msra.mxu0 0
      %5170 = vmatprep.mubr.bf16.mxu0 0
      %5171 = vmatmul.mubr.bf16.gmra.mxu0 %v5085
      %v5172 = vpop.f32.mrf.mxu0
      %v5173 = vadd.f32 0.0, %v5172
      %v5174 = vpop.f32.mrf.mxu0
      %v5175 = vpop.f32.mrf.mxu0
      %v5176 = vadd.f32 0.0, %v5175
      %v5177 = vpop.f32.mrf.mxu0
      %5178 = vmatprep.mubr.bf16.mxu0 0
      %5179 = vmatmul.mubr.bf16.gmra.mxu0 %v5088
      %v5180 = vpop.f32.mrf.mxu0
      %v5181 = vadd.f32 0.0, %v5180
      %v5182 = vpop.f32.mrf.mxu0
      %v5183 = vpop.f32.mrf.mxu0
      %v5184 = vadd.f32 0.0, %v5183
      %v5185 = vpop.f32.mrf.mxu0
      %5186 = vmatprep.mubr.bf16.mxu0 0
      %5187 = vmatmul.mubr.bf16.gmra.mxu0 %v5091
      %v5188 = vpop.f32.mrf.mxu0
      %v5189 = vadd.f32 0.0, %v5188
      %v5190 = vpop.f32.mrf.mxu0
      %v5191 = vpop.f32.mrf.mxu0
      %v5192 = vadd.f32 0.0, %v5191
      %v5193 = vpop.f32.mrf.mxu0
      %5194 = vmatprep.mubr.bf16.mxu0 0
      %5195 = vmatmul.mubr.bf16.gmra.mxu0 %v5094
      %v5196 = vpop.f32.mrf.mxu0
      %v5197 = vadd.f32 0.0, %v5196
      %v5198 = vpop.f32.mrf.mxu0
      %v5199 = vpop.f32.mrf.mxu0
      %v5200 = vadd.f32 0.0, %v5199
      %v5201 = vpop.f32.mrf.mxu0
      %5202 = vmatprep.mubr.bf16.mxu0 0
      %5203 = vmatmul.mubr.bf16.gmra.mxu0 %v5097
      %v5204 = vpop.f32.mrf.mxu0
      %v5205 = vadd.f32 0.0, %v5204
      %v5206 = vpop.f32.mrf.mxu0
      %v5207 = vpop.f32.mrf.mxu0
      %v5208 = vadd.f32 0.0, %v5207
      %v5209 = vpop.f32.mrf.mxu0
      %5210 = vmatprep.mubr.bf16.mxu0 0
      %5211 = vmatmul.mubr.bf16.gmra.mxu0 %v5100
      %v5212 = vpop.f32.mrf.mxu0
      %v5213 = vadd.f32 0.0, %v5212
      %v5214 = vpop.f32.mrf.mxu0
      %v5215 = vpop.f32.mrf.mxu0
      %v5216 = vadd.f32 0.0, %v5215
      %v5217 = vpop.f32.mrf.mxu0
      %5218 = vmatprep.mubr.bf16.mxu0 0
      %5219 = vmatmul.mubr.bf16.gmra.mxu0 %v5103
      %v5220 = vpop.f32.mrf.mxu0
      %v5221 = vadd.f32 0.0, %v5220
      %v5222 = vpop.f32.mrf.mxu0
      %v5223 = vpop.f32.mrf.mxu0
      %v5224 = vadd.f32 0.0, %v5223
      %v5225 = vpop.f32.mrf.mxu0
      %5226 = vmatprep.mubr.bf16.mxu0 0
      %5227 = vmatmul.mubr.bf16.gmra.mxu0 %v5106
      %v5228 = vpop.f32.mrf.mxu0
      %v5229 = vadd.f32 0.0, %v5228
      %v5230 = vpop.f32.mrf.mxu0
      %v5231 = vpop.f32.mrf.mxu0
      %v5232 = vadd.f32 0.0, %v5231
      %v5233 = vpop.f32.mrf.mxu0
      %5234 = vmatprep.mubr.bf16.mxu0 0
      %5235 = vmatmul.mubr.bf16.gmra.mxu0 %v5109
      %v5236 = vpop.f32.mrf.mxu0
      %v5237 = vadd.f32 0.0, %v5236
      %v5238 = vpop.f32.mrf.mxu0
      %v5239 = vpop.f32.mrf.mxu0
      %v5240 = vadd.f32 0.0, %v5239
      %v5241 = vpop.f32.mrf.mxu0
      %5242 = vmatprep.mubr.bf16.mxu0 0
      %5243 = vmatmul.mubr.bf16.gmra.mxu0 %v5112
      %v5244 = vpop.f32.mrf.mxu0
      %v5245 = vadd.f32 0.0, %v5244
      %v5246 = vpop.f32.mrf.mxu0
      %v5247 = vpop.f32.mrf.mxu0
      %v5248 = vadd.f32 0.0, %v5247
      %v5249 = vpop.f32.mrf.mxu0
      %5250 = vmatprep.mubr.bf16.mxu0 0
      %5251 = vmatmul.mubr.bf16.gmra.mxu0 %v5115
      %v5252 = vpop.f32.mrf.mxu0
      %v5253 = vadd.f32 0.0, %v5252
      %v5254 = vpop.f32.mrf.mxu0
      %v5255 = vpop.f32.mrf.mxu0
      %v5256 = vadd.f32 0.0, %v5255
      %v5257 = vpop.f32.mrf.mxu0
      %5258 = vmatprep.mubr.bf16.mxu0 0
      %5259 = vmatmul.mubr.bf16.gmra.mxu0 %v5118
      %v5260 = vpop.f32.mrf.mxu0
      %v5261 = vadd.f32 0.0, %v5260
      %v5262 = vpop.f32.mrf.mxu0
      %v5263 = vpop.f32.mrf.mxu0
      %v5264 = vadd.f32 0.0, %v5263
      %v5265 = vpop.f32.mrf.mxu0
      %5266 = vmatprep.mubr.bf16.mxu0 0
      %5267 = vmatmul.mubr.bf16.gmra.mxu0 %v5121
      %v5268 = vpop.f32.mrf.mxu0
      %v5269 = vadd.f32 0.0, %v5268
      %v5270 = vpop.f32.mrf.mxu0
      %v5271 = vpop.f32.mrf.mxu0
      %v5272 = vadd.f32 0.0, %v5271
      %v5273 = vpop.f32.mrf.mxu0
      %5274 = vmatprep.mubr.bf16.mxu0 0
      %5275 = vmatmul.mubr.bf16.gmra.mxu0 %v5124
      %v5276 = vpop.f32.mrf.mxu0
      %v5277 = vadd.f32 0.0, %v5276
      %v5278 = vpop.f32.mrf.mxu0
      %v5279 = vpop.f32.mrf.mxu0
      %v5280 = vadd.f32 0.0, %v5279
      %v5281 = vpop.f32.mrf.mxu0
      %5282 = vmatprep.mubr.bf16.mxu0 0
      %5283 = vmatmul.mubr.bf16.gmra.mxu0 %v5127
      %v5284 = vpop.f32.mrf.mxu0
      %v5285 = vadd.f32 0.0, %v5284
      %v5286 = vpop.f32.mrf.mxu0
      %v5287 = vpop.f32.mrf.mxu0
      %v5288 = vadd.f32 0.0, %v5287
      %v5289 = vpop.f32.mrf.mxu0
      %5290 = vmatprep.mubr.bf16.mxu0 0
      %5291 = vmatmul.mubr.bf16.gmra.mxu0 %v5130
      %v5292 = vpop.f32.mrf.mxu0
      %v5293 = vadd.f32 0.0, %v5292
      %v5294 = vpop.f32.mrf.mxu0
      %v5295 = vpop.f32.mrf.mxu0
      %v5296 = vadd.f32 0.0, %v5295
      %v5297 = vpop.f32.mrf.mxu0
      %5298 = vmatprep.mubr.bf16.mxu0 0
      %5299 = vmatmul.mubr.bf16.gmra.mxu0 %v5133
      %v5300 = vpop.f32.mrf.mxu0
      %v5301 = vadd.f32 0.0, %v5300
      %v5302 = vpop.f32.mrf.mxu0
      %v5303 = vpop.f32.mrf.mxu0
      %v5304 = vadd.f32 0.0, %v5303
      %v5305 = vpop.f32.mrf.mxu0
      %5306 = vmatprep.mubr.bf16.mxu0 0
      %5307 = vmatmul.mubr.bf16.gmra.mxu0 %v5136
      %v5308 = vpop.f32.mrf.mxu0
      %v5309 = vadd.f32 0.0, %v5308
      %v5310 = vpop.f32.mrf.mxu0
      %v5311 = vpop.f32.mrf.mxu0
      %v5312 = vadd.f32 0.0, %v5311
      %v5313 = vpop.f32.mrf.mxu0
      %5314 = vdwg.mxu0
      %v5319 = vunpack.c.l.b16 %v4821
      %v5320 = vunpack.c.l.b16 %v4822
      %v5321 = vunpack.c.l.b16 %v4823
      %v5322 = vunpack.c.l.b16 %v4824
      %v5323 = vpack.c.b16 %v5320, %v5319
      %v5324 = vpack.c.b16 %v5322, %v5321
      %v5327 = vsel %vm600, %v4905, 0
      %v5329 = vsel %vm600, %v4906, 0
      %v5331 = vsel %vm600, %v4907, 0
      %v5333 = vsel %vm600, %v4908, 0
      %v5335 = vsel %vm600, %v4909, 0
      %v5337 = vsel %vm600, %v4910, 0
      %v5339 = vsel %vm600, %v4911, 0
      %v5341 = vsel %vm600, %v4912, 0
      %v5343 = vsel %vm600, %v4913, 0
      %v5345 = vsel %vm600, %v4914, 0
      %v5347 = vsel %vm600, %v4915, 0
      %v5349 = vsel %vm600, %v4916, 0
      %v5351 = vsel %vm600, %v4917, 0
      %v5353 = vsel %vm600, %v4918, 0
      %v5355 = vsel %vm600, %v4919, 0
      %v5357 = vsel %vm600, %v4920, 0
      %v5359 = vsel %vm600, %v4921, 0
      %v5361 = vsel %vm600, %v4922, 0
      %5363 = vmatprep.subr.bf16.mxu0 0
      %5364 = vmatpush1.bf16.msra.mxu0 0
      %5365 = vmatprep.subr.bf16.mxu0 0
      %5366 = vmatpush1.bf16.msra.mxu0 0
      %5367 = vmatprep.subr.bf16.mxu0 0
      %5368 = vmatpush1.bf16.msra.mxu0 0
      %5369 = vmatprep.subr.bf16.mxu0 0
      %5370 = vmatpush1.bf16.msra.mxu0 0
      %5371 = vmatprep.subr.bf16.mxu0 0
      %5372 = vmatpush1.bf16.msra.mxu0 0
      %5373 = vmatprep.subr.bf16.mxu0 0
      %5374 = vmatpush1.bf16.msra.mxu0 0
      %5375 = vmatprep.subr.bf16.mxu0 0
      %5376 = vmatpush1.bf16.msra.mxu0 %v5324
      %5377 = vmatprep.subr.bf16.mxu0 0
      %5378 = vmatpush1.bf16.msra.mxu0 %v5323
      %5379 = vmatprep.subr.bf16.mxu0 0
      %5380 = vmatpush2.bf16.msra.mxu0 0
      %5381 = vmatprep.subr.bf16.mxu0 0
      %5382 = vmatpush2.bf16.msra.mxu0 0
      %5383 = vmatprep.subr.bf16.mxu0 0
      %5384 = vmatpush2.bf16.msra.mxu0 0
      %5385 = vmatprep.subr.bf16.mxu0 0
      %5386 = vmatpush2.bf16.msra.mxu0 0
      %5387 = vmatprep.subr.bf16.mxu0 0
      %5388 = vmatpush2.bf16.msra.mxu0 0
      %5389 = vmatprep.subr.bf16.mxu0 0
      %5390 = vmatpush2.bf16.msra.mxu0 0
      %5391 = vmatprep.subr.bf16.mxu0 0
      %5392 = vmatpush2.bf16.msra.mxu0 0
      %5393 = vmatprep.subr.bf16.mxu0 0
      %5394 = vmatpush2.bf16.msra.mxu0 0
      %5395 = vmatprep.mubr.bf16.mxu0 0
      %5396 = vmatmul.mubr.bf16.gmra.mxu0 %v5327
      %v5397 = vpop.f32.mrf.mxu0
      %v5398 = vadd.f32 %v5173, %v5397
      %v5399 = vpop.f32.mrf.mxu0
      %v5400 = vpop.f32.mrf.mxu0
      %v5401 = vadd.f32 %v5176, %v5400
      %v5402 = vpop.f32.mrf.mxu0
      %5403 = vmatprep.mubr.bf16.mxu0 0
      %5404 = vmatmul.mubr.bf16.gmra.mxu0 %v5329
      %v5405 = vpop.f32.mrf.mxu0
      %v5406 = vadd.f32 %v5181, %v5405
      %v5407 = vpop.f32.mrf.mxu0
      %v5408 = vpop.f32.mrf.mxu0
      %v5409 = vadd.f32 %v5184, %v5408
      %v5410 = vpop.f32.mrf.mxu0
      %5411 = vmatprep.mubr.bf16.mxu0 0
      %5412 = vmatmul.mubr.bf16.gmra.mxu0 %v5331
      %v5413 = vpop.f32.mrf.mxu0
      %v5414 = vadd.f32 %v5189, %v5413
      %v5415 = vpop.f32.mrf.mxu0
      %v5416 = vpop.f32.mrf.mxu0
      %v5417 = vadd.f32 %v5192, %v5416
      %v5418 = vpop.f32.mrf.mxu0
      %5419 = vmatprep.mubr.bf16.mxu0 0
      %5420 = vmatmul.mubr.bf16.gmra.mxu0 %v5333
      %v5421 = vpop.f32.mrf.mxu0
      %v5422 = vadd.f32 %v5197, %v5421
      %v5423 = vpop.f32.mrf.mxu0
      %v5424 = vpop.f32.mrf.mxu0
      %v5425 = vadd.f32 %v5200, %v5424
      %v5426 = vpop.f32.mrf.mxu0
      %5427 = vmatprep.mubr.bf16.mxu0 0
      %5428 = vmatmul.mubr.bf16.gmra.mxu0 %v5335
      %v5429 = vpop.f32.mrf.mxu0
      %v5430 = vadd.f32 %v5205, %v5429
      %v5431 = vpop.f32.mrf.mxu0
      %v5432 = vpop.f32.mrf.mxu0
      %v5433 = vadd.f32 %v5208, %v5432
      %v5434 = vpop.f32.mrf.mxu0
      %5435 = vmatprep.mubr.bf16.mxu0 0
      %5436 = vmatmul.mubr.bf16.gmra.mxu0 %v5337
      %v5437 = vpop.f32.mrf.mxu0
      %v5438 = vadd.f32 %v5213, %v5437
      %v5439 = vpop.f32.mrf.mxu0
      %v5440 = vpop.f32.mrf.mxu0
      %v5441 = vadd.f32 %v5216, %v5440
      %v5442 = vpop.f32.mrf.mxu0
      %5443 = vmatprep.mubr.bf16.mxu0 0
      %5444 = vmatmul.mubr.bf16.gmra.mxu0 %v5339
      %v5445 = vpop.f32.mrf.mxu0
      %v5446 = vadd.f32 %v5221, %v5445
      %v5447 = vpop.f32.mrf.mxu0
      %v5448 = vpop.f32.mrf.mxu0
      %v5449 = vadd.f32 %v5224, %v5448
      %v5450 = vpop.f32.mrf.mxu0
      %5451 = vmatprep.mubr.bf16.mxu0 0
      %5452 = vmatmul.mubr.bf16.gmra.mxu0 %v5341
      %v5453 = vpop.f32.mrf.mxu0
      %v5454 = vadd.f32 %v5229, %v5453
      %v5455 = vpop.f32.mrf.mxu0
      %v5456 = vpop.f32.mrf.mxu0
      %v5457 = vadd.f32 %v5232, %v5456
      %v5458 = vpop.f32.mrf.mxu0
      %5459 = vmatprep.mubr.bf16.mxu0 0
      %5460 = vmatmul.mubr.bf16.gmra.mxu0 %v5343
      %v5461 = vpop.f32.mrf.mxu0
      %v5462 = vadd.f32 %v5237, %v5461
      %v5463 = vpop.f32.mrf.mxu0
      %v5464 = vpop.f32.mrf.mxu0
      %v5465 = vadd.f32 %v5240, %v5464
      %v5466 = vpop.f32.mrf.mxu0
      %5467 = vmatprep.mubr.bf16.mxu0 0
      %5468 = vmatmul.mubr.bf16.gmra.mxu0 %v5345
      %v5469 = vpop.f32.mrf.mxu0
      %v5470 = vadd.f32 %v5245, %v5469
      %v5471 = vpop.f32.mrf.mxu0
      %v5472 = vpop.f32.mrf.mxu0
      %v5473 = vadd.f32 %v5248, %v5472
      %v5474 = vpop.f32.mrf.mxu0
      %5475 = vmatprep.mubr.bf16.mxu0 0
      %5476 = vmatmul.mubr.bf16.gmra.mxu0 %v5347
      %v5477 = vpop.f32.mrf.mxu0
      %v5478 = vadd.f32 %v5253, %v5477
      %v5479 = vpop.f32.mrf.mxu0
      %v5480 = vpop.f32.mrf.mxu0
      %v5481 = vadd.f32 %v5256, %v5480
      %v5482 = vpop.f32.mrf.mxu0
      %5483 = vmatprep.mubr.bf16.mxu0 0
      %5484 = vmatmul.mubr.bf16.gmra.mxu0 %v5349
      %v5485 = vpop.f32.mrf.mxu0
      %v5486 = vadd.f32 %v5261, %v5485
      %v5487 = vpop.f32.mrf.mxu0
      %v5488 = vpop.f32.mrf.mxu0
      %v5489 = vadd.f32 %v5264, %v5488
      %v5490 = vpop.f32.mrf.mxu0
      %5491 = vmatprep.mubr.bf16.mxu0 0
      %5492 = vmatmul.mubr.bf16.gmra.mxu0 %v5351
      %v5493 = vpop.f32.mrf.mxu0
      %v5494 = vadd.f32 %v5269, %v5493
      %v5495 = vpop.f32.mrf.mxu0
      %v5496 = vpop.f32.mrf.mxu0
      %v5497 = vadd.f32 %v5272, %v5496
      %v5498 = vpop.f32.mrf.mxu0
      %5499 = vmatprep.mubr.bf16.mxu0 0
      %5500 = vmatmul.mubr.bf16.gmra.mxu0 %v5353
      %v5501 = vpop.f32.mrf.mxu0
      %v5502 = vadd.f32 %v5277, %v5501
      %v5503 = vpop.f32.mrf.mxu0
      %v5504 = vpop.f32.mrf.mxu0
      %v5505 = vadd.f32 %v5280, %v5504
      %v5506 = vpop.f32.mrf.mxu0
      %5507 = vmatprep.mubr.bf16.mxu0 0
      %5508 = vmatmul.mubr.bf16.gmra.mxu0 %v5355
      %v5509 = vpop.f32.mrf.mxu0
      %v5510 = vadd.f32 %v5285, %v5509
      %v5511 = vpop.f32.mrf.mxu0
      %v5512 = vpop.f32.mrf.mxu0
      %v5513 = vadd.f32 %v5288, %v5512
      %v5514 = vpop.f32.mrf.mxu0
      %5515 = vmatprep.mubr.bf16.mxu0 0
      %5516 = vmatmul.mubr.bf16.gmra.mxu0 %v5357
      %v5517 = vpop.f32.mrf.mxu0
      %v5518 = vadd.f32 %v5293, %v5517
      %v5519 = vpop.f32.mrf.mxu0
      %v5520 = vpop.f32.mrf.mxu0
      %v5521 = vadd.f32 %v5296, %v5520
      %v5522 = vpop.f32.mrf.mxu0
      %5523 = vmatprep.mubr.bf16.mxu0 0
      %5524 = vmatmul.mubr.bf16.gmra.mxu0 %v5359
      %v5525 = vpop.f32.mrf.mxu0
      %v5526 = vadd.f32 %v5301, %v5525
      %v5527 = vpop.f32.mrf.mxu0
      %v5528 = vpop.f32.mrf.mxu0
      %v5529 = vadd.f32 %v5304, %v5528
      %v5530 = vpop.f32.mrf.mxu0
      %5531 = vmatprep.mubr.bf16.mxu0 0
      %5532 = vmatmul.mubr.bf16.gmra.mxu0 %v5361
      %v5533 = vpop.f32.mrf.mxu0
      %v5534 = vadd.f32 %v5309, %v5533
      %v5535 = vpop.f32.mrf.mxu0
      %v5536 = vpop.f32.mrf.mxu0
      %v5537 = vadd.f32 %v5312, %v5536
      %v5538 = vpop.f32.mrf.mxu0
      %5539 = vdwg.mxu0
      %v5540 = vld [vmem:[#allocation2] sm:$0xe]
      %s5541 = scalar_lea.vmem %s4, 32
      %v5542 = vld [vmem:[%s5541] sm:$0xf]
      %v5543 = vld [vmem:[%s5541 + $0x4] sm:$0xf]
      %v5544 = vld [vmem:[%s5541 + $0x8] sm:$0xf]
      %v5545 = vld [vmem:[%s5541 + $0xc] sm:$0xf]
      %v5547 = vunpack.c.l.b16 %v5540
      %v5548 = vpack.c.b16 %v4869, %v5547
      %v5549 = vrot.slane %v5548, 1
      %v5550 = vrot.slane %v4906, 1
      %v5551 = vsel %vm1066, %v5549, %v5550
      %v5552 = vrot.slane %v4907, 1
      %v5553 = vsel %vm1066, %v5550, %v5552
      %v5554 = vrot.slane %v4908, 1
      %v5555 = vsel %vm1066, %v5552, %v5554
      %v5556 = vrot.slane %v4909, 1
      %v5557 = vsel %vm1066, %v5554, %v5556
      %v5558 = vrot.slane %v4910, 1
      %v5559 = vsel %vm1066, %v5556, %v5558
      %v5560 = vrot.slane %v4911, 1
      %v5561 = vsel %vm1066, %v5558, %v5560
      %v5562 = vrot.slane %v4912, 1
      %v5563 = vsel %vm1066, %v5560, %v5562
      %v5564 = vrot.slane %v4913, 1
      %v5565 = vsel %vm1066, %v5562, %v5564
      %v5566 = vrot.slane %v4914, 1
      %v5567 = vsel %vm1066, %v5564, %v5566
      %v5568 = vrot.slane %v4915, 1
      %v5569 = vsel %vm1066, %v5566, %v5568
      %v5570 = vrot.slane %v4916, 1
      %v5571 = vsel %vm1066, %v5568, %v5570
      %v5572 = vrot.slane %v4917, 1
      %v5573 = vsel %vm1066, %v5570, %v5572
      %v5574 = vrot.slane %v4918, 1
      %v5575 = vsel %vm1066, %v5572, %v5574
      %v5576 = vrot.slane %v4919, 1
      %v5577 = vsel %vm1066, %v5574, %v5576
      %v5578 = vrot.slane %v4920, 1
      %v5579 = vsel %vm1066, %v5576, %v5578
      %v5580 = vrot.slane %v4921, 1
      %v5581 = vsel %vm1066, %v5578, %v5580
      %v5582 = vrot.slane %v4922, 1
      %v5583 = vsel %vm1066, %v5580, %v5582
      %v5584 = vrot.slane %v4923, 1
      %v5585 = vsel %vm1066, %v5582, %v5584
      %v5590 = vunpack.c.l.b16 %v5542
      %v5591 = vunpack.c.l.b16 %v5543
      %v5592 = vunpack.c.l.b16 %v5544
      %v5593 = vunpack.c.l.b16 %v5545
      %v5594 = vpack.c.b16 %v5591, %v5590
      %v5595 = vpack.c.b16 %v5593, %v5592
      %v5599 = vsel %vm600, %v5551, 0
      %v5602 = vsel %vm600, %v5553, 0
      %v5605 = vsel %vm600, %v5555, 0
      %v5608 = vsel %vm600, %v5557, 0
      %v5611 = vsel %vm600, %v5559, 0
      %v5614 = vsel %vm600, %v5561, 0
      %v5617 = vsel %vm600, %v5563, 0
      %v5620 = vsel %vm600, %v5565, 0
      %v5623 = vsel %vm600, %v5567, 0
      %v5626 = vsel %vm600, %v5569, 0
      %v5629 = vsel %vm600, %v5571, 0
      %v5632 = vsel %vm600, %v5573, 0
      %v5635 = vsel %vm600, %v5575, 0
      %v5638 = vsel %vm600, %v5577, 0
      %v5641 = vsel %vm600, %v5579, 0
      %v5644 = vsel %vm600, %v5581, 0
      %v5647 = vsel %vm600, %v5583, 0
      %v5650 = vsel %vm600, %v5585, 0
      %5652 = vmatprep.subr.bf16.mxu0 0
      %5653 = vmatpush1.bf16.msra.mxu0 0
      %5654 = vmatprep.subr.bf16.mxu0 0
      %5655 = vmatpush1.bf16.msra.mxu0 0
      %5656 = vmatprep.subr.bf16.mxu0 0
      %5657 = vmatpush1.bf16.msra.mxu0 0
      %5658 = vmatprep.subr.bf16.mxu0 0
      %5659 = vmatpush1.bf16.msra.mxu0 0
      %5660 = vmatprep.subr.bf16.mxu0 0
      %5661 = vmatpush1.bf16.msra.mxu0 0
      %5662 = vmatprep.subr.bf16.mxu0 0
      %5663 = vmatpush1.bf16.msra.mxu0 0
      %5664 = vmatprep.subr.bf16.mxu0 0
      %5665 = vmatpush1.bf16.msra.mxu0 %v5595
      %5666 = vmatprep.subr.bf16.mxu0 0
      %5667 = vmatpush1.bf16.msra.mxu0 %v5594
      %5668 = vmatprep.subr.bf16.mxu0 0
      %5669 = vmatpush2.bf16.msra.mxu0 0
      %5670 = vmatprep.subr.bf16.mxu0 0
      %5671 = vmatpush2.bf16.msra.mxu0 0
      %5672 = vmatprep.subr.bf16.mxu0 0
      %5673 = vmatpush2.bf16.msra.mxu0 0
      %5674 = vmatprep.subr.bf16.mxu0 0
      %5675 = vmatpush2.bf16.msra.mxu0 0
      %5676 = vmatprep.subr.bf16.mxu0 0
      %5677 = vmatpush2.bf16.msra.mxu0 0
      %5678 = vmatprep.subr.bf16.mxu0 0
      %5679 = vmatpush2.bf16.msra.mxu0 0
      %5680 = vmatprep.subr.bf16.mxu0 0
      %5681 = vmatpush2.bf16.msra.mxu0 0
      %5682 = vmatprep.subr.bf16.mxu0 0
      %5683 = vmatpush2.bf16.msra.mxu0 0
      %5684 = vmatprep.mubr.bf16.mxu0 0
      %5685 = vmatmul.mubr.bf16.gmra.mxu0 %v5599
      %v5686 = vpop.f32.mrf.mxu0
      %v5687 = vadd.f32 0.0, %v5686
      %v5688 = vpop.f32.mrf.mxu0
      %v5689 = vpop.f32.mrf.mxu0
      %v5690 = vadd.f32 0.0, %v5689
      %v5691 = vpop.f32.mrf.mxu0
      %5692 = vmatprep.mubr.bf16.mxu0 0
      %5693 = vmatmul.mubr.bf16.gmra.mxu0 %v5602
      %v5694 = vpop.f32.mrf.mxu0
      %v5695 = vadd.f32 0.0, %v5694
      %v5696 = vpop.f32.mrf.mxu0
      %v5697 = vpop.f32.mrf.mxu0
      %v5698 = vadd.f32 0.0, %v5697
      %v5699 = vpop.f32.mrf.mxu0
      %5700 = vmatprep.mubr.bf16.mxu0 0
      %5701 = vmatmul.mubr.bf16.gmra.mxu0 %v5605
      %v5702 = vpop.f32.mrf.mxu0
      %v5703 = vadd.f32 0.0, %v5702
      %v5704 = vpop.f32.mrf.mxu0
      %v5705 = vpop.f32.mrf.mxu0
      %v5706 = vadd.f32 0.0, %v5705
      %v5707 = vpop.f32.mrf.mxu0
      %5708 = vmatprep.mubr.bf16.mxu0 0
      %5709 = vmatmul.mubr.bf16.gmra.mxu0 %v5608
      %v5710 = vpop.f32.mrf.mxu0
      %v5711 = vadd.f32 0.0, %v5710
      %v5712 = vpop.f32.mrf.mxu0
      %v5713 = vpop.f32.mrf.mxu0
      %v5714 = vadd.f32 0.0, %v5713
      %v5715 = vpop.f32.mrf.mxu0
      %5716 = vmatprep.mubr.bf16.mxu0 0
      %5717 = vmatmul.mubr.bf16.gmra.mxu0 %v5611
      %v5718 = vpop.f32.mrf.mxu0
      %v5719 = vadd.f32 0.0, %v5718
      %v5720 = vpop.f32.mrf.mxu0
      %v5721 = vpop.f32.mrf.mxu0
      %v5722 = vadd.f32 0.0, %v5721
      %v5723 = vpop.f32.mrf.mxu0
      %5724 = vmatprep.mubr.bf16.mxu0 0
      %5725 = vmatmul.mubr.bf16.gmra.mxu0 %v5614
      %v5726 = vpop.f32.mrf.mxu0
      %v5727 = vadd.f32 0.0, %v5726
      %v5728 = vpop.f32.mrf.mxu0
      %v5729 = vpop.f32.mrf.mxu0
      %v5730 = vadd.f32 0.0, %v5729
      %v5731 = vpop.f32.mrf.mxu0
      %5732 = vmatprep.mubr.bf16.mxu0 0
      %5733 = vmatmul.mubr.bf16.gmra.mxu0 %v5617
      %v5734 = vpop.f32.mrf.mxu0
      %v5735 = vadd.f32 0.0, %v5734
      %v5736 = vpop.f32.mrf.mxu0
      %v5737 = vpop.f32.mrf.mxu0
      %v5738 = vadd.f32 0.0, %v5737
      %v5739 = vpop.f32.mrf.mxu0
      %5740 = vmatprep.mubr.bf16.mxu0 0
      %5741 = vmatmul.mubr.bf16.gmra.mxu0 %v5620
      %v5742 = vpop.f32.mrf.mxu0
      %v5743 = vadd.f32 0.0, %v5742
      %v5744 = vpop.f32.mrf.mxu0
      %v5745 = vpop.f32.mrf.mxu0
      %v5746 = vadd.f32 0.0, %v5745
      %v5747 = vpop.f32.mrf.mxu0
      %5748 = vmatprep.mubr.bf16.mxu0 0
      %5749 = vmatmul.mubr.bf16.gmra.mxu0 %v5623
      %v5750 = vpop.f32.mrf.mxu0
      %v5751 = vadd.f32 0.0, %v5750
      %v5752 = vpop.f32.mrf.mxu0
      %v5753 = vpop.f32.mrf.mxu0
      %v5754 = vadd.f32 0.0, %v5753
      %v5755 = vpop.f32.mrf.mxu0
      %5756 = vmatprep.mubr.bf16.mxu0 0
      %5757 = vmatmul.mubr.bf16.gmra.mxu0 %v5626
      %v5758 = vpop.f32.mrf.mxu0
      %v5759 = vadd.f32 0.0, %v5758
      %v5760 = vpop.f32.mrf.mxu0
      %v5761 = vpop.f32.mrf.mxu0
      %v5762 = vadd.f32 0.0, %v5761
      %v5763 = vpop.f32.mrf.mxu0
      %5764 = vmatprep.mubr.bf16.mxu0 0
      %5765 = vmatmul.mubr.bf16.gmra.mxu0 %v5629
      %v5766 = vpop.f32.mrf.mxu0
      %v5767 = vadd.f32 0.0, %v5766
      %v5768 = vpop.f32.mrf.mxu0
      %v5769 = vpop.f32.mrf.mxu0
      %v5770 = vadd.f32 0.0, %v5769
      %v5771 = vpop.f32.mrf.mxu0
      %5772 = vmatprep.mubr.bf16.mxu0 0
      %5773 = vmatmul.mubr.bf16.gmra.mxu0 %v5632
      %v5774 = vpop.f32.mrf.mxu0
      %v5775 = vadd.f32 0.0, %v5774
      %v5776 = vpop.f32.mrf.mxu0
      %v5777 = vpop.f32.mrf.mxu0
      %v5778 = vadd.f32 0.0, %v5777
      %v5779 = vpop.f32.mrf.mxu0
      %5780 = vmatprep.mubr.bf16.mxu0 0
      %5781 = vmatmul.mubr.bf16.gmra.mxu0 %v5635
      %v5782 = vpop.f32.mrf.mxu0
      %v5783 = vadd.f32 0.0, %v5782
      %v5784 = vpop.f32.mrf.mxu0
      %v5785 = vpop.f32.mrf.mxu0
      %v5786 = vadd.f32 0.0, %v5785
      %v5787 = vpop.f32.mrf.mxu0
      %5788 = vmatprep.mubr.bf16.mxu0 0
      %5789 = vmatmul.mubr.bf16.gmra.mxu0 %v5638
      %v5790 = vpop.f32.mrf.mxu0
      %v5791 = vadd.f32 0.0, %v5790
      %v5792 = vpop.f32.mrf.mxu0
      %v5793 = vpop.f32.mrf.mxu0
      %v5794 = vadd.f32 0.0, %v5793
      %v5795 = vpop.f32.mrf.mxu0
      %5796 = vmatprep.mubr.bf16.mxu0 0
      %5797 = vmatmul.mubr.bf16.gmra.mxu0 %v5641
      %v5798 = vpop.f32.mrf.mxu0
      %v5799 = vadd.f32 0.0, %v5798
      %v5800 = vpop.f32.mrf.mxu0
      %v5801 = vpop.f32.mrf.mxu0
      %v5802 = vadd.f32 0.0, %v5801
      %v5803 = vpop.f32.mrf.mxu0
      %5804 = vmatprep.mubr.bf16.mxu0 0
      %5805 = vmatmul.mubr.bf16.gmra.mxu0 %v5644
      %v5806 = vpop.f32.mrf.mxu0
      %v5807 = vadd.f32 0.0, %v5806
      %v5808 = vpop.f32.mrf.mxu0
      %v5809 = vpop.f32.mrf.mxu0
      %v5810 = vadd.f32 0.0, %v5809
      %v5811 = vpop.f32.mrf.mxu0
      %5812 = vmatprep.mubr.bf16.mxu0 0
      %5813 = vmatmul.mubr.bf16.gmra.mxu0 %v5647
      %v5814 = vpop.f32.mrf.mxu0
      %v5815 = vadd.f32 0.0, %v5814
      %v5816 = vpop.f32.mrf.mxu0
      %v5817 = vpop.f32.mrf.mxu0
      %v5818 = vadd.f32 0.0, %v5817
      %v5819 = vpop.f32.mrf.mxu0
      %5820 = vmatprep.mubr.bf16.mxu0 0
      %5821 = vmatmul.mubr.bf16.gmra.mxu0 %v5650
      %v5822 = vpop.f32.mrf.mxu0
      %v5823 = vadd.f32 0.0, %v5822
      %v5824 = vpop.f32.mrf.mxu0
      %v5825 = vpop.f32.mrf.mxu0
      %v5826 = vadd.f32 0.0, %v5825
      %v5827 = vpop.f32.mrf.mxu0
      %5828 = vdwg.mxu0
      %v5829 = vadd.f32 %v5398, %v5687
      %v5830 = vadd.f32 %v5401, %v5690
      %v5831 = vadd.f32 %v5406, %v5695
      %v5832 = vadd.f32 %v5409, %v5698
      %v5833 = vadd.f32 %v5414, %v5703
      %v5834 = vadd.f32 %v5417, %v5706
      %v5835 = vadd.f32 %v5422, %v5711
      %v5836 = vadd.f32 %v5425, %v5714
      %v5837 = vadd.f32 %v5430, %v5719
      %v5838 = vadd.f32 %v5433, %v5722
      %v5839 = vadd.f32 %v5438, %v5727
      %v5840 = vadd.f32 %v5441, %v5730
      %v5841 = vadd.f32 %v5446, %v5735
      %v5842 = vadd.f32 %v5449, %v5738
      %v5843 = vadd.f32 %v5454, %v5743
      %v5844 = vadd.f32 %v5457, %v5746
      %v5845 = vadd.f32 %v5462, %v5751
      %v5846 = vadd.f32 %v5465, %v5754
      %v5847 = vadd.f32 %v5470, %v5759
      %v5848 = vadd.f32 %v5473, %v5762
      %v5849 = vadd.f32 %v5478, %v5767
      %v5850 = vadd.f32 %v5481, %v5770
      %v5851 = vadd.f32 %v5486, %v5775
      %v5852 = vadd.f32 %v5489, %v5778
      %v5853 = vadd.f32 %v5494, %v5783
      %v5854 = vadd.f32 %v5497, %v5786
      %v5855 = vadd.f32 %v5502, %v5791
      %v5856 = vadd.f32 %v5505, %v5794
      %v5857 = vadd.f32 %v5510, %v5799
      %v5858 = vadd.f32 %v5513, %v5802
      %v5859 = vadd.f32 %v5518, %v5807
      %v5860 = vadd.f32 %v5521, %v5810
      %v5861 = vadd.f32 %v5526, %v5815
      %v5862 = vadd.f32 %v5529, %v5818
      %v5863 = vadd.f32 %v5534, %v5823
      %v5864 = vadd.f32 %v5537, %v5826
      %v5865 = vld [vmem:[#allocation2 + $0x8] sm:$0xe]
      %v5866 = vld [vmem:[#allocation2 + $0xc] sm:$0xf]
      %v5867 = vld [vmem:[#allocation2 + $0x10] sm:$0xf]
      %v5868 = vld [vmem:[#allocation2 + $0x14] sm:$0xf]
      %v5869 = vld [vmem:[#allocation2 + $0x18] sm:$0xf]
      %v5870 = vld [vmem:[#allocation2 + $0x1c] sm:$0xf]
      %v5871 = vld [vmem:[#allocation2 + $0x20] sm:$0xf]
      %v5872 = vld [vmem:[#allocation2 + $0x24] sm:$0xf]
      %v5873 = vld [vmem:[#allocation2 + $0x28] sm:$0xf]
      %v5874 = vld [vmem:[#allocation2 + $0x2c] sm:$0xf]
      %v5875 = vld [vmem:[#allocation2 + $0x30] sm:$0xf]
      %v5876 = vld [vmem:[#allocation2 + $0x34] sm:$0xf]
      %v5877 = vld [vmem:[#allocation2 + $0x38] sm:$0xf]
      %v5878 = vld [vmem:[#allocation2 + $0x3c] sm:$0xf]
      %v5879 = vld [vmem:[#allocation2 + $0x40] sm:$0xf]
      %v5880 = vld [vmem:[#allocation2 + $0x44] sm:$0xf]
      %v5881 = vld [vmem:[#allocation2 + $0x48] sm:$0xf]
      %v5882 = vld [vmem:[#allocation2 + $0x4c] sm:$0xf]
      %v5883 = vld [vmem:[#allocation2 + $0x50] sm:$0xf]
      %v5884 = vld [vmem:[#allocation2 + $0x54] sm:$0xf]
      %v5885 = vld [vmem:[#allocation2 + $0x58] sm:$0xf]
      %v5886 = vld [vmem:[#allocation2 + $0x5c] sm:$0xf]
      %v5887 = vld [vmem:[#allocation2 + $0x60] sm:$0xf]
      %v5888 = vld [vmem:[#allocation2 + $0x64] sm:$0xf]
      %v5889 = vld [vmem:[#allocation2 + $0x68] sm:$0xf]
      %v5890 = vld [vmem:[#allocation2 + $0x6c] sm:$0xf]
      %v5891 = vld [vmem:[#allocation2 + $0x70] sm:$0xf]
      %v5892 = vld [vmem:[#allocation2 + $0x74] sm:$0xf]
      %v5893 = vld [vmem:[#allocation2 + $0x78] sm:$0xf]
      %v5894 = vld [vmem:[#allocation2 + $0x7c] sm:$0xf]
      %v5895 = vld [vmem:[#allocation2 + $0x80] sm:$0xf]
      %v5896 = vld [vmem:[#allocation2 + $0x84] sm:$0xf]
      %v5897 = vld [vmem:[#allocation2 + $0x88] sm:$0xf]
      %v5898 = vld [vmem:[#allocation2 + $0x8c] sm:$0xf]
      %v5899 = vld [vmem:[#allocation2 + $0x90] sm:$0xf]
      %v5900 = vld [vmem:[#allocation2 + $0x94] sm:$0xf]
      %v5901 = vld [vmem:[#allocation2 + $0x98] sm:$0x1]
      %s5902 = scalar_lea.vmem %s4, 48
      %v5903 = vld [vmem:[%s5902] sm:$0xf]
      %v5904 = vld [vmem:[%s5902 + $0x4] sm:$0xf]
      %v5905 = vld [vmem:[%s5902 + $0x8] sm:$0xf]
      %v5906 = vld [vmem:[%s5902 + $0xc] sm:$0xf]
      %v5944 = vunpack.c.l.b16 %v5865
      %v5945 = vunpack.c.l.b16 %v5866
      %v5946 = vunpack.c.l.b16 %v5867
      %v5947 = vunpack.c.l.b16 %v5868
      %v5948 = vunpack.c.l.b16 %v5869
      %v5949 = vunpack.c.l.b16 %v5870
      %v5950 = vunpack.c.l.b16 %v5871
      %v5951 = vunpack.c.l.b16 %v5872
      %v5952 = vunpack.c.l.b16 %v5873
      %v5953 = vunpack.c.l.b16 %v5874
      %v5954 = vunpack.c.l.b16 %v5875
      %v5955 = vunpack.c.l.b16 %v5876
      %v5956 = vunpack.c.l.b16 %v5877
      %v5957 = vunpack.c.l.b16 %v5878
      %v5958 = vunpack.c.l.b16 %v5879
      %v5959 = vunpack.c.l.b16 %v5880
      %v5960 = vunpack.c.l.b16 %v5881
      %v5961 = vunpack.c.l.b16 %v5882
      %v5962 = vunpack.c.l.b16 %v5883
      %v5963 = vunpack.c.l.b16 %v5884
      %v5964 = vunpack.c.l.b16 %v5885
      %v5965 = vunpack.c.l.b16 %v5886
      %v5966 = vunpack.c.l.b16 %v5887
      %v5967 = vunpack.c.l.b16 %v5888
      %v5968 = vunpack.c.l.b16 %v5889
      %v5969 = vunpack.c.l.b16 %v5890
      %v5970 = vunpack.c.l.b16 %v5891
      %v5971 = vunpack.c.l.b16 %v5892
      %v5972 = vunpack.c.l.b16 %v5893
      %v5973 = vunpack.c.l.b16 %v5894
      %v5974 = vunpack.c.l.b16 %v5895
      %v5975 = vunpack.c.l.b16 %v5896
      %v5976 = vunpack.c.l.b16 %v5897
      %v5977 = vunpack.c.l.b16 %v5898
      %v5978 = vunpack.c.l.b16 %v5899
      %v5979 = vunpack.c.l.b16 %v5900
      %v5980 = vunpack.c.l.b16 %v5901
      %v5981 = vpack.c.b16 %v5945, %v5944
      %v5982 = vpack.c.b16 %v5947, %v5946
      %v5983 = vpack.c.b16 %v5949, %v5948
      %v5984 = vpack.c.b16 %v5951, %v5950
      %v5985 = vpack.c.b16 %v5953, %v5952
      %v5986 = vpack.c.b16 %v5955, %v5954
      %v5987 = vpack.c.b16 %v5957, %v5956
      %v5988 = vpack.c.b16 %v5959, %v5958
      %v5989 = vpack.c.b16 %v5961, %v5960
      %v5990 = vpack.c.b16 %v5963, %v5962
      %v5991 = vpack.c.b16 %v5965, %v5964
      %v5992 = vpack.c.b16 %v5967, %v5966
      %v5993 = vpack.c.b16 %v5969, %v5968
      %v5994 = vpack.c.b16 %v5971, %v5970
      %v5995 = vpack.c.b16 %v5973, %v5972
      %v5996 = vpack.c.b16 %v5975, %v5974
      %v5997 = vpack.c.b16 %v5977, %v5976
      %v5998 = vpack.c.b16 %v5979, %v5978
      %v5999 = vpack.c.b16 %v5980, %v5980
      %v6000 = vrot.slane %v5981, 1
      %v6001 = vrot.slane %v5982, 1
      %v6002 = vsel %vm1066, %v6000, %v6001
      %v6003 = vrot.slane %v5983, 1
      %v6004 = vsel %vm1066, %v6001, %v6003
      %v6005 = vrot.slane %v5984, 1
      %v6006 = vsel %vm1066, %v6003, %v6005
      %v6007 = vrot.slane %v5985, 1
      %v6008 = vsel %vm1066, %v6005, %v6007
      %v6009 = vrot.slane %v5986, 1
      %v6010 = vsel %vm1066, %v6007, %v6009
      %v6011 = vrot.slane %v5987, 1
      %v6012 = vsel %vm1066, %v6009, %v6011
      %v6013 = vrot.slane %v5988, 1
      %v6014 = vsel %vm1066, %v6011, %v6013
      %v6015 = vrot.slane %v5989, 1
      %v6016 = vsel %vm1066, %v6013, %v6015
      %v6017 = vrot.slane %v5990, 1
      %v6018 = vsel %vm1066, %v6015, %v6017
      %v6019 = vrot.slane %v5991, 1
      %v6020 = vsel %vm1066, %v6017, %v6019
      %v6021 = vrot.slane %v5992, 1
      %v6022 = vsel %vm1066, %v6019, %v6021
      %v6023 = vrot.slane %v5993, 1
      %v6024 = vsel %vm1066, %v6021, %v6023
      %v6025 = vrot.slane %v5994, 1
      %v6026 = vsel %vm1066, %v6023, %v6025
      %v6027 = vrot.slane %v5995, 1
      %v6028 = vsel %vm1066, %v6025, %v6027
      %v6029 = vrot.slane %v5996, 1
      %v6030 = vsel %vm1066, %v6027, %v6029
      %v6031 = vrot.slane %v5997, 1
      %v6032 = vsel %vm1066, %v6029, %v6031
      %v6033 = vrot.slane %v5998, 1
      %v6034 = vsel %vm1066, %v6031, %v6033
      %v6035 = vrot.slane %v5999, 1
      %v6036 = vsel %vm1066, %v6033, %v6035
      %v6041 = vunpack.c.l.b16 %v5903
      %v6042 = vunpack.c.l.b16 %v5904
      %v6043 = vunpack.c.l.b16 %v5905
      %v6044 = vunpack.c.l.b16 %v5906
      %v6045 = vpack.c.b16 %v6042, %v6041
      %v6046 = vpack.c.b16 %v6044, %v6043
      %v6050 = vsel %vm600, %v6002, 0
      %v6053 = vsel %vm600, %v6004, 0
      %v6056 = vsel %vm600, %v6006, 0
      %v6059 = vsel %vm600, %v6008, 0
      %v6062 = vsel %vm600, %v6010, 0
      %v6065 = vsel %vm600, %v6012, 0
      %v6068 = vsel %vm600, %v6014, 0
      %v6071 = vsel %vm600, %v6016, 0
      %v6074 = vsel %vm600, %v6018, 0
      %v6077 = vsel %vm600, %v6020, 0
      %v6080 = vsel %vm600, %v6022, 0
      %v6083 = vsel %vm600, %v6024, 0
      %v6086 = vsel %vm600, %v6026, 0
      %v6089 = vsel %vm600, %v6028, 0
      %v6092 = vsel %vm600, %v6030, 0
      %v6095 = vsel %vm600, %v6032, 0
      %v6098 = vsel %vm600, %v6034, 0
      %v6101 = vsel %vm600, %v6036, 0
      %6103 = vmatprep.subr.bf16.mxu0 0
      %6104 = vmatpush1.bf16.msra.mxu0 0
      %6105 = vmatprep.subr.bf16.mxu0 0
      %6106 = vmatpush1.bf16.msra.mxu0 0
      %6107 = vmatprep.subr.bf16.mxu0 0
      %6108 = vmatpush1.bf16.msra.mxu0 0
      %6109 = vmatprep.subr.bf16.mxu0 0
      %6110 = vmatpush1.bf16.msra.mxu0 0
      %6111 = vmatprep.subr.bf16.mxu0 0
      %6112 = vmatpush1.bf16.msra.mxu0 0
      %6113 = vmatprep.subr.bf16.mxu0 0
      %6114 = vmatpush1.bf16.msra.mxu0 0
      %6115 = vmatprep.subr.bf16.mxu0 0
      %6116 = vmatpush1.bf16.msra.mxu0 %v6046
      %6117 = vmatprep.subr.bf16.mxu0 0
      %6118 = vmatpush1.bf16.msra.mxu0 %v6045
      %6119 = vmatprep.subr.bf16.mxu0 0
      %6120 = vmatpush2.bf16.msra.mxu0 0
      %6121 = vmatprep.subr.bf16.mxu0 0
      %6122 = vmatpush2.bf16.msra.mxu0 0
      %6123 = vmatprep.subr.bf16.mxu0 0
      %6124 = vmatpush2.bf16.msra.mxu0 0
      %6125 = vmatprep.subr.bf16.mxu0 0
      %6126 = vmatpush2.bf16.msra.mxu0 0
      %6127 = vmatprep.subr.bf16.mxu0 0
      %6128 = vmatpush2.bf16.msra.mxu0 0
      %6129 = vmatprep.subr.bf16.mxu0 0
      %6130 = vmatpush2.bf16.msra.mxu0 0
      %6131 = vmatprep.subr.bf16.mxu0 0
      %6132 = vmatpush2.bf16.msra.mxu0 0
      %6133 = vmatprep.subr.bf16.mxu0 0
      %6134 = vmatpush2.bf16.msra.mxu0 0
      %6135 = vmatprep.mubr.bf16.mxu0 0
      %6136 = vmatmul.mubr.bf16.gmra.mxu0 %v6050
      %v6137 = vpop.f32.mrf.mxu0
      %v6138 = vadd.f32 0.0, %v6137
      %v6139 = vpop.f32.mrf.mxu0
      %v6140 = vpop.f32.mrf.mxu0
      %v6141 = vadd.f32 0.0, %v6140
      %v6142 = vpop.f32.mrf.mxu0
      %6143 = vmatprep.mubr.bf16.mxu0 0
      %6144 = vmatmul.mubr.bf16.gmra.mxu0 %v6053
      %v6145 = vpop.f32.mrf.mxu0
      %v6146 = vadd.f32 0.0, %v6145
      %v6147 = vpop.f32.mrf.mxu0
      %v6148 = vpop.f32.mrf.mxu0
      %v6149 = vadd.f32 0.0, %v6148
      %v6150 = vpop.f32.mrf.mxu0
      %6151 = vmatprep.mubr.bf16.mxu0 0
      %6152 = vmatmul.mubr.bf16.gmra.mxu0 %v6056
      %v6153 = vpop.f32.mrf.mxu0
      %v6154 = vadd.f32 0.0, %v6153
      %v6155 = vpop.f32.mrf.mxu0
      %v6156 = vpop.f32.mrf.mxu0
      %v6157 = vadd.f32 0.0, %v6156
      %v6158 = vpop.f32.mrf.mxu0
      %6159 = vmatprep.mubr.bf16.mxu0 0
      %6160 = vmatmul.mubr.bf16.gmra.mxu0 %v6059
      %v6161 = vpop.f32.mrf.mxu0
      %v6162 = vadd.f32 0.0, %v6161
      %v6163 = vpop.f32.mrf.mxu0
      %v6164 = vpop.f32.mrf.mxu0
      %v6165 = vadd.f32 0.0, %v6164
      %v6166 = vpop.f32.mrf.mxu0
      %6167 = vmatprep.mubr.bf16.mxu0 0
      %6168 = vmatmul.mubr.bf16.gmra.mxu0 %v6062
      %v6169 = vpop.f32.mrf.mxu0
      %v6170 = vadd.f32 0.0, %v6169
      %v6171 = vpop.f32.mrf.mxu0
      %v6172 = vpop.f32.mrf.mxu0
      %v6173 = vadd.f32 0.0, %v6172
      %v6174 = vpop.f32.mrf.mxu0
      %6175 = vmatprep.mubr.bf16.mxu0 0
      %6176 = vmatmul.mubr.bf16.gmra.mxu0 %v6065
      %v6177 = vpop.f32.mrf.mxu0
      %v6178 = vadd.f32 0.0, %v6177
      %v6179 = vpop.f32.mrf.mxu0
      %v6180 = vpop.f32.mrf.mxu0
      %v6181 = vadd.f32 0.0, %v6180
      %v6182 = vpop.f32.mrf.mxu0
      %6183 = vmatprep.mubr.bf16.mxu0 0
      %6184 = vmatmul.mubr.bf16.gmra.mxu0 %v6068
      %v6185 = vpop.f32.mrf.mxu0
      %v6186 = vadd.f32 0.0, %v6185
      %v6187 = vpop.f32.mrf.mxu0
      %v6188 = vpop.f32.mrf.mxu0
      %v6189 = vadd.f32 0.0, %v6188
      %v6190 = vpop.f32.mrf.mxu0
      %6191 = vmatprep.mubr.bf16.mxu0 0
      %6192 = vmatmul.mubr.bf16.gmra.mxu0 %v6071
      %v6193 = vpop.f32.mrf.mxu0
      %v6194 = vadd.f32 0.0, %v6193
      %v6195 = vpop.f32.mrf.mxu0
      %v6196 = vpop.f32.mrf.mxu0
      %v6197 = vadd.f32 0.0, %v6196
      %v6198 = vpop.f32.mrf.mxu0
      %6199 = vmatprep.mubr.bf16.mxu0 0
      %6200 = vmatmul.mubr.bf16.gmra.mxu0 %v6074
      %v6201 = vpop.f32.mrf.mxu0
      %v6202 = vadd.f32 0.0, %v6201
      %v6203 = vpop.f32.mrf.mxu0
      %v6204 = vpop.f32.mrf.mxu0
      %v6205 = vadd.f32 0.0, %v6204
      %v6206 = vpop.f32.mrf.mxu0
      %6207 = vmatprep.mubr.bf16.mxu0 0
      %6208 = vmatmul.mubr.bf16.gmra.mxu0 %v6077
      %v6209 = vpop.f32.mrf.mxu0
      %v6210 = vadd.f32 0.0, %v6209
      %v6211 = vpop.f32.mrf.mxu0
      %v6212 = vpop.f32.mrf.mxu0
      %v6213 = vadd.f32 0.0, %v6212
      %v6214 = vpop.f32.mrf.mxu0
      %6215 = vmatprep.mubr.bf16.mxu0 0
      %6216 = vmatmul.mubr.bf16.gmra.mxu0 %v6080
      %v6217 = vpop.f32.mrf.mxu0
      %v6218 = vadd.f32 0.0, %v6217
      %v6219 = vpop.f32.mrf.mxu0
      %v6220 = vpop.f32.mrf.mxu0
      %v6221 = vadd.f32 0.0, %v6220
      %v6222 = vpop.f32.mrf.mxu0
      %6223 = vmatprep.mubr.bf16.mxu0 0
      %6224 = vmatmul.mubr.bf16.gmra.mxu0 %v6083
      %v6225 = vpop.f32.mrf.mxu0
      %v6226 = vadd.f32 0.0, %v6225
      %v6227 = vpop.f32.mrf.mxu0
      %v6228 = vpop.f32.mrf.mxu0
      %v6229 = vadd.f32 0.0, %v6228
      %v6230 = vpop.f32.mrf.mxu0
      %6231 = vmatprep.mubr.bf16.mxu0 0
      %6232 = vmatmul.mubr.bf16.gmra.mxu0 %v6086
      %v6233 = vpop.f32.mrf.mxu0
      %v6234 = vadd.f32 0.0, %v6233
      %v6235 = vpop.f32.mrf.mxu0
      %v6236 = vpop.f32.mrf.mxu0
      %v6237 = vadd.f32 0.0, %v6236
      %v6238 = vpop.f32.mrf.mxu0
      %6239 = vmatprep.mubr.bf16.mxu0 0
      %6240 = vmatmul.mubr.bf16.gmra.mxu0 %v6089
      %v6241 = vpop.f32.mrf.mxu0
      %v6242 = vadd.f32 0.0, %v6241
      %v6243 = vpop.f32.mrf.mxu0
      %v6244 = vpop.f32.mrf.mxu0
      %v6245 = vadd.f32 0.0, %v6244
      %v6246 = vpop.f32.mrf.mxu0
      %6247 = vmatprep.mubr.bf16.mxu0 0
      %6248 = vmatmul.mubr.bf16.gmra.mxu0 %v6092
      %v6249 = vpop.f32.mrf.mxu0
      %v6250 = vadd.f32 0.0, %v6249
      %v6251 = vpop.f32.mrf.mxu0
      %v6252 = vpop.f32.mrf.mxu0
      %v6253 = vadd.f32 0.0, %v6252
      %v6254 = vpop.f32.mrf.mxu0
      %6255 = vmatprep.mubr.bf16.mxu0 0
      %6256 = vmatmul.mubr.bf16.gmra.mxu0 %v6095
      %v6257 = vpop.f32.mrf.mxu0
      %v6258 = vadd.f32 0.0, %v6257
      %v6259 = vpop.f32.mrf.mxu0
      %v6260 = vpop.f32.mrf.mxu0
      %v6261 = vadd.f32 0.0, %v6260
      %v6262 = vpop.f32.mrf.mxu0
      %6263 = vmatprep.mubr.bf16.mxu0 0
      %6264 = vmatmul.mubr.bf16.gmra.mxu0 %v6098
      %v6265 = vpop.f32.mrf.mxu0
      %v6266 = vadd.f32 0.0, %v6265
      %v6267 = vpop.f32.mrf.mxu0
      %v6268 = vpop.f32.mrf.mxu0
      %v6269 = vadd.f32 0.0, %v6268
      %v6270 = vpop.f32.mrf.mxu0
      %6271 = vmatprep.mubr.bf16.mxu0 0
      %6272 = vmatmul.mubr.bf16.gmra.mxu0 %v6101
      %v6273 = vpop.f32.mrf.mxu0
      %v6274 = vadd.f32 0.0, %v6273
      %v6275 = vpop.f32.mrf.mxu0
      %v6276 = vpop.f32.mrf.mxu0
      %v6277 = vadd.f32 0.0, %v6276
      %v6278 = vpop.f32.mrf.mxu0
      %6279 = vdwg.mxu0
      %v6280 = vadd.f32 %v5829, %v6138
      %v6281 = vadd.f32 %v5830, %v6141
      %v6282 = vadd.f32 %v5831, %v6146
      %v6283 = vadd.f32 %v5832, %v6149
      %v6284 = vadd.f32 %v5833, %v6154
      %v6285 = vadd.f32 %v5834, %v6157
      %v6286 = vadd.f32 %v5835, %v6162
      %v6287 = vadd.f32 %v5836, %v6165
      %v6288 = vadd.f32 %v5837, %v6170
      %v6289 = vadd.f32 %v5838, %v6173
      %v6290 = vadd.f32 %v5839, %v6178
      %v6291 = vadd.f32 %v5840, %v6181
      %v6292 = vadd.f32 %v5841, %v6186
      %v6293 = vadd.f32 %v5842, %v6189
      %v6294 = vadd.f32 %v5843, %v6194
      %v6295 = vadd.f32 %v5844, %v6197
      %v6296 = vadd.f32 %v5845, %v6202
      %v6297 = vadd.f32 %v5846, %v6205
      %v6298 = vadd.f32 %v5847, %v6210
      %v6299 = vadd.f32 %v5848, %v6213
      %v6300 = vadd.f32 %v5849, %v6218
      %v6301 = vadd.f32 %v5850, %v6221
      %v6302 = vadd.f32 %v5851, %v6226
      %v6303 = vadd.f32 %v5852, %v6229
      %v6304 = vadd.f32 %v5853, %v6234
      %v6305 = vadd.f32 %v5854, %v6237
      %v6306 = vadd.f32 %v5855, %v6242
      %v6307 = vadd.f32 %v5856, %v6245
      %v6308 = vadd.f32 %v5857, %v6250
      %v6309 = vadd.f32 %v5858, %v6253
      %v6310 = vadd.f32 %v5859, %v6258
      %v6311 = vadd.f32 %v5860, %v6261
      %v6312 = vadd.f32 %v5861, %v6266
      %v6313 = vadd.f32 %v5862, %v6269
      %v6314 = vadd.f32 %v5863, %v6274
      %v6315 = vadd.f32 %v5864, %v6277
      %v6316 = vld [vmem:[#allocation2 + $0x98] sm:$0x3]
      %s6317 = scalar_lea.vmem %s4, 64
      %v6318 = vld [vmem:[%s6317] sm:$0xf]
      %v6319 = vld [vmem:[%s6317 + $0x4] sm:$0xf]
      %v6320 = vld [vmem:[%s6317 + $0x8] sm:$0xf]
      %v6321 = vld [vmem:[%s6317 + $0xc] sm:$0xf]
      %v6323 = vunpack.c.l.b16 %v6316
      %v6324 = vpack.c.b16 %v6323, %v6323
      %v6326 = vshrl.u32 %v5981, 16
      %v6328 = vrot.slane %v6326, 1
      %v6329 = vshll.u32 %v5981, 16
      %v6331 = vrot.slane %v6329, 2
      %v6332 = vor.u32 %v6328, %v6331
      %v6334 = vshrl.u32 %v5982, 16
      %v6336 = vrot.slane %v6334, 1
      %v6337 = vshll.u32 %v5982, 16
      %v6339 = vrot.slane %v6337, 2
      %v6340 = vor.u32 %v6336, %v6339
      %v6341 = vsel %vm1843, %v6332, %v6340
      %v6343 = vshrl.u32 %v5983, 16
      %v6345 = vrot.slane %v6343, 1
      %v6346 = vshll.u32 %v5983, 16
      %v6348 = vrot.slane %v6346, 2
      %v6349 = vor.u32 %v6345, %v6348
      %v6350 = vsel %vm1843, %v6340, %v6349
      %v6352 = vshrl.u32 %v5984, 16
      %v6354 = vrot.slane %v6352, 1
      %v6355 = vshll.u32 %v5984, 16
      %v6357 = vrot.slane %v6355, 2
      %v6358 = vor.u32 %v6354, %v6357
      %v6359 = vsel %vm1843, %v6349, %v6358
      %v6361 = vshrl.u32 %v5985, 16
      %v6363 = vrot.slane %v6361, 1
      %v6364 = vshll.u32 %v5985, 16
      %v6366 = vrot.slane %v6364, 2
      %v6367 = vor.u32 %v6363, %v6366
      %v6368 = vsel %vm1843, %v6358, %v6367
      %v6370 = vshrl.u32 %v5986, 16
      %v6372 = vrot.slane %v6370, 1
      %v6373 = vshll.u32 %v5986, 16
      %v6375 = vrot.slane %v6373, 2
      %v6376 = vor.u32 %v6372, %v6375
      %v6377 = vsel %vm1843, %v6367, %v6376
      %v6379 = vshrl.u32 %v5987, 16
      %v6381 = vrot.slane %v6379, 1
      %v6382 = vshll.u32 %v5987, 16
      %v6384 = vrot.slane %v6382, 2
      %v6385 = vor.u32 %v6381, %v6384
      %v6386 = vsel %vm1843, %v6376, %v6385
      %v6388 = vshrl.u32 %v5988, 16
      %v6390 = vrot.slane %v6388, 1
      %v6391 = vshll.u32 %v5988, 16
      %v6393 = vrot.slane %v6391, 2
      %v6394 = vor.u32 %v6390, %v6393
      %v6395 = vsel %vm1843, %v6385, %v6394
      %v6397 = vshrl.u32 %v5989, 16
      %v6399 = vrot.slane %v6397, 1
      %v6400 = vshll.u32 %v5989, 16
      %v6402 = vrot.slane %v6400, 2
      %v6403 = vor.u32 %v6399, %v6402
      %v6404 = vsel %vm1843, %v6394, %v6403
      %v6406 = vshrl.u32 %v5990, 16
      %v6408 = vrot.slane %v6406, 1
      %v6409 = vshll.u32 %v5990, 16
      %v6411 = vrot.slane %v6409, 2
      %v6412 = vor.u32 %v6408, %v6411
      %v6413 = vsel %vm1843, %v6403, %v6412
      %v6415 = vshrl.u32 %v5991, 16
      %v6417 = vrot.slane %v6415, 1
      %v6418 = vshll.u32 %v5991, 16
      %v6420 = vrot.slane %v6418, 2
      %v6421 = vor.u32 %v6417, %v6420
      %v6422 = vsel %vm1843, %v6412, %v6421
      %v6424 = vshrl.u32 %v5992, 16
      %v6426 = vrot.slane %v6424, 1
      %v6427 = vshll.u32 %v5992, 16
      %v6429 = vrot.slane %v6427, 2
      %v6430 = vor.u32 %v6426, %v6429
      %v6431 = vsel %vm1843, %v6421, %v6430
      %v6433 = vshrl.u32 %v5993, 16
      %v6435 = vrot.slane %v6433, 1
      %v6436 = vshll.u32 %v5993, 16
      %v6438 = vrot.slane %v6436, 2
      %v6439 = vor.u32 %v6435, %v6438
      %v6440 = vsel %vm1843, %v6430, %v6439
      %v6442 = vshrl.u32 %v5994, 16
      %v6444 = vrot.slane %v6442, 1
      %v6445 = vshll.u32 %v5994, 16
      %v6447 = vrot.slane %v6445, 2
      %v6448 = vor.u32 %v6444, %v6447
      %v6449 = vsel %vm1843, %v6439, %v6448
      %v6451 = vshrl.u32 %v5995, 16
      %v6453 = vrot.slane %v6451, 1
      %v6454 = vshll.u32 %v5995, 16
      %v6456 = vrot.slane %v6454, 2
      %v6457 = vor.u32 %v6453, %v6456
      %v6458 = vsel %vm1843, %v6448, %v6457
      %v6460 = vshrl.u32 %v5996, 16
      %v6462 = vrot.slane %v6460, 1
      %v6463 = vshll.u32 %v5996, 16
      %v6465 = vrot.slane %v6463, 2
      %v6466 = vor.u32 %v6462, %v6465
      %v6467 = vsel %vm1843, %v6457, %v6466
      %v6469 = vshrl.u32 %v5997, 16
      %v6471 = vrot.slane %v6469, 1
      %v6472 = vshll.u32 %v5997, 16
      %v6474 = vrot.slane %v6472, 2
      %v6475 = vor.u32 %v6471, %v6474
      %v6476 = vsel %vm1843, %v6466, %v6475
      %v6478 = vshrl.u32 %v5998, 16
      %v6480 = vrot.slane %v6478, 1
      %v6481 = vshll.u32 %v5998, 16
      %v6483 = vrot.slane %v6481, 2
      %v6484 = vor.u32 %v6480, %v6483
      %v6485 = vsel %vm1843, %v6475, %v6484
      %v6487 = vshrl.u32 %v6324, 16
      %v6489 = vrot.slane %v6487, 1
      %v6490 = vshll.u32 %v6324, 16
      %v6492 = vrot.slane %v6490, 2
      %v6493 = vor.u32 %v6489, %v6492
      %v6494 = vsel %vm1843, %v6484, %v6493
      %v6499 = vunpack.c.l.b16 %v6318
      %v6500 = vunpack.c.l.b16 %v6319
      %v6501 = vunpack.c.l.b16 %v6320
      %v6502 = vunpack.c.l.b16 %v6321
      %v6503 = vpack.c.b16 %v6500, %v6499
      %v6504 = vpack.c.b16 %v6502, %v6501
      %v6508 = vsel %vm600, %v6341, 0
      %v6511 = vsel %vm600, %v6350, 0
      %v6514 = vsel %vm600, %v6359, 0
      %v6517 = vsel %vm600, %v6368, 0
      %v6520 = vsel %vm600, %v6377, 0
      %v6523 = vsel %vm600, %v6386, 0
      %v6526 = vsel %vm600, %v6395, 0
      %v6529 = vsel %vm600, %v6404, 0
      %v6532 = vsel %vm600, %v6413, 0
      %v6535 = vsel %vm600, %v6422, 0
      %v6538 = vsel %vm600, %v6431, 0
      %v6541 = vsel %vm600, %v6440, 0
      %v6544 = vsel %vm600, %v6449, 0
      %v6547 = vsel %vm600, %v6458, 0
      %v6550 = vsel %vm600, %v6467, 0
      %v6553 = vsel %vm600, %v6476, 0
      %v6556 = vsel %vm600, %v6485, 0
      %v6559 = vsel %vm600, %v6494, 0
      %6561 = vmatprep.subr.bf16.mxu0 0
      %6562 = vmatpush1.bf16.msra.mxu0 0
      %6563 = vmatprep.subr.bf16.mxu0 0
      %6564 = vmatpush1.bf16.msra.mxu0 0
      %6565 = vmatprep.subr.bf16.mxu0 0
      %6566 = vmatpush1.bf16.msra.mxu0 0
      %6567 = vmatprep.subr.bf16.mxu0 0
      %6568 = vmatpush1.bf16.msra.mxu0 0
      %6569 = vmatprep.subr.bf16.mxu0 0
      %6570 = vmatpush1.bf16.msra.mxu0 0
      %6571 = vmatprep.subr.bf16.mxu0 0
      %6572 = vmatpush1.bf16.msra.mxu0 0
      %6573 = vmatprep.subr.bf16.mxu0 0
      %6574 = vmatpush1.bf16.msra.mxu0 %v6504
      %6575 = vmatprep.subr.bf16.mxu0 0
      %6576 = vmatpush1.bf16.msra.mxu0 %v6503
      %6577 = vmatprep.subr.bf16.mxu0 0
      %6578 = vmatpush2.bf16.msra.mxu0 0
      %6579 = vmatprep.subr.bf16.mxu0 0
      %6580 = vmatpush2.bf16.msra.mxu0 0
      %6581 = vmatprep.subr.bf16.mxu0 0
      %6582 = vmatpush2.bf16.msra.mxu0 0
      %6583 = vmatprep.subr.bf16.mxu0 0
      %6584 = vmatpush2.bf16.msra.mxu0 0
      %6585 = vmatprep.subr.bf16.mxu0 0
      %6586 = vmatpush2.bf16.msra.mxu0 0
      %6587 = vmatprep.subr.bf16.mxu0 0
      %6588 = vmatpush2.bf16.msra.mxu0 0
      %6589 = vmatprep.subr.bf16.mxu0 0
      %6590 = vmatpush2.bf16.msra.mxu0 0
      %6591 = vmatprep.subr.bf16.mxu0 0
      %6592 = vmatpush2.bf16.msra.mxu0 0
      %6593 = vmatprep.mubr.bf16.mxu0 0
      %6594 = vmatmul.mubr.bf16.gmra.mxu0 %v6508
      %v6595 = vpop.f32.mrf.mxu0
      %v6596 = vadd.f32 0.0, %v6595
      %v6597 = vpop.f32.mrf.mxu0
      %v6598 = vpop.f32.mrf.mxu0
      %v6599 = vadd.f32 0.0, %v6598
      %v6600 = vpop.f32.mrf.mxu0
      %6601 = vmatprep.mubr.bf16.mxu0 0
      %6602 = vmatmul.mubr.bf16.gmra.mxu0 %v6511
      %v6603 = vpop.f32.mrf.mxu0
      %v6604 = vadd.f32 0.0, %v6603
      %v6605 = vpop.f32.mrf.mxu0
      %v6606 = vpop.f32.mrf.mxu0
      %v6607 = vadd.f32 0.0, %v6606
      %v6608 = vpop.f32.mrf.mxu0
      %6609 = vmatprep.mubr.bf16.mxu0 0
      %6610 = vmatmul.mubr.bf16.gmra.mxu0 %v6514
      %v6611 = vpop.f32.mrf.mxu0
      %v6612 = vadd.f32 0.0, %v6611
      %v6613 = vpop.f32.mrf.mxu0
      %v6614 = vpop.f32.mrf.mxu0
      %v6615 = vadd.f32 0.0, %v6614
      %v6616 = vpop.f32.mrf.mxu0
      %6617 = vmatprep.mubr.bf16.mxu0 0
      %6618 = vmatmul.mubr.bf16.gmra.mxu0 %v6517
      %v6619 = vpop.f32.mrf.mxu0
      %v6620 = vadd.f32 0.0, %v6619
      %v6621 = vpop.f32.mrf.mxu0
      %v6622 = vpop.f32.mrf.mxu0
      %v6623 = vadd.f32 0.0, %v6622
      %v6624 = vpop.f32.mrf.mxu0
      %6625 = vmatprep.mubr.bf16.mxu0 0
      %6626 = vmatmul.mubr.bf16.gmra.mxu0 %v6520
      %v6627 = vpop.f32.mrf.mxu0
      %v6628 = vadd.f32 0.0, %v6627
      %v6629 = vpop.f32.mrf.mxu0
      %v6630 = vpop.f32.mrf.mxu0
      %v6631 = vadd.f32 0.0, %v6630
      %v6632 = vpop.f32.mrf.mxu0
      %6633 = vmatprep.mubr.bf16.mxu0 0
      %6634 = vmatmul.mubr.bf16.gmra.mxu0 %v6523
      %v6635 = vpop.f32.mrf.mxu0
      %v6636 = vadd.f32 0.0, %v6635
      %v6637 = vpop.f32.mrf.mxu0
      %v6638 = vpop.f32.mrf.mxu0
      %v6639 = vadd.f32 0.0, %v6638
      %v6640 = vpop.f32.mrf.mxu0
      %6641 = vmatprep.mubr.bf16.mxu0 0
      %6642 = vmatmul.mubr.bf16.gmra.mxu0 %v6526
      %v6643 = vpop.f32.mrf.mxu0
      %v6644 = vadd.f32 0.0, %v6643
      %v6645 = vpop.f32.mrf.mxu0
      %v6646 = vpop.f32.mrf.mxu0
      %v6647 = vadd.f32 0.0, %v6646
      %v6648 = vpop.f32.mrf.mxu0
      %6649 = vmatprep.mubr.bf16.mxu0 0
      %6650 = vmatmul.mubr.bf16.gmra.mxu0 %v6529
      %v6651 = vpop.f32.mrf.mxu0
      %v6652 = vadd.f32 0.0, %v6651
      %v6653 = vpop.f32.mrf.mxu0
      %v6654 = vpop.f32.mrf.mxu0
      %v6655 = vadd.f32 0.0, %v6654
      %v6656 = vpop.f32.mrf.mxu0
      %6657 = vmatprep.mubr.bf16.mxu0 0
      %6658 = vmatmul.mubr.bf16.gmra.mxu0 %v6532
      %v6659 = vpop.f32.mrf.mxu0
      %v6660 = vadd.f32 0.0, %v6659
      %v6661 = vpop.f32.mrf.mxu0
      %v6662 = vpop.f32.mrf.mxu0
      %v6663 = vadd.f32 0.0, %v6662
      %v6664 = vpop.f32.mrf.mxu0
      %6665 = vmatprep.mubr.bf16.mxu0 0
      %6666 = vmatmul.mubr.bf16.gmra.mxu0 %v6535
      %v6667 = vpop.f32.mrf.mxu0
      %v6668 = vadd.f32 0.0, %v6667
      %v6669 = vpop.f32.mrf.mxu0
      %v6670 = vpop.f32.mrf.mxu0
      %v6671 = vadd.f32 0.0, %v6670
      %v6672 = vpop.f32.mrf.mxu0
      %6673 = vmatprep.mubr.bf16.mxu0 0
      %6674 = vmatmul.mubr.bf16.gmra.mxu0 %v6538
      %v6675 = vpop.f32.mrf.mxu0
      %v6676 = vadd.f32 0.0, %v6675
      %v6677 = vpop.f32.mrf.mxu0
      %v6678 = vpop.f32.mrf.mxu0
      %v6679 = vadd.f32 0.0, %v6678
      %v6680 = vpop.f32.mrf.mxu0
      %6681 = vmatprep.mubr.bf16.mxu0 0
      %6682 = vmatmul.mubr.bf16.gmra.mxu0 %v6541
      %v6683 = vpop.f32.mrf.mxu0
      %v6684 = vadd.f32 0.0, %v6683
      %v6685 = vpop.f32.mrf.mxu0
      %v6686 = vpop.f32.mrf.mxu0
      %v6687 = vadd.f32 0.0, %v6686
      %v6688 = vpop.f32.mrf.mxu0
      %6689 = vmatprep.mubr.bf16.mxu0 0
      %6690 = vmatmul.mubr.bf16.gmra.mxu0 %v6544
      %v6691 = vpop.f32.mrf.mxu0
      %v6692 = vadd.f32 0.0, %v6691
      %v6693 = vpop.f32.mrf.mxu0
      %v6694 = vpop.f32.mrf.mxu0
      %v6695 = vadd.f32 0.0, %v6694
      %v6696 = vpop.f32.mrf.mxu0
      %6697 = vmatprep.mubr.bf16.mxu0 0
      %6698 = vmatmul.mubr.bf16.gmra.mxu0 %v6547
      %v6699 = vpop.f32.mrf.mxu0
      %v6700 = vadd.f32 0.0, %v6699
      %v6701 = vpop.f32.mrf.mxu0
      %v6702 = vpop.f32.mrf.mxu0
      %v6703 = vadd.f32 0.0, %v6702
      %v6704 = vpop.f32.mrf.mxu0
      %6705 = vmatprep.mubr.bf16.mxu0 0
      %6706 = vmatmul.mubr.bf16.gmra.mxu0 %v6550
      %v6707 = vpop.f32.mrf.mxu0
      %v6708 = vadd.f32 0.0, %v6707
      %v6709 = vpop.f32.mrf.mxu0
      %v6710 = vpop.f32.mrf.mxu0
      %v6711 = vadd.f32 0.0, %v6710
      %v6712 = vpop.f32.mrf.mxu0
      %6713 = vmatprep.mubr.bf16.mxu0 0
      %6714 = vmatmul.mubr.bf16.gmra.mxu0 %v6553
      %v6715 = vpop.f32.mrf.mxu0
      %v6716 = vadd.f32 0.0, %v6715
      %v6717 = vpop.f32.mrf.mxu0
      %v6718 = vpop.f32.mrf.mxu0
      %v6719 = vadd.f32 0.0, %v6718
      %v6720 = vpop.f32.mrf.mxu0
      %6721 = vmatprep.mubr.bf16.mxu0 0
      %6722 = vmatmul.mubr.bf16.gmra.mxu0 %v6556
      %v6723 = vpop.f32.mrf.mxu0
      %v6724 = vadd.f32 0.0, %v6723
      %v6725 = vpop.f32.mrf.mxu0
      %v6726 = vpop.f32.mrf.mxu0
      %v6727 = vadd.f32 0.0, %v6726
      %v6728 = vpop.f32.mrf.mxu0
      %6729 = vmatprep.mubr.bf16.mxu0 0
      %6730 = vmatmul.mubr.bf16.gmra.mxu0 %v6559
      %v6731 = vpop.f32.mrf.mxu0
      %v6732 = vadd.f32 0.0, %v6731
      %v6733 = vpop.f32.mrf.mxu0
      %v6734 = vpop.f32.mrf.mxu0
      %v6735 = vadd.f32 0.0, %v6734
      %v6736 = vpop.f32.mrf.mxu0
      %6737 = vdwg.mxu0
      %v6738 = vadd.f32 %v6280, %v6596
      %v6739 = vadd.f32 %v6281, %v6599
      %v6740 = vadd.f32 %v6282, %v6604
      %v6741 = vadd.f32 %v6283, %v6607
      %v6742 = vadd.f32 %v6284, %v6612
      %v6743 = vadd.f32 %v6285, %v6615
      %v6744 = vadd.f32 %v6286, %v6620
      %v6745 = vadd.f32 %v6287, %v6623
      %v6746 = vadd.f32 %v6288, %v6628
      %v6747 = vadd.f32 %v6289, %v6631
      %v6748 = vadd.f32 %v6290, %v6636
      %v6749 = vadd.f32 %v6291, %v6639
      %v6750 = vadd.f32 %v6292, %v6644
      %v6751 = vadd.f32 %v6293, %v6647
      %v6752 = vadd.f32 %v6294, %v6652
      %v6753 = vadd.f32 %v6295, %v6655
      %v6754 = vadd.f32 %v6296, %v6660
      %v6755 = vadd.f32 %v6297, %v6663
      %v6756 = vadd.f32 %v6298, %v6668
      %v6757 = vadd.f32 %v6299, %v6671
      %v6758 = vadd.f32 %v6300, %v6676
      %v6759 = vadd.f32 %v6301, %v6679
      %v6760 = vadd.f32 %v6302, %v6684
      %v6761 = vadd.f32 %v6303, %v6687
      %v6762 = vadd.f32 %v6304, %v6692
      %v6763 = vadd.f32 %v6305, %v6695
      %v6764 = vadd.f32 %v6306, %v6700
      %v6765 = vadd.f32 %v6307, %v6703
      %v6766 = vadd.f32 %v6308, %v6708
      %v6767 = vadd.f32 %v6309, %v6711
      %v6768 = vadd.f32 %v6310, %v6716
      %v6769 = vadd.f32 %v6311, %v6719
      %v6770 = vadd.f32 %v6312, %v6724
      %v6771 = vadd.f32 %v6313, %v6727
      %v6772 = vadd.f32 %v6314, %v6732
      %v6773 = vadd.f32 %v6315, %v6735
      %v6774 = vld [vmem:[#allocation2 + $0x8] sm:$0xc]
      %s6775 = scalar_lea.vmem %s4, 80
      %v6776 = vld [vmem:[%s6775] sm:$0xf]
      %v6777 = vld [vmem:[%s6775 + $0x4] sm:$0xf]
      %v6778 = vld [vmem:[%s6775 + $0x8] sm:$0xf]
      %v6779 = vld [vmem:[%s6775 + $0xc] sm:$0xf]
      %v6781 = vunpack.c.l.b16 %v6774
      %v6782 = vpack.c.b16 %v5945, %v6781
      %v6783 = vrot.slane %v6782, 2
      %v6784 = vrot.slane %v5982, 2
      %v6785 = vsel %vm2302, %v6783, %v6784
      %v6786 = vrot.slane %v5983, 2
      %v6787 = vsel %vm2302, %v6784, %v6786
      %v6788 = vrot.slane %v5984, 2
      %v6789 = vsel %vm2302, %v6786, %v6788
      %v6790 = vrot.slane %v5985, 2
      %v6791 = vsel %vm2302, %v6788, %v6790
      %v6792 = vrot.slane %v5986, 2
      %v6793 = vsel %vm2302, %v6790, %v6792
      %v6794 = vrot.slane %v5987, 2
      %v6795 = vsel %vm2302, %v6792, %v6794
      %v6796 = vrot.slane %v5988, 2
      %v6797 = vsel %vm2302, %v6794, %v6796
      %v6798 = vrot.slane %v5989, 2
      %v6799 = vsel %vm2302, %v6796, %v6798
      %v6800 = vrot.slane %v5990, 2
      %v6801 = vsel %vm2302, %v6798, %v6800
      %v6802 = vrot.slane %v5991, 2
      %v6803 = vsel %vm2302, %v6800, %v6802
      %v6804 = vrot.slane %v5992, 2
      %v6805 = vsel %vm2302, %v6802, %v6804
      %v6806 = vrot.slane %v5993, 2
      %v6807 = vsel %vm2302, %v6804, %v6806
      %v6808 = vrot.slane %v5994, 2
      %v6809 = vsel %vm2302, %v6806, %v6808
      %v6810 = vrot.slane %v5995, 2
      %v6811 = vsel %vm2302, %v6808, %v6810
      %v6812 = vrot.slane %v5996, 2
      %v6813 = vsel %vm2302, %v6810, %v6812
      %v6814 = vrot.slane %v5997, 2
      %v6815 = vsel %vm2302, %v6812, %v6814
      %v6816 = vrot.slane %v5998, 2
      %v6817 = vsel %vm2302, %v6814, %v6816
      %v6818 = vrot.slane %v6324, 2
      %v6819 = vsel %vm2302, %v6816, %v6818
      %v6824 = vunpack.c.l.b16 %v6776
      %v6825 = vunpack.c.l.b16 %v6777
      %v6826 = vunpack.c.l.b16 %v6778
      %v6827 = vunpack.c.l.b16 %v6779
      %v6828 = vpack.c.b16 %v6825, %v6824
      %v6829 = vpack.c.b16 %v6827, %v6826
      %v6833 = vsel %vm600, %v6785, 0
      %v6836 = vsel %vm600, %v6787, 0
      %v6839 = vsel %vm600, %v6789, 0
      %v6842 = vsel %vm600, %v6791, 0
      %v6845 = vsel %vm600, %v6793, 0
      %v6848 = vsel %vm600, %v6795, 0
      %v6851 = vsel %vm600, %v6797, 0
      %v6854 = vsel %vm600, %v6799, 0
      %v6857 = vsel %vm600, %v6801, 0
      %v6860 = vsel %vm600, %v6803, 0
      %v6863 = vsel %vm600, %v6805, 0
      %v6866 = vsel %vm600, %v6807, 0
      %v6869 = vsel %vm600, %v6809, 0
      %v6872 = vsel %vm600, %v6811, 0
      %v6875 = vsel %vm600, %v6813, 0
      %v6878 = vsel %vm600, %v6815, 0
      %v6881 = vsel %vm600, %v6817, 0
      %v6884 = vsel %vm600, %v6819, 0
      %6886 = vmatprep.subr.bf16.mxu0 0
      %6887 = vmatpush1.bf16.msra.mxu0 0
      %6888 = vmatprep.subr.bf16.mxu0 0
      %6889 = vmatpush1.bf16.msra.mxu0 0
      %6890 = vmatprep.subr.bf16.mxu0 0
      %6891 = vmatpush1.bf16.msra.mxu0 0
      %6892 = vmatprep.subr.bf16.mxu0 0
      %6893 = vmatpush1.bf16.msra.mxu0 0
      %6894 = vmatprep.subr.bf16.mxu0 0
      %6895 = vmatpush1.bf16.msra.mxu0 0
      %6896 = vmatprep.subr.bf16.mxu0 0
      %6897 = vmatpush1.bf16.msra.mxu0 0
      %6898 = vmatprep.subr.bf16.mxu0 0
      %6899 = vmatpush1.bf16.msra.mxu0 %v6829
      %6900 = vmatprep.subr.bf16.mxu0 0
      %6901 = vmatpush1.bf16.msra.mxu0 %v6828
      %6902 = vmatprep.subr.bf16.mxu0 0
      %6903 = vmatpush2.bf16.msra.mxu0 0
      %6904 = vmatprep.subr.bf16.mxu0 0
      %6905 = vmatpush2.bf16.msra.mxu0 0
      %6906 = vmatprep.subr.bf16.mxu0 0
      %6907 = vmatpush2.bf16.msra.mxu0 0
      %6908 = vmatprep.subr.bf16.mxu0 0
      %6909 = vmatpush2.bf16.msra.mxu0 0
      %6910 = vmatprep.subr.bf16.mxu0 0
      %6911 = vmatpush2.bf16.msra.mxu0 0
      %6912 = vmatprep.subr.bf16.mxu0 0
      %6913 = vmatpush2.bf16.msra.mxu0 0
      %6914 = vmatprep.subr.bf16.mxu0 0
      %6915 = vmatpush2.bf16.msra.mxu0 0
      %6916 = vmatprep.subr.bf16.mxu0 0
      %6917 = vmatpush2.bf16.msra.mxu0 0
      %6918 = vmatprep.mubr.bf16.mxu0 0
      %6919 = vmatmul.mubr.bf16.gmra.mxu0 %v6833
      %v6920 = vpop.f32.mrf.mxu0
      %v6921 = vadd.f32 0.0, %v6920
      %v6922 = vpop.f32.mrf.mxu0
      %v6923 = vpop.f32.mrf.mxu0
      %v6924 = vadd.f32 0.0, %v6923
      %v6925 = vpop.f32.mrf.mxu0
      %6926 = vmatprep.mubr.bf16.mxu0 0
      %6927 = vmatmul.mubr.bf16.gmra.mxu0 %v6836
      %v6928 = vpop.f32.mrf.mxu0
      %v6929 = vadd.f32 0.0, %v6928
      %v6930 = vpop.f32.mrf.mxu0
      %v6931 = vpop.f32.mrf.mxu0
      %v6932 = vadd.f32 0.0, %v6931
      %v6933 = vpop.f32.mrf.mxu0
      %6934 = vmatprep.mubr.bf16.mxu0 0
      %6935 = vmatmul.mubr.bf16.gmra.mxu0 %v6839
      %v6936 = vpop.f32.mrf.mxu0
      %v6937 = vadd.f32 0.0, %v6936
      %v6938 = vpop.f32.mrf.mxu0
      %v6939 = vpop.f32.mrf.mxu0
      %v6940 = vadd.f32 0.0, %v6939
      %v6941 = vpop.f32.mrf.mxu0
      %6942 = vmatprep.mubr.bf16.mxu0 0
      %6943 = vmatmul.mubr.bf16.gmra.mxu0 %v6842
      %v6944 = vpop.f32.mrf.mxu0
      %v6945 = vadd.f32 0.0, %v6944
      %v6946 = vpop.f32.mrf.mxu0
      %v6947 = vpop.f32.mrf.mxu0
      %v6948 = vadd.f32 0.0, %v6947
      %v6949 = vpop.f32.mrf.mxu0
      %6950 = vmatprep.mubr.bf16.mxu0 0
      %6951 = vmatmul.mubr.bf16.gmra.mxu0 %v6845
      %v6952 = vpop.f32.mrf.mxu0
      %v6953 = vadd.f32 0.0, %v6952
      %v6954 = vpop.f32.mrf.mxu0
      %v6955 = vpop.f32.mrf.mxu0
      %v6956 = vadd.f32 0.0, %v6955
      %v6957 = vpop.f32.mrf.mxu0
      %6958 = vmatprep.mubr.bf16.mxu0 0
      %6959 = vmatmul.mubr.bf16.gmra.mxu0 %v6848
      %v6960 = vpop.f32.mrf.mxu0
      %v6961 = vadd.f32 0.0, %v6960
      %v6962 = vpop.f32.mrf.mxu0
      %v6963 = vpop.f32.mrf.mxu0
      %v6964 = vadd.f32 0.0, %v6963
      %v6965 = vpop.f32.mrf.mxu0
      %6966 = vmatprep.mubr.bf16.mxu0 0
      %6967 = vmatmul.mubr.bf16.gmra.mxu0 %v6851
      %v6968 = vpop.f32.mrf.mxu0
      %v6969 = vadd.f32 0.0, %v6968
      %v6970 = vpop.f32.mrf.mxu0
      %v6971 = vpop.f32.mrf.mxu0
      %v6972 = vadd.f32 0.0, %v6971
      %v6973 = vpop.f32.mrf.mxu0
      %6974 = vmatprep.mubr.bf16.mxu0 0
      %6975 = vmatmul.mubr.bf16.gmra.mxu0 %v6854
      %v6976 = vpop.f32.mrf.mxu0
      %v6977 = vadd.f32 0.0, %v6976
      %v6978 = vpop.f32.mrf.mxu0
      %v6979 = vpop.f32.mrf.mxu0
      %v6980 = vadd.f32 0.0, %v6979
      %v6981 = vpop.f32.mrf.mxu0
      %6982 = vmatprep.mubr.bf16.mxu0 0
      %6983 = vmatmul.mubr.bf16.gmra.mxu0 %v6857
      %v6984 = vpop.f32.mrf.mxu0
      %v6985 = vadd.f32 0.0, %v6984
      %v6986 = vpop.f32.mrf.mxu0
      %v6987 = vpop.f32.mrf.mxu0
      %v6988 = vadd.f32 0.0, %v6987
      %v6989 = vpop.f32.mrf.mxu0
      %6990 = vmatprep.mubr.bf16.mxu0 0
      %6991 = vmatmul.mubr.bf16.gmra.mxu0 %v6860
      %v6992 = vpop.f32.mrf.mxu0
      %v6993 = vadd.f32 0.0, %v6992
      %v6994 = vpop.f32.mrf.mxu0
      %v6995 = vpop.f32.mrf.mxu0
      %v6996 = vadd.f32 0.0, %v6995
      %v6997 = vpop.f32.mrf.mxu0
      %6998 = vmatprep.mubr.bf16.mxu0 0
      %6999 = vmatmul.mubr.bf16.gmra.mxu0 %v6863
      %v7000 = vpop.f32.mrf.mxu0
      %v7001 = vadd.f32 0.0, %v7000
      %v7002 = vpop.f32.mrf.mxu0
      %v7003 = vpop.f32.mrf.mxu0
      %v7004 = vadd.f32 0.0, %v7003
      %v7005 = vpop.f32.mrf.mxu0
      %7006 = vmatprep.mubr.bf16.mxu0 0
      %7007 = vmatmul.mubr.bf16.gmra.mxu0 %v6866
      %v7008 = vpop.f32.mrf.mxu0
      %v7009 = vadd.f32 0.0, %v7008
      %v7010 = vpop.f32.mrf.mxu0
      %v7011 = vpop.f32.mrf.mxu0
      %v7012 = vadd.f32 0.0, %v7011
      %v7013 = vpop.f32.mrf.mxu0
      %7014 = vmatprep.mubr.bf16.mxu0 0
      %7015 = vmatmul.mubr.bf16.gmra.mxu0 %v6869
      %v7016 = vpop.f32.mrf.mxu0
      %v7017 = vadd.f32 0.0, %v7016
      %v7018 = vpop.f32.mrf.mxu0
      %v7019 = vpop.f32.mrf.mxu0
      %v7020 = vadd.f32 0.0, %v7019
      %v7021 = vpop.f32.mrf.mxu0
      %7022 = vmatprep.mubr.bf16.mxu0 0
      %7023 = vmatmul.mubr.bf16.gmra.mxu0 %v6872
      %v7024 = vpop.f32.mrf.mxu0
      %v7025 = vadd.f32 0.0, %v7024
      %v7026 = vpop.f32.mrf.mxu0
      %v7027 = vpop.f32.mrf.mxu0
      %v7028 = vadd.f32 0.0, %v7027
      %v7029 = vpop.f32.mrf.mxu0
      %7030 = vmatprep.mubr.bf16.mxu0 0
      %7031 = vmatmul.mubr.bf16.gmra.mxu0 %v6875
      %v7032 = vpop.f32.mrf.mxu0
      %v7033 = vadd.f32 0.0, %v7032
      %v7034 = vpop.f32.mrf.mxu0
      %v7035 = vpop.f32.mrf.mxu0
      %v7036 = vadd.f32 0.0, %v7035
      %v7037 = vpop.f32.mrf.mxu0
      %7038 = vmatprep.mubr.bf16.mxu0 0
      %7039 = vmatmul.mubr.bf16.gmra.mxu0 %v6878
      %v7040 = vpop.f32.mrf.mxu0
      %v7041 = vadd.f32 0.0, %v7040
      %v7042 = vpop.f32.mrf.mxu0
      %v7043 = vpop.f32.mrf.mxu0
      %v7044 = vadd.f32 0.0, %v7043
      %v7045 = vpop.f32.mrf.mxu0
      %7046 = vmatprep.mubr.bf16.mxu0 0
      %7047 = vmatmul.mubr.bf16.gmra.mxu0 %v6881
      %v7048 = vpop.f32.mrf.mxu0
      %v7049 = vadd.f32 0.0, %v7048
      %v7050 = vpop.f32.mrf.mxu0
      %v7051 = vpop.f32.mrf.mxu0
      %v7052 = vadd.f32 0.0, %v7051
      %v7053 = vpop.f32.mrf.mxu0
      %7054 = vmatprep.mubr.bf16.mxu0 0
      %7055 = vmatmul.mubr.bf16.gmra.mxu0 %v6884
      %v7056 = vpop.f32.mrf.mxu0
      %v7057 = vadd.f32 0.0, %v7056
      %v7058 = vpop.f32.mrf.mxu0
      %v7059 = vpop.f32.mrf.mxu0
      %v7060 = vadd.f32 0.0, %v7059
      %v7061 = vpop.f32.mrf.mxu0
      %7062 = vdwg.mxu0
      %v7063 = vadd.f32 %v6738, %v6921
      %v7064 = vadd.f32 %v6739, %v6924
      %v7065 = vadd.f32 %v6740, %v6929
      %v7066 = vadd.f32 %v6741, %v6932
      %v7067 = vadd.f32 %v6742, %v6937
      %v7068 = vadd.f32 %v6743, %v6940
      %v7069 = vadd.f32 %v6744, %v6945
      %v7070 = vadd.f32 %v6745, %v6948
      %v7071 = vadd.f32 %v6746, %v6953
      %v7072 = vadd.f32 %v6747, %v6956
      %v7073 = vadd.f32 %v6748, %v6961
      %v7074 = vadd.f32 %v6749, %v6964
      %v7075 = vadd.f32 %v6750, %v6969
      %v7076 = vadd.f32 %v6751, %v6972
      %v7077 = vadd.f32 %v6752, %v6977
      %v7078 = vadd.f32 %v6753, %v6980
      %v7079 = vadd.f32 %v6754, %v6985
      %v7080 = vadd.f32 %v6755, %v6988
      %v7081 = vadd.f32 %v6756, %v6993
      %v7082 = vadd.f32 %v6757, %v6996
      %v7083 = vadd.f32 %v6758, %v7001
      %v7084 = vadd.f32 %v6759, %v7004
      %v7085 = vadd.f32 %v6760, %v7009
      %v7086 = vadd.f32 %v6761, %v7012
      %v7087 = vadd.f32 %v6762, %v7017
      %v7088 = vadd.f32 %v6763, %v7020
      %v7089 = vadd.f32 %v6764, %v7025
      %v7090 = vadd.f32 %v6765, %v7028
      %v7091 = vadd.f32 %v6766, %v7033
      %v7092 = vadd.f32 %v6767, %v7036
      %v7093 = vadd.f32 %v6768, %v7041
      %v7094 = vadd.f32 %v6769, %v7044
      %v7095 = vadd.f32 %v6770, %v7049
      %v7096 = vadd.f32 %v6771, %v7052
      %v7097 = vadd.f32 %v6772, %v7057
      %v7098 = vadd.f32 %v6773, %v7060
      %v7099 = vld [vmem:[#allocation2 + $0x10] sm:$0xc]
      %v7100 = vld [vmem:[#allocation2 + $0x14] sm:$0xf]
      %v7101 = vld [vmem:[#allocation2 + $0x18] sm:$0xf]
      %v7102 = vld [vmem:[#allocation2 + $0x1c] sm:$0xf]
      %v7103 = vld [vmem:[#allocation2 + $0x20] sm:$0xf]
      %v7104 = vld [vmem:[#allocation2 + $0x24] sm:$0xf]
      %v7105 = vld [vmem:[#allocation2 + $0x28] sm:$0xf]
      %v7106 = vld [vmem:[#allocation2 + $0x2c] sm:$0xf]
      %v7107 = vld [vmem:[#allocation2 + $0x30] sm:$0xf]
      %v7108 = vld [vmem:[#allocation2 + $0x34] sm:$0xf]
      %v7109 = vld [vmem:[#allocation2 + $0x38] sm:$0xf]
      %v7110 = vld [vmem:[#allocation2 + $0x3c] sm:$0xf]
      %v7111 = vld [vmem:[#allocation2 + $0x40] sm:$0xf]
      %v7112 = vld [vmem:[#allocation2 + $0x44] sm:$0xf]
      %v7113 = vld [vmem:[#allocation2 + $0x48] sm:$0xf]
      %v7114 = vld [vmem:[#allocation2 + $0x4c] sm:$0xf]
      %v7115 = vld [vmem:[#allocation2 + $0x50] sm:$0xf]
      %v7116 = vld [vmem:[#allocation2 + $0x54] sm:$0xf]
      %v7117 = vld [vmem:[#allocation2 + $0x58] sm:$0xf]
      %v7118 = vld [vmem:[#allocation2 + $0x5c] sm:$0xf]
      %v7119 = vld [vmem:[#allocation2 + $0x60] sm:$0xf]
      %v7120 = vld [vmem:[#allocation2 + $0x64] sm:$0xf]
      %v7121 = vld [vmem:[#allocation2 + $0x68] sm:$0xf]
      %v7122 = vld [vmem:[#allocation2 + $0x6c] sm:$0xf]
      %v7123 = vld [vmem:[#allocation2 + $0x70] sm:$0xf]
      %v7124 = vld [vmem:[#allocation2 + $0x74] sm:$0xf]
      %v7125 = vld [vmem:[#allocation2 + $0x78] sm:$0xf]
      %v7126 = vld [vmem:[#allocation2 + $0x7c] sm:$0xf]
      %v7127 = vld [vmem:[#allocation2 + $0x80] sm:$0xf]
      %v7128 = vld [vmem:[#allocation2 + $0x84] sm:$0xf]
      %v7129 = vld [vmem:[#allocation2 + $0x88] sm:$0xf]
      %v7130 = vld [vmem:[#allocation2 + $0x8c] sm:$0xf]
      %v7131 = vld [vmem:[#allocation2 + $0x90] sm:$0xf]
      %v7132 = vld [vmem:[#allocation2 + $0x94] sm:$0xf]
      %v7133 = vld [vmem:[#allocation2 + $0x98] sm:$0xf]
      %v7134 = vld [vmem:[#allocation2 + $0x9c] sm:$0xf]
      %v7135 = vld [vmem:[#allocation2 + $0xa0] sm:$0x3]
      %s7136 = scalar_lea.vmem %s4, 96
      %v7137 = vld [vmem:[%s7136] sm:$0xf]
      %v7138 = vld [vmem:[%s7136 + $0x4] sm:$0xf]
      %v7139 = vld [vmem:[%s7136 + $0x8] sm:$0xf]
      %v7140 = vld [vmem:[%s7136 + $0xc] sm:$0xf]
      %v7178 = vunpack.c.l.b16 %v7099
      %v7179 = vunpack.c.l.b16 %v7100
      %v7180 = vunpack.c.l.b16 %v7101
      %v7181 = vunpack.c.l.b16 %v7102
      %v7182 = vunpack.c.l.b16 %v7103
      %v7183 = vunpack.c.l.b16 %v7104
      %v7184 = vunpack.c.l.b16 %v7105
      %v7185 = vunpack.c.l.b16 %v7106
      %v7186 = vunpack.c.l.b16 %v7107
      %v7187 = vunpack.c.l.b16 %v7108
      %v7188 = vunpack.c.l.b16 %v7109
      %v7189 = vunpack.c.l.b16 %v7110
      %v7190 = vunpack.c.l.b16 %v7111
      %v7191 = vunpack.c.l.b16 %v7112
      %v7192 = vunpack.c.l.b16 %v7113
      %v7193 = vunpack.c.l.b16 %v7114
      %v7194 = vunpack.c.l.b16 %v7115
      %v7195 = vunpack.c.l.b16 %v7116
      %v7196 = vunpack.c.l.b16 %v7117
      %v7197 = vunpack.c.l.b16 %v7118
      %v7198 = vunpack.c.l.b16 %v7119
      %v7199 = vunpack.c.l.b16 %v7120
      %v7200 = vunpack.c.l.b16 %v7121
      %v7201 = vunpack.c.l.b16 %v7122
      %v7202 = vunpack.c.l.b16 %v7123
      %v7203 = vunpack.c.l.b16 %v7124
      %v7204 = vunpack.c.l.b16 %v7125
      %v7205 = vunpack.c.l.b16 %v7126
      %v7206 = vunpack.c.l.b16 %v7127
      %v7207 = vunpack.c.l.b16 %v7128
      %v7208 = vunpack.c.l.b16 %v7129
      %v7209 = vunpack.c.l.b16 %v7130
      %v7210 = vunpack.c.l.b16 %v7131
      %v7211 = vunpack.c.l.b16 %v7132
      %v7212 = vunpack.c.l.b16 %v7133
      %v7213 = vunpack.c.l.b16 %v7134
      %v7214 = vunpack.c.l.b16 %v7135
      %v7215 = vpack.c.b16 %v7179, %v7178
      %v7216 = vpack.c.b16 %v7181, %v7180
      %v7217 = vpack.c.b16 %v7183, %v7182
      %v7218 = vpack.c.b16 %v7185, %v7184
      %v7219 = vpack.c.b16 %v7187, %v7186
      %v7220 = vpack.c.b16 %v7189, %v7188
      %v7221 = vpack.c.b16 %v7191, %v7190
      %v7222 = vpack.c.b16 %v7193, %v7192
      %v7223 = vpack.c.b16 %v7195, %v7194
      %v7224 = vpack.c.b16 %v7197, %v7196
      %v7225 = vpack.c.b16 %v7199, %v7198
      %v7226 = vpack.c.b16 %v7201, %v7200
      %v7227 = vpack.c.b16 %v7203, %v7202
      %v7228 = vpack.c.b16 %v7205, %v7204
      %v7229 = vpack.c.b16 %v7207, %v7206
      %v7230 = vpack.c.b16 %v7209, %v7208
      %v7231 = vpack.c.b16 %v7211, %v7210
      %v7232 = vpack.c.b16 %v7213, %v7212
      %v7233 = vpack.c.b16 %v7214, %v7214
      %v7234 = vrot.slane %v7215, 2
      %v7235 = vrot.slane %v7216, 2
      %v7236 = vsel %vm2302, %v7234, %v7235
      %v7237 = vrot.slane %v7217, 2
      %v7238 = vsel %vm2302, %v7235, %v7237
      %v7239 = vrot.slane %v7218, 2
      %v7240 = vsel %vm2302, %v7237, %v7239
      %v7241 = vrot.slane %v7219, 2
      %v7242 = vsel %vm2302, %v7239, %v7241
      %v7243 = vrot.slane %v7220, 2
      %v7244 = vsel %vm2302, %v7241, %v7243
      %v7245 = vrot.slane %v7221, 2
      %v7246 = vsel %vm2302, %v7243, %v7245
      %v7247 = vrot.slane %v7222, 2
      %v7248 = vsel %vm2302, %v7245, %v7247
      %v7249 = vrot.slane %v7223, 2
      %v7250 = vsel %vm2302, %v7247, %v7249
      %v7251 = vrot.slane %v7224, 2
      %v7252 = vsel %vm2302, %v7249, %v7251
      %v7253 = vrot.slane %v7225, 2
      %v7254 = vsel %vm2302, %v7251, %v7253
      %v7255 = vrot.slane %v7226, 2
      %v7256 = vsel %vm2302, %v7253, %v7255
      %v7257 = vrot.slane %v7227, 2
      %v7258 = vsel %vm2302, %v7255, %v7257
      %v7259 = vrot.slane %v7228, 2
      %v7260 = vsel %vm2302, %v7257, %v7259
      %v7261 = vrot.slane %v7229, 2
      %v7262 = vsel %vm2302, %v7259, %v7261
      %v7263 = vrot.slane %v7230, 2
      %v7264 = vsel %vm2302, %v7261, %v7263
      %v7265 = vrot.slane %v7231, 2
      %v7266 = vsel %vm2302, %v7263, %v7265
      %v7267 = vrot.slane %v7232, 2
      %v7268 = vsel %vm2302, %v7265, %v7267
      %v7269 = vrot.slane %v7233, 2
      %v7270 = vsel %vm2302, %v7267, %v7269
      %v7275 = vunpack.c.l.b16 %v7137
      %v7276 = vunpack.c.l.b16 %v7138
      %v7277 = vunpack.c.l.b16 %v7139
      %v7278 = vunpack.c.l.b16 %v7140
      %v7279 = vpack.c.b16 %v7276, %v7275
      %v7280 = vpack.c.b16 %v7278, %v7277
      %v7284 = vsel %vm600, %v7236, 0
      %v7287 = vsel %vm600, %v7238, 0
      %v7290 = vsel %vm600, %v7240, 0
      %v7293 = vsel %vm600, %v7242, 0
      %v7296 = vsel %vm600, %v7244, 0
      %v7299 = vsel %vm600, %v7246, 0
      %v7302 = vsel %vm600, %v7248, 0
      %v7305 = vsel %vm600, %v7250, 0
      %v7308 = vsel %vm600, %v7252, 0
      %v7311 = vsel %vm600, %v7254, 0
      %v7314 = vsel %vm600, %v7256, 0
      %v7317 = vsel %vm600, %v7258, 0
      %v7320 = vsel %vm600, %v7260, 0
      %v7323 = vsel %vm600, %v7262, 0
      %v7326 = vsel %vm600, %v7264, 0
      %v7329 = vsel %vm600, %v7266, 0
      %v7332 = vsel %vm600, %v7268, 0
      %v7335 = vsel %vm600, %v7270, 0
      %7337 = vmatprep.subr.bf16.mxu0 0
      %7338 = vmatpush1.bf16.msra.mxu0 0
      %7339 = vmatprep.subr.bf16.mxu0 0
      %7340 = vmatpush1.bf16.msra.mxu0 0
      %7341 = vmatprep.subr.bf16.mxu0 0
      %7342 = vmatpush1.bf16.msra.mxu0 0
      %7343 = vmatprep.subr.bf16.mxu0 0
      %7344 = vmatpush1.bf16.msra.mxu0 0
      %7345 = vmatprep.subr.bf16.mxu0 0
      %7346 = vmatpush1.bf16.msra.mxu0 0
      %7347 = vmatprep.subr.bf16.mxu0 0
      %7348 = vmatpush1.bf16.msra.mxu0 0
      %7349 = vmatprep.subr.bf16.mxu0 0
      %7350 = vmatpush1.bf16.msra.mxu0 %v7280
      %7351 = vmatprep.subr.bf16.mxu0 0
      %7352 = vmatpush1.bf16.msra.mxu0 %v7279
      %7353 = vmatprep.subr.bf16.mxu0 0
      %7354 = vmatpush2.bf16.msra.mxu0 0
      %7355 = vmatprep.subr.bf16.mxu0 0
      %7356 = vmatpush2.bf16.msra.mxu0 0
      %7357 = vmatprep.subr.bf16.mxu0 0
      %7358 = vmatpush2.bf16.msra.mxu0 0
      %7359 = vmatprep.subr.bf16.mxu0 0
      %7360 = vmatpush2.bf16.msra.mxu0 0
      %7361 = vmatprep.subr.bf16.mxu0 0
      %7362 = vmatpush2.bf16.msra.mxu0 0
      %7363 = vmatprep.subr.bf16.mxu0 0
      %7364 = vmatpush2.bf16.msra.mxu0 0
      %7365 = vmatprep.subr.bf16.mxu0 0
      %7366 = vmatpush2.bf16.msra.mxu0 0
      %7367 = vmatprep.subr.bf16.mxu0 0
      %7368 = vmatpush2.bf16.msra.mxu0 0
      %7369 = vmatprep.mubr.bf16.mxu0 0
      %7370 = vmatmul.mubr.bf16.gmra.mxu0 %v7284
      %v7371 = vpop.f32.mrf.mxu0
      %v7372 = vadd.f32 0.0, %v7371
      %v7373 = vpop.f32.mrf.mxu0
      %v7374 = vpop.f32.mrf.mxu0
      %v7375 = vadd.f32 0.0, %v7374
      %v7376 = vpop.f32.mrf.mxu0
      %7377 = vmatprep.mubr.bf16.mxu0 0
      %7378 = vmatmul.mubr.bf16.gmra.mxu0 %v7287
      %v7379 = vpop.f32.mrf.mxu0
      %v7380 = vadd.f32 0.0, %v7379
      %v7381 = vpop.f32.mrf.mxu0
      %v7382 = vpop.f32.mrf.mxu0
      %v7383 = vadd.f32 0.0, %v7382
      %v7384 = vpop.f32.mrf.mxu0
      %7385 = vmatprep.mubr.bf16.mxu0 0
      %7386 = vmatmul.mubr.bf16.gmra.mxu0 %v7290
      %v7387 = vpop.f32.mrf.mxu0
      %v7388 = vadd.f32 0.0, %v7387
      %v7389 = vpop.f32.mrf.mxu0
      %v7390 = vpop.f32.mrf.mxu0
      %v7391 = vadd.f32 0.0, %v7390
      %v7392 = vpop.f32.mrf.mxu0
      %7393 = vmatprep.mubr.bf16.mxu0 0
      %7394 = vmatmul.mubr.bf16.gmra.mxu0 %v7293
      %v7395 = vpop.f32.mrf.mxu0
      %v7396 = vadd.f32 0.0, %v7395
      %v7397 = vpop.f32.mrf.mxu0
      %v7398 = vpop.f32.mrf.mxu0
      %v7399 = vadd.f32 0.0, %v7398
      %v7400 = vpop.f32.mrf.mxu0
      %7401 = vmatprep.mubr.bf16.mxu0 0
      %7402 = vmatmul.mubr.bf16.gmra.mxu0 %v7296
      %v7403 = vpop.f32.mrf.mxu0
      %v7404 = vadd.f32 0.0, %v7403
      %v7405 = vpop.f32.mrf.mxu0
      %v7406 = vpop.f32.mrf.mxu0
      %v7407 = vadd.f32 0.0, %v7406
      %v7408 = vpop.f32.mrf.mxu0
      %7409 = vmatprep.mubr.bf16.mxu0 0
      %7410 = vmatmul.mubr.bf16.gmra.mxu0 %v7299
      %v7411 = vpop.f32.mrf.mxu0
      %v7412 = vadd.f32 0.0, %v7411
      %v7413 = vpop.f32.mrf.mxu0
      %v7414 = vpop.f32.mrf.mxu0
      %v7415 = vadd.f32 0.0, %v7414
      %v7416 = vpop.f32.mrf.mxu0
      %7417 = vmatprep.mubr.bf16.mxu0 0
      %7418 = vmatmul.mubr.bf16.gmra.mxu0 %v7302
      %v7419 = vpop.f32.mrf.mxu0
      %v7420 = vadd.f32 0.0, %v7419
      %v7421 = vpop.f32.mrf.mxu0
      %v7422 = vpop.f32.mrf.mxu0
      %v7423 = vadd.f32 0.0, %v7422
      %v7424 = vpop.f32.mrf.mxu0
      %7425 = vmatprep.mubr.bf16.mxu0 0
      %7426 = vmatmul.mubr.bf16.gmra.mxu0 %v7305
      %v7427 = vpop.f32.mrf.mxu0
      %v7428 = vadd.f32 0.0, %v7427
      %v7429 = vpop.f32.mrf.mxu0
      %v7430 = vpop.f32.mrf.mxu0
      %v7431 = vadd.f32 0.0, %v7430
      %v7432 = vpop.f32.mrf.mxu0
      %7433 = vmatprep.mubr.bf16.mxu0 0
      %7434 = vmatmul.mubr.bf16.gmra.mxu0 %v7308
      %v7435 = vpop.f32.mrf.mxu0
      %v7436 = vadd.f32 0.0, %v7435
      %v7437 = vpop.f32.mrf.mxu0
      %v7438 = vpop.f32.mrf.mxu0
      %v7439 = vadd.f32 0.0, %v7438
      %v7440 = vpop.f32.mrf.mxu0
      %7441 = vmatprep.mubr.bf16.mxu0 0
      %7442 = vmatmul.mubr.bf16.gmra.mxu0 %v7311
      %v7443 = vpop.f32.mrf.mxu0
      %v7444 = vadd.f32 0.0, %v7443
      %v7445 = vpop.f32.mrf.mxu0
      %v7446 = vpop.f32.mrf.mxu0
      %v7447 = vadd.f32 0.0, %v7446
      %v7448 = vpop.f32.mrf.mxu0
      %7449 = vmatprep.mubr.bf16.mxu0 0
      %7450 = vmatmul.mubr.bf16.gmra.mxu0 %v7314
      %v7451 = vpop.f32.mrf.mxu0
      %v7452 = vadd.f32 0.0, %v7451
      %v7453 = vpop.f32.mrf.mxu0
      %v7454 = vpop.f32.mrf.mxu0
      %v7455 = vadd.f32 0.0, %v7454
      %v7456 = vpop.f32.mrf.mxu0
      %7457 = vmatprep.mubr.bf16.mxu0 0
      %7458 = vmatmul.mubr.bf16.gmra.mxu0 %v7317
      %v7459 = vpop.f32.mrf.mxu0
      %v7460 = vadd.f32 0.0, %v7459
      %v7461 = vpop.f32.mrf.mxu0
      %v7462 = vpop.f32.mrf.mxu0
      %v7463 = vadd.f32 0.0, %v7462
      %v7464 = vpop.f32.mrf.mxu0
      %7465 = vmatprep.mubr.bf16.mxu0 0
      %7466 = vmatmul.mubr.bf16.gmra.mxu0 %v7320
      %v7467 = vpop.f32.mrf.mxu0
      %v7468 = vadd.f32 0.0, %v7467
      %v7469 = vpop.f32.mrf.mxu0
      %v7470 = vpop.f32.mrf.mxu0
      %v7471 = vadd.f32 0.0, %v7470
      %v7472 = vpop.f32.mrf.mxu0
      %7473 = vmatprep.mubr.bf16.mxu0 0
      %7474 = vmatmul.mubr.bf16.gmra.mxu0 %v7323
      %v7475 = vpop.f32.mrf.mxu0
      %v7476 = vadd.f32 0.0, %v7475
      %v7477 = vpop.f32.mrf.mxu0
      %v7478 = vpop.f32.mrf.mxu0
      %v7479 = vadd.f32 0.0, %v7478
      %v7480 = vpop.f32.mrf.mxu0
      %7481 = vmatprep.mubr.bf16.mxu0 0
      %7482 = vmatmul.mubr.bf16.gmra.mxu0 %v7326
      %v7483 = vpop.f32.mrf.mxu0
      %v7484 = vadd.f32 0.0, %v7483
      %v7485 = vpop.f32.mrf.mxu0
      %v7486 = vpop.f32.mrf.mxu0
      %v7487 = vadd.f32 0.0, %v7486
      %v7488 = vpop.f32.mrf.mxu0
      %7489 = vmatprep.mubr.bf16.mxu0 0
      %7490 = vmatmul.mubr.bf16.gmra.mxu0 %v7329
      %v7491 = vpop.f32.mrf.mxu0
      %v7492 = vadd.f32 0.0, %v7491
      %v7493 = vpop.f32.mrf.mxu0
      %v7494 = vpop.f32.mrf.mxu0
      %v7495 = vadd.f32 0.0, %v7494
      %v7496 = vpop.f32.mrf.mxu0
      %7497 = vmatprep.mubr.bf16.mxu0 0
      %7498 = vmatmul.mubr.bf16.gmra.mxu0 %v7332
      %v7499 = vpop.f32.mrf.mxu0
      %v7500 = vadd.f32 0.0, %v7499
      %v7501 = vpop.f32.mrf.mxu0
      %v7502 = vpop.f32.mrf.mxu0
      %v7503 = vadd.f32 0.0, %v7502
      %v7504 = vpop.f32.mrf.mxu0
      %7505 = vmatprep.mubr.bf16.mxu0 0
      %7506 = vmatmul.mubr.bf16.gmra.mxu0 %v7335
      %v7507 = vpop.f32.mrf.mxu0
      %v7508 = vadd.f32 0.0, %v7507
      %v7509 = vpop.f32.mrf.mxu0
      %v7510 = vpop.f32.mrf.mxu0
      %v7511 = vadd.f32 0.0, %v7510
      %v7512 = vpop.f32.mrf.mxu0
      %7513 = vdwg.mxu0
      %v7514 = vadd.f32 %v7063, %v7372
      %v7515 = vadd.f32 %v7064, %v7375
      %v7516 = vadd.f32 %v7065, %v7380
      %v7517 = vadd.f32 %v7066, %v7383
      %v7518 = vadd.f32 %v7067, %v7388
      %v7519 = vadd.f32 %v7068, %v7391
      %v7520 = vadd.f32 %v7069, %v7396
      %v7521 = vadd.f32 %v7070, %v7399
      %v7522 = vadd.f32 %v7071, %v7404
      %v7523 = vadd.f32 %v7072, %v7407
      %v7524 = vadd.f32 %v7073, %v7412
      %v7525 = vadd.f32 %v7074, %v7415
      %v7526 = vadd.f32 %v7075, %v7420
      %v7527 = vadd.f32 %v7076, %v7423
      %v7528 = vadd.f32 %v7077, %v7428
      %v7529 = vadd.f32 %v7078, %v7431
      %v7530 = vadd.f32 %v7079, %v7436
      %v7531 = vadd.f32 %v7080, %v7439
      %v7532 = vadd.f32 %v7081, %v7444
      %v7533 = vadd.f32 %v7082, %v7447
      %v7534 = vadd.f32 %v7083, %v7452
      %v7535 = vadd.f32 %v7084, %v7455
      %v7536 = vadd.f32 %v7085, %v7460
      %v7537 = vadd.f32 %v7086, %v7463
      %v7538 = vadd.f32 %v7087, %v7468
      %v7539 = vadd.f32 %v7088, %v7471
      %v7540 = vadd.f32 %v7089, %v7476
      %v7541 = vadd.f32 %v7090, %v7479
      %v7542 = vadd.f32 %v7091, %v7484
      %v7543 = vadd.f32 %v7092, %v7487
      %v7544 = vadd.f32 %v7093, %v7492
      %v7545 = vadd.f32 %v7094, %v7495
      %v7546 = vadd.f32 %v7095, %v7500
      %v7547 = vadd.f32 %v7096, %v7503
      %v7548 = vadd.f32 %v7097, %v7508
      %v7549 = vadd.f32 %v7098, %v7511
      %v7550 = vld [vmem:[#allocation2 + $0xa0] sm:$0x7]
      %s7551 = scalar_lea.vmem %s4, 112
      %v7552 = vld [vmem:[%s7551] sm:$0xf]
      %v7553 = vld [vmem:[%s7551 + $0x4] sm:$0xf]
      %v7554 = vld [vmem:[%s7551 + $0x8] sm:$0xf]
      %v7555 = vld [vmem:[%s7551 + $0xc] sm:$0xf]
      %v7557 = vunpack.c.l.b16 %v7550
      %v7558 = vpack.c.b16 %v7557, %v7557
      %v7560 = vshrl.u32 %v7215, 16
      %v7562 = vrot.slane %v7560, 2
      %v7563 = vshll.u32 %v7215, 16
      %v7565 = vrot.slane %v7563, 3
      %v7566 = vor.u32 %v7562, %v7565
      %v7568 = vshrl.u32 %v7216, 16
      %v7570 = vrot.slane %v7568, 2
      %v7571 = vshll.u32 %v7216, 16
      %v7573 = vrot.slane %v7571, 3
      %v7574 = vor.u32 %v7570, %v7573
      %v7575 = vsel %vm3079, %v7566, %v7574
      %v7577 = vshrl.u32 %v7217, 16
      %v7579 = vrot.slane %v7577, 2
      %v7580 = vshll.u32 %v7217, 16
      %v7582 = vrot.slane %v7580, 3
      %v7583 = vor.u32 %v7579, %v7582
      %v7584 = vsel %vm3079, %v7574, %v7583
      %v7586 = vshrl.u32 %v7218, 16
      %v7588 = vrot.slane %v7586, 2
      %v7589 = vshll.u32 %v7218, 16
      %v7591 = vrot.slane %v7589, 3
      %v7592 = vor.u32 %v7588, %v7591
      %v7593 = vsel %vm3079, %v7583, %v7592
      %v7595 = vshrl.u32 %v7219, 16
      %v7597 = vrot.slane %v7595, 2
      %v7598 = vshll.u32 %v7219, 16
      %v7600 = vrot.slane %v7598, 3
      %v7601 = vor.u32 %v7597, %v7600
      %v7602 = vsel %vm3079, %v7592, %v7601
      %v7604 = vshrl.u32 %v7220, 16
      %v7606 = vrot.slane %v7604, 2
      %v7607 = vshll.u32 %v7220, 16
      %v7609 = vrot.slane %v7607, 3
      %v7610 = vor.u32 %v7606, %v7609
      %v7611 = vsel %vm3079, %v7601, %v7610
      %v7613 = vshrl.u32 %v7221, 16
      %v7615 = vrot.slane %v7613, 2
      %v7616 = vshll.u32 %v7221, 16
      %v7618 = vrot.slane %v7616, 3
      %v7619 = vor.u32 %v7615, %v7618
      %v7620 = vsel %vm3079, %v7610, %v7619
      %v7622 = vshrl.u32 %v7222, 16
      %v7624 = vrot.slane %v7622, 2
      %v7625 = vshll.u32 %v7222, 16
      %v7627 = vrot.slane %v7625, 3
      %v7628 = vor.u32 %v7624, %v7627
      %v7629 = vsel %vm3079, %v7619, %v7628
      %v7631 = vshrl.u32 %v7223, 16
      %v7633 = vrot.slane %v7631, 2
      %v7634 = vshll.u32 %v7223, 16
      %v7636 = vrot.slane %v7634, 3
      %v7637 = vor.u32 %v7633, %v7636
      %v7638 = vsel %vm3079, %v7628, %v7637
      %v7640 = vshrl.u32 %v7224, 16
      %v7642 = vrot.slane %v7640, 2
      %v7643 = vshll.u32 %v7224, 16
      %v7645 = vrot.slane %v7643, 3
      %v7646 = vor.u32 %v7642, %v7645
      %v7647 = vsel %vm3079, %v7637, %v7646
      %v7649 = vshrl.u32 %v7225, 16
      %v7651 = vrot.slane %v7649, 2
      %v7652 = vshll.u32 %v7225, 16
      %v7654 = vrot.slane %v7652, 3
      %v7655 = vor.u32 %v7651, %v7654
      %v7656 = vsel %vm3079, %v7646, %v7655
      %v7658 = vshrl.u32 %v7226, 16
      %v7660 = vrot.slane %v7658, 2
      %v7661 = vshll.u32 %v7226, 16
      %v7663 = vrot.slane %v7661, 3
      %v7664 = vor.u32 %v7660, %v7663
      %v7665 = vsel %vm3079, %v7655, %v7664
      %v7667 = vshrl.u32 %v7227, 16
      %v7669 = vrot.slane %v7667, 2
      %v7670 = vshll.u32 %v7227, 16
      %v7672 = vrot.slane %v7670, 3
      %v7673 = vor.u32 %v7669, %v7672
      %v7674 = vsel %vm3079, %v7664, %v7673
      %v7676 = vshrl.u32 %v7228, 16
      %v7678 = vrot.slane %v7676, 2
      %v7679 = vshll.u32 %v7228, 16
      %v7681 = vrot.slane %v7679, 3
      %v7682 = vor.u32 %v7678, %v7681
      %v7683 = vsel %vm3079, %v7673, %v7682
      %v7685 = vshrl.u32 %v7229, 16
      %v7687 = vrot.slane %v7685, 2
      %v7688 = vshll.u32 %v7229, 16
      %v7690 = vrot.slane %v7688, 3
      %v7691 = vor.u32 %v7687, %v7690
      %v7692 = vsel %vm3079, %v7682, %v7691
      %v7694 = vshrl.u32 %v7230, 16
      %v7696 = vrot.slane %v7694, 2
      %v7697 = vshll.u32 %v7230, 16
      %v7699 = vrot.slane %v7697, 3
      %v7700 = vor.u32 %v7696, %v7699
      %v7701 = vsel %vm3079, %v7691, %v7700
      %v7703 = vshrl.u32 %v7231, 16
      %v7705 = vrot.slane %v7703, 2
      %v7706 = vshll.u32 %v7231, 16
      %v7708 = vrot.slane %v7706, 3
      %v7709 = vor.u32 %v7705, %v7708
      %v7710 = vsel %vm3079, %v7700, %v7709
      %v7712 = vshrl.u32 %v7232, 16
      %v7714 = vrot.slane %v7712, 2
      %v7715 = vshll.u32 %v7232, 16
      %v7717 = vrot.slane %v7715, 3
      %v7718 = vor.u32 %v7714, %v7717
      %v7719 = vsel %vm3079, %v7709, %v7718
      %v7721 = vshrl.u32 %v7558, 16
      %v7723 = vrot.slane %v7721, 2
      %v7724 = vshll.u32 %v7558, 16
      %v7726 = vrot.slane %v7724, 3
      %v7727 = vor.u32 %v7723, %v7726
      %v7728 = vsel %vm3079, %v7718, %v7727
      %v7733 = vunpack.c.l.b16 %v7552
      %v7734 = vunpack.c.l.b16 %v7553
      %v7735 = vunpack.c.l.b16 %v7554
      %v7736 = vunpack.c.l.b16 %v7555
      %v7737 = vpack.c.b16 %v7734, %v7733
      %v7738 = vpack.c.b16 %v7736, %v7735
      %v7742 = vsel %vm600, %v7575, 0
      %v7745 = vsel %vm600, %v7584, 0
      %v7748 = vsel %vm600, %v7593, 0
      %v7751 = vsel %vm600, %v7602, 0
      %v7754 = vsel %vm600, %v7611, 0
      %v7757 = vsel %vm600, %v7620, 0
      %v7760 = vsel %vm600, %v7629, 0
      %v7763 = vsel %vm600, %v7638, 0
      %v7766 = vsel %vm600, %v7647, 0
      %v7769 = vsel %vm600, %v7656, 0
      %v7772 = vsel %vm600, %v7665, 0
      %v7775 = vsel %vm600, %v7674, 0
      %v7778 = vsel %vm600, %v7683, 0
      %v7781 = vsel %vm600, %v7692, 0
      %v7784 = vsel %vm600, %v7701, 0
      %v7787 = vsel %vm600, %v7710, 0
      %v7790 = vsel %vm600, %v7719, 0
      %v7793 = vsel %vm600, %v7728, 0
      %7795 = vmatprep.subr.bf16.mxu0 0
      %7796 = vmatpush1.bf16.msra.mxu0 0
      %7797 = vmatprep.subr.bf16.mxu0 0
      %7798 = vmatpush1.bf16.msra.mxu0 0
      %7799 = vmatprep.subr.bf16.mxu0 0
      %7800 = vmatpush1.bf16.msra.mxu0 0
      %7801 = vmatprep.subr.bf16.mxu0 0
      %7802 = vmatpush1.bf16.msra.mxu0 0
      %7803 = vmatprep.subr.bf16.mxu0 0
      %7804 = vmatpush1.bf16.msra.mxu0 0
      %7805 = vmatprep.subr.bf16.mxu0 0
      %7806 = vmatpush1.bf16.msra.mxu0 0
      %7807 = vmatprep.subr.bf16.mxu0 0
      %7808 = vmatpush1.bf16.msra.mxu0 %v7738
      %7809 = vmatprep.subr.bf16.mxu0 0
      %7810 = vmatpush1.bf16.msra.mxu0 %v7737
      %7811 = vmatprep.subr.bf16.mxu0 0
      %7812 = vmatpush2.bf16.msra.mxu0 0
      %7813 = vmatprep.subr.bf16.mxu0 0
      %7814 = vmatpush2.bf16.msra.mxu0 0
      %7815 = vmatprep.subr.bf16.mxu0 0
      %7816 = vmatpush2.bf16.msra.mxu0 0
      %7817 = vmatprep.subr.bf16.mxu0 0
      %7818 = vmatpush2.bf16.msra.mxu0 0
      %7819 = vmatprep.subr.bf16.mxu0 0
      %7820 = vmatpush2.bf16.msra.mxu0 0
      %7821 = vmatprep.subr.bf16.mxu0 0
      %7822 = vmatpush2.bf16.msra.mxu0 0
      %7823 = vmatprep.subr.bf16.mxu0 0
      %7824 = vmatpush2.bf16.msra.mxu0 0
      %7825 = vmatprep.subr.bf16.mxu0 0
      %7826 = vmatpush2.bf16.msra.mxu0 0
      %7827 = vmatprep.mubr.bf16.mxu0 0
      %7828 = vmatmul.mubr.bf16.gmra.mxu0 %v7742
      %v7829 = vpop.f32.mrf.mxu0
      %v7830 = vadd.f32 0.0, %v7829
      %v7831 = vpop.f32.mrf.mxu0
      %v7832 = vpop.f32.mrf.mxu0
      %v7833 = vadd.f32 0.0, %v7832
      %v7834 = vpop.f32.mrf.mxu0
      %7835 = vmatprep.mubr.bf16.mxu0 0
      %7836 = vmatmul.mubr.bf16.gmra.mxu0 %v7745
      %v7837 = vpop.f32.mrf.mxu0
      %v7838 = vadd.f32 0.0, %v7837
      %v7839 = vpop.f32.mrf.mxu0
      %v7840 = vpop.f32.mrf.mxu0
      %v7841 = vadd.f32 0.0, %v7840
      %v7842 = vpop.f32.mrf.mxu0
      %7843 = vmatprep.mubr.bf16.mxu0 0
      %7844 = vmatmul.mubr.bf16.gmra.mxu0 %v7748
      %v7845 = vpop.f32.mrf.mxu0
      %v7846 = vadd.f32 0.0, %v7845
      %v7847 = vpop.f32.mrf.mxu0
      %v7848 = vpop.f32.mrf.mxu0
      %v7849 = vadd.f32 0.0, %v7848
      %v7850 = vpop.f32.mrf.mxu0
      %7851 = vmatprep.mubr.bf16.mxu0 0
      %7852 = vmatmul.mubr.bf16.gmra.mxu0 %v7751
      %v7853 = vpop.f32.mrf.mxu0
      %v7854 = vadd.f32 0.0, %v7853
      %v7855 = vpop.f32.mrf.mxu0
      %v7856 = vpop.f32.mrf.mxu0
      %v7857 = vadd.f32 0.0, %v7856
      %v7858 = vpop.f32.mrf.mxu0
      %7859 = vmatprep.mubr.bf16.mxu0 0
      %7860 = vmatmul.mubr.bf16.gmra.mxu0 %v7754
      %v7861 = vpop.f32.mrf.mxu0
      %v7862 = vadd.f32 0.0, %v7861
      %v7863 = vpop.f32.mrf.mxu0
      %v7864 = vpop.f32.mrf.mxu0
      %v7865 = vadd.f32 0.0, %v7864
      %v7866 = vpop.f32.mrf.mxu0
      %7867 = vmatprep.mubr.bf16.mxu0 0
      %7868 = vmatmul.mubr.bf16.gmra.mxu0 %v7757
      %v7869 = vpop.f32.mrf.mxu0
      %v7870 = vadd.f32 0.0, %v7869
      %v7871 = vpop.f32.mrf.mxu0
      %v7872 = vpop.f32.mrf.mxu0
      %v7873 = vadd.f32 0.0, %v7872
      %v7874 = vpop.f32.mrf.mxu0
      %7875 = vmatprep.mubr.bf16.mxu0 0
      %7876 = vmatmul.mubr.bf16.gmra.mxu0 %v7760
      %v7877 = vpop.f32.mrf.mxu0
      %v7878 = vadd.f32 0.0, %v7877
      %v7879 = vpop.f32.mrf.mxu0
      %v7880 = vpop.f32.mrf.mxu0
      %v7881 = vadd.f32 0.0, %v7880
      %v7882 = vpop.f32.mrf.mxu0
      %7883 = vmatprep.mubr.bf16.mxu0 0
      %7884 = vmatmul.mubr.bf16.gmra.mxu0 %v7763
      %v7885 = vpop.f32.mrf.mxu0
      %v7886 = vadd.f32 0.0, %v7885
      %v7887 = vpop.f32.mrf.mxu0
      %v7888 = vpop.f32.mrf.mxu0
      %v7889 = vadd.f32 0.0, %v7888
      %v7890 = vpop.f32.mrf.mxu0
      %7891 = vmatprep.mubr.bf16.mxu0 0
      %7892 = vmatmul.mubr.bf16.gmra.mxu0 %v7766
      %v7893 = vpop.f32.mrf.mxu0
      %v7894 = vadd.f32 0.0, %v7893
      %v7895 = vpop.f32.mrf.mxu0
      %v7896 = vpop.f32.mrf.mxu0
      %v7897 = vadd.f32 0.0, %v7896
      %v7898 = vpop.f32.mrf.mxu0
      %7899 = vmatprep.mubr.bf16.mxu0 0
      %7900 = vmatmul.mubr.bf16.gmra.mxu0 %v7769
      %v7901 = vpop.f32.mrf.mxu0
      %v7902 = vadd.f32 0.0, %v7901
      %v7903 = vpop.f32.mrf.mxu0
      %v7904 = vpop.f32.mrf.mxu0
      %v7905 = vadd.f32 0.0, %v7904
      %v7906 = vpop.f32.mrf.mxu0
      %7907 = vmatprep.mubr.bf16.mxu0 0
      %7908 = vmatmul.mubr.bf16.gmra.mxu0 %v7772
      %v7909 = vpop.f32.mrf.mxu0
      %v7910 = vadd.f32 0.0, %v7909
      %v7911 = vpop.f32.mrf.mxu0
      %v7912 = vpop.f32.mrf.mxu0
      %v7913 = vadd.f32 0.0, %v7912
      %v7914 = vpop.f32.mrf.mxu0
      %7915 = vmatprep.mubr.bf16.mxu0 0
      %7916 = vmatmul.mubr.bf16.gmra.mxu0 %v7775
      %v7917 = vpop.f32.mrf.mxu0
      %v7918 = vadd.f32 0.0, %v7917
      %v7919 = vpop.f32.mrf.mxu0
      %v7920 = vpop.f32.mrf.mxu0
      %v7921 = vadd.f32 0.0, %v7920
      %v7922 = vpop.f32.mrf.mxu0
      %7923 = vmatprep.mubr.bf16.mxu0 0
      %7924 = vmatmul.mubr.bf16.gmra.mxu0 %v7778
      %v7925 = vpop.f32.mrf.mxu0
      %v7926 = vadd.f32 0.0, %v7925
      %v7927 = vpop.f32.mrf.mxu0
      %v7928 = vpop.f32.mrf.mxu0
      %v7929 = vadd.f32 0.0, %v7928
      %v7930 = vpop.f32.mrf.mxu0
      %7931 = vmatprep.mubr.bf16.mxu0 0
      %7932 = vmatmul.mubr.bf16.gmra.mxu0 %v7781
      %v7933 = vpop.f32.mrf.mxu0
      %v7934 = vadd.f32 0.0, %v7933
      %v7935 = vpop.f32.mrf.mxu0
      %v7936 = vpop.f32.mrf.mxu0
      %v7937 = vadd.f32 0.0, %v7936
      %v7938 = vpop.f32.mrf.mxu0
      %7939 = vmatprep.mubr.bf16.mxu0 0
      %7940 = vmatmul.mubr.bf16.gmra.mxu0 %v7784
      %v7941 = vpop.f32.mrf.mxu0
      %v7942 = vadd.f32 0.0, %v7941
      %v7943 = vpop.f32.mrf.mxu0
      %v7944 = vpop.f32.mrf.mxu0
      %v7945 = vadd.f32 0.0, %v7944
      %v7946 = vpop.f32.mrf.mxu0
      %7947 = vmatprep.mubr.bf16.mxu0 0
      %7948 = vmatmul.mubr.bf16.gmra.mxu0 %v7787
      %v7949 = vpop.f32.mrf.mxu0
      %v7950 = vadd.f32 0.0, %v7949
      %v7951 = vpop.f32.mrf.mxu0
      %v7952 = vpop.f32.mrf.mxu0
      %v7953 = vadd.f32 0.0, %v7952
      %v7954 = vpop.f32.mrf.mxu0
      %7955 = vmatprep.mubr.bf16.mxu0 0
      %7956 = vmatmul.mubr.bf16.gmra.mxu0 %v7790
      %v7957 = vpop.f32.mrf.mxu0
      %v7958 = vadd.f32 0.0, %v7957
      %v7959 = vpop.f32.mrf.mxu0
      %v7960 = vpop.f32.mrf.mxu0
      %v7961 = vadd.f32 0.0, %v7960
      %v7962 = vpop.f32.mrf.mxu0
      %7963 = vmatprep.mubr.bf16.mxu0 0
      %7964 = vmatmul.mubr.bf16.gmra.mxu0 %v7793
      %v7965 = vpop.f32.mrf.mxu0
      %v7966 = vadd.f32 0.0, %v7965
      %v7967 = vpop.f32.mrf.mxu0
      %v7968 = vpop.f32.mrf.mxu0
      %v7969 = vadd.f32 0.0, %v7968
      %v7970 = vpop.f32.mrf.mxu0
      %7971 = vdwg.mxu0
      %v7972 = vadd.f32 %v7514, %v7830
      %v7973 = vadd.f32 %v7515, %v7833
      %v7974 = vadd.f32 %v7516, %v7838
      %v7975 = vadd.f32 %v7517, %v7841
      %v7976 = vadd.f32 %v7518, %v7846
      %v7977 = vadd.f32 %v7519, %v7849
      %v7978 = vadd.f32 %v7520, %v7854
      %v7979 = vadd.f32 %v7521, %v7857
      %v7980 = vadd.f32 %v7522, %v7862
      %v7981 = vadd.f32 %v7523, %v7865
      %v7982 = vadd.f32 %v7524, %v7870
      %v7983 = vadd.f32 %v7525, %v7873
      %v7984 = vadd.f32 %v7526, %v7878
      %v7985 = vadd.f32 %v7527, %v7881
      %v7986 = vadd.f32 %v7528, %v7886
      %v7987 = vadd.f32 %v7529, %v7889
      %v7988 = vadd.f32 %v7530, %v7894
      %v7989 = vadd.f32 %v7531, %v7897
      %v7990 = vadd.f32 %v7532, %v7902
      %v7991 = vadd.f32 %v7533, %v7905
      %v7992 = vadd.f32 %v7534, %v7910
      %v7993 = vadd.f32 %v7535, %v7913
      %v7994 = vadd.f32 %v7536, %v7918
      %v7995 = vadd.f32 %v7537, %v7921
      %v7996 = vadd.f32 %v7538, %v7926
      %v7997 = vadd.f32 %v7539, %v7929
      %v7998 = vadd.f32 %v7540, %v7934
      %v7999 = vadd.f32 %v7541, %v7937
      %v8000 = vadd.f32 %v7542, %v7942
      %v8001 = vadd.f32 %v7543, %v7945
      %v8002 = vadd.f32 %v7544, %v7950
      %v8003 = vadd.f32 %v7545, %v7953
      %v8004 = vadd.f32 %v7546, %v7958
      %v8005 = vadd.f32 %v7547, %v7961
      %v8006 = vadd.f32 %v7548, %v7966
      %v8007 = vadd.f32 %v7549, %v7969
      %v8008 = vld [vmem:[#allocation2 + $0x10] sm:$0x8]
      %s8009 = scalar_lea.vmem %s4, 128
      %v8010 = vld [vmem:[%s8009] sm:$0xf]
      %v8011 = vld [vmem:[%s8009 + $0x4] sm:$0xf]
      %v8012 = vld [vmem:[%s8009 + $0x8] sm:$0xf]
      %v8013 = vld [vmem:[%s8009 + $0xc] sm:$0xf]
      %v8015 = vunpack.c.l.b16 %v8008
      %v8016 = vpack.c.b16 %v7179, %v8015
      %v8017 = vrot.slane %v8016, 3
      %v8018 = vrot.slane %v7216, 3
      %v8019 = vsel %vm3538, %v8017, %v8018
      %v8020 = vrot.slane %v7217, 3
      %v8021 = vsel %vm3538, %v8018, %v8020
      %v8022 = vrot.slane %v7218, 3
      %v8023 = vsel %vm3538, %v8020, %v8022
      %v8024 = vrot.slane %v7219, 3
      %v8025 = vsel %vm3538, %v8022, %v8024
      %v8026 = vrot.slane %v7220, 3
      %v8027 = vsel %vm3538, %v8024, %v8026
      %v8028 = vrot.slane %v7221, 3
      %v8029 = vsel %vm3538, %v8026, %v8028
      %v8030 = vrot.slane %v7222, 3
      %v8031 = vsel %vm3538, %v8028, %v8030
      %v8032 = vrot.slane %v7223, 3
      %v8033 = vsel %vm3538, %v8030, %v8032
      %v8034 = vrot.slane %v7224, 3
      %v8035 = vsel %vm3538, %v8032, %v8034
      %v8036 = vrot.slane %v7225, 3
      %v8037 = vsel %vm3538, %v8034, %v8036
      %v8038 = vrot.slane %v7226, 3
      %v8039 = vsel %vm3538, %v8036, %v8038
      %v8040 = vrot.slane %v7227, 3
      %v8041 = vsel %vm3538, %v8038, %v8040
      %v8042 = vrot.slane %v7228, 3
      %v8043 = vsel %vm3538, %v8040, %v8042
      %v8044 = vrot.slane %v7229, 3
      %v8045 = vsel %vm3538, %v8042, %v8044
      %v8046 = vrot.slane %v7230, 3
      %v8047 = vsel %vm3538, %v8044, %v8046
      %v8048 = vrot.slane %v7231, 3
      %v8049 = vsel %vm3538, %v8046, %v8048
      %v8050 = vrot.slane %v7232, 3
      %v8051 = vsel %vm3538, %v8048, %v8050
      %v8052 = vrot.slane %v7558, 3
      %v8053 = vsel %vm3538, %v8050, %v8052
      %v8058 = vunpack.c.l.b16 %v8010
      %v8059 = vunpack.c.l.b16 %v8011
      %v8060 = vunpack.c.l.b16 %v8012
      %v8061 = vunpack.c.l.b16 %v8013
      %v8062 = vpack.c.b16 %v8059, %v8058
      %v8063 = vpack.c.b16 %v8061, %v8060
      %v8067 = vsel %vm600, %v8019, 0
      %v8070 = vsel %vm600, %v8021, 0
      %v8073 = vsel %vm600, %v8023, 0
      %v8076 = vsel %vm600, %v8025, 0
      %v8079 = vsel %vm600, %v8027, 0
      %v8082 = vsel %vm600, %v8029, 0
      %v8085 = vsel %vm600, %v8031, 0
      %v8088 = vsel %vm600, %v8033, 0
      %v8091 = vsel %vm600, %v8035, 0
      %v8094 = vsel %vm600, %v8037, 0
      %v8097 = vsel %vm600, %v8039, 0
      %v8100 = vsel %vm600, %v8041, 0
      %v8103 = vsel %vm600, %v8043, 0
      %v8106 = vsel %vm600, %v8045, 0
      %v8109 = vsel %vm600, %v8047, 0
      %v8112 = vsel %vm600, %v8049, 0
      %v8115 = vsel %vm600, %v8051, 0
      %v8118 = vsel %vm600, %v8053, 0
      %8120 = vmatprep.subr.bf16.mxu0 0
      %8121 = vmatpush1.bf16.msra.mxu0 0
      %8122 = vmatprep.subr.bf16.mxu0 0
      %8123 = vmatpush1.bf16.msra.mxu0 0
      %8124 = vmatprep.subr.bf16.mxu0 0
      %8125 = vmatpush1.bf16.msra.mxu0 0
      %8126 = vmatprep.subr.bf16.mxu0 0
      %8127 = vmatpush1.bf16.msra.mxu0 0
      %8128 = vmatprep.subr.bf16.mxu0 0
      %8129 = vmatpush1.bf16.msra.mxu0 0
      %8130 = vmatprep.subr.bf16.mxu0 0
      %8131 = vmatpush1.bf16.msra.mxu0 0
      %8132 = vmatprep.subr.bf16.mxu0 0
      %8133 = vmatpush1.bf16.msra.mxu0 %v8063
      %8134 = vmatprep.subr.bf16.mxu0 0
      %8135 = vmatpush1.bf16.msra.mxu0 %v8062
      %8136 = vmatprep.subr.bf16.mxu0 0
      %8137 = vmatpush2.bf16.msra.mxu0 0
      %8138 = vmatprep.subr.bf16.mxu0 0
      %8139 = vmatpush2.bf16.msra.mxu0 0
      %8140 = vmatprep.subr.bf16.mxu0 0
      %8141 = vmatpush2.bf16.msra.mxu0 0
      %8142 = vmatprep.subr.bf16.mxu0 0
      %8143 = vmatpush2.bf16.msra.mxu0 0
      %8144 = vmatprep.subr.bf16.mxu0 0
      %8145 = vmatpush2.bf16.msra.mxu0 0
      %8146 = vmatprep.subr.bf16.mxu0 0
      %8147 = vmatpush2.bf16.msra.mxu0 0
      %8148 = vmatprep.subr.bf16.mxu0 0
      %8149 = vmatpush2.bf16.msra.mxu0 0
      %8150 = vmatprep.subr.bf16.mxu0 0
      %8151 = vmatpush2.bf16.msra.mxu0 0
      %8152 = vmatprep.mubr.bf16.mxu0 0
      %8153 = vmatmul.mubr.bf16.gmra.mxu0 %v8067
      %v8154 = vpop.f32.mrf.mxu0
      %v8155 = vadd.f32 0.0, %v8154
      %v8156 = vpop.f32.mrf.mxu0
      %v8157 = vpop.f32.mrf.mxu0
      %v8158 = vadd.f32 0.0, %v8157
      %v8159 = vpop.f32.mrf.mxu0
      %8160 = vmatprep.mubr.bf16.mxu0 0
      %8161 = vmatmul.mubr.bf16.gmra.mxu0 %v8070
      %v8162 = vpop.f32.mrf.mxu0
      %v8163 = vadd.f32 0.0, %v8162
      %v8164 = vpop.f32.mrf.mxu0
      %v8165 = vpop.f32.mrf.mxu0
      %v8166 = vadd.f32 0.0, %v8165
      %v8167 = vpop.f32.mrf.mxu0
      %8168 = vmatprep.mubr.bf16.mxu0 0
      %8169 = vmatmul.mubr.bf16.gmra.mxu0 %v8073
      %v8170 = vpop.f32.mrf.mxu0
      %v8171 = vadd.f32 0.0, %v8170
      %v8172 = vpop.f32.mrf.mxu0
      %v8173 = vpop.f32.mrf.mxu0
      %v8174 = vadd.f32 0.0, %v8173
      %v8175 = vpop.f32.mrf.mxu0
      %8176 = vmatprep.mubr.bf16.mxu0 0
      %8177 = vmatmul.mubr.bf16.gmra.mxu0 %v8076
      %v8178 = vpop.f32.mrf.mxu0
      %v8179 = vadd.f32 0.0, %v8178
      %v8180 = vpop.f32.mrf.mxu0
      %v8181 = vpop.f32.mrf.mxu0
      %v8182 = vadd.f32 0.0, %v8181
      %v8183 = vpop.f32.mrf.mxu0
      %8184 = vmatprep.mubr.bf16.mxu0 0
      %8185 = vmatmul.mubr.bf16.gmra.mxu0 %v8079
      %v8186 = vpop.f32.mrf.mxu0
      %v8187 = vadd.f32 0.0, %v8186
      %v8188 = vpop.f32.mrf.mxu0
      %v8189 = vpop.f32.mrf.mxu0
      %v8190 = vadd.f32 0.0, %v8189
      %v8191 = vpop.f32.mrf.mxu0
      %8192 = vmatprep.mubr.bf16.mxu0 0
      %8193 = vmatmul.mubr.bf16.gmra.mxu0 %v8082
      %v8194 = vpop.f32.mrf.mxu0
      %v8195 = vadd.f32 0.0, %v8194
      %v8196 = vpop.f32.mrf.mxu0
      %v8197 = vpop.f32.mrf.mxu0
      %v8198 = vadd.f32 0.0, %v8197
      %v8199 = vpop.f32.mrf.mxu0
      %8200 = vmatprep.mubr.bf16.mxu0 0
      %8201 = vmatmul.mubr.bf16.gmra.mxu0 %v8085
      %v8202 = vpop.f32.mrf.mxu0
      %v8203 = vadd.f32 0.0, %v8202
      %v8204 = vpop.f32.mrf.mxu0
      %v8205 = vpop.f32.mrf.mxu0
      %v8206 = vadd.f32 0.0, %v8205
      %v8207 = vpop.f32.mrf.mxu0
      %8208 = vmatprep.mubr.bf16.mxu0 0
      %8209 = vmatmul.mubr.bf16.gmra.mxu0 %v8088
      %v8210 = vpop.f32.mrf.mxu0
      %v8211 = vadd.f32 0.0, %v8210
      %v8212 = vpop.f32.mrf.mxu0
      %v8213 = vpop.f32.mrf.mxu0
      %v8214 = vadd.f32 0.0, %v8213
      %v8215 = vpop.f32.mrf.mxu0
      %8216 = vmatprep.mubr.bf16.mxu0 0
      %8217 = vmatmul.mubr.bf16.gmra.mxu0 %v8091
      %v8218 = vpop.f32.mrf.mxu0
      %v8219 = vadd.f32 0.0, %v8218
      %v8220 = vpop.f32.mrf.mxu0
      %v8221 = vpop.f32.mrf.mxu0
      %v8222 = vadd.f32 0.0, %v8221
      %v8223 = vpop.f32.mrf.mxu0
      %8224 = vmatprep.mubr.bf16.mxu0 0
      %8225 = vmatmul.mubr.bf16.gmra.mxu0 %v8094
      %v8226 = vpop.f32.mrf.mxu0
      %v8227 = vadd.f32 0.0, %v8226
      %v8228 = vpop.f32.mrf.mxu0
      %v8229 = vpop.f32.mrf.mxu0
      %v8230 = vadd.f32 0.0, %v8229
      %v8231 = vpop.f32.mrf.mxu0
      %8232 = vmatprep.mubr.bf16.mxu0 0
      %8233 = vmatmul.mubr.bf16.gmra.mxu0 %v8097
      %v8234 = vpop.f32.mrf.mxu0
      %v8235 = vadd.f32 0.0, %v8234
      %v8236 = vpop.f32.mrf.mxu0
      %v8237 = vpop.f32.mrf.mxu0
      %v8238 = vadd.f32 0.0, %v8237
      %v8239 = vpop.f32.mrf.mxu0
      %8240 = vmatprep.mubr.bf16.mxu0 0
      %8241 = vmatmul.mubr.bf16.gmra.mxu0 %v8100
      %v8242 = vpop.f32.mrf.mxu0
      %v8243 = vadd.f32 0.0, %v8242
      %v8244 = vpop.f32.mrf.mxu0
      %v8245 = vpop.f32.mrf.mxu0
      %v8246 = vadd.f32 0.0, %v8245
      %v8247 = vpop.f32.mrf.mxu0
      %8248 = vmatprep.mubr.bf16.mxu0 0
      %8249 = vmatmul.mubr.bf16.gmra.mxu0 %v8103
      %v8250 = vpop.f32.mrf.mxu0
      %v8251 = vadd.f32 0.0, %v8250
      %v8252 = vpop.f32.mrf.mxu0
      %v8253 = vpop.f32.mrf.mxu0
      %v8254 = vadd.f32 0.0, %v8253
      %v8255 = vpop.f32.mrf.mxu0
      %8256 = vmatprep.mubr.bf16.mxu0 0
      %8257 = vmatmul.mubr.bf16.gmra.mxu0 %v8106
      %v8258 = vpop.f32.mrf.mxu0
      %v8259 = vadd.f32 0.0, %v8258
      %v8260 = vpop.f32.mrf.mxu0
      %v8261 = vpop.f32.mrf.mxu0
      %v8262 = vadd.f32 0.0, %v8261
      %v8263 = vpop.f32.mrf.mxu0
      %8264 = vmatprep.mubr.bf16.mxu0 0
      %8265 = vmatmul.mubr.bf16.gmra.mxu0 %v8109
      %v8266 = vpop.f32.mrf.mxu0
      %v8267 = vadd.f32 0.0, %v8266
      %v8268 = vpop.f32.mrf.mxu0
      %v8269 = vpop.f32.mrf.mxu0
      %v8270 = vadd.f32 0.0, %v8269
      %v8271 = vpop.f32.mrf.mxu0
      %8272 = vmatprep.mubr.bf16.mxu0 0
      %8273 = vmatmul.mubr.bf16.gmra.mxu0 %v8112
      %v8274 = vpop.f32.mrf.mxu0
      %v8275 = vadd.f32 0.0, %v8274
      %v8276 = vpop.f32.mrf.mxu0
      %v8277 = vpop.f32.mrf.mxu0
      %v8278 = vadd.f32 0.0, %v8277
      %v8279 = vpop.f32.mrf.mxu0
      %8280 = vmatprep.mubr.bf16.mxu0 0
      %8281 = vmatmul.mubr.bf16.gmra.mxu0 %v8115
      %v8282 = vpop.f32.mrf.mxu0
      %v8283 = vadd.f32 0.0, %v8282
      %v8284 = vpop.f32.mrf.mxu0
      %v8285 = vpop.f32.mrf.mxu0
      %v8286 = vadd.f32 0.0, %v8285
      %v8287 = vpop.f32.mrf.mxu0
      %8288 = vmatprep.mubr.bf16.mxu0 0
      %8289 = vmatmul.mubr.bf16.gmra.mxu0 %v8118
      %v8290 = vpop.f32.mrf.mxu0
      %v8291 = vadd.f32 0.0, %v8290
      %v8292 = vpop.f32.mrf.mxu0
      %v8293 = vpop.f32.mrf.mxu0
      %v8294 = vadd.f32 0.0, %v8293
      %v8295 = vpop.f32.mrf.mxu0
      %8296 = vdwg.mxu0
      %v8297 = vadd.f32 %v7972, %v8155
      %v8298 = vadd.f32 %v7973, %v8158
      %v8299 = vadd.f32 %v7974, %v8163
      %v8300 = vadd.f32 %v7975, %v8166
      %v8301 = vadd.f32 %v7976, %v8171
      %v8302 = vadd.f32 %v7977, %v8174
      %v8303 = vadd.f32 %v7978, %v8179
      %v8304 = vadd.f32 %v7979, %v8182
      %v8305 = vadd.f32 %v7980, %v8187
      %v8306 = vadd.f32 %v7981, %v8190
      %v8307 = vadd.f32 %v7982, %v8195
      %v8308 = vadd.f32 %v7983, %v8198
      %v8309 = vadd.f32 %v7984, %v8203
      %v8310 = vadd.f32 %v7985, %v8206
      %v8311 = vadd.f32 %v7986, %v8211
      %v8312 = vadd.f32 %v7987, %v8214
      %v8313 = vadd.f32 %v7988, %v8219
      %v8314 = vadd.f32 %v7989, %v8222
      %v8315 = vadd.f32 %v7990, %v8227
      %v8316 = vadd.f32 %v7991, %v8230
      %v8317 = vadd.f32 %v7992, %v8235
      %v8318 = vadd.f32 %v7993, %v8238
      %v8319 = vadd.f32 %v7994, %v8243
      %v8320 = vadd.f32 %v7995, %v8246
      %v8321 = vadd.f32 %v7996, %v8251
      %v8322 = vadd.f32 %v7997, %v8254
      %v8323 = vadd.f32 %v7998, %v8259
      %v8324 = vadd.f32 %v7999, %v8262
      %v8325 = vadd.f32 %v8000, %v8267
      %v8326 = vadd.f32 %v8001, %v8270
      %v8327 = vadd.f32 %v8002, %v8275
      %v8328 = vadd.f32 %v8003, %v8278
      %v8329 = vadd.f32 %v8004, %v8283
      %v8330 = vadd.f32 %v8005, %v8286
      %v8331 = vadd.f32 %v8006, %v8291
      %v8332 = vadd.f32 %v8007, %v8294
      %8333 = vst.msk [vmem:[#allocation3] sm:$0xff] %vm600, %v8297
      %8334 = vst.msk [vmem:[#allocation3 + $0x8] sm:$0xff] %vm600, %v8298
      %8335 = vst.msk [vmem:[#allocation3 + $0x10] sm:$0xff] %vm600, %v8299
      %8336 = vst.msk [vmem:[#allocation3 + $0x18] sm:$0xff] %vm600, %v8300
      %8337 = vst.msk [vmem:[#allocation3 + $0x20] sm:$0xff] %vm600, %v8301
      %8338 = vst.msk [vmem:[#allocation3 + $0x28] sm:$0xff] %vm600, %v8302
      %8339 = vst.msk [vmem:[#allocation3 + $0x30] sm:$0xff] %vm600, %v8303
      %8340 = vst.msk [vmem:[#allocation3 + $0x38] sm:$0xff] %vm600, %v8304
      %8341 = vst.msk [vmem:[#allocation3 + $0x40] sm:$0xff] %vm600, %v8305
      %8342 = vst.msk [vmem:[#allocation3 + $0x48] sm:$0xff] %vm600, %v8306
      %8343 = vst.msk [vmem:[#allocation3 + $0x50] sm:$0xff] %vm600, %v8307
      %8344 = vst.msk [vmem:[#allocation3 + $0x58] sm:$0xff] %vm600, %v8308
      %8345 = vst.msk [vmem:[#allocation3 + $0x60] sm:$0xff] %vm600, %v8309
      %8346 = vst.msk [vmem:[#allocation3 + $0x68] sm:$0xff] %vm600, %v8310
      %8347 = vst.msk [vmem:[#allocation3 + $0x70] sm:$0xff] %vm600, %v8311
      %8348 = vst.msk [vmem:[#allocation3 + $0x78] sm:$0xff] %vm600, %v8312
      %8349 = vst.msk [vmem:[#allocation3 + $0x80] sm:$0xff] %vm600, %v8313
      %8350 = vst.msk [vmem:[#allocation3 + $0x88] sm:$0xff] %vm600, %v8314
      %8351 = vst.msk [vmem:[#allocation3 + $0x90] sm:$0xff] %vm600, %v8315
      %8352 = vst.msk [vmem:[#allocation3 + $0x98] sm:$0xff] %vm600, %v8316
      %8353 = vst.msk [vmem:[#allocation3 + $0xa0] sm:$0xff] %vm600, %v8317
      %8354 = vst.msk [vmem:[#allocation3 + $0xa8] sm:$0xff] %vm600, %v8318
      %8355 = vst.msk [vmem:[#allocation3 + $0xb0] sm:$0xff] %vm600, %v8319
      %8356 = vst.msk [vmem:[#allocation3 + $0xb8] sm:$0xff] %vm600, %v8320
      %8357 = vst.msk [vmem:[#allocation3 + $0xc0] sm:$0xff] %vm600, %v8321
      %8358 = vst.msk [vmem:[#allocation3 + $0xc8] sm:$0xff] %vm600, %v8322
      %8359 = vst.msk [vmem:[#allocation3 + $0xd0] sm:$0xff] %vm600, %v8323
      %8360 = vst.msk [vmem:[#allocation3 + $0xd8] sm:$0xff] %vm600, %v8324
      %8361 = vst.msk [vmem:[#allocation3 + $0xe0] sm:$0xff] %vm600, %v8325
      %8362 = vst.msk [vmem:[#allocation3 + $0xe8] sm:$0xff] %vm600, %v8326
      %8363 = vst.msk [vmem:[#allocation3 + $0xf0] sm:$0xff] %vm600, %v8327
      %8364 = vst.msk [vmem:[#allocation3 + $0xf8] sm:$0xff] %vm600, %v8328
      %8365 = vst.msk [vmem:[#allocation3 + $0x100] sm:$0xff] %vm600, %v8329
      %8366 = vst.msk [vmem:[#allocation3 + $0x108] sm:$0xff] %vm600, %v8330
      %8367 = vst.msk [vmem:[#allocation3 + $0x110] sm:$0xff] %vm600, %v8331
      %8368 = vst.msk [vmem:[#allocation3 + $0x118] sm:$0xff] %vm600, %v8332
      %v8369 = vld [vmem:[#allocation3] sm:$0xff]
      %v8370 = vld [vmem:[#allocation3 + $0x8] sm:$0xff]
      %v8371 = vld [vmem:[#allocation3 + $0x12] sm:$0xff]
      %v8372 = vld [vmem:[#allocation3 + $0x1a] sm:$0xff]
      %v8373 = vld [vmem:[#allocation3 + $0x24] sm:$0xff]
      %v8374 = vld [vmem:[#allocation3 + $0x2c] sm:$0xff]
      %v8375 = vld [vmem:[#allocation3 + $0x36] sm:$0xff]
      %v8376 = vld [vmem:[#allocation3 + $0x3e] sm:$0xff]
      %v8377 = vld [vmem:[#allocation3 + $0x48] sm:$0xff]
      %v8378 = vld [vmem:[#allocation3 + $0x50] sm:$0xff]
      %v8379 = vld [vmem:[#allocation3 + $0x5a] sm:$0xff]
      %v8380 = vld [vmem:[#allocation3 + $0x62] sm:$0xff]
      %v8381 = vld [vmem:[#allocation3 + $0x6c] sm:$0xff]
      %v8382 = vld [vmem:[#allocation3 + $0x74] sm:$0xff]
      %v8383 = vld [vmem:[#allocation3 + $0x7e] sm:$0xff]
      %v8384 = vld [vmem:[#allocation3 + $0x86] sm:$0xff]
      %v8385 = vld [vmem:[#allocation3 + $0x90] sm:$0xff]
      %v8386 = vld [vmem:[#allocation3 + $0x98] sm:$0xff]
      %v8387 = vld [vmem:[#allocation3 + $0xa2] sm:$0xff]
      %v8388 = vld [vmem:[#allocation3 + $0xaa] sm:$0xff]
      %v8389 = vld [vmem:[#allocation3 + $0xb4] sm:$0xff]
      %v8390 = vld [vmem:[#allocation3 + $0xbc] sm:$0xff]
      %v8391 = vld [vmem:[#allocation3 + $0xc6] sm:$0xff]
      %v8392 = vld [vmem:[#allocation3 + $0xce] sm:$0xff]
      %v8393 = vld [vmem:[#allocation3 + $0xd8] sm:$0xff]
      %v8394 = vld [vmem:[#allocation3 + $0xe0] sm:$0xff]
      %v8395 = vld [vmem:[#allocation3 + $0xea] sm:$0xff]
      %v8396 = vld [vmem:[#allocation3 + $0xf2] sm:$0xff]
      %v8397 = vld [vmem:[#allocation3 + $0xfc] sm:$0xff]
      %v8398 = vld [vmem:[#allocation3 + $0x104] sm:$0xff]
      %v8399 = vld [vmem:[#allocation3 + $0x10e] sm:$0xff]
      %v8400 = vld [vmem:[#allocation3 + $0x116] sm:$0xff]
      %v8401 = vld [vmem:[%s5] sm:$0x1]
      %v8403 = vlaneseq
      %v8404 = vshrl.u32 %v8403, 7
      %v8405 = vsub.s32 0, %v8404
      %v8406 = vrot.slane %v8401, %v8405
      %v8408 = vadd.f32 %v8369, %v8406
      %v8409 = vadd.f32 %v8370, %v8406
      %v8410 = vadd.f32 %v8371, %v8406
      %v8411 = vadd.f32 %v8372, %v8406
      %v8412 = vadd.f32 %v8373, %v8406
      %v8413 = vadd.f32 %v8374, %v8406
      %v8414 = vadd.f32 %v8375, %v8406
      %v8415 = vadd.f32 %v8376, %v8406
      %v8416 = vadd.f32 %v8377, %v8406
      %v8417 = vadd.f32 %v8378, %v8406
      %v8418 = vadd.f32 %v8379, %v8406
      %v8419 = vadd.f32 %v8380, %v8406
      %v8420 = vadd.f32 %v8381, %v8406
      %v8421 = vadd.f32 %v8382, %v8406
      %v8422 = vadd.f32 %v8383, %v8406
      %v8423 = vadd.f32 %v8384, %v8406
      %v8424 = vadd.f32 %v8385, %v8406
      %v8425 = vadd.f32 %v8386, %v8406
      %v8426 = vadd.f32 %v8387, %v8406
      %v8427 = vadd.f32 %v8388, %v8406
      %v8428 = vadd.f32 %v8389, %v8406
      %v8429 = vadd.f32 %v8390, %v8406
      %v8430 = vadd.f32 %v8391, %v8406
      %v8431 = vadd.f32 %v8392, %v8406
      %v8432 = vadd.f32 %v8393, %v8406
      %v8433 = vadd.f32 %v8394, %v8406
      %v8434 = vadd.f32 %v8395, %v8406
      %v8435 = vadd.f32 %v8396, %v8406
      %v8436 = vadd.f32 %v8397, %v8406
      %v8437 = vadd.f32 %v8398, %v8406
      %v8438 = vadd.f32 %v8399, %v8406
      %v8439 = vadd.f32 %v8400, %v8406
      %v8440 = vsel %vm600, %v8408, 0.0
      %v8441 = vsel %vm600, %v8409, 0.0
      %v8442 = vsel %vm600, %v8410, 0.0
      %v8443 = vsel %vm600, %v8411, 0.0
      %v8444 = vsel %vm600, %v8412, 0.0
      %v8445 = vsel %vm600, %v8413, 0.0
      %v8446 = vsel %vm600, %v8414, 0.0
      %v8447 = vsel %vm600, %v8415, 0.0
      %v8448 = vsel %vm600, %v8416, 0.0
      %v8449 = vsel %vm600, %v8417, 0.0
      %v8450 = vsel %vm600, %v8418, 0.0
      %v8451 = vsel %vm600, %v8419, 0.0
      %v8452 = vsel %vm600, %v8420, 0.0
      %v8453 = vsel %vm600, %v8421, 0.0
      %v8454 = vsel %vm600, %v8422, 0.0
      %v8455 = vsel %vm600, %v8423, 0.0
      %v8456 = vsel %vm600, %v8424, 0.0
      %v8457 = vsel %vm600, %v8425, 0.0
      %v8458 = vsel %vm600, %v8426, 0.0
      %v8459 = vsel %vm600, %v8427, 0.0
      %v8460 = vsel %vm600, %v8428, 0.0
      %v8461 = vsel %vm600, %v8429, 0.0
      %v8462 = vsel %vm600, %v8430, 0.0
      %v8463 = vsel %vm600, %v8431, 0.0
      %v8464 = vsel %vm600, %v8432, 0.0
      %v8465 = vsel %vm600, %v8433, 0.0
      %v8466 = vsel %vm600, %v8434, 0.0
      %v8467 = vsel %vm600, %v8435, 0.0
      %v8468 = vsel %vm600, %v8436, 0.0
      %v8469 = vsel %vm600, %v8437, 0.0
      %v8470 = vsel %vm600, %v8438, 0.0
      %v8471 = vsel %vm600, %v8439, 0.0
      %8472 = vxpose.xlu0.b32.start [1/16] %v8440, 128
      %8473 = vxpose.xlu0.b32.cont [2/16] %v8441, 128
      %8474 = vxpose.xlu0.b32.cont [3/16] %v8442, 128
      %8475 = vxpose.xlu0.b32.cont [4/16] %v8443, 128
      %8476 = vxpose.xlu0.b32.cont [5/16] %v8444, 128
      %8477 = vxpose.xlu0.b32.cont [6/16] %v8445, 128
      %8478 = vxpose.xlu0.b32.cont [7/16] %v8446, 128
      %8479 = vxpose.xlu0.b32.cont [8/16] %v8447, 128
      %8480 = vxpose.xlu0.b32.cont [9/16] %v8448, 128
      %8481 = vxpose.xlu0.b32.cont [10/16] %v8449, 128
      %8482 = vxpose.xlu0.b32.cont [11/16] %v8450, 128
      %8483 = vxpose.xlu0.b32.cont [12/16] %v8451, 128
      %8484 = vxpose.xlu0.b32.cont [13/16] %v8452, 128
      %8485 = vxpose.xlu0.b32.cont [14/16] %v8453, 128
      %8486 = vxpose.xlu0.b32.cont [15/16] %v8454, 128
      %8487 = vxpose.xlu0.b32.end [16/16] %v8455, 128
      %v8488 = vpop.trf.xlu0
      %v8489 = vpop.trf.xlu0
      %v8490 = vpop.trf.xlu0
      %v8491 = vpop.trf.xlu0
      %v8492 = vpop.trf.xlu0
      %v8493 = vpop.trf.xlu0
      %v8494 = vpop.trf.xlu0
      %v8495 = vpop.trf.xlu0
      %v8496 = vpop.trf.xlu0
      %v8497 = vpop.trf.xlu0
      %v8498 = vpop.trf.xlu0
      %v8499 = vpop.trf.xlu0
      %v8500 = vpop.trf.xlu0
      %v8501 = vpop.trf.xlu0
      %v8502 = vpop.trf.xlu0
      %v8503 = vpop.trf.xlu0
      %8504 = vxpose.xlu0.b32.start [1/16] %v8456, 128
      %8505 = vxpose.xlu0.b32.cont [2/16] %v8457, 128
      %8506 = vxpose.xlu0.b32.cont [3/16] %v8458, 128
      %8507 = vxpose.xlu0.b32.cont [4/16] %v8459, 128
      %8508 = vxpose.xlu0.b32.cont [5/16] %v8460, 128
      %8509 = vxpose.xlu0.b32.cont [6/16] %v8461, 128
      %8510 = vxpose.xlu0.b32.cont [7/16] %v8462, 128
      %8511 = vxpose.xlu0.b32.cont [8/16] %v8463, 128
      %8512 = vxpose.xlu0.b32.cont [9/16] %v8464, 128
      %8513 = vxpose.xlu0.b32.cont [10/16] %v8465, 128
      %8514 = vxpose.xlu0.b32.cont [11/16] %v8466, 128
      %8515 = vxpose.xlu0.b32.cont [12/16] %v8467, 128
      %8516 = vxpose.xlu0.b32.cont [13/16] %v8468, 128
      %8517 = vxpose.xlu0.b32.cont [14/16] %v8469, 128
      %8518 = vxpose.xlu0.b32.cont [15/16] %v8470, 128
      %8519 = vxpose.xlu0.b32.end [16/16] %v8471, 128
      %v8520 = vpop.trf.xlu0
      %v8521 = vpop.trf.xlu0
      %v8522 = vpop.trf.xlu0
      %v8523 = vpop.trf.xlu0
      %v8524 = vpop.trf.xlu0
      %v8525 = vpop.trf.xlu0
      %v8526 = vpop.trf.xlu0
      %v8527 = vpop.trf.xlu0
      %v8528 = vpop.trf.xlu0
      %v8529 = vpop.trf.xlu0
      %v8530 = vpop.trf.xlu0
      %v8531 = vpop.trf.xlu0
      %v8532 = vpop.trf.xlu0
      %v8533 = vpop.trf.xlu0
      %v8534 = vpop.trf.xlu0
      %v8535 = vpop.trf.xlu0
      %v8536 = vld [vmem:[%s293] sm:$0xff]
      %v8537 = vld [vmem:[%s293 + $0x8] sm:$0xff]
      %v8538 = vld [vmem:[%s293 + $0x10] sm:$0xff]
      %v8539 = vld [vmem:[%s293 + $0x18] sm:$0xff]
      %v8540 = vld [vmem:[%s293 + $0x20] sm:$0xff]
      %v8541 = vld [vmem:[%s293 + $0x28] sm:$0xff]
      %v8542 = vld [vmem:[%s293 + $0x30] sm:$0xff]
      %v8543 = vld [vmem:[%s293 + $0x38] sm:$0xff]
      %v8544 = vadd.f32 %v8488, %v8536
      %v8545 = vadd.f32 %v8520, %v8537
      %v8546 = vadd.f32 %v8489, %v8538
      %v8547 = vadd.f32 %v8521, %v8539
      %v8548 = vadd.f32 %v8490, %v8540
      %v8549 = vadd.f32 %v8522, %v8541
      %v8550 = vadd.f32 %v8491, %v8542
      %v8551 = vadd.f32 %v8523, %v8543
      %8552 = vst [vmem:[%s298] sm:$0xff] %v8544
      %8553 = vst [vmem:[%s298 + $0x8] sm:$0xff] %v8545
      %8554 = vst [vmem:[%s298 + $0x10] sm:$0xff] %v8546
      %8555 = vst [vmem:[%s298 + $0x18] sm:$0xff] %v8547
      %8556 = vst [vmem:[%s298 + $0x20] sm:$0xff] %v8548
      %8557 = vst [vmem:[%s298 + $0x28] sm:$0xff] %v8549
      %8558 = vst [vmem:[%s298 + $0x30] sm:$0xff] %v8550
      %8559 = vst [vmem:[%s298 + $0x38] sm:$0xff] %v8551
      %p8560 = scmp.lt.s32.totalorder %s18, 1
      %s8561 = scalar_select %p8560, %s18, 1
      %s8562 = smul.addr %s8561, 8
      %s8563 = smul.addr %s8562, 8
      %s8564 = scalar_lea.vmem %s7, %s8563
      // Predicated region
      $region49: #{resblock_forward.1} parent=47 // pred_check
        %p8565 = pneg %p193
      $region50: #{resblock_forward.1} parent=47 // pred_check_branch
        %8567 = sbr.rel (%p8565) target = $region52
      $region51: #{resblock_forward.1} parent=47 // pred_region
        _
      $region52: #{resblock_forward.1} parent=47 // pred_fallthru
        _
    $region48: #{resblock_forward.1} parent=5 // pred_fallthru
      _
    %p8568 = scmp.le.s32.totalorder 2, %s13
    // Predicated region
    $region53: #{resblock_forward.1} parent=5 // pred_check
      %p8569 = pneg %p8568
    $region54: #{resblock_forward.1} parent=5 // pred_check_branch
      %8571 = sbr.rel (%p8569) target = $region56
    $region55: #{resblock_forward.1} parent=5 // pred_region
      %s8572 = ssub.s32 %s13, 2
      // Predicated region
      $region57: #{resblock_forward.1} parent=55 // pred_check
        %p8573 = pneg %p199
      $region58: #{resblock_forward.1} parent=55 // pred_check_branch
        %8575 = sbr.rel (%p8573) target = $region60
      $region59: #{resblock_forward.1} parent=55 // pred_region
        %p8576 = scmp.lt.s32.totalorder %s19, 1
        %s8577 = scalar_select %p8576, %s19, 1
        %s8578 = smul.addr %s8577, 8
        %s8579 = smul.addr %s8578, 8
        %s8580 = scalar_lea.vmem %s7, %s8579
      $region60: #{resblock_forward.1} parent=55 // pred_fallthru
        _
    $region56: #{resblock_forward.1} parent=5 // pred_fallthru
      _
  $region6: #{resblock_forward.1} parent=0 // loop_footer
    %s17 = sadd.s32 1, %s13
  $region7: #{resblock_forward.1} parent=0 // loop_footer_branch
    %12 = sbr.rel target = $region3
  $region8: #{resblock_forward.1} parent=0 // loop_exit
    _

</llo_original>
